<compile_context>
chip_gen: v7x
topology: tpu7x:2x2x1
jax: 0.10.0
libtpu: 0.0.40
codegen_flags: <defaults>
</compile_context>

<pallas_src>
import functools

import numpy as np
import jax
import jax.numpy as jnp
from jax.experimental import pallas as pl
from jax.experimental.pallas import tpu as pltpu


# =============================================================================
# In-kernel helpers.  All activations are channel-major (C, H*W): channels on
# sublanes, pixels on lanes.
# =============================================================================
def _col_masks(W, N):
    """Lane masks for the +/-1 column taps of a 'same' 3x3 conv on the
    flattened H*W axis (kills the wrap from the end of one row to the next)."""
    col = jax.lax.broadcasted_iota(jnp.int32, (1, N), 1) % W
    return {0: col != 0, 2: col != (W - 1)}


def _shift_flat(xb, s):
    """out[:, n] = xb[:, n + s], zero filled (no wraparound). xb: (C, N)."""
    C, N = xb.shape
    if s == 0:
        return xb
    if s > 0:
        return jnp.concatenate([xb[:, s:], jnp.zeros((C, s), xb.dtype)], axis=1)
    return jnp.concatenate([jnp.zeros((C, -s), xb.dtype), xb[:, :N + s]], axis=1)


def _conv3x3_relu(x, w, b, W, masks):
    """'same' 3x3 conv + ReLU as a single channel-major im2col matmul.

    x: (C, N) f32, N = H*W;  w: (Cout, 9*C) bf16;  b: (Cout, 1) f32.
    The H boundary is handled by the zero-filled flat shift (whole rows drop
    out); the W boundary needs the per-lane column mask on the +/-1 taps.
    """
    xb = x.astype(jnp.bfloat16)
    taps = []
    for ky in range(3):
        for kx in range(3):
            t = _shift_flat(xb, (ky - 1) * W + (kx - 1))
            if kx != 1:
                t = jnp.where(masks[kx], t, jnp.zeros_like(t))
            taps.append(t)
    cols = jnp.concatenate(taps, axis=0)                           # (9C, N) bf16
    y = jnp.dot(w, cols, preferred_element_type=jnp.float32) + b
    return jnp.maximum(y, 0.0)


def _mm(w, x, b=None):
    """1x1 conv: (Cout, Cin) bf16 @ (Cin, N) -> (Cout, N) f32."""
    y = jnp.dot(w, x.astype(jnp.bfloat16), preferred_element_type=jnp.float32)
    return y if b is None else y + b


def _nonlocal(theta, phi, gw, gw_b, x0):
    """Embedded-Gaussian non-local block, channel-major, W folded into g.

    theta, phi: (Ci, N); gw = (W@g) projection of x0: (C, N); x0: (C, N).
    Softmax is normalized after the PV matmul; the row sums come for free from
    an extra ones-row appended to gw.
    """
    C, N = x0.shape
    f = jnp.dot(theta.T.astype(jnp.bfloat16), phi.astype(jnp.bfloat16),
                preferred_element_type=jnp.float32)                # (N, N)
    e = jnp.exp(f - jnp.max(f, axis=-1, keepdims=True))
    gw_aug = jnp.concatenate(
        [gw.astype(jnp.bfloat16), jnp.ones((1, N), jnp.bfloat16)], axis=0)
    pv = jax.lax.dot_general(                                      # (C+1, N)
        gw_aug, e.astype(jnp.bfloat16),
        dimension_numbers=(((1,), (1,)), ((), ())),
        preferred_element_type=jnp.float32)
    inv = pl.reciprocal(pv[C:C + 1], approx=True)                  # 1/rowsum, (1,N)
    return pv[:C] * inv + gw_b + x0


def _ssem(x, cw, cb, c0, proj_w, proj_b, gw_b, ab_w, ab_b, W, masks, Ci):
    """Whole SSEM sub-module on one (C, N) activation; convs at indices c0..c0+3."""
    x_head = _conv3x3_relu(x, cw[c0], cb[c0], W, masks)            # head
    x_mb = _conv3x3_relu(x_head, cw[c0 + 1], cb[c0 + 1], W, masks) # MB[0]
    x_mb = _conv3x3_relu(x_mb, cw[c0 + 2], cb[c0 + 2], W, masks)   # MB[1]
    # AB = NonLocalBlock2D(x_head) -> 1x1 conv -> sigmoid.
    proj = _mm(proj_w, x_head, proj_b)                             # [theta;phi;Wg]
    z = _nonlocal(proj[:Ci], proj[Ci:2 * Ci], proj[2 * Ci:], gw_b, x_head)
    x_ab = jax.nn.sigmoid(_mm(ab_w, z, ab_b))
    x_tail = _conv3x3_relu(x_mb * x_ab, cw[c0 + 3], cb[c0 + 3], W, masks)
    return x + x_tail                                              # SSEM residual


# =============================================================================
# Fused kernel: whole BasicModule forward for one batch element.
# =============================================================================
def _basic_module_kernel(x_ref, conv_w_ref, conv_b_ref,
                         sproj_w_ref, sproj_b_ref, sgwb_ref,
                         sab_w_ref, sab_b_ref,
                         ht_w_ref, ht_b_ref, hpg_w_ref, hpg_b_ref, hgwb_ref,
                         down_ref, up_ref, o_ref, *, H, W, Ci):
    N = H * W
    W2 = W // 2
    masks = _col_masks(W, N)
    masks2 = _col_masks(W2, (H // 2) * W2)

    n_conv = conv_w_ref.shape[0]
    cw = [conv_w_ref[i] for i in range(n_conv)]
    cb = [conv_b_ref[i] for i in range(n_conv)]

    x_in = x_ref[0]                                                # (C, N) f32

    # ---- BasicModule head: 2 x (conv3x3 + ReLU) ----------------------------
    x = _conv3x3_relu(x_in, cw[0], cb[0], W, masks)
    x = _conv3x3_relu(x, cw[1], cb[1], W, masks)

    # ---- HSEM ---------------------------------------------------------------
    hsem_in = x
    # base-scale SSEM
    x_base = _ssem(x, cw, cb, 2, sproj_w_ref[0], sproj_b_ref[0], sgwb_ref[0],
                   sab_w_ref[0], sab_b_ref[0], W, masks, Ci)
    # bilinear 0.5x downsample (exact 2x2 mean, align_corners=False) as matmul
    x_dn = jnp.dot(hsem_in.astype(jnp.bfloat16), down_ref[...],
                   preferred_element_type=jnp.float32)             # (C, N/4)
    # down-scale SSEM
    x_dn = _ssem(x_dn, cw, cb, 6, sproj_w_ref[1], sproj_b_ref[1], sgwb_ref[1],
                 sab_w_ref[1], sab_b_ref[1], W2, masks2, Ci)
    # bilinear 2x upsample back to (H, W) as matmul
    x_up = jnp.dot(x_dn.astype(jnp.bfloat16), up_ref[...],
                   preferred_element_type=jnp.float32)             # (C, N)
    # AdjustedNonLocalBlock(x0=x_base, x1=x_up) + HSEM tail conv + residual
    theta = _mm(ht_w_ref[...], x_up, ht_b_ref[...])                # theta(x1)
    pg = _mm(hpg_w_ref[...], x_base, hpg_b_ref[...])               # [phi; W.g](x0)
    ms = _nonlocal(theta, pg[:Ci], pg[Ci:], hgwb_ref[...], x_base)
    ms = _conv3x3_relu(ms, cw[10], cb[10], W, masks)               # HSEM tail
    x = hsem_in + ms                                               # HSEM residual

    # ---- BasicModule tail: 2 x (conv3x3 + ReLU) + global residual ----------
    x = _conv3x3_relu(x, cw[11], cb[11], W, masks)
    x = _conv3x3_relu(x, cw[12], cb[12], W, masks)
    o_ref[0] = (x_in + x).astype(o_ref.dtype)


# =============================================================================
# pallas_call wrapper
# =============================================================================
def _const_index_map(ndim):
    def imap(b):
        return (0,) * ndim
    return imap


def _basic_module_nc(x_flat, p, H, W):
    """x_flat: (B, C, H*W) f32 (channel-major, lane-dense)."""
    B, C, N = x_flat.shape
    assert H % 2 == 0 and W % 2 == 0 and H * W == N
    Ci = p["ht_w"].shape[0]
    weights = (p["conv_w"], p["conv_b"], p["sproj_w"], p["sproj_b"], p["sgwb"],
               p["sab_w"], p["sab_b"], p["ht_w"], p["ht_b"], p["hpg_w"],
               p["hpg_b"], p["hgwb"], p["down_mat"], p["up_mat"])
    act_spec = pl.BlockSpec((1, C, N), lambda b: (b, 0, 0))
    in_specs = [act_spec] + [pl.BlockSpec(w.shape, _const_index_map(w.ndim))
                             for w in weights]
    return pl.pallas_call(
        functools.partial(_basic_module_kernel, H=H, W=W, Ci=Ci),
        out_shape=jax.ShapeDtypeStruct((B, C, N), x_flat.dtype),
        grid=(B,),
        in_specs=in_specs,
        out_specs=act_spec,
        compiler_params=pltpu.CompilerParams(
            dimension_semantics=("parallel",),        # B=2 -> both TCs on v7x
            vmem_limit_bytes=32 * 1024 * 1024),
    )(x_flat, *weights)


@jax.jit
def basic_module(x_nchw, params):
    """BasicModule forward.  x_nchw: (B, C, H, W) f32, same layout as PyTorch."""
    B, C, H, W = x_nchw.shape
    y = _basic_module_nc(x_nchw.reshape(B, C, H * W), params, H, W)  # free reshape
    return y.reshape(B, C, H, W)


# =============================================================================
# Deterministic parameter construction + packing into fused-kernel operands.
# =============================================================================
def _init_conv(key, kh, kw, cin, cout, scale=0.1):
    k1, k2 = jax.random.split(key)
    return {"w": scale * jax.random.normal(k1, (kh, kw, cin, cout), jnp.float32),
            "b": scale * jax.random.normal(k2, (cout,), jnp.float32)}


def _init_nonlocal(key, c, ci):
    kg, kt, kp, kw = jax.random.split(key, 4)
    return {"g": _init_conv(kg, 1, 1, c, ci),
            "theta": _init_conv(kt, 1, 1, c, ci),
            "phi": _init_conv(kp, 1, 1, c, ci),
            # PyTorch inits W to zero; random here so the attention path is exercised
            "W": _init_conv(kw, 1, 1, ci, c)}


def _init_ssem(key, c, ks):
    k = jax.random.split(key, 6)
    return {"head": _init_conv(k[0], ks, ks, c, c),
            "mb0": _init_conv(k[1], ks, ks, c, c),
            "mb1": _init_conv(k[2], ks, ks, c, c),
            "nl": _init_nonlocal(k[3], c, c // 2),
            "ab_conv": _init_conv(k[4], 1, 1, c, c),
            "tail": _init_conv(k[5], ks, ks, c, c)}


def init_basic_module(key, n_feats, kernel_size):
    k = jax.random.split(key, 8)
    return {"head0": _init_conv(k[0], kernel_size, kernel_size, n_feats, n_feats),
            "head1": _init_conv(k[1], kernel_size, kernel_size, n_feats, n_feats),
            "hsem": {"base": _init_ssem(k[2], n_feats, kernel_size),
                     "down": _init_ssem(k[3], n_feats, kernel_size),
                     "nl": _init_nonlocal(k[4], n_feats, n_feats // 2),
                     "tail": _init_conv(k[5], kernel_size, kernel_size, n_feats, n_feats)},
            "tail0": _init_conv(k[6], kernel_size, kernel_size, n_feats, n_feats),
            "tail1": _init_conv(k[7], kernel_size, kernel_size, n_feats, n_feats)}


def _cm_conv(p):
    """HWIO (kh,kw,cin,cout) conv -> channel-major ((cout, kh*kw*cin), (cout, 1))."""
    w = p["w"]
    kh, kw, cin, cout = w.shape
    return w.reshape(kh * kw * cin, cout).T, p["b"].reshape(-1, 1)


def _pack_nonlocal(nl):
    tw, tb = _cm_conv(nl["theta"])
    pw, pb = _cm_conv(nl["phi"])
    gw, gb = _cm_conv(nl["g"])
    ww, wb = _cm_conv(nl["W"])
    # Fold the trailing 1x1 W projection into g:  W(g(x) attn^T) == (W g)(x) attn^T;
    # softmax rows sum to 1, so g's bias folds into the constant  W g_b + W_b.
    return {"theta_w": tw, "theta_b": tb, "phi_w": pw, "phi_b": pb,
            "gW_w": ww @ gw, "gW_b": ww @ gb + wb}


def _pack_ssem(s):
    nl = _pack_nonlocal(s["nl"])
    c = nl["gW_w"].shape[0]
    convs = [_cm_conv(s[n]) for n in ("head", "mb0", "mb1", "tail")]
    abw, abb = _cm_conv(s["ab_conv"])
    return {"conv_w": [m[0] for m in convs],
            "conv_b": [m[1] for m in convs],
            "proj_w": jnp.concatenate([nl["theta_w"], nl["phi_w"], nl["gW_w"]], 0),
            "proj_b": jnp.concatenate([nl["theta_b"], nl["phi_b"],
                                       jnp.zeros((c, 1), jnp.float32)], 0),
            "gW_b": nl["gW_b"], "ab_w": abw, "ab_b": abb}


def _bilinear_1d(n_in, n_out):
    """PyTorch F.interpolate(mode='bilinear', align_corners=False), 1-D matrix."""
    m = np.zeros((n_in, n_out), np.float32)
    scale = n_in / n_out
    for i in range(n_out):
        src = (i + 0.5) * scale - 0.5
        lo = int(np.floor(src))
        t = src - lo
        m[min(max(lo, 0), n_in - 1), i] += 1.0 - t
        m[min(max(lo + 1, 0), n_in - 1), i] += t
    return m


def _resize_matrix(h_in, w_in, h_out, w_out):
    """(h_in*w_in, h_out*w_out) so that y_flat = x_flat @ M resizes (C,H,W) maps."""
    return np.kron(_bilinear_1d(h_in, h_out), _bilinear_1d(w_in, w_out))


def prepare_params(raw, H, W):
    """Pack raw (PyTorch-structured) params into fused-kernel operands (bf16 weights)."""
    hs = raw["hsem"]
    base, down = _pack_ssem(hs["base"]), _pack_ssem(hs["down"])
    hnl = _pack_nonlocal(hs["nl"])
    head = [_cm_conv(raw["head0"]), _cm_conv(raw["head1"])]
    tail = [_cm_conv(raw["tail0"]), _cm_conv(raw["tail1"])]
    htail = _cm_conv(hs["tail"])
    c = head[0][0].shape[0]

    conv_w = ([m[0] for m in head] + base["conv_w"] + down["conv_w"]
              + [htail[0]] + [m[0] for m in tail])
    conv_b = ([m[1] for m in head] + base["conv_b"] + down["conv_b"]
              + [htail[1]] + [m[1] for m in tail])

    bf16 = lambda a: jnp.asarray(a, jnp.bfloat16)
    f32 = lambda a: jnp.asarray(a, jnp.float32)
    return {
        "conv_w": bf16(jnp.stack(conv_w, 0)),                  # (13, C, 9C)
        "conv_b": f32(jnp.stack(conv_b, 0)),                   # (13, C, 1)
        "sproj_w": bf16(jnp.stack([base["proj_w"], down["proj_w"]], 0)),
        "sproj_b": f32(jnp.stack([base["proj_b"], down["proj_b"]], 0)),
        "sgwb": f32(jnp.stack([base["gW_b"], down["gW_b"]], 0)),
        "sab_w": bf16(jnp.stack([base["ab_w"], down["ab_w"]], 0)),
        "sab_b": f32(jnp.stack([base["ab_b"], down["ab_b"]], 0)),
        "ht_w": bf16(hnl["theta_w"]), "ht_b": f32(hnl["theta_b"]),
        "hpg_w": bf16(jnp.concatenate([hnl["phi_w"], hnl["gW_w"]], 0)),
        "hpg_b": f32(jnp.concatenate([hnl["phi_b"],
                                      jnp.zeros((c, 1), jnp.float32)], 0)),
        "hgwb": f32(hnl["gW_b"]),
        # bilinear resizes (align_corners=False) as constant matmul operands
        "down_mat": bf16(_resize_matrix(H, W, H // 2, W // 2)),
        "up_mat": bf16(_resize_matrix(H // 2, W // 2, H, W)),
    }


# =============================================================================
if __name__ == "__main__":
    n_feats, kernel_size = 16, 3
    B, H, W = 2, 16, 16

    key = jax.random.PRNGKey(0)
    kx, kp = jax.random.split(key)
    x = jax.random.normal(kx, (B, n_feats, H, W), jnp.float32)   # NCHW like PyTorch
    params = prepare_params(init_basic_module(kp, n_feats, kernel_size), H, W)

    y = basic_module(x, params)
    jax.block_until_ready(y)
    assert y.shape == (B, n_feats, H, W) and y.dtype == jnp.float32
    assert bool(jnp.isfinite(y).all())
    print("KERNEL_OK")
</pallas_src>

<mosaic_0001>
module attributes {stable_mosaic.version = 11 : i64} {
  func.func @_basic_module_kernel(%arg0: i32, %arg1: memref<1x16x256xf32, #tpu.memory_space<vmem>>, %arg2: memref<13x16x144xbf16, #tpu.memory_space<vmem>>, %arg3: memref<13x16x1xf32, #tpu.memory_space<vmem>>, %arg4: memref<2x32x16xbf16, #tpu.memory_space<vmem>>, %arg5: memref<2x32x1xf32, #tpu.memory_space<vmem>>, %arg6: memref<2x16x1xf32, #tpu.memory_space<vmem>>, %arg7: memref<2x16x16xbf16, #tpu.memory_space<vmem>>, %arg8: memref<2x16x1xf32, #tpu.memory_space<vmem>>, %arg9: memref<8x16xbf16, #tpu.memory_space<vmem>>, %arg10: memref<8x1xf32, #tpu.memory_space<vmem>>, %arg11: memref<24x16xbf16, #tpu.memory_space<vmem>>, %arg12: memref<24x1xf32, #tpu.memory_space<vmem>>, %arg13: memref<16x1xf32, #tpu.memory_space<vmem>>, %arg14: memref<256x64xbf16, #tpu.memory_space<vmem>>, %arg15: memref<64x256xbf16, #tpu.memory_space<vmem>>, %arg16: memref<1x16x256xf32, #tpu.memory_space<vmem>>) attributes {dimension_semantics = [#tpu.dimension_semantics<parallel>], iteration_bounds = array<i64: 2>, scalar_prefetch = 0 : i64, scratch_operands = 0 : i64, tpu.core_type = #tpu.core_type<tc>, window_params = [{transform_indices = @transform_0, window_bounds = array<i64: 1, 16, 256>}, {pipeline_mode = #tpu.pipeline_mode<synchronous>, transform_indices = @transform_1, window_bounds = array<i64: 13, 16, 144>}, {pipeline_mode = #tpu.pipeline_mode<synchronous>, transform_indices = @transform_2, window_bounds = array<i64: 13, 16, 1>}, {pipeline_mode = #tpu.pipeline_mode<synchronous>, transform_indices = @transform_3, window_bounds = array<i64: 2, 32, 16>}, {pipeline_mode = #tpu.pipeline_mode<synchronous>, transform_indices = @transform_4, window_bounds = array<i64: 2, 32, 1>}, {pipeline_mode = #tpu.pipeline_mode<synchronous>, transform_indices = @transform_5, window_bounds = array<i64: 2, 16, 1>}, {pipeline_mode = #tpu.pipeline_mode<synchronous>, transform_indices = @transform_6, window_bounds = array<i64: 2, 16, 16>}, {pipeline_mode = #tpu.pipeline_mode<synchronous>, transform_indices = @transform_7, window_bounds = array<i64: 2, 16, 1>}, {pipeline_mode = #tpu.pipeline_mode<synchronous>, transform_indices = @transform_8, window_bounds = array<i64: 8, 16>}, {pipeline_mode = #tpu.pipeline_mode<synchronous>, transform_indices = @transform_9, window_bounds = array<i64: 8, 1>}, {pipeline_mode = #tpu.pipeline_mode<synchronous>, transform_indices = @transform_10, window_bounds = array<i64: 24, 16>}, {pipeline_mode = #tpu.pipeline_mode<synchronous>, transform_indices = @transform_11, window_bounds = array<i64: 24, 1>}, {pipeline_mode = #tpu.pipeline_mode<synchronous>, transform_indices = @transform_12, window_bounds = array<i64: 16, 1>}, {pipeline_mode = #tpu.pipeline_mode<synchronous>, transform_indices = @transform_13, window_bounds = array<i64: 256, 64>}, {pipeline_mode = #tpu.pipeline_mode<synchronous>, transform_indices = @transform_14, window_bounds = array<i64: 64, 256>}, {transform_indices = @transform_15, window_bounds = array<i64: 1, 16, 256>}]} {
    %0 = tpu.iota {dimensions = array<i32: 1>} : vector<1x256xi32>
    %c16_i32 = arith.constant 16 : i32
    %c0_i32 = arith.constant 0 : i32
    %1 = arith.cmpi eq, %c16_i32, %c0_i32 : i32
    %c1_i32 = arith.constant 1 : i32
    %2 = arith.select %1, %c1_i32, %c16_i32 : i32
    %3 = vector.broadcast %2 : i32 to vector<1x256xi32>
    %4 = arith.remsi %0, %3 : vector<1x256xi32>
    %c0_i32_0 = arith.constant 0 : i32
    %5 = vector.broadcast %c0_i32_0 : i32 to vector<1x256xi32>
    %6 = arith.cmpi ne, %4, %5 : vector<1x256xi32>
    %c0_i32_1 = arith.constant 0 : i32
    %7 = vector.broadcast %c0_i32_1 : i32 to vector<1x256xi32>
    %8 = arith.cmpi slt, %4, %7 : vector<1x256xi32>
    %c0_i32_2 = arith.constant 0 : i32
    %9 = arith.cmpi slt, %2, %c0_i32_2 : i32
    %10 = vector.broadcast %9 : i1 to vector<1x256xi1>
    %11 = vector.broadcast %10 : vector<1x256xi1> to vector<1x256xi1>
    %12 = arith.xori %8, %11 : vector<1x256xi1>
    %13 = arith.andi %12, %6 : vector<1x256xi1>
    %14 = vector.broadcast %2 : i32 to vector<1x256xi32>
    %15 = arith.addi %4, %14 : vector<1x256xi32>
    %16 = arith.select %13, %15, %4 : vector<1x256xi1>, vector<1x256xi32>
    %c0_i32_3 = arith.constant 0 : i32
    %17 = vector.broadcast %c0_i32_3 : i32 to vector<1x256xi32>
    %18 = arith.cmpi ne, %16, %17 : vector<1x256xi32>
    %c15_i32 = arith.constant 15 : i32
    %19 = vector.broadcast %c15_i32 : i32 to vector<1x256xi32>
    %20 = arith.cmpi ne, %16, %19 : vector<1x256xi32>
    %21 = tpu.iota {dimensions = array<i32: 1>} : vector<1x64xi32>
    %c8_i32 = arith.constant 8 : i32
    %c0_i32_4 = arith.constant 0 : i32
    %22 = arith.cmpi eq, %c8_i32, %c0_i32_4 : i32
    %c1_i32_5 = arith.constant 1 : i32
    %23 = arith.select %22, %c1_i32_5, %c8_i32 : i32
    %24 = vector.broadcast %23 : i32 to vector<1x64xi32>
    %25 = arith.remsi %21, %24 : vector<1x64xi32>
    %c0_i32_6 = arith.constant 0 : i32
    %26 = vector.broadcast %c0_i32_6 : i32 to vector<1x64xi32>
    %27 = arith.cmpi ne, %25, %26 : vector<1x64xi32>
    %c0_i32_7 = arith.constant 0 : i32
    %28 = vector.broadcast %c0_i32_7 : i32 to vector<1x64xi32>
    %29 = arith.cmpi slt, %25, %28 : vector<1x64xi32>
    %c0_i32_8 = arith.constant 0 : i32
    %30 = arith.cmpi slt, %23, %c0_i32_8 : i32
    %31 = vector.broadcast %30 : i1 to vector<1x64xi1>
    %32 = vector.broadcast %31 : vector<1x64xi1> to vector<1x64xi1>
    %33 = arith.xori %29, %32 : vector<1x64xi1>
    %34 = arith.andi %33, %27 : vector<1x64xi1>
    %35 = vector.broadcast %23 : i32 to vector<1x64xi32>
    %36 = arith.addi %25, %35 : vector<1x64xi32>
    %37 = arith.select %34, %36, %25 : vector<1x64xi1>, vector<1x64xi32>
    %c0_i32_9 = arith.constant 0 : i32
    %38 = vector.broadcast %c0_i32_9 : i32 to vector<1x64xi32>
    %39 = arith.cmpi ne, %37, %38 : vector<1x64xi32>
    %c7_i32 = arith.constant 7 : i32
    %40 = vector.broadcast %c7_i32 : i32 to vector<1x64xi32>
    %41 = arith.cmpi ne, %37, %40 : vector<1x64xi32>
    %c0 = arith.constant 0 : index
    %c0_10 = arith.constant 0 : index
    %c0_11 = arith.constant 0 : index
    %42 = vector.load %arg2[%c0, %c0_10, %c0_11] : memref<13x16x144xbf16, #tpu.memory_space<vmem>>, vector<1x16x144xbf16>
    %43 = vector.shape_cast %42 : vector<1x16x144xbf16> to vector<16x144xbf16>
    %c1 = arith.constant 1 : index
    %c0_12 = arith.constant 0 : index
    %c0_13 = arith.constant 0 : index
    %44 = vector.load %arg2[%c1, %c0_12, %c0_13] : memref<13x16x144xbf16, #tpu.memory_space<vmem>>, vector<1x16x144xbf16>
    %45 = vector.shape_cast %44 : vector<1x16x144xbf16> to vector<16x144xbf16>
    %c2 = arith.constant 2 : index
    %c0_14 = arith.constant 0 : index
    %c0_15 = arith.constant 0 : index
    %46 = vector.load %arg2[%c2, %c0_14, %c0_15] : memref<13x16x144xbf16, #tpu.memory_space<vmem>>, vector<1x16x144xbf16>
    %47 = vector.shape_cast %46 : vector<1x16x144xbf16> to vector<16x144xbf16>
    %c3 = arith.constant 3 : index
    %c0_16 = arith.constant 0 : index
    %c0_17 = arith.constant 0 : index
    %48 = vector.load %arg2[%c3, %c0_16, %c0_17] : memref<13x16x144xbf16, #tpu.memory_space<vmem>>, vector<1x16x144xbf16>
    %49 = vector.shape_cast %48 : vector<1x16x144xbf16> to vector<16x144xbf16>
    %c4 = arith.constant 4 : index
    %c0_18 = arith.constant 0 : index
    %c0_19 = arith.constant 0 : index
    %50 = vector.load %arg2[%c4, %c0_18, %c0_19] : memref<13x16x144xbf16, #tpu.memory_space<vmem>>, vector<1x16x144xbf16>
    %51 = vector.shape_cast %50 : vector<1x16x144xbf16> to vector<16x144xbf16>
    %c5 = arith.constant 5 : index
    %c0_20 = arith.constant 0 : index
    %c0_21 = arith.constant 0 : index
    %52 = vector.load %arg2[%c5, %c0_20, %c0_21] : memref<13x16x144xbf16, #tpu.memory_space<vmem>>, vector<1x16x144xbf16>
    %53 = vector.shape_cast %52 : vector<1x16x144xbf16> to vector<16x144xbf16>
    %c6 = arith.constant 6 : index
    %c0_22 = arith.constant 0 : index
    %c0_23 = arith.constant 0 : index
    %54 = vector.load %arg2[%c6, %c0_22, %c0_23] : memref<13x16x144xbf16, #tpu.memory_space<vmem>>, vector<1x16x144xbf16>
    %55 = vector.shape_cast %54 : vector<1x16x144xbf16> to vector<16x144xbf16>
    %c7 = arith.constant 7 : index
    %c0_24 = arith.constant 0 : index
    %c0_25 = arith.constant 0 : index
    %56 = vector.load %arg2[%c7, %c0_24, %c0_25] : memref<13x16x144xbf16, #tpu.memory_space<vmem>>, vector<1x16x144xbf16>
    %57 = vector.shape_cast %56 : vector<1x16x144xbf16> to vector<16x144xbf16>
    %c8 = arith.constant 8 : index
    %c0_26 = arith.constant 0 : index
    %c0_27 = arith.constant 0 : index
    %58 = vector.load %arg2[%c8, %c0_26, %c0_27] : memref<13x16x144xbf16, #tpu.memory_space<vmem>>, vector<1x16x144xbf16>
    %59 = vector.shape_cast %58 : vector<1x16x144xbf16> to vector<16x144xbf16>
    %c9 = arith.constant 9 : index
    %c0_28 = arith.constant 0 : index
    %c0_29 = arith.constant 0 : index
    %60 = vector.load %arg2[%c9, %c0_28, %c0_29] : memref<13x16x144xbf16, #tpu.memory_space<vmem>>, vector<1x16x144xbf16>
    %61 = vector.shape_cast %60 : vector<1x16x144xbf16> to vector<16x144xbf16>
    %c10 = arith.constant 10 : index
    %c0_30 = arith.constant 0 : index
    %c0_31 = arith.constant 0 : index
    %62 = vector.load %arg2[%c10, %c0_30, %c0_31] : memref<13x16x144xbf16, #tpu.memory_space<vmem>>, vector<1x16x144xbf16>
    %63 = vector.shape_cast %62 : vector<1x16x144xbf16> to vector<16x144xbf16>
    %c11 = arith.constant 11 : index
    %c0_32 = arith.constant 0 : index
    %c0_33 = arith.constant 0 : index
    %64 = vector.load %arg2[%c11, %c0_32, %c0_33] : memref<13x16x144xbf16, #tpu.memory_space<vmem>>, vector<1x16x144xbf16>
    %65 = vector.shape_cast %64 : vector<1x16x144xbf16> to vector<16x144xbf16>
    %c12 = arith.constant 12 : index
    %c0_34 = arith.constant 0 : index
    %c0_35 = arith.constant 0 : index
    %66 = vector.load %arg2[%c12, %c0_34, %c0_35] : memref<13x16x144xbf16, #tpu.memory_space<vmem>>, vector<1x16x144xbf16>
    %67 = vector.shape_cast %66 : vector<1x16x144xbf16> to vector<16x144xbf16>
    %c0_36 = arith.constant 0 : index
    %c0_37 = arith.constant 0 : index
    %c0_38 = arith.constant 0 : index
    %68 = vector.load %arg3[%c0_36, %c0_37, %c0_38] : memref<13x16x1xf32, #tpu.memory_space<vmem>>, vector<1x16x1xf32>
    %69 = vector.shape_cast %68 : vector<1x16x1xf32> to vector<16x1xf32>
    %c1_39 = arith.constant 1 : index
    %c0_40 = arith.constant 0 : index
    %c0_41 = arith.constant 0 : index
    %70 = vector.load %arg3[%c1_39, %c0_40, %c0_41] : memref<13x16x1xf32, #tpu.memory_space<vmem>>, vector<1x16x1xf32>
    %71 = vector.shape_cast %70 : vector<1x16x1xf32> to vector<16x1xf32>
    %c2_42 = arith.constant 2 : index
    %c0_43 = arith.constant 0 : index
    %c0_44 = arith.constant 0 : index
    %72 = vector.load %arg3[%c2_42, %c0_43, %c0_44] : memref<13x16x1xf32, #tpu.memory_space<vmem>>, vector<1x16x1xf32>
    %73 = vector.shape_cast %72 : vector<1x16x1xf32> to vector<16x1xf32>
    %c3_45 = arith.constant 3 : index
    %c0_46 = arith.constant 0 : index
    %c0_47 = arith.constant 0 : index
    %74 = vector.load %arg3[%c3_45, %c0_46, %c0_47] : memref<13x16x1xf32, #tpu.memory_space<vmem>>, vector<1x16x1xf32>
    %75 = vector.shape_cast %74 : vector<1x16x1xf32> to vector<16x1xf32>
    %c4_48 = arith.constant 4 : index
    %c0_49 = arith.constant 0 : index
    %c0_50 = arith.constant 0 : index
    %76 = vector.load %arg3[%c4_48, %c0_49, %c0_50] : memref<13x16x1xf32, #tpu.memory_space<vmem>>, vector<1x16x1xf32>
    %77 = vector.shape_cast %76 : vector<1x16x1xf32> to vector<16x1xf32>
    %c5_51 = arith.constant 5 : index
    %c0_52 = arith.constant 0 : index
    %c0_53 = arith.constant 0 : index
    %78 = vector.load %arg3[%c5_51, %c0_52, %c0_53] : memref<13x16x1xf32, #tpu.memory_space<vmem>>, vector<1x16x1xf32>
    %79 = vector.shape_cast %78 : vector<1x16x1xf32> to vector<16x1xf32>
    %c6_54 = arith.constant 6 : index
    %c0_55 = arith.constant 0 : index
    %c0_56 = arith.constant 0 : index
    %80 = vector.load %arg3[%c6_54, %c0_55, %c0_56] : memref<13x16x1xf32, #tpu.memory_space<vmem>>, vector<1x16x1xf32>
    %81 = vector.shape_cast %80 : vector<1x16x1xf32> to vector<16x1xf32>
    %c7_57 = arith.constant 7 : index
    %c0_58 = arith.constant 0 : index
    %c0_59 = arith.constant 0 : index
    %82 = vector.load %arg3[%c7_57, %c0_58, %c0_59] : memref<13x16x1xf32, #tpu.memory_space<vmem>>, vector<1x16x1xf32>
    %83 = vector.shape_cast %82 : vector<1x16x1xf32> to vector<16x1xf32>
    %c8_60 = arith.constant 8 : index
    %c0_61 = arith.constant 0 : index
    %c0_62 = arith.constant 0 : index
    %84 = vector.load %arg3[%c8_60, %c0_61, %c0_62] : memref<13x16x1xf32, #tpu.memory_space<vmem>>, vector<1x16x1xf32>
    %85 = vector.shape_cast %84 : vector<1x16x1xf32> to vector<16x1xf32>
    %c9_63 = arith.constant 9 : index
    %c0_64 = arith.constant 0 : index
    %c0_65 = arith.constant 0 : index
    %86 = vector.load %arg3[%c9_63, %c0_64, %c0_65] : memref<13x16x1xf32, #tpu.memory_space<vmem>>, vector<1x16x1xf32>
    %87 = vector.shape_cast %86 : vector<1x16x1xf32> to vector<16x1xf32>
    %c10_66 = arith.constant 10 : index
    %c0_67 = arith.constant 0 : index
    %c0_68 = arith.constant 0 : index
    %88 = vector.load %arg3[%c10_66, %c0_67, %c0_68] : memref<13x16x1xf32, #tpu.memory_space<vmem>>, vector<1x16x1xf32>
    %89 = vector.shape_cast %88 : vector<1x16x1xf32> to vector<16x1xf32>
    %c11_69 = arith.constant 11 : index
    %c0_70 = arith.constant 0 : index
    %c0_71 = arith.constant 0 : index
    %90 = vector.load %arg3[%c11_69, %c0_70, %c0_71] : memref<13x16x1xf32, #tpu.memory_space<vmem>>, vector<1x16x1xf32>
    %91 = vector.shape_cast %90 : vector<1x16x1xf32> to vector<16x1xf32>
    %c12_72 = arith.constant 12 : index
    %c0_73 = arith.constant 0 : index
    %c0_74 = arith.constant 0 : index
    %92 = vector.load %arg3[%c12_72, %c0_73, %c0_74] : memref<13x16x1xf32, #tpu.memory_space<vmem>>, vector<1x16x1xf32>
    %93 = vector.shape_cast %92 : vector<1x16x1xf32> to vector<16x1xf32>
    %c0_75 = arith.constant 0 : index
    %c0_76 = arith.constant 0 : index
    %c0_77 = arith.constant 0 : index
    %94 = vector.load %arg1[%c0_75, %c0_76, %c0_77] : memref<1x16x256xf32, #tpu.memory_space<vmem>>, vector<1x16x256xf32>
    %95 = vector.shape_cast %94 : vector<1x16x256xf32> to vector<16x256xf32>
    %96 = arith.truncf %95 : vector<16x256xf32> to vector<16x256xbf16>
    %cst = arith.constant 0.000000e+00 : bf16
    %97 = vector.broadcast %cst : bf16 to vector<16x17xbf16>
    %98 = vector.extract_strided_slice %96 {offsets = [0, 0], sizes = [16, 239], strides = [1, 1]} : vector<16x256xbf16> to vector<16x239xbf16>
    %99 = tpu.concatenate %97, %98 in 1 : vector<16x17xbf16>, vector<16x239xbf16> -> vector<16x256xbf16>
    %cst_78 = arith.constant 0.000000e+00 : bf16
    %100 = vector.broadcast %cst_78 : bf16 to vector<16x256xbf16>
    %101 = vector.shape_cast %18 : vector<1x256xi1> to vector<1x256xi1>
    %102 = vector.broadcast %101 : vector<1x256xi1> to vector<16x256xi1>
    %103 = arith.select %102, %99, %100 : vector<16x256xi1>, vector<16x256xbf16>
    %cst_79 = arith.constant 0.000000e+00 : bf16
    %104 = vector.broadcast %cst_79 : bf16 to vector<16x16xbf16>
    %105 = vector.extract_strided_slice %96 {offsets = [0, 0], sizes = [16, 240], strides = [1, 1]} : vector<16x256xbf16> to vector<16x240xbf16>
    %106 = tpu.concatenate %104, %105 in 1 : vector<16x16xbf16>, vector<16x240xbf16> -> vector<16x256xbf16>
    %cst_80 = arith.constant 0.000000e+00 : bf16
    %107 = vector.broadcast %cst_80 : bf16 to vector<16x15xbf16>
    %108 = vector.extract_strided_slice %96 {offsets = [0, 0], sizes = [16, 241], strides = [1, 1]} : vector<16x256xbf16> to vector<16x241xbf16>
    %109 = tpu.concatenate %107, %108 in 1 : vector<16x15xbf16>, vector<16x241xbf16> -> vector<16x256xbf16>
    %cst_81 = arith.constant 0.000000e+00 : bf16
    %110 = vector.broadcast %cst_81 : bf16 to vector<16x256xbf16>
    %111 = vector.shape_cast %20 : vector<1x256xi1> to vector<1x256xi1>
    %112 = vector.broadcast %111 : vector<1x256xi1> to vector<16x256xi1>
    %113 = arith.select %112, %109, %110 : vector<16x256xi1>, vector<16x256xbf16>
    %cst_82 = arith.constant 0.000000e+00 : bf16
    %114 = vector.broadcast %cst_82 : bf16 to vector<16x1xbf16>
    %115 = vector.extract_strided_slice %96 {offsets = [0, 0], sizes = [16, 255], strides = [1, 1]} : vector<16x256xbf16> to vector<16x255xbf16>
    %116 = tpu.concatenate %114, %115 in 1 : vector<16x1xbf16>, vector<16x255xbf16> -> vector<16x256xbf16>
    %cst_83 = arith.constant 0.000000e+00 : bf16
    %117 = vector.broadcast %cst_83 : bf16 to vector<16x256xbf16>
    %118 = vector.shape_cast %18 : vector<1x256xi1> to vector<1x256xi1>
    %119 = vector.broadcast %118 : vector<1x256xi1> to vector<16x256xi1>
    %120 = arith.select %119, %116, %117 : vector<16x256xi1>, vector<16x256xbf16>
    %121 = vector.extract_strided_slice %96 {offsets = [0, 1], sizes = [16, 255], strides = [1, 1]} : vector<16x256xbf16> to vector<16x255xbf16>
    %cst_84 = arith.constant 0.000000e+00 : bf16
    %122 = vector.broadcast %cst_84 : bf16 to vector<16x1xbf16>
    %123 = tpu.concatenate %121, %122 in 1 : vector<16x255xbf16>, vector<16x1xbf16> -> vector<16x256xbf16>
    %cst_85 = arith.constant 0.000000e+00 : bf16
    %124 = vector.broadcast %cst_85 : bf16 to vector<16x256xbf16>
    %125 = vector.shape_cast %20 : vector<1x256xi1> to vector<1x256xi1>
    %126 = vector.broadcast %125 : vector<1x256xi1> to vector<16x256xi1>
    %127 = arith.select %126, %123, %124 : vector<16x256xi1>, vector<16x256xbf16>
    %128 = vector.extract_strided_slice %96 {offsets = [0, 15], sizes = [16, 241], strides = [1, 1]} : vector<16x256xbf16> to vector<16x241xbf16>
    %cst_86 = arith.constant 0.000000e+00 : bf16
    %129 = vector.broadcast %cst_86 : bf16 to vector<16x15xbf16>
    %130 = tpu.concatenate %128, %129 in 1 : vector<16x241xbf16>, vector<16x15xbf16> -> vector<16x256xbf16>
    %cst_87 = arith.constant 0.000000e+00 : bf16
    %131 = vector.broadcast %cst_87 : bf16 to vector<16x256xbf16>
    %132 = vector.shape_cast %18 : vector<1x256xi1> to vector<1x256xi1>
    %133 = vector.broadcast %132 : vector<1x256xi1> to vector<16x256xi1>
    %134 = arith.select %133, %130, %131 : vector<16x256xi1>, vector<16x256xbf16>
    %135 = vector.extract_strided_slice %96 {offsets = [0, 16], sizes = [16, 240], strides = [1, 1]} : vector<16x256xbf16> to vector<16x240xbf16>
    %cst_88 = arith.constant 0.000000e+00 : bf16
    %136 = vector.broadcast %cst_88 : bf16 to vector<16x16xbf16>
    %137 = tpu.concatenate %135, %136 in 1 : vector<16x240xbf16>, vector<16x16xbf16> -> vector<16x256xbf16>
    %138 = vector.extract_strided_slice %96 {offsets = [0, 17], sizes = [16, 239], strides = [1, 1]} : vector<16x256xbf16> to vector<16x239xbf16>
    %cst_89 = arith.constant 0.000000e+00 : bf16
    %139 = vector.broadcast %cst_89 : bf16 to vector<16x17xbf16>
    %140 = tpu.concatenate %138, %139 in 1 : vector<16x239xbf16>, vector<16x17xbf16> -> vector<16x256xbf16>
    %cst_90 = arith.constant 0.000000e+00 : bf16
    %141 = vector.broadcast %cst_90 : bf16 to vector<16x256xbf16>
    %142 = vector.shape_cast %20 : vector<1x256xi1> to vector<1x256xi1>
    %143 = vector.broadcast %142 : vector<1x256xi1> to vector<16x256xi1>
    %144 = arith.select %143, %140, %141 : vector<16x256xi1>, vector<16x256xbf16>
    %145 = tpu.concatenate %103, %106, %113, %120, %96, %127, %134, %137, %144 in 0 : vector<16x256xbf16>, vector<16x256xbf16>, vector<16x256xbf16>, vector<16x256xbf16>, vector<16x256xbf16>, vector<16x256xbf16>, vector<16x256xbf16>, vector<16x256xbf16>, vector<16x256xbf16> -> vector<144x256xbf16>
    %cst_91 = arith.constant dense<0.000000e+00> : vector<16x256xf32>
    %146 = tpu.matmul %43, %145, %cst_91 {dimension_numbers = #tpu.dot_dimension_numbers<[1], [0], [0], [1], [0, 0, 1, 1], [], []>} : vector<16x144xbf16>, vector<144x256xbf16>, vector<16x256xf32> -> vector<16x256xf32>
    %147 = vector.broadcast %69 : vector<16x1xf32> to vector<16x256xf32>
    %148 = arith.addf %146, %147 : vector<16x256xf32>
    %cst_92 = arith.constant 0.000000e+00 : f32
    %149 = vector.broadcast %cst_92 : f32 to vector<16x256xf32>
    %150 = arith.maximumf %148, %149 : vector<16x256xf32>
    %151 = arith.truncf %150 : vector<16x256xf32> to vector<16x256xbf16>
    %cst_93 = arith.constant 0.000000e+00 : bf16
    %152 = vector.broadcast %cst_93 : bf16 to vector<16x17xbf16>
    %153 = vector.extract_strided_slice %151 {offsets = [0, 0], sizes = [16, 239], strides = [1, 1]} : vector<16x256xbf16> to vector<16x239xbf16>
    %154 = tpu.concatenate %152, %153 in 1 : vector<16x17xbf16>, vector<16x239xbf16> -> vector<16x256xbf16>
    %cst_94 = arith.constant 0.000000e+00 : bf16
    %155 = vector.broadcast %cst_94 : bf16 to vector<16x256xbf16>
    %156 = vector.shape_cast %18 : vector<1x256xi1> to vector<1x256xi1>
    %157 = vector.broadcast %156 : vector<1x256xi1> to vector<16x256xi1>
    %158 = arith.select %157, %154, %155 : vector<16x256xi1>, vector<16x256xbf16>
    %cst_95 = arith.constant 0.000000e+00 : bf16
    %159 = vector.broadcast %cst_95 : bf16 to vector<16x16xbf16>
    %160 = vector.extract_strided_slice %151 {offsets = [0, 0], sizes = [16, 240], strides = [1, 1]} : vector<16x256xbf16> to vector<16x240xbf16>
    %161 = tpu.concatenate %159, %160 in 1 : vector<16x16xbf16>, vector<16x240xbf16> -> vector<16x256xbf16>
    %cst_96 = arith.constant 0.000000e+00 : bf16
    %162 = vector.broadcast %cst_96 : bf16 to vector<16x15xbf16>
    %163 = vector.extract_strided_slice %151 {offsets = [0, 0], sizes = [16, 241], strides = [1, 1]} : vector<16x256xbf16> to vector<16x241xbf16>
    %164 = tpu.concatenate %162, %163 in 1 : vector<16x15xbf16>, vector<16x241xbf16> -> vector<16x256xbf16>
    %cst_97 = arith.constant 0.000000e+00 : bf16
    %165 = vector.broadcast %cst_97 : bf16 to vector<16x256xbf16>
    %166 = vector.shape_cast %20 : vector<1x256xi1> to vector<1x256xi1>
    %167 = vector.broadcast %166 : vector<1x256xi1> to vector<16x256xi1>
    %168 = arith.select %167, %164, %165 : vector<16x256xi1>, vector<16x256xbf16>
    %cst_98 = arith.constant 0.000000e+00 : bf16
    %169 = vector.broadcast %cst_98 : bf16 to vector<16x1xbf16>
    %170 = vector.extract_strided_slice %151 {offsets = [0, 0], sizes = [16, 255], strides = [1, 1]} : vector<16x256xbf16> to vector<16x255xbf16>
    %171 = tpu.concatenate %169, %170 in 1 : vector<16x1xbf16>, vector<16x255xbf16> -> vector<16x256xbf16>
    %cst_99 = arith.constant 0.000000e+00 : bf16
    %172 = vector.broadcast %cst_99 : bf16 to vector<16x256xbf16>
    %173 = vector.shape_cast %18 : vector<1x256xi1> to vector<1x256xi1>
    %174 = vector.broadcast %173 : vector<1x256xi1> to vector<16x256xi1>
    %175 = arith.select %174, %171, %172 : vector<16x256xi1>, vector<16x256xbf16>
    %176 = vector.extract_strided_slice %151 {offsets = [0, 1], sizes = [16, 255], strides = [1, 1]} : vector<16x256xbf16> to vector<16x255xbf16>
    %cst_100 = arith.constant 0.000000e+00 : bf16
    %177 = vector.broadcast %cst_100 : bf16 to vector<16x1xbf16>
    %178 = tpu.concatenate %176, %177 in 1 : vector<16x255xbf16>, vector<16x1xbf16> -> vector<16x256xbf16>
    %cst_101 = arith.constant 0.000000e+00 : bf16
    %179 = vector.broadcast %cst_101 : bf16 to vector<16x256xbf16>
    %180 = vector.shape_cast %20 : vector<1x256xi1> to vector<1x256xi1>
    %181 = vector.broadcast %180 : vector<1x256xi1> to vector<16x256xi1>
    %182 = arith.select %181, %178, %179 : vector<16x256xi1>, vector<16x256xbf16>
    %183 = vector.extract_strided_slice %151 {offsets = [0, 15], sizes = [16, 241], strides = [1, 1]} : vector<16x256xbf16> to vector<16x241xbf16>
    %cst_102 = arith.constant 0.000000e+00 : bf16
    %184 = vector.broadcast %cst_102 : bf16 to vector<16x15xbf16>
    %185 = tpu.concatenate %183, %184 in 1 : vector<16x241xbf16>, vector<16x15xbf16> -> vector<16x256xbf16>
    %cst_103 = arith.constant 0.000000e+00 : bf16
    %186 = vector.broadcast %cst_103 : bf16 to vector<16x256xbf16>
    %187 = vector.shape_cast %18 : vector<1x256xi1> to vector<1x256xi1>
    %188 = vector.broadcast %187 : vector<1x256xi1> to vector<16x256xi1>
    %189 = arith.select %188, %185, %186 : vector<16x256xi1>, vector<16x256xbf16>
    %190 = vector.extract_strided_slice %151 {offsets = [0, 16], sizes = [16, 240], strides = [1, 1]} : vector<16x256xbf16> to vector<16x240xbf16>
    %cst_104 = arith.constant 0.000000e+00 : bf16
    %191 = vector.broadcast %cst_104 : bf16 to vector<16x16xbf16>
    %192 = tpu.concatenate %190, %191 in 1 : vector<16x240xbf16>, vector<16x16xbf16> -> vector<16x256xbf16>
    %193 = vector.extract_strided_slice %151 {offsets = [0, 17], sizes = [16, 239], strides = [1, 1]} : vector<16x256xbf16> to vector<16x239xbf16>
    %cst_105 = arith.constant 0.000000e+00 : bf16
    %194 = vector.broadcast %cst_105 : bf16 to vector<16x17xbf16>
    %195 = tpu.concatenate %193, %194 in 1 : vector<16x239xbf16>, vector<16x17xbf16> -> vector<16x256xbf16>
    %cst_106 = arith.constant 0.000000e+00 : bf16
    %196 = vector.broadcast %cst_106 : bf16 to vector<16x256xbf16>
    %197 = vector.shape_cast %20 : vector<1x256xi1> to vector<1x256xi1>
    %198 = vector.broadcast %197 : vector<1x256xi1> to vector<16x256xi1>
    %199 = arith.select %198, %195, %196 : vector<16x256xi1>, vector<16x256xbf16>
    %200 = tpu.concatenate %158, %161, %168, %175, %151, %182, %189, %192, %199 in 0 : vector<16x256xbf16>, vector<16x256xbf16>, vector<16x256xbf16>, vector<16x256xbf16>, vector<16x256xbf16>, vector<16x256xbf16>, vector<16x256xbf16>, vector<16x256xbf16>, vector<16x256xbf16> -> vector<144x256xbf16>
    %cst_107 = arith.constant dense<0.000000e+00> : vector<16x256xf32>
    %201 = tpu.matmul %45, %200, %cst_107 {dimension_numbers = #tpu.dot_dimension_numbers<[1], [0], [0], [1], [0, 0, 1, 1], [], []>} : vector<16x144xbf16>, vector<144x256xbf16>, vector<16x256xf32> -> vector<16x256xf32>
    %202 = vector.broadcast %71 : vector<16x1xf32> to vector<16x256xf32>
    %203 = arith.addf %201, %202 : vector<16x256xf32>
    %cst_108 = arith.constant 0.000000e+00 : f32
    %204 = vector.broadcast %cst_108 : f32 to vector<16x256xf32>
    %205 = arith.maximumf %203, %204 : vector<16x256xf32>
    %c0_109 = arith.constant 0 : index
    %c0_110 = arith.constant 0 : index
    %c0_111 = arith.constant 0 : index
    %206 = vector.load %arg4[%c0_109, %c0_110, %c0_111] : memref<2x32x16xbf16, #tpu.memory_space<vmem>>, vector<1x32x16xbf16>
    %207 = vector.shape_cast %206 : vector<1x32x16xbf16> to vector<32x16xbf16>
    %c0_112 = arith.constant 0 : index
    %c0_113 = arith.constant 0 : index
    %c0_114 = arith.constant 0 : index
    %208 = vector.load %arg5[%c0_112, %c0_113, %c0_114] : memref<2x32x1xf32, #tpu.memory_space<vmem>>, vector<1x32x1xf32>
    %209 = vector.shape_cast %208 : vector<1x32x1xf32> to vector<32x1xf32>
    %c0_115 = arith.constant 0 : index
    %c0_116 = arith.constant 0 : index
    %c0_117 = arith.constant 0 : index
    %210 = vector.load %arg6[%c0_115, %c0_116, %c0_117] : memref<2x16x1xf32, #tpu.memory_space<vmem>>, vector<1x16x1xf32>
    %211 = vector.shape_cast %210 : vector<1x16x1xf32> to vector<16x1xf32>
    %c0_118 = arith.constant 0 : index
    %c0_119 = arith.constant 0 : index
    %c0_120 = arith.constant 0 : index
    %212 = vector.load %arg7[%c0_118, %c0_119, %c0_120] : memref<2x16x16xbf16, #tpu.memory_space<vmem>>, vector<1x16x16xbf16>
    %213 = vector.shape_cast %212 : vector<1x16x16xbf16> to vector<16x16xbf16>
    %c0_121 = arith.constant 0 : index
    %c0_122 = arith.constant 0 : index
    %c0_123 = arith.constant 0 : index
    %214 = vector.load %arg8[%c0_121, %c0_122, %c0_123] : memref<2x16x1xf32, #tpu.memory_space<vmem>>, vector<1x16x1xf32>
    %215 = vector.shape_cast %214 : vector<1x16x1xf32> to vector<16x1xf32>
    %216 = arith.truncf %205 : vector<16x256xf32> to vector<16x256xbf16>
    %cst_124 = arith.constant 0.000000e+00 : bf16
    %217 = vector.broadcast %cst_124 : bf16 to vector<16x17xbf16>
    %218 = vector.extract_strided_slice %216 {offsets = [0, 0], sizes = [16, 239], strides = [1, 1]} : vector<16x256xbf16> to vector<16x239xbf16>
    %219 = tpu.concatenate %217, %218 in 1 : vector<16x17xbf16>, vector<16x239xbf16> -> vector<16x256xbf16>
    %cst_125 = arith.constant 0.000000e+00 : bf16
    %220 = vector.broadcast %cst_125 : bf16 to vector<16x256xbf16>
    %221 = vector.shape_cast %18 : vector<1x256xi1> to vector<1x256xi1>
    %222 = vector.broadcast %221 : vector<1x256xi1> to vector<16x256xi1>
    %223 = arith.select %222, %219, %220 : vector<16x256xi1>, vector<16x256xbf16>
    %cst_126 = arith.constant 0.000000e+00 : bf16
    %224 = vector.broadcast %cst_126 : bf16 to vector<16x16xbf16>
    %225 = vector.extract_strided_slice %216 {offsets = [0, 0], sizes = [16, 240], strides = [1, 1]} : vector<16x256xbf16> to vector<16x240xbf16>
    %226 = tpu.concatenate %224, %225 in 1 : vector<16x16xbf16>, vector<16x240xbf16> -> vector<16x256xbf16>
    %cst_127 = arith.constant 0.000000e+00 : bf16
    %227 = vector.broadcast %cst_127 : bf16 to vector<16x15xbf16>
    %228 = vector.extract_strided_slice %216 {offsets = [0, 0], sizes = [16, 241], strides = [1, 1]} : vector<16x256xbf16> to vector<16x241xbf16>
    %229 = tpu.concatenate %227, %228 in 1 : vector<16x15xbf16>, vector<16x241xbf16> -> vector<16x256xbf16>
    %cst_128 = arith.constant 0.000000e+00 : bf16
    %230 = vector.broadcast %cst_128 : bf16 to vector<16x256xbf16>
    %231 = vector.shape_cast %20 : vector<1x256xi1> to vector<1x256xi1>
    %232 = vector.broadcast %231 : vector<1x256xi1> to vector<16x256xi1>
    %233 = arith.select %232, %229, %230 : vector<16x256xi1>, vector<16x256xbf16>
    %cst_129 = arith.constant 0.000000e+00 : bf16
    %234 = vector.broadcast %cst_129 : bf16 to vector<16x1xbf16>
    %235 = vector.extract_strided_slice %216 {offsets = [0, 0], sizes = [16, 255], strides = [1, 1]} : vector<16x256xbf16> to vector<16x255xbf16>
    %236 = tpu.concatenate %234, %235 in 1 : vector<16x1xbf16>, vector<16x255xbf16> -> vector<16x256xbf16>
    %cst_130 = arith.constant 0.000000e+00 : bf16
    %237 = vector.broadcast %cst_130 : bf16 to vector<16x256xbf16>
    %238 = vector.shape_cast %18 : vector<1x256xi1> to vector<1x256xi1>
    %239 = vector.broadcast %238 : vector<1x256xi1> to vector<16x256xi1>
    %240 = arith.select %239, %236, %237 : vector<16x256xi1>, vector<16x256xbf16>
    %241 = vector.extract_strided_slice %216 {offsets = [0, 1], sizes = [16, 255], strides = [1, 1]} : vector<16x256xbf16> to vector<16x255xbf16>
    %cst_131 = arith.constant 0.000000e+00 : bf16
    %242 = vector.broadcast %cst_131 : bf16 to vector<16x1xbf16>
    %243 = tpu.concatenate %241, %242 in 1 : vector<16x255xbf16>, vector<16x1xbf16> -> vector<16x256xbf16>
    %cst_132 = arith.constant 0.000000e+00 : bf16
    %244 = vector.broadcast %cst_132 : bf16 to vector<16x256xbf16>
    %245 = vector.shape_cast %20 : vector<1x256xi1> to vector<1x256xi1>
    %246 = vector.broadcast %245 : vector<1x256xi1> to vector<16x256xi1>
    %247 = arith.select %246, %243, %244 : vector<16x256xi1>, vector<16x256xbf16>
    %248 = vector.extract_strided_slice %216 {offsets = [0, 15], sizes = [16, 241], strides = [1, 1]} : vector<16x256xbf16> to vector<16x241xbf16>
    %cst_133 = arith.constant 0.000000e+00 : bf16
    %249 = vector.broadcast %cst_133 : bf16 to vector<16x15xbf16>
    %250 = tpu.concatenate %248, %249 in 1 : vector<16x241xbf16>, vector<16x15xbf16> -> vector<16x256xbf16>
    %cst_134 = arith.constant 0.000000e+00 : bf16
    %251 = vector.broadcast %cst_134 : bf16 to vector<16x256xbf16>
    %252 = vector.shape_cast %18 : vector<1x256xi1> to vector<1x256xi1>
    %253 = vector.broadcast %252 : vector<1x256xi1> to vector<16x256xi1>
    %254 = arith.select %253, %250, %251 : vector<16x256xi1>, vector<16x256xbf16>
    %255 = vector.extract_strided_slice %216 {offsets = [0, 16], sizes = [16, 240], strides = [1, 1]} : vector<16x256xbf16> to vector<16x240xbf16>
    %cst_135 = arith.constant 0.000000e+00 : bf16
    %256 = vector.broadcast %cst_135 : bf16 to vector<16x16xbf16>
    %257 = tpu.concatenate %255, %256 in 1 : vector<16x240xbf16>, vector<16x16xbf16> -> vector<16x256xbf16>
    %258 = vector.extract_strided_slice %216 {offsets = [0, 17], sizes = [16, 239], strides = [1, 1]} : vector<16x256xbf16> to vector<16x239xbf16>
    %cst_136 = arith.constant 0.000000e+00 : bf16
    %259 = vector.broadcast %cst_136 : bf16 to vector<16x17xbf16>
    %260 = tpu.concatenate %258, %259 in 1 : vector<16x239xbf16>, vector<16x17xbf16> -> vector<16x256xbf16>
    %cst_137 = arith.constant 0.000000e+00 : bf16
    %261 = vector.broadcast %cst_137 : bf16 to vector<16x256xbf16>
    %262 = vector.shape_cast %20 : vector<1x256xi1> to vector<1x256xi1>
    %263 = vector.broadcast %262 : vector<1x256xi1> to vector<16x256xi1>
    %264 = arith.select %263, %260, %261 : vector<16x256xi1>, vector<16x256xbf16>
    %265 = tpu.concatenate %223, %226, %233, %240, %216, %247, %254, %257, %264 in 0 : vector<16x256xbf16>, vector<16x256xbf16>, vector<16x256xbf16>, vector<16x256xbf16>, vector<16x256xbf16>, vector<16x256xbf16>, vector<16x256xbf16>, vector<16x256xbf16>, vector<16x256xbf16> -> vector<144x256xbf16>
    %cst_138 = arith.constant dense<0.000000e+00> : vector<16x256xf32>
    %266 = tpu.matmul %47, %265, %cst_138 {dimension_numbers = #tpu.dot_dimension_numbers<[1], [0], [0], [1], [0, 0, 1, 1], [], []>} : vector<16x144xbf16>, vector<144x256xbf16>, vector<16x256xf32> -> vector<16x256xf32>
    %267 = vector.broadcast %73 : vector<16x1xf32> to vector<16x256xf32>
    %268 = arith.addf %266, %267 : vector<16x256xf32>
    %cst_139 = arith.constant 0.000000e+00 : f32
    %269 = vector.broadcast %cst_139 : f32 to vector<16x256xf32>
    %270 = arith.maximumf %268, %269 : vector<16x256xf32>
    %271 = arith.truncf %270 : vector<16x256xf32> to vector<16x256xbf16>
    %cst_140 = arith.constant 0.000000e+00 : bf16
    %272 = vector.broadcast %cst_140 : bf16 to vector<16x17xbf16>
    %273 = vector.extract_strided_slice %271 {offsets = [0, 0], sizes = [16, 239], strides = [1, 1]} : vector<16x256xbf16> to vector<16x239xbf16>
    %274 = tpu.concatenate %272, %273 in 1 : vector<16x17xbf16>, vector<16x239xbf16> -> vector<16x256xbf16>
    %cst_141 = arith.constant 0.000000e+00 : bf16
    %275 = vector.broadcast %cst_141 : bf16 to vector<16x256xbf16>
    %276 = vector.shape_cast %18 : vector<1x256xi1> to vector<1x256xi1>
    %277 = vector.broadcast %276 : vector<1x256xi1> to vector<16x256xi1>
    %278 = arith.select %277, %274, %275 : vector<16x256xi1>, vector<16x256xbf16>
    %cst_142 = arith.constant 0.000000e+00 : bf16
    %279 = vector.broadcast %cst_142 : bf16 to vector<16x16xbf16>
    %280 = vector.extract_strided_slice %271 {offsets = [0, 0], sizes = [16, 240], strides = [1, 1]} : vector<16x256xbf16> to vector<16x240xbf16>
    %281 = tpu.concatenate %279, %280 in 1 : vector<16x16xbf16>, vector<16x240xbf16> -> vector<16x256xbf16>
    %cst_143 = arith.constant 0.000000e+00 : bf16
    %282 = vector.broadcast %cst_143 : bf16 to vector<16x15xbf16>
    %283 = vector.extract_strided_slice %271 {offsets = [0, 0], sizes = [16, 241], strides = [1, 1]} : vector<16x256xbf16> to vector<16x241xbf16>
    %284 = tpu.concatenate %282, %283 in 1 : vector<16x15xbf16>, vector<16x241xbf16> -> vector<16x256xbf16>
    %cst_144 = arith.constant 0.000000e+00 : bf16
    %285 = vector.broadcast %cst_144 : bf16 to vector<16x256xbf16>
    %286 = vector.shape_cast %20 : vector<1x256xi1> to vector<1x256xi1>
    %287 = vector.broadcast %286 : vector<1x256xi1> to vector<16x256xi1>
    %288 = arith.select %287, %284, %285 : vector<16x256xi1>, vector<16x256xbf16>
    %cst_145 = arith.constant 0.000000e+00 : bf16
    %289 = vector.broadcast %cst_145 : bf16 to vector<16x1xbf16>
    %290 = vector.extract_strided_slice %271 {offsets = [0, 0], sizes = [16, 255], strides = [1, 1]} : vector<16x256xbf16> to vector<16x255xbf16>
    %291 = tpu.concatenate %289, %290 in 1 : vector<16x1xbf16>, vector<16x255xbf16> -> vector<16x256xbf16>
    %cst_146 = arith.constant 0.000000e+00 : bf16
    %292 = vector.broadcast %cst_146 : bf16 to vector<16x256xbf16>
    %293 = vector.shape_cast %18 : vector<1x256xi1> to vector<1x256xi1>
    %294 = vector.broadcast %293 : vector<1x256xi1> to vector<16x256xi1>
    %295 = arith.select %294, %291, %292 : vector<16x256xi1>, vector<16x256xbf16>
    %296 = vector.extract_strided_slice %271 {offsets = [0, 1], sizes = [16, 255], strides = [1, 1]} : vector<16x256xbf16> to vector<16x255xbf16>
    %cst_147 = arith.constant 0.000000e+00 : bf16
    %297 = vector.broadcast %cst_147 : bf16 to vector<16x1xbf16>
    %298 = tpu.concatenate %296, %297 in 1 : vector<16x255xbf16>, vector<16x1xbf16> -> vector<16x256xbf16>
    %cst_148 = arith.constant 0.000000e+00 : bf16
    %299 = vector.broadcast %cst_148 : bf16 to vector<16x256xbf16>
    %300 = vector.shape_cast %20 : vector<1x256xi1> to vector<1x256xi1>
    %301 = vector.broadcast %300 : vector<1x256xi1> to vector<16x256xi1>
    %302 = arith.select %301, %298, %299 : vector<16x256xi1>, vector<16x256xbf16>
    %303 = vector.extract_strided_slice %271 {offsets = [0, 15], sizes = [16, 241], strides = [1, 1]} : vector<16x256xbf16> to vector<16x241xbf16>
    %cst_149 = arith.constant 0.000000e+00 : bf16
    %304 = vector.broadcast %cst_149 : bf16 to vector<16x15xbf16>
    %305 = tpu.concatenate %303, %304 in 1 : vector<16x241xbf16>, vector<16x15xbf16> -> vector<16x256xbf16>
    %cst_150 = arith.constant 0.000000e+00 : bf16
    %306 = vector.broadcast %cst_150 : bf16 to vector<16x256xbf16>
    %307 = vector.shape_cast %18 : vector<1x256xi1> to vector<1x256xi1>
    %308 = vector.broadcast %307 : vector<1x256xi1> to vector<16x256xi1>
    %309 = arith.select %308, %305, %306 : vector<16x256xi1>, vector<16x256xbf16>
    %310 = vector.extract_strided_slice %271 {offsets = [0, 16], sizes = [16, 240], strides = [1, 1]} : vector<16x256xbf16> to vector<16x240xbf16>
    %cst_151 = arith.constant 0.000000e+00 : bf16
    %311 = vector.broadcast %cst_151 : bf16 to vector<16x16xbf16>
    %312 = tpu.concatenate %310, %311 in 1 : vector<16x240xbf16>, vector<16x16xbf16> -> vector<16x256xbf16>
    %313 = vector.extract_strided_slice %271 {offsets = [0, 17], sizes = [16, 239], strides = [1, 1]} : vector<16x256xbf16> to vector<16x239xbf16>
    %cst_152 = arith.constant 0.000000e+00 : bf16
    %314 = vector.broadcast %cst_152 : bf16 to vector<16x17xbf16>
    %315 = tpu.concatenate %313, %314 in 1 : vector<16x239xbf16>, vector<16x17xbf16> -> vector<16x256xbf16>
    %cst_153 = arith.constant 0.000000e+00 : bf16
    %316 = vector.broadcast %cst_153 : bf16 to vector<16x256xbf16>
    %317 = vector.shape_cast %20 : vector<1x256xi1> to vector<1x256xi1>
    %318 = vector.broadcast %317 : vector<1x256xi1> to vector<16x256xi1>
    %319 = arith.select %318, %315, %316 : vector<16x256xi1>, vector<16x256xbf16>
    %320 = tpu.concatenate %278, %281, %288, %295, %271, %302, %309, %312, %319 in 0 : vector<16x256xbf16>, vector<16x256xbf16>, vector<16x256xbf16>, vector<16x256xbf16>, vector<16x256xbf16>, vector<16x256xbf16>, vector<16x256xbf16>, vector<16x256xbf16>, vector<16x256xbf16> -> vector<144x256xbf16>
    %cst_154 = arith.constant dense<0.000000e+00> : vector<16x256xf32>
    %321 = tpu.matmul %49, %320, %cst_154 {dimension_numbers = #tpu.dot_dimension_numbers<[1], [0], [0], [1], [0, 0, 1, 1], [], []>} : vector<16x144xbf16>, vector<144x256xbf16>, vector<16x256xf32> -> vector<16x256xf32>
    %322 = vector.broadcast %75 : vector<16x1xf32> to vector<16x256xf32>
    %323 = arith.addf %321, %322 : vector<16x256xf32>
    %cst_155 = arith.constant 0.000000e+00 : f32
    %324 = vector.broadcast %cst_155 : f32 to vector<16x256xf32>
    %325 = arith.maximumf %323, %324 : vector<16x256xf32>
    %326 = arith.truncf %325 : vector<16x256xf32> to vector<16x256xbf16>
    %cst_156 = arith.constant 0.000000e+00 : bf16
    %327 = vector.broadcast %cst_156 : bf16 to vector<16x17xbf16>
    %328 = vector.extract_strided_slice %326 {offsets = [0, 0], sizes = [16, 239], strides = [1, 1]} : vector<16x256xbf16> to vector<16x239xbf16>
    %329 = tpu.concatenate %327, %328 in 1 : vector<16x17xbf16>, vector<16x239xbf16> -> vector<16x256xbf16>
    %cst_157 = arith.constant 0.000000e+00 : bf16
    %330 = vector.broadcast %cst_157 : bf16 to vector<16x256xbf16>
    %331 = vector.shape_cast %18 : vector<1x256xi1> to vector<1x256xi1>
    %332 = vector.broadcast %331 : vector<1x256xi1> to vector<16x256xi1>
    %333 = arith.select %332, %329, %330 : vector<16x256xi1>, vector<16x256xbf16>
    %cst_158 = arith.constant 0.000000e+00 : bf16
    %334 = vector.broadcast %cst_158 : bf16 to vector<16x16xbf16>
    %335 = vector.extract_strided_slice %326 {offsets = [0, 0], sizes = [16, 240], strides = [1, 1]} : vector<16x256xbf16> to vector<16x240xbf16>
    %336 = tpu.concatenate %334, %335 in 1 : vector<16x16xbf16>, vector<16x240xbf16> -> vector<16x256xbf16>
    %cst_159 = arith.constant 0.000000e+00 : bf16
    %337 = vector.broadcast %cst_159 : bf16 to vector<16x15xbf16>
    %338 = vector.extract_strided_slice %326 {offsets = [0, 0], sizes = [16, 241], strides = [1, 1]} : vector<16x256xbf16> to vector<16x241xbf16>
    %339 = tpu.concatenate %337, %338 in 1 : vector<16x15xbf16>, vector<16x241xbf16> -> vector<16x256xbf16>
    %cst_160 = arith.constant 0.000000e+00 : bf16
    %340 = vector.broadcast %cst_160 : bf16 to vector<16x256xbf16>
    %341 = vector.shape_cast %20 : vector<1x256xi1> to vector<1x256xi1>
    %342 = vector.broadcast %341 : vector<1x256xi1> to vector<16x256xi1>
    %343 = arith.select %342, %339, %340 : vector<16x256xi1>, vector<16x256xbf16>
    %cst_161 = arith.constant 0.000000e+00 : bf16
    %344 = vector.broadcast %cst_161 : bf16 to vector<16x1xbf16>
    %345 = vector.extract_strided_slice %326 {offsets = [0, 0], sizes = [16, 255], strides = [1, 1]} : vector<16x256xbf16> to vector<16x255xbf16>
    %346 = tpu.concatenate %344, %345 in 1 : vector<16x1xbf16>, vector<16x255xbf16> -> vector<16x256xbf16>
    %cst_162 = arith.constant 0.000000e+00 : bf16
    %347 = vector.broadcast %cst_162 : bf16 to vector<16x256xbf16>
    %348 = vector.shape_cast %18 : vector<1x256xi1> to vector<1x256xi1>
    %349 = vector.broadcast %348 : vector<1x256xi1> to vector<16x256xi1>
    %350 = arith.select %349, %346, %347 : vector<16x256xi1>, vector<16x256xbf16>
    %351 = vector.extract_strided_slice %326 {offsets = [0, 1], sizes = [16, 255], strides = [1, 1]} : vector<16x256xbf16> to vector<16x255xbf16>
    %cst_163 = arith.constant 0.000000e+00 : bf16
    %352 = vector.broadcast %cst_163 : bf16 to vector<16x1xbf16>
    %353 = tpu.concatenate %351, %352 in 1 : vector<16x255xbf16>, vector<16x1xbf16> -> vector<16x256xbf16>
    %cst_164 = arith.constant 0.000000e+00 : bf16
    %354 = vector.broadcast %cst_164 : bf16 to vector<16x256xbf16>
    %355 = vector.shape_cast %20 : vector<1x256xi1> to vector<1x256xi1>
    %356 = vector.broadcast %355 : vector<1x256xi1> to vector<16x256xi1>
    %357 = arith.select %356, %353, %354 : vector<16x256xi1>, vector<16x256xbf16>
    %358 = vector.extract_strided_slice %326 {offsets = [0, 15], sizes = [16, 241], strides = [1, 1]} : vector<16x256xbf16> to vector<16x241xbf16>
    %cst_165 = arith.constant 0.000000e+00 : bf16
    %359 = vector.broadcast %cst_165 : bf16 to vector<16x15xbf16>
    %360 = tpu.concatenate %358, %359 in 1 : vector<16x241xbf16>, vector<16x15xbf16> -> vector<16x256xbf16>
    %cst_166 = arith.constant 0.000000e+00 : bf16
    %361 = vector.broadcast %cst_166 : bf16 to vector<16x256xbf16>
    %362 = vector.shape_cast %18 : vector<1x256xi1> to vector<1x256xi1>
    %363 = vector.broadcast %362 : vector<1x256xi1> to vector<16x256xi1>
    %364 = arith.select %363, %360, %361 : vector<16x256xi1>, vector<16x256xbf16>
    %365 = vector.extract_strided_slice %326 {offsets = [0, 16], sizes = [16, 240], strides = [1, 1]} : vector<16x256xbf16> to vector<16x240xbf16>
    %cst_167 = arith.constant 0.000000e+00 : bf16
    %366 = vector.broadcast %cst_167 : bf16 to vector<16x16xbf16>
    %367 = tpu.concatenate %365, %366 in 1 : vector<16x240xbf16>, vector<16x16xbf16> -> vector<16x256xbf16>
    %368 = vector.extract_strided_slice %326 {offsets = [0, 17], sizes = [16, 239], strides = [1, 1]} : vector<16x256xbf16> to vector<16x239xbf16>
    %cst_168 = arith.constant 0.000000e+00 : bf16
    %369 = vector.broadcast %cst_168 : bf16 to vector<16x17xbf16>
    %370 = tpu.concatenate %368, %369 in 1 : vector<16x239xbf16>, vector<16x17xbf16> -> vector<16x256xbf16>
    %cst_169 = arith.constant 0.000000e+00 : bf16
    %371 = vector.broadcast %cst_169 : bf16 to vector<16x256xbf16>
    %372 = vector.shape_cast %20 : vector<1x256xi1> to vector<1x256xi1>
    %373 = vector.broadcast %372 : vector<1x256xi1> to vector<16x256xi1>
    %374 = arith.select %373, %370, %371 : vector<16x256xi1>, vector<16x256xbf16>
    %375 = tpu.concatenate %333, %336, %343, %350, %326, %357, %364, %367, %374 in 0 : vector<16x256xbf16>, vector<16x256xbf16>, vector<16x256xbf16>, vector<16x256xbf16>, vector<16x256xbf16>, vector<16x256xbf16>, vector<16x256xbf16>, vector<16x256xbf16>, vector<16x256xbf16> -> vector<144x256xbf16>
    %cst_170 = arith.constant dense<0.000000e+00> : vector<16x256xf32>
    %376 = tpu.matmul %51, %375, %cst_170 {dimension_numbers = #tpu.dot_dimension_numbers<[1], [0], [0], [1], [0, 0, 1, 1], [], []>} : vector<16x144xbf16>, vector<144x256xbf16>, vector<16x256xf32> -> vector<16x256xf32>
    %377 = vector.broadcast %77 : vector<16x1xf32> to vector<16x256xf32>
    %378 = arith.addf %376, %377 : vector<16x256xf32>
    %cst_171 = arith.constant 0.000000e+00 : f32
    %379 = vector.broadcast %cst_171 : f32 to vector<16x256xf32>
    %380 = arith.maximumf %378, %379 : vector<16x256xf32>
    %381 = arith.truncf %270 : vector<16x256xf32> to vector<16x256xbf16>
    %cst_172 = arith.constant dense<0.000000e+00> : vector<32x256xf32>
    %382 = tpu.matmul %207, %381, %cst_172 {dimension_numbers = #tpu.dot_dimension_numbers<[1], [0], [0], [1], [0, 0, 1, 1], [], []>} : vector<32x16xbf16>, vector<16x256xbf16>, vector<32x256xf32> -> vector<32x256xf32>
    %383 = vector.broadcast %209 : vector<32x1xf32> to vector<32x256xf32>
    %384 = arith.addf %382, %383 : vector<32x256xf32>
    %385 = vector.extract_strided_slice %384 {offsets = [0, 0], sizes = [8, 256], strides = [1, 1]} : vector<32x256xf32> to vector<8x256xf32>
    %386 = vector.extract_strided_slice %384 {offsets = [8, 0], sizes = [8, 256], strides = [1, 1]} : vector<32x256xf32> to vector<8x256xf32>
    %387 = vector.extract_strided_slice %384 {offsets = [16, 0], sizes = [16, 256], strides = [1, 1]} : vector<32x256xf32> to vector<16x256xf32>
    %388 = tpu.transpose %385, [1, 0] : vector<8x256xf32> -> vector<256x8xf32>
    %389 = arith.truncf %388 : vector<256x8xf32> to vector<256x8xbf16>
    %390 = arith.truncf %386 : vector<8x256xf32> to vector<8x256xbf16>
    %cst_173 = arith.constant dense<0.000000e+00> : vector<256x256xf32>
    %391 = tpu.matmul %389, %390, %cst_173 {dimension_numbers = #tpu.dot_dimension_numbers<[1], [0], [0], [1], [0, 0, 1, 1], [], []>} : vector<256x8xbf16>, vector<8x256xbf16>, vector<256x256xf32> -> vector<256x256xf32>
    %cst_174 = arith.constant dense<0xFF800000> : vector<256xf32>
    %392 = vector.multi_reduction <maximumf>, %391, %cst_174 [1] : vector<256x256xf32> to vector<256xf32>
    %393 = vector.shape_cast %392 : vector<256xf32> to vector<256x1xf32>
    %394 = vector.broadcast %393 : vector<256x1xf32> to vector<256x256xf32>
    %395 = arith.subf %391, %394 : vector<256x256xf32>
    %396 = math.exp %395 : vector<256x256xf32>
    %397 = arith.truncf %387 : vector<16x256xf32> to vector<16x256xbf16>
    %cst_175 = arith.constant 1.000000e+00 : bf16
    %398 = vector.broadcast %cst_175 : bf16 to vector<1x256xbf16>
    %399 = tpu.concatenate %397, %398 in 0 : vector<16x256xbf16>, vector<1x256xbf16> -> vector<17x256xbf16>
    %400 = arith.truncf %396 : vector<256x256xf32> to vector<256x256xbf16>
    %cst_176 = arith.constant dense<0.000000e+00> : vector<17x256xf32>
    %401 = tpu.matmul %399, %400, %cst_176 {dimension_numbers = #tpu.dot_dimension_numbers<[1], [1], [0], [0], [0, 0, 1, 0], [], []>} : vector<17x256xbf16>, vector<256x256xbf16>, vector<17x256xf32> -> vector<17x256xf32>
    %402 = vector.extract_strided_slice %401 {offsets = [16, 0], sizes = [1, 256], strides = [1, 1]} : vector<17x256xf32> to vector<1x256xf32>
    %403 = tpu.reciprocal %402 {approx = true} : vector<1x256xf32> -> vector<1x256xf32>
    %404 = vector.extract_strided_slice %401 {offsets = [0, 0], sizes = [16, 256], strides = [1, 1]} : vector<17x256xf32> to vector<16x256xf32>
    %405 = vector.broadcast %403 : vector<1x256xf32> to vector<16x256xf32>
    %406 = arith.mulf %404, %405 : vector<16x256xf32>
    %407 = vector.broadcast %211 : vector<16x1xf32> to vector<16x256xf32>
    %408 = arith.addf %406, %407 : vector<16x256xf32>
    %409 = arith.addf %408, %270 : vector<16x256xf32>
    %410 = arith.truncf %409 : vector<16x256xf32> to vector<16x256xbf16>
    %cst_177 = arith.constant dense<0.000000e+00> : vector<16x256xf32>
    %411 = tpu.matmul %213, %410, %cst_177 {dimension_numbers = #tpu.dot_dimension_numbers<[1], [0], [0], [1], [0, 0, 1, 1], [], []>} : vector<16x16xbf16>, vector<16x256xbf16>, vector<16x256xf32> -> vector<16x256xf32>
    %412 = vector.broadcast %215 : vector<16x1xf32> to vector<16x256xf32>
    %413 = arith.addf %411, %412 : vector<16x256xf32>
    %414 = arith.negf %413 : vector<16x256xf32>
    %415 = math.exp %414 : vector<16x256xf32>
    %cst_178 = arith.constant 1.000000e+00 : f32
    %416 = vector.broadcast %cst_178 : f32 to vector<16x256xf32>
    %417 = arith.addf %416, %415 : vector<16x256xf32>
    %418 = arith.divf %416, %417 : vector<16x256xf32>
    %419 = arith.mulf %380, %418 : vector<16x256xf32>
    %420 = arith.truncf %419 : vector<16x256xf32> to vector<16x256xbf16>
    %cst_179 = arith.constant 0.000000e+00 : bf16
    %421 = vector.broadcast %cst_179 : bf16 to vector<16x17xbf16>
    %422 = vector.extract_strided_slice %420 {offsets = [0, 0], sizes = [16, 239], strides = [1, 1]} : vector<16x256xbf16> to vector<16x239xbf16>
    %423 = tpu.concatenate %421, %422 in 1 : vector<16x17xbf16>, vector<16x239xbf16> -> vector<16x256xbf16>
    %cst_180 = arith.constant 0.000000e+00 : bf16
    %424 = vector.broadcast %cst_180 : bf16 to vector<16x256xbf16>
    %425 = vector.shape_cast %18 : vector<1x256xi1> to vector<1x256xi1>
    %426 = vector.broadcast %425 : vector<1x256xi1> to vector<16x256xi1>
    %427 = arith.select %426, %423, %424 : vector<16x256xi1>, vector<16x256xbf16>
    %cst_181 = arith.constant 0.000000e+00 : bf16
    %428 = vector.broadcast %cst_181 : bf16 to vector<16x16xbf16>
    %429 = vector.extract_strided_slice %420 {offsets = [0, 0], sizes = [16, 240], strides = [1, 1]} : vector<16x256xbf16> to vector<16x240xbf16>
    %430 = tpu.concatenate %428, %429 in 1 : vector<16x16xbf16>, vector<16x240xbf16> -> vector<16x256xbf16>
    %cst_182 = arith.constant 0.000000e+00 : bf16
    %431 = vector.broadcast %cst_182 : bf16 to vector<16x15xbf16>
    %432 = vector.extract_strided_slice %420 {offsets = [0, 0], sizes = [16, 241], strides = [1, 1]} : vector<16x256xbf16> to vector<16x241xbf16>
    %433 = tpu.concatenate %431, %432 in 1 : vector<16x15xbf16>, vector<16x241xbf16> -> vector<16x256xbf16>
    %cst_183 = arith.constant 0.000000e+00 : bf16
    %434 = vector.broadcast %cst_183 : bf16 to vector<16x256xbf16>
    %435 = vector.shape_cast %20 : vector<1x256xi1> to vector<1x256xi1>
    %436 = vector.broadcast %435 : vector<1x256xi1> to vector<16x256xi1>
    %437 = arith.select %436, %433, %434 : vector<16x256xi1>, vector<16x256xbf16>
    %cst_184 = arith.constant 0.000000e+00 : bf16
    %438 = vector.broadcast %cst_184 : bf16 to vector<16x1xbf16>
    %439 = vector.extract_strided_slice %420 {offsets = [0, 0], sizes = [16, 255], strides = [1, 1]} : vector<16x256xbf16> to vector<16x255xbf16>
    %440 = tpu.concatenate %438, %439 in 1 : vector<16x1xbf16>, vector<16x255xbf16> -> vector<16x256xbf16>
    %cst_185 = arith.constant 0.000000e+00 : bf16
    %441 = vector.broadcast %cst_185 : bf16 to vector<16x256xbf16>
    %442 = vector.shape_cast %18 : vector<1x256xi1> to vector<1x256xi1>
    %443 = vector.broadcast %442 : vector<1x256xi1> to vector<16x256xi1>
    %444 = arith.select %443, %440, %441 : vector<16x256xi1>, vector<16x256xbf16>
    %445 = vector.extract_strided_slice %420 {offsets = [0, 1], sizes = [16, 255], strides = [1, 1]} : vector<16x256xbf16> to vector<16x255xbf16>
    %cst_186 = arith.constant 0.000000e+00 : bf16
    %446 = vector.broadcast %cst_186 : bf16 to vector<16x1xbf16>
    %447 = tpu.concatenate %445, %446 in 1 : vector<16x255xbf16>, vector<16x1xbf16> -> vector<16x256xbf16>
    %cst_187 = arith.constant 0.000000e+00 : bf16
    %448 = vector.broadcast %cst_187 : bf16 to vector<16x256xbf16>
    %449 = vector.shape_cast %20 : vector<1x256xi1> to vector<1x256xi1>
    %450 = vector.broadcast %449 : vector<1x256xi1> to vector<16x256xi1>
    %451 = arith.select %450, %447, %448 : vector<16x256xi1>, vector<16x256xbf16>
    %452 = vector.extract_strided_slice %420 {offsets = [0, 15], sizes = [16, 241], strides = [1, 1]} : vector<16x256xbf16> to vector<16x241xbf16>
    %cst_188 = arith.constant 0.000000e+00 : bf16
    %453 = vector.broadcast %cst_188 : bf16 to vector<16x15xbf16>
    %454 = tpu.concatenate %452, %453 in 1 : vector<16x241xbf16>, vector<16x15xbf16> -> vector<16x256xbf16>
    %cst_189 = arith.constant 0.000000e+00 : bf16
    %455 = vector.broadcast %cst_189 : bf16 to vector<16x256xbf16>
    %456 = vector.shape_cast %18 : vector<1x256xi1> to vector<1x256xi1>
    %457 = vector.broadcast %456 : vector<1x256xi1> to vector<16x256xi1>
    %458 = arith.select %457, %454, %455 : vector<16x256xi1>, vector<16x256xbf16>
    %459 = vector.extract_strided_slice %420 {offsets = [0, 16], sizes = [16, 240], strides = [1, 1]} : vector<16x256xbf16> to vector<16x240xbf16>
    %cst_190 = arith.constant 0.000000e+00 : bf16
    %460 = vector.broadcast %cst_190 : bf16 to vector<16x16xbf16>
    %461 = tpu.concatenate %459, %460 in 1 : vector<16x240xbf16>, vector<16x16xbf16> -> vector<16x256xbf16>
    %462 = vector.extract_strided_slice %420 {offsets = [0, 17], sizes = [16, 239], strides = [1, 1]} : vector<16x256xbf16> to vector<16x239xbf16>
    %cst_191 = arith.constant 0.000000e+00 : bf16
    %463 = vector.broadcast %cst_191 : bf16 to vector<16x17xbf16>
    %464 = tpu.concatenate %462, %463 in 1 : vector<16x239xbf16>, vector<16x17xbf16> -> vector<16x256xbf16>
    %cst_192 = arith.constant 0.000000e+00 : bf16
    %465 = vector.broadcast %cst_192 : bf16 to vector<16x256xbf16>
    %466 = vector.shape_cast %20 : vector<1x256xi1> to vector<1x256xi1>
    %467 = vector.broadcast %466 : vector<1x256xi1> to vector<16x256xi1>
    %468 = arith.select %467, %464, %465 : vector<16x256xi1>, vector<16x256xbf16>
    %469 = tpu.concatenate %427, %430, %437, %444, %420, %451, %458, %461, %468 in 0 : vector<16x256xbf16>, vector<16x256xbf16>, vector<16x256xbf16>, vector<16x256xbf16>, vector<16x256xbf16>, vector<16x256xbf16>, vector<16x256xbf16>, vector<16x256xbf16>, vector<16x256xbf16> -> vector<144x256xbf16>
    %cst_193 = arith.constant dense<0.000000e+00> : vector<16x256xf32>
    %470 = tpu.matmul %53, %469, %cst_193 {dimension_numbers = #tpu.dot_dimension_numbers<[1], [0], [0], [1], [0, 0, 1, 1], [], []>} : vector<16x144xbf16>, vector<144x256xbf16>, vector<16x256xf32> -> vector<16x256xf32>
    %471 = vector.broadcast %79 : vector<16x1xf32> to vector<16x256xf32>
    %472 = arith.addf %470, %471 : vector<16x256xf32>
    %cst_194 = arith.constant 0.000000e+00 : f32
    %473 = vector.broadcast %cst_194 : f32 to vector<16x256xf32>
    %474 = arith.maximumf %472, %473 : vector<16x256xf32>
    %475 = arith.addf %205, %474 : vector<16x256xf32>
    %476 = arith.truncf %205 : vector<16x256xf32> to vector<16x256xbf16>
    %c0_195 = arith.constant 0 : index
    %c0_196 = arith.constant 0 : index
    %477 = vector.load %arg14[%c0_195, %c0_196] : memref<256x64xbf16, #tpu.memory_space<vmem>>, vector<256x64xbf16>
    %cst_197 = arith.constant dense<0.000000e+00> : vector<16x64xf32>
    %478 = tpu.matmul %476, %477, %cst_197 {dimension_numbers = #tpu.dot_dimension_numbers<[1], [0], [0], [1], [0, 0, 1, 1], [], []>} : vector<16x256xbf16>, vector<256x64xbf16>, vector<16x64xf32> -> vector<16x64xf32>
    %c1_198 = arith.constant 1 : index
    %c0_199 = arith.constant 0 : index
    %c0_200 = arith.constant 0 : index
    %479 = vector.load %arg4[%c1_198, %c0_199, %c0_200] : memref<2x32x16xbf16, #tpu.memory_space<vmem>>, vector<1x32x16xbf16>
    %480 = vector.shape_cast %479 : vector<1x32x16xbf16> to vector<32x16xbf16>
    %c1_201 = arith.constant 1 : index
    %c0_202 = arith.constant 0 : index
    %c0_203 = arith.constant 0 : index
    %481 = vector.load %arg5[%c1_201, %c0_202, %c0_203] : memref<2x32x1xf32, #tpu.memory_space<vmem>>, vector<1x32x1xf32>
    %482 = vector.shape_cast %481 : vector<1x32x1xf32> to vector<32x1xf32>
    %c1_204 = arith.constant 1 : index
    %c0_205 = arith.constant 0 : index
    %c0_206 = arith.constant 0 : index
    %483 = vector.load %arg6[%c1_204, %c0_205, %c0_206] : memref<2x16x1xf32, #tpu.memory_space<vmem>>, vector<1x16x1xf32>
    %484 = vector.shape_cast %483 : vector<1x16x1xf32> to vector<16x1xf32>
    %c1_207 = arith.constant 1 : index
    %c0_208 = arith.constant 0 : index
    %c0_209 = arith.constant 0 : index
    %485 = vector.load %arg7[%c1_207, %c0_208, %c0_209] : memref<2x16x16xbf16, #tpu.memory_space<vmem>>, vector<1x16x16xbf16>
    %486 = vector.shape_cast %485 : vector<1x16x16xbf16> to vector<16x16xbf16>
    %c1_210 = arith.constant 1 : index
    %c0_211 = arith.constant 0 : index
    %c0_212 = arith.constant 0 : index
    %487 = vector.load %arg8[%c1_210, %c0_211, %c0_212] : memref<2x16x1xf32, #tpu.memory_space<vmem>>, vector<1x16x1xf32>
    %488 = vector.shape_cast %487 : vector<1x16x1xf32> to vector<16x1xf32>
    %489 = arith.truncf %478 : vector<16x64xf32> to vector<16x64xbf16>
    %cst_213 = arith.constant 0.000000e+00 : bf16
    %490 = vector.broadcast %cst_213 : bf16 to vector<16x9xbf16>
    %491 = vector.extract_strided_slice %489 {offsets = [0, 0], sizes = [16, 55], strides = [1, 1]} : vector<16x64xbf16> to vector<16x55xbf16>
    %492 = tpu.concatenate %490, %491 in 1 : vector<16x9xbf16>, vector<16x55xbf16> -> vector<16x64xbf16>
    %cst_214 = arith.constant 0.000000e+00 : bf16
    %493 = vector.broadcast %cst_214 : bf16 to vector<16x64xbf16>
    %494 = vector.shape_cast %39 : vector<1x64xi1> to vector<1x64xi1>
    %495 = vector.broadcast %494 : vector<1x64xi1> to vector<16x64xi1>
    %496 = arith.select %495, %492, %493 : vector<16x64xi1>, vector<16x64xbf16>
    %cst_215 = arith.constant 0.000000e+00 : bf16
    %497 = vector.broadcast %cst_215 : bf16 to vector<16x8xbf16>
    %498 = vector.extract_strided_slice %489 {offsets = [0, 0], sizes = [16, 56], strides = [1, 1]} : vector<16x64xbf16> to vector<16x56xbf16>
    %499 = tpu.concatenate %497, %498 in 1 : vector<16x8xbf16>, vector<16x56xbf16> -> vector<16x64xbf16>
    %cst_216 = arith.constant 0.000000e+00 : bf16
    %500 = vector.broadcast %cst_216 : bf16 to vector<16x7xbf16>
    %501 = vector.extract_strided_slice %489 {offsets = [0, 0], sizes = [16, 57], strides = [1, 1]} : vector<16x64xbf16> to vector<16x57xbf16>
    %502 = tpu.concatenate %500, %501 in 1 : vector<16x7xbf16>, vector<16x57xbf16> -> vector<16x64xbf16>
    %cst_217 = arith.constant 0.000000e+00 : bf16
    %503 = vector.broadcast %cst_217 : bf16 to vector<16x64xbf16>
    %504 = vector.shape_cast %41 : vector<1x64xi1> to vector<1x64xi1>
    %505 = vector.broadcast %504 : vector<1x64xi1> to vector<16x64xi1>
    %506 = arith.select %505, %502, %503 : vector<16x64xi1>, vector<16x64xbf16>
    %cst_218 = arith.constant 0.000000e+00 : bf16
    %507 = vector.broadcast %cst_218 : bf16 to vector<16x1xbf16>
    %508 = vector.extract_strided_slice %489 {offsets = [0, 0], sizes = [16, 63], strides = [1, 1]} : vector<16x64xbf16> to vector<16x63xbf16>
    %509 = tpu.concatenate %507, %508 in 1 : vector<16x1xbf16>, vector<16x63xbf16> -> vector<16x64xbf16>
    %cst_219 = arith.constant 0.000000e+00 : bf16
    %510 = vector.broadcast %cst_219 : bf16 to vector<16x64xbf16>
    %511 = vector.shape_cast %39 : vector<1x64xi1> to vector<1x64xi1>
    %512 = vector.broadcast %511 : vector<1x64xi1> to vector<16x64xi1>
    %513 = arith.select %512, %509, %510 : vector<16x64xi1>, vector<16x64xbf16>
    %514 = vector.extract_strided_slice %489 {offsets = [0, 1], sizes = [16, 63], strides = [1, 1]} : vector<16x64xbf16> to vector<16x63xbf16>
    %cst_220 = arith.constant 0.000000e+00 : bf16
    %515 = vector.broadcast %cst_220 : bf16 to vector<16x1xbf16>
    %516 = tpu.concatenate %514, %515 in 1 : vector<16x63xbf16>, vector<16x1xbf16> -> vector<16x64xbf16>
    %cst_221 = arith.constant 0.000000e+00 : bf16
    %517 = vector.broadcast %cst_221 : bf16 to vector<16x64xbf16>
    %518 = vector.shape_cast %41 : vector<1x64xi1> to vector<1x64xi1>
    %519 = vector.broadcast %518 : vector<1x64xi1> to vector<16x64xi1>
    %520 = arith.select %519, %516, %517 : vector<16x64xi1>, vector<16x64xbf16>
    %521 = vector.extract_strided_slice %489 {offsets = [0, 7], sizes = [16, 57], strides = [1, 1]} : vector<16x64xbf16> to vector<16x57xbf16>
    %cst_222 = arith.constant 0.000000e+00 : bf16
    %522 = vector.broadcast %cst_222 : bf16 to vector<16x7xbf16>
    %523 = tpu.concatenate %521, %522 in 1 : vector<16x57xbf16>, vector<16x7xbf16> -> vector<16x64xbf16>
    %cst_223 = arith.constant 0.000000e+00 : bf16
    %524 = vector.broadcast %cst_223 : bf16 to vector<16x64xbf16>
    %525 = vector.shape_cast %39 : vector<1x64xi1> to vector<1x64xi1>
    %526 = vector.broadcast %525 : vector<1x64xi1> to vector<16x64xi1>
    %527 = arith.select %526, %523, %524 : vector<16x64xi1>, vector<16x64xbf16>
    %528 = vector.extract_strided_slice %489 {offsets = [0, 8], sizes = [16, 56], strides = [1, 1]} : vector<16x64xbf16> to vector<16x56xbf16>
    %cst_224 = arith.constant 0.000000e+00 : bf16
    %529 = vector.broadcast %cst_224 : bf16 to vector<16x8xbf16>
    %530 = tpu.concatenate %528, %529 in 1 : vector<16x56xbf16>, vector<16x8xbf16> -> vector<16x64xbf16>
    %531 = vector.extract_strided_slice %489 {offsets = [0, 9], sizes = [16, 55], strides = [1, 1]} : vector<16x64xbf16> to vector<16x55xbf16>
    %cst_225 = arith.constant 0.000000e+00 : bf16
    %532 = vector.broadcast %cst_225 : bf16 to vector<16x9xbf16>
    %533 = tpu.concatenate %531, %532 in 1 : vector<16x55xbf16>, vector<16x9xbf16> -> vector<16x64xbf16>
    %cst_226 = arith.constant 0.000000e+00 : bf16
    %534 = vector.broadcast %cst_226 : bf16 to vector<16x64xbf16>
    %535 = vector.shape_cast %41 : vector<1x64xi1> to vector<1x64xi1>
    %536 = vector.broadcast %535 : vector<1x64xi1> to vector<16x64xi1>
    %537 = arith.select %536, %533, %534 : vector<16x64xi1>, vector<16x64xbf16>
    %538 = tpu.concatenate %496, %499, %506, %513, %489, %520, %527, %530, %537 in 0 : vector<16x64xbf16>, vector<16x64xbf16>, vector<16x64xbf16>, vector<16x64xbf16>, vector<16x64xbf16>, vector<16x64xbf16>, vector<16x64xbf16>, vector<16x64xbf16>, vector<16x64xbf16> -> vector<144x64xbf16>
    %cst_227 = arith.constant dense<0.000000e+00> : vector<16x64xf32>
    %539 = tpu.matmul %55, %538, %cst_227 {dimension_numbers = #tpu.dot_dimension_numbers<[1], [0], [0], [1], [0, 0, 1, 1], [], []>} : vector<16x144xbf16>, vector<144x64xbf16>, vector<16x64xf32> -> vector<16x64xf32>
    %540 = vector.broadcast %81 : vector<16x1xf32> to vector<16x64xf32>
    %541 = arith.addf %539, %540 : vector<16x64xf32>
    %cst_228 = arith.constant 0.000000e+00 : f32
    %542 = vector.broadcast %cst_228 : f32 to vector<16x64xf32>
    %543 = arith.maximumf %541, %542 : vector<16x64xf32>
    %544 = arith.truncf %543 : vector<16x64xf32> to vector<16x64xbf16>
    %cst_229 = arith.constant 0.000000e+00 : bf16
    %545 = vector.broadcast %cst_229 : bf16 to vector<16x9xbf16>
    %546 = vector.extract_strided_slice %544 {offsets = [0, 0], sizes = [16, 55], strides = [1, 1]} : vector<16x64xbf16> to vector<16x55xbf16>
    %547 = tpu.concatenate %545, %546 in 1 : vector<16x9xbf16>, vector<16x55xbf16> -> vector<16x64xbf16>
    %cst_230 = arith.constant 0.000000e+00 : bf16
    %548 = vector.broadcast %cst_230 : bf16 to vector<16x64xbf16>
    %549 = vector.shape_cast %39 : vector<1x64xi1> to vector<1x64xi1>
    %550 = vector.broadcast %549 : vector<1x64xi1> to vector<16x64xi1>
    %551 = arith.select %550, %547, %548 : vector<16x64xi1>, vector<16x64xbf16>
    %cst_231 = arith.constant 0.000000e+00 : bf16
    %552 = vector.broadcast %cst_231 : bf16 to vector<16x8xbf16>
    %553 = vector.extract_strided_slice %544 {offsets = [0, 0], sizes = [16, 56], strides = [1, 1]} : vector<16x64xbf16> to vector<16x56xbf16>
    %554 = tpu.concatenate %552, %553 in 1 : vector<16x8xbf16>, vector<16x56xbf16> -> vector<16x64xbf16>
    %cst_232 = arith.constant 0.000000e+00 : bf16
    %555 = vector.broadcast %cst_232 : bf16 to vector<16x7xbf16>
    %556 = vector.extract_strided_slice %544 {offsets = [0, 0], sizes = [16, 57], strides = [1, 1]} : vector<16x64xbf16> to vector<16x57xbf16>
    %557 = tpu.concatenate %555, %556 in 1 : vector<16x7xbf16>, vector<16x57xbf16> -> vector<16x64xbf16>
    %cst_233 = arith.constant 0.000000e+00 : bf16
    %558 = vector.broadcast %cst_233 : bf16 to vector<16x64xbf16>
    %559 = vector.shape_cast %41 : vector<1x64xi1> to vector<1x64xi1>
    %560 = vector.broadcast %559 : vector<1x64xi1> to vector<16x64xi1>
    %561 = arith.select %560, %557, %558 : vector<16x64xi1>, vector<16x64xbf16>
    %cst_234 = arith.constant 0.000000e+00 : bf16
    %562 = vector.broadcast %cst_234 : bf16 to vector<16x1xbf16>
    %563 = vector.extract_strided_slice %544 {offsets = [0, 0], sizes = [16, 63], strides = [1, 1]} : vector<16x64xbf16> to vector<16x63xbf16>
    %564 = tpu.concatenate %562, %563 in 1 : vector<16x1xbf16>, vector<16x63xbf16> -> vector<16x64xbf16>
    %cst_235 = arith.constant 0.000000e+00 : bf16
    %565 = vector.broadcast %cst_235 : bf16 to vector<16x64xbf16>
    %566 = vector.shape_cast %39 : vector<1x64xi1> to vector<1x64xi1>
    %567 = vector.broadcast %566 : vector<1x64xi1> to vector<16x64xi1>
    %568 = arith.select %567, %564, %565 : vector<16x64xi1>, vector<16x64xbf16>
    %569 = vector.extract_strided_slice %544 {offsets = [0, 1], sizes = [16, 63], strides = [1, 1]} : vector<16x64xbf16> to vector<16x63xbf16>
    %cst_236 = arith.constant 0.000000e+00 : bf16
    %570 = vector.broadcast %cst_236 : bf16 to vector<16x1xbf16>
    %571 = tpu.concatenate %569, %570 in 1 : vector<16x63xbf16>, vector<16x1xbf16> -> vector<16x64xbf16>
    %cst_237 = arith.constant 0.000000e+00 : bf16
    %572 = vector.broadcast %cst_237 : bf16 to vector<16x64xbf16>
    %573 = vector.shape_cast %41 : vector<1x64xi1> to vector<1x64xi1>
    %574 = vector.broadcast %573 : vector<1x64xi1> to vector<16x64xi1>
    %575 = arith.select %574, %571, %572 : vector<16x64xi1>, vector<16x64xbf16>
    %576 = vector.extract_strided_slice %544 {offsets = [0, 7], sizes = [16, 57], strides = [1, 1]} : vector<16x64xbf16> to vector<16x57xbf16>
    %cst_238 = arith.constant 0.000000e+00 : bf16
    %577 = vector.broadcast %cst_238 : bf16 to vector<16x7xbf16>
    %578 = tpu.concatenate %576, %577 in 1 : vector<16x57xbf16>, vector<16x7xbf16> -> vector<16x64xbf16>
    %cst_239 = arith.constant 0.000000e+00 : bf16
    %579 = vector.broadcast %cst_239 : bf16 to vector<16x64xbf16>
    %580 = vector.shape_cast %39 : vector<1x64xi1> to vector<1x64xi1>
    %581 = vector.broadcast %580 : vector<1x64xi1> to vector<16x64xi1>
    %582 = arith.select %581, %578, %579 : vector<16x64xi1>, vector<16x64xbf16>
    %583 = vector.extract_strided_slice %544 {offsets = [0, 8], sizes = [16, 56], strides = [1, 1]} : vector<16x64xbf16> to vector<16x56xbf16>
    %cst_240 = arith.constant 0.000000e+00 : bf16
    %584 = vector.broadcast %cst_240 : bf16 to vector<16x8xbf16>
    %585 = tpu.concatenate %583, %584 in 1 : vector<16x56xbf16>, vector<16x8xbf16> -> vector<16x64xbf16>
    %586 = vector.extract_strided_slice %544 {offsets = [0, 9], sizes = [16, 55], strides = [1, 1]} : vector<16x64xbf16> to vector<16x55xbf16>
    %cst_241 = arith.constant 0.000000e+00 : bf16
    %587 = vector.broadcast %cst_241 : bf16 to vector<16x9xbf16>
    %588 = tpu.concatenate %586, %587 in 1 : vector<16x55xbf16>, vector<16x9xbf16> -> vector<16x64xbf16>
    %cst_242 = arith.constant 0.000000e+00 : bf16
    %589 = vector.broadcast %cst_242 : bf16 to vector<16x64xbf16>
    %590 = vector.shape_cast %41 : vector<1x64xi1> to vector<1x64xi1>
    %591 = vector.broadcast %590 : vector<1x64xi1> to vector<16x64xi1>
    %592 = arith.select %591, %588, %589 : vector<16x64xi1>, vector<16x64xbf16>
    %593 = tpu.concatenate %551, %554, %561, %568, %544, %575, %582, %585, %592 in 0 : vector<16x64xbf16>, vector<16x64xbf16>, vector<16x64xbf16>, vector<16x64xbf16>, vector<16x64xbf16>, vector<16x64xbf16>, vector<16x64xbf16>, vector<16x64xbf16>, vector<16x64xbf16> -> vector<144x64xbf16>
    %cst_243 = arith.constant dense<0.000000e+00> : vector<16x64xf32>
    %594 = tpu.matmul %57, %593, %cst_243 {dimension_numbers = #tpu.dot_dimension_numbers<[1], [0], [0], [1], [0, 0, 1, 1], [], []>} : vector<16x144xbf16>, vector<144x64xbf16>, vector<16x64xf32> -> vector<16x64xf32>
    %595 = vector.broadcast %83 : vector<16x1xf32> to vector<16x64xf32>
    %596 = arith.addf %594, %595 : vector<16x64xf32>
    %cst_244 = arith.constant 0.000000e+00 : f32
    %597 = vector.broadcast %cst_244 : f32 to vector<16x64xf32>
    %598 = arith.maximumf %596, %597 : vector<16x64xf32>
    %599 = arith.truncf %598 : vector<16x64xf32> to vector<16x64xbf16>
    %cst_245 = arith.constant 0.000000e+00 : bf16
    %600 = vector.broadcast %cst_245 : bf16 to vector<16x9xbf16>
    %601 = vector.extract_strided_slice %599 {offsets = [0, 0], sizes = [16, 55], strides = [1, 1]} : vector<16x64xbf16> to vector<16x55xbf16>
    %602 = tpu.concatenate %600, %601 in 1 : vector<16x9xbf16>, vector<16x55xbf16> -> vector<16x64xbf16>
    %cst_246 = arith.constant 0.000000e+00 : bf16
    %603 = vector.broadcast %cst_246 : bf16 to vector<16x64xbf16>
    %604 = vector.shape_cast %39 : vector<1x64xi1> to vector<1x64xi1>
    %605 = vector.broadcast %604 : vector<1x64xi1> to vector<16x64xi1>
    %606 = arith.select %605, %602, %603 : vector<16x64xi1>, vector<16x64xbf16>
    %cst_247 = arith.constant 0.000000e+00 : bf16
    %607 = vector.broadcast %cst_247 : bf16 to vector<16x8xbf16>
    %608 = vector.extract_strided_slice %599 {offsets = [0, 0], sizes = [16, 56], strides = [1, 1]} : vector<16x64xbf16> to vector<16x56xbf16>
    %609 = tpu.concatenate %607, %608 in 1 : vector<16x8xbf16>, vector<16x56xbf16> -> vector<16x64xbf16>
    %cst_248 = arith.constant 0.000000e+00 : bf16
    %610 = vector.broadcast %cst_248 : bf16 to vector<16x7xbf16>
    %611 = vector.extract_strided_slice %599 {offsets = [0, 0], sizes = [16, 57], strides = [1, 1]} : vector<16x64xbf16> to vector<16x57xbf16>
    %612 = tpu.concatenate %610, %611 in 1 : vector<16x7xbf16>, vector<16x57xbf16> -> vector<16x64xbf16>
    %cst_249 = arith.constant 0.000000e+00 : bf16
    %613 = vector.broadcast %cst_249 : bf16 to vector<16x64xbf16>
    %614 = vector.shape_cast %41 : vector<1x64xi1> to vector<1x64xi1>
    %615 = vector.broadcast %614 : vector<1x64xi1> to vector<16x64xi1>
    %616 = arith.select %615, %612, %613 : vector<16x64xi1>, vector<16x64xbf16>
    %cst_250 = arith.constant 0.000000e+00 : bf16
    %617 = vector.broadcast %cst_250 : bf16 to vector<16x1xbf16>
    %618 = vector.extract_strided_slice %599 {offsets = [0, 0], sizes = [16, 63], strides = [1, 1]} : vector<16x64xbf16> to vector<16x63xbf16>
    %619 = tpu.concatenate %617, %618 in 1 : vector<16x1xbf16>, vector<16x63xbf16> -> vector<16x64xbf16>
    %cst_251 = arith.constant 0.000000e+00 : bf16
    %620 = vector.broadcast %cst_251 : bf16 to vector<16x64xbf16>
    %621 = vector.shape_cast %39 : vector<1x64xi1> to vector<1x64xi1>
    %622 = vector.broadcast %621 : vector<1x64xi1> to vector<16x64xi1>
    %623 = arith.select %622, %619, %620 : vector<16x64xi1>, vector<16x64xbf16>
    %624 = vector.extract_strided_slice %599 {offsets = [0, 1], sizes = [16, 63], strides = [1, 1]} : vector<16x64xbf16> to vector<16x63xbf16>
    %cst_252 = arith.constant 0.000000e+00 : bf16
    %625 = vector.broadcast %cst_252 : bf16 to vector<16x1xbf16>
    %626 = tpu.concatenate %624, %625 in 1 : vector<16x63xbf16>, vector<16x1xbf16> -> vector<16x64xbf16>
    %cst_253 = arith.constant 0.000000e+00 : bf16
    %627 = vector.broadcast %cst_253 : bf16 to vector<16x64xbf16>
    %628 = vector.shape_cast %41 : vector<1x64xi1> to vector<1x64xi1>
    %629 = vector.broadcast %628 : vector<1x64xi1> to vector<16x64xi1>
    %630 = arith.select %629, %626, %627 : vector<16x64xi1>, vector<16x64xbf16>
    %631 = vector.extract_strided_slice %599 {offsets = [0, 7], sizes = [16, 57], strides = [1, 1]} : vector<16x64xbf16> to vector<16x57xbf16>
    %cst_254 = arith.constant 0.000000e+00 : bf16
    %632 = vector.broadcast %cst_254 : bf16 to vector<16x7xbf16>
    %633 = tpu.concatenate %631, %632 in 1 : vector<16x57xbf16>, vector<16x7xbf16> -> vector<16x64xbf16>
    %cst_255 = arith.constant 0.000000e+00 : bf16
    %634 = vector.broadcast %cst_255 : bf16 to vector<16x64xbf16>
    %635 = vector.shape_cast %39 : vector<1x64xi1> to vector<1x64xi1>
    %636 = vector.broadcast %635 : vector<1x64xi1> to vector<16x64xi1>
    %637 = arith.select %636, %633, %634 : vector<16x64xi1>, vector<16x64xbf16>
    %638 = vector.extract_strided_slice %599 {offsets = [0, 8], sizes = [16, 56], strides = [1, 1]} : vector<16x64xbf16> to vector<16x56xbf16>
    %cst_256 = arith.constant 0.000000e+00 : bf16
    %639 = vector.broadcast %cst_256 : bf16 to vector<16x8xbf16>
    %640 = tpu.concatenate %638, %639 in 1 : vector<16x56xbf16>, vector<16x8xbf16> -> vector<16x64xbf16>
    %641 = vector.extract_strided_slice %599 {offsets = [0, 9], sizes = [16, 55], strides = [1, 1]} : vector<16x64xbf16> to vector<16x55xbf16>
    %cst_257 = arith.constant 0.000000e+00 : bf16
    %642 = vector.broadcast %cst_257 : bf16 to vector<16x9xbf16>
    %643 = tpu.concatenate %641, %642 in 1 : vector<16x55xbf16>, vector<16x9xbf16> -> vector<16x64xbf16>
    %cst_258 = arith.constant 0.000000e+00 : bf16
    %644 = vector.broadcast %cst_258 : bf16 to vector<16x64xbf16>
    %645 = vector.shape_cast %41 : vector<1x64xi1> to vector<1x64xi1>
    %646 = vector.broadcast %645 : vector<1x64xi1> to vector<16x64xi1>
    %647 = arith.select %646, %643, %644 : vector<16x64xi1>, vector<16x64xbf16>
    %648 = tpu.concatenate %606, %609, %616, %623, %599, %630, %637, %640, %647 in 0 : vector<16x64xbf16>, vector<16x64xbf16>, vector<16x64xbf16>, vector<16x64xbf16>, vector<16x64xbf16>, vector<16x64xbf16>, vector<16x64xbf16>, vector<16x64xbf16>, vector<16x64xbf16> -> vector<144x64xbf16>
    %cst_259 = arith.constant dense<0.000000e+00> : vector<16x64xf32>
    %649 = tpu.matmul %59, %648, %cst_259 {dimension_numbers = #tpu.dot_dimension_numbers<[1], [0], [0], [1], [0, 0, 1, 1], [], []>} : vector<16x144xbf16>, vector<144x64xbf16>, vector<16x64xf32> -> vector<16x64xf32>
    %650 = vector.broadcast %85 : vector<16x1xf32> to vector<16x64xf32>
    %651 = arith.addf %649, %650 : vector<16x64xf32>
    %cst_260 = arith.constant 0.000000e+00 : f32
    %652 = vector.broadcast %cst_260 : f32 to vector<16x64xf32>
    %653 = arith.maximumf %651, %652 : vector<16x64xf32>
    %654 = arith.truncf %543 : vector<16x64xf32> to vector<16x64xbf16>
    %cst_261 = arith.constant dense<0.000000e+00> : vector<32x64xf32>
    %655 = tpu.matmul %480, %654, %cst_261 {dimension_numbers = #tpu.dot_dimension_numbers<[1], [0], [0], [1], [0, 0, 1, 1], [], []>} : vector<32x16xbf16>, vector<16x64xbf16>, vector<32x64xf32> -> vector<32x64xf32>
    %656 = vector.broadcast %482 : vector<32x1xf32> to vector<32x64xf32>
    %657 = arith.addf %655, %656 : vector<32x64xf32>
    %658 = vector.extract_strided_slice %657 {offsets = [0, 0], sizes = [8, 64], strides = [1, 1]} : vector<32x64xf32> to vector<8x64xf32>
    %659 = vector.extract_strided_slice %657 {offsets = [8, 0], sizes = [8, 64], strides = [1, 1]} : vector<32x64xf32> to vector<8x64xf32>
    %660 = vector.extract_strided_slice %657 {offsets = [16, 0], sizes = [16, 64], strides = [1, 1]} : vector<32x64xf32> to vector<16x64xf32>
    %661 = tpu.transpose %658, [1, 0] : vector<8x64xf32> -> vector<64x8xf32>
    %662 = arith.truncf %661 : vector<64x8xf32> to vector<64x8xbf16>
    %663 = arith.truncf %659 : vector<8x64xf32> to vector<8x64xbf16>
    %cst_262 = arith.constant dense<0.000000e+00> : vector<64x64xf32>
    %664 = tpu.matmul %662, %663, %cst_262 {dimension_numbers = #tpu.dot_dimension_numbers<[1], [0], [0], [1], [0, 0, 1, 1], [], []>} : vector<64x8xbf16>, vector<8x64xbf16>, vector<64x64xf32> -> vector<64x64xf32>
    %cst_263 = arith.constant dense<0xFF800000> : vector<64xf32>
    %665 = vector.multi_reduction <maximumf>, %664, %cst_263 [1] : vector<64x64xf32> to vector<64xf32>
    %666 = vector.shape_cast %665 : vector<64xf32> to vector<64x1xf32>
    %667 = vector.broadcast %666 : vector<64x1xf32> to vector<64x64xf32>
    %668 = arith.subf %664, %667 : vector<64x64xf32>
    %669 = math.exp %668 : vector<64x64xf32>
    %670 = arith.truncf %660 : vector<16x64xf32> to vector<16x64xbf16>
    %cst_264 = arith.constant 1.000000e+00 : bf16
    %671 = vector.broadcast %cst_264 : bf16 to vector<1x64xbf16>
    %672 = tpu.concatenate %670, %671 in 0 : vector<16x64xbf16>, vector<1x64xbf16> -> vector<17x64xbf16>
    %673 = arith.truncf %669 : vector<64x64xf32> to vector<64x64xbf16>
    %cst_265 = arith.constant dense<0.000000e+00> : vector<17x64xf32>
    %674 = tpu.matmul %672, %673, %cst_265 {dimension_numbers = #tpu.dot_dimension_numbers<[1], [1], [0], [0], [0, 0, 1, 0], [], []>} : vector<17x64xbf16>, vector<64x64xbf16>, vector<17x64xf32> -> vector<17x64xf32>
    %675 = vector.extract_strided_slice %674 {offsets = [16, 0], sizes = [1, 64], strides = [1, 1]} : vector<17x64xf32> to vector<1x64xf32>
    %676 = tpu.reciprocal %675 {approx = true} : vector<1x64xf32> -> vector<1x64xf32>
    %677 = vector.extract_strided_slice %674 {offsets = [0, 0], sizes = [16, 64], strides = [1, 1]} : vector<17x64xf32> to vector<16x64xf32>
    %678 = vector.broadcast %676 : vector<1x64xf32> to vector<16x64xf32>
    %679 = arith.mulf %677, %678 : vector<16x64xf32>
    %680 = vector.broadcast %484 : vector<16x1xf32> to vector<16x64xf32>
    %681 = arith.addf %679, %680 : vector<16x64xf32>
    %682 = arith.addf %681, %543 : vector<16x64xf32>
    %683 = arith.truncf %682 : vector<16x64xf32> to vector<16x64xbf16>
    %cst_266 = arith.constant dense<0.000000e+00> : vector<16x64xf32>
    %684 = tpu.matmul %486, %683, %cst_266 {dimension_numbers = #tpu.dot_dimension_numbers<[1], [0], [0], [1], [0, 0, 1, 1], [], []>} : vector<16x16xbf16>, vector<16x64xbf16>, vector<16x64xf32> -> vector<16x64xf32>
    %685 = vector.broadcast %488 : vector<16x1xf32> to vector<16x64xf32>
    %686 = arith.addf %684, %685 : vector<16x64xf32>
    %687 = arith.negf %686 : vector<16x64xf32>
    %688 = math.exp %687 : vector<16x64xf32>
    %cst_267 = arith.constant 1.000000e+00 : f32
    %689 = vector.broadcast %cst_267 : f32 to vector<16x64xf32>
    %690 = arith.addf %689, %688 : vector<16x64xf32>
    %691 = arith.divf %689, %690 : vector<16x64xf32>
    %692 = arith.mulf %653, %691 : vector<16x64xf32>
    %693 = arith.truncf %692 : vector<16x64xf32> to vector<16x64xbf16>
    %cst_268 = arith.constant 0.000000e+00 : bf16
    %694 = vector.broadcast %cst_268 : bf16 to vector<16x9xbf16>
    %695 = vector.extract_strided_slice %693 {offsets = [0, 0], sizes = [16, 55], strides = [1, 1]} : vector<16x64xbf16> to vector<16x55xbf16>
    %696 = tpu.concatenate %694, %695 in 1 : vector<16x9xbf16>, vector<16x55xbf16> -> vector<16x64xbf16>
    %cst_269 = arith.constant 0.000000e+00 : bf16
    %697 = vector.broadcast %cst_269 : bf16 to vector<16x64xbf16>
    %698 = vector.shape_cast %39 : vector<1x64xi1> to vector<1x64xi1>
    %699 = vector.broadcast %698 : vector<1x64xi1> to vector<16x64xi1>
    %700 = arith.select %699, %696, %697 : vector<16x64xi1>, vector<16x64xbf16>
    %cst_270 = arith.constant 0.000000e+00 : bf16
    %701 = vector.broadcast %cst_270 : bf16 to vector<16x8xbf16>
    %702 = vector.extract_strided_slice %693 {offsets = [0, 0], sizes = [16, 56], strides = [1, 1]} : vector<16x64xbf16> to vector<16x56xbf16>
    %703 = tpu.concatenate %701, %702 in 1 : vector<16x8xbf16>, vector<16x56xbf16> -> vector<16x64xbf16>
    %cst_271 = arith.constant 0.000000e+00 : bf16
    %704 = vector.broadcast %cst_271 : bf16 to vector<16x7xbf16>
    %705 = vector.extract_strided_slice %693 {offsets = [0, 0], sizes = [16, 57], strides = [1, 1]} : vector<16x64xbf16> to vector<16x57xbf16>
    %706 = tpu.concatenate %704, %705 in 1 : vector<16x7xbf16>, vector<16x57xbf16> -> vector<16x64xbf16>
    %cst_272 = arith.constant 0.000000e+00 : bf16
    %707 = vector.broadcast %cst_272 : bf16 to vector<16x64xbf16>
    %708 = vector.shape_cast %41 : vector<1x64xi1> to vector<1x64xi1>
    %709 = vector.broadcast %708 : vector<1x64xi1> to vector<16x64xi1>
    %710 = arith.select %709, %706, %707 : vector<16x64xi1>, vector<16x64xbf16>
    %cst_273 = arith.constant 0.000000e+00 : bf16
    %711 = vector.broadcast %cst_273 : bf16 to vector<16x1xbf16>
    %712 = vector.extract_strided_slice %693 {offsets = [0, 0], sizes = [16, 63], strides = [1, 1]} : vector<16x64xbf16> to vector<16x63xbf16>
    %713 = tpu.concatenate %711, %712 in 1 : vector<16x1xbf16>, vector<16x63xbf16> -> vector<16x64xbf16>
    %cst_274 = arith.constant 0.000000e+00 : bf16
    %714 = vector.broadcast %cst_274 : bf16 to vector<16x64xbf16>
    %715 = vector.shape_cast %39 : vector<1x64xi1> to vector<1x64xi1>
    %716 = vector.broadcast %715 : vector<1x64xi1> to vector<16x64xi1>
    %717 = arith.select %716, %713, %714 : vector<16x64xi1>, vector<16x64xbf16>
    %718 = vector.extract_strided_slice %693 {offsets = [0, 1], sizes = [16, 63], strides = [1, 1]} : vector<16x64xbf16> to vector<16x63xbf16>
    %cst_275 = arith.constant 0.000000e+00 : bf16
    %719 = vector.broadcast %cst_275 : bf16 to vector<16x1xbf16>
    %720 = tpu.concatenate %718, %719 in 1 : vector<16x63xbf16>, vector<16x1xbf16> -> vector<16x64xbf16>
    %cst_276 = arith.constant 0.000000e+00 : bf16
    %721 = vector.broadcast %cst_276 : bf16 to vector<16x64xbf16>
    %722 = vector.shape_cast %41 : vector<1x64xi1> to vector<1x64xi1>
    %723 = vector.broadcast %722 : vector<1x64xi1> to vector<16x64xi1>
    %724 = arith.select %723, %720, %721 : vector<16x64xi1>, vector<16x64xbf16>
    %725 = vector.extract_strided_slice %693 {offsets = [0, 7], sizes = [16, 57], strides = [1, 1]} : vector<16x64xbf16> to vector<16x57xbf16>
    %cst_277 = arith.constant 0.000000e+00 : bf16
    %726 = vector.broadcast %cst_277 : bf16 to vector<16x7xbf16>
    %727 = tpu.concatenate %725, %726 in 1 : vector<16x57xbf16>, vector<16x7xbf16> -> vector<16x64xbf16>
    %cst_278 = arith.constant 0.000000e+00 : bf16
    %728 = vector.broadcast %cst_278 : bf16 to vector<16x64xbf16>
    %729 = vector.shape_cast %39 : vector<1x64xi1> to vector<1x64xi1>
    %730 = vector.broadcast %729 : vector<1x64xi1> to vector<16x64xi1>
    %731 = arith.select %730, %727, %728 : vector<16x64xi1>, vector<16x64xbf16>
    %732 = vector.extract_strided_slice %693 {offsets = [0, 8], sizes = [16, 56], strides = [1, 1]} : vector<16x64xbf16> to vector<16x56xbf16>
    %cst_279 = arith.constant 0.000000e+00 : bf16
    %733 = vector.broadcast %cst_279 : bf16 to vector<16x8xbf16>
    %734 = tpu.concatenate %732, %733 in 1 : vector<16x56xbf16>, vector<16x8xbf16> -> vector<16x64xbf16>
    %735 = vector.extract_strided_slice %693 {offsets = [0, 9], sizes = [16, 55], strides = [1, 1]} : vector<16x64xbf16> to vector<16x55xbf16>
    %cst_280 = arith.constant 0.000000e+00 : bf16
    %736 = vector.broadcast %cst_280 : bf16 to vector<16x9xbf16>
    %737 = tpu.concatenate %735, %736 in 1 : vector<16x55xbf16>, vector<16x9xbf16> -> vector<16x64xbf16>
    %cst_281 = arith.constant 0.000000e+00 : bf16
    %738 = vector.broadcast %cst_281 : bf16 to vector<16x64xbf16>
    %739 = vector.shape_cast %41 : vector<1x64xi1> to vector<1x64xi1>
    %740 = vector.broadcast %739 : vector<1x64xi1> to vector<16x64xi1>
    %741 = arith.select %740, %737, %738 : vector<16x64xi1>, vector<16x64xbf16>
    %742 = tpu.concatenate %700, %703, %710, %717, %693, %724, %731, %734, %741 in 0 : vector<16x64xbf16>, vector<16x64xbf16>, vector<16x64xbf16>, vector<16x64xbf16>, vector<16x64xbf16>, vector<16x64xbf16>, vector<16x64xbf16>, vector<16x64xbf16>, vector<16x64xbf16> -> vector<144x64xbf16>
    %cst_282 = arith.constant dense<0.000000e+00> : vector<16x64xf32>
    %743 = tpu.matmul %61, %742, %cst_282 {dimension_numbers = #tpu.dot_dimension_numbers<[1], [0], [0], [1], [0, 0, 1, 1], [], []>} : vector<16x144xbf16>, vector<144x64xbf16>, vector<16x64xf32> -> vector<16x64xf32>
    %744 = vector.broadcast %87 : vector<16x1xf32> to vector<16x64xf32>
    %745 = arith.addf %743, %744 : vector<16x64xf32>
    %cst_283 = arith.constant 0.000000e+00 : f32
    %746 = vector.broadcast %cst_283 : f32 to vector<16x64xf32>
    %747 = arith.maximumf %745, %746 : vector<16x64xf32>
    %748 = arith.addf %478, %747 : vector<16x64xf32>
    %749 = arith.truncf %748 : vector<16x64xf32> to vector<16x64xbf16>
    %c0_284 = arith.constant 0 : index
    %c0_285 = arith.constant 0 : index
    %750 = vector.load %arg15[%c0_284, %c0_285] : memref<64x256xbf16, #tpu.memory_space<vmem>>, vector<64x256xbf16>
    %cst_286 = arith.constant dense<0.000000e+00> : vector<16x256xf32>
    %751 = tpu.matmul %749, %750, %cst_286 {dimension_numbers = #tpu.dot_dimension_numbers<[1], [0], [0], [1], [0, 0, 1, 1], [], []>} : vector<16x64xbf16>, vector<64x256xbf16>, vector<16x256xf32> -> vector<16x256xf32>
    %c0_287 = arith.constant 0 : index
    %c0_288 = arith.constant 0 : index
    %752 = vector.load %arg9[%c0_287, %c0_288] : memref<8x16xbf16, #tpu.memory_space<vmem>>, vector<8x16xbf16>
    %c0_289 = arith.constant 0 : index
    %c0_290 = arith.constant 0 : index
    %753 = vector.load %arg10[%c0_289, %c0_290] : memref<8x1xf32, #tpu.memory_space<vmem>>, vector<8x1xf32>
    %754 = arith.truncf %751 : vector<16x256xf32> to vector<16x256xbf16>
    %cst_291 = arith.constant dense<0.000000e+00> : vector<8x256xf32>
    %755 = tpu.matmul %752, %754, %cst_291 {dimension_numbers = #tpu.dot_dimension_numbers<[1], [0], [0], [1], [0, 0, 1, 1], [], []>} : vector<8x16xbf16>, vector<16x256xbf16>, vector<8x256xf32> -> vector<8x256xf32>
    %756 = vector.broadcast %753 : vector<8x1xf32> to vector<8x256xf32>
    %757 = arith.addf %755, %756 : vector<8x256xf32>
    %c0_292 = arith.constant 0 : index
    %c0_293 = arith.constant 0 : index
    %758 = vector.load %arg11[%c0_292, %c0_293] : memref<24x16xbf16, #tpu.memory_space<vmem>>, vector<24x16xbf16>
    %c0_294 = arith.constant 0 : index
    %c0_295 = arith.constant 0 : index
    %759 = vector.load %arg12[%c0_294, %c0_295] : memref<24x1xf32, #tpu.memory_space<vmem>>, vector<24x1xf32>
    %760 = arith.truncf %475 : vector<16x256xf32> to vector<16x256xbf16>
    %cst_296 = arith.constant dense<0.000000e+00> : vector<24x256xf32>
    %761 = tpu.matmul %758, %760, %cst_296 {dimension_numbers = #tpu.dot_dimension_numbers<[1], [0], [0], [1], [0, 0, 1, 1], [], []>} : vector<24x16xbf16>, vector<16x256xbf16>, vector<24x256xf32> -> vector<24x256xf32>
    %762 = vector.broadcast %759 : vector<24x1xf32> to vector<24x256xf32>
    %763 = arith.addf %761, %762 : vector<24x256xf32>
    %764 = vector.extract_strided_slice %763 {offsets = [0, 0], sizes = [8, 256], strides = [1, 1]} : vector<24x256xf32> to vector<8x256xf32>
    %765 = vector.extract_strided_slice %763 {offsets = [8, 0], sizes = [16, 256], strides = [1, 1]} : vector<24x256xf32> to vector<16x256xf32>
    %c0_297 = arith.constant 0 : index
    %c0_298 = arith.constant 0 : index
    %766 = vector.load %arg13[%c0_297, %c0_298] : memref<16x1xf32, #tpu.memory_space<vmem>>, vector<16x1xf32>
    %767 = tpu.transpose %757, [1, 0] : vector<8x256xf32> -> vector<256x8xf32>
    %768 = arith.truncf %767 : vector<256x8xf32> to vector<256x8xbf16>
    %769 = arith.truncf %764 : vector<8x256xf32> to vector<8x256xbf16>
    %cst_299 = arith.constant dense<0.000000e+00> : vector<256x256xf32>
    %770 = tpu.matmul %768, %769, %cst_299 {dimension_numbers = #tpu.dot_dimension_numbers<[1], [0], [0], [1], [0, 0, 1, 1], [], []>} : vector<256x8xbf16>, vector<8x256xbf16>, vector<256x256xf32> -> vector<256x256xf32>
    %cst_300 = arith.constant dense<0xFF800000> : vector<256xf32>
    %771 = vector.multi_reduction <maximumf>, %770, %cst_300 [1] : vector<256x256xf32> to vector<256xf32>
    %772 = vector.shape_cast %771 : vector<256xf32> to vector<256x1xf32>
    %773 = vector.broadcast %772 : vector<256x1xf32> to vector<256x256xf32>
    %774 = arith.subf %770, %773 : vector<256x256xf32>
    %775 = math.exp %774 : vector<256x256xf32>
    %776 = arith.truncf %765 : vector<16x256xf32> to vector<16x256xbf16>
    %cst_301 = arith.constant 1.000000e+00 : bf16
    %777 = vector.broadcast %cst_301 : bf16 to vector<1x256xbf16>
    %778 = tpu.concatenate %776, %777 in 0 : vector<16x256xbf16>, vector<1x256xbf16> -> vector<17x256xbf16>
    %779 = arith.truncf %775 : vector<256x256xf32> to vector<256x256xbf16>
    %cst_302 = arith.constant dense<0.000000e+00> : vector<17x256xf32>
    %780 = tpu.matmul %778, %779, %cst_302 {dimension_numbers = #tpu.dot_dimension_numbers<[1], [1], [0], [0], [0, 0, 1, 0], [], []>} : vector<17x256xbf16>, vector<256x256xbf16>, vector<17x256xf32> -> vector<17x256xf32>
    %781 = vector.extract_strided_slice %780 {offsets = [16, 0], sizes = [1, 256], strides = [1, 1]} : vector<17x256xf32> to vector<1x256xf32>
    %782 = tpu.reciprocal %781 {approx = true} : vector<1x256xf32> -> vector<1x256xf32>
    %783 = vector.extract_strided_slice %780 {offsets = [0, 0], sizes = [16, 256], strides = [1, 1]} : vector<17x256xf32> to vector<16x256xf32>
    %784 = vector.broadcast %782 : vector<1x256xf32> to vector<16x256xf32>
    %785 = arith.mulf %783, %784 : vector<16x256xf32>
    %786 = vector.broadcast %766 : vector<16x1xf32> to vector<16x256xf32>
    %787 = arith.addf %785, %786 : vector<16x256xf32>
    %788 = arith.addf %787, %475 : vector<16x256xf32>
    %789 = arith.truncf %788 : vector<16x256xf32> to vector<16x256xbf16>
    %cst_303 = arith.constant 0.000000e+00 : bf16
    %790 = vector.broadcast %cst_303 : bf16 to vector<16x17xbf16>
    %791 = vector.extract_strided_slice %789 {offsets = [0, 0], sizes = [16, 239], strides = [1, 1]} : vector<16x256xbf16> to vector<16x239xbf16>
    %792 = tpu.concatenate %790, %791 in 1 : vector<16x17xbf16>, vector<16x239xbf16> -> vector<16x256xbf16>
    %cst_304 = arith.constant 0.000000e+00 : bf16
    %793 = vector.broadcast %cst_304 : bf16 to vector<16x256xbf16>
    %794 = vector.shape_cast %18 : vector<1x256xi1> to vector<1x256xi1>
    %795 = vector.broadcast %794 : vector<1x256xi1> to vector<16x256xi1>
    %796 = arith.select %795, %792, %793 : vector<16x256xi1>, vector<16x256xbf16>
    %cst_305 = arith.constant 0.000000e+00 : bf16
    %797 = vector.broadcast %cst_305 : bf16 to vector<16x16xbf16>
    %798 = vector.extract_strided_slice %789 {offsets = [0, 0], sizes = [16, 240], strides = [1, 1]} : vector<16x256xbf16> to vector<16x240xbf16>
    %799 = tpu.concatenate %797, %798 in 1 : vector<16x16xbf16>, vector<16x240xbf16> -> vector<16x256xbf16>
    %cst_306 = arith.constant 0.000000e+00 : bf16
    %800 = vector.broadcast %cst_306 : bf16 to vector<16x15xbf16>
    %801 = vector.extract_strided_slice %789 {offsets = [0, 0], sizes = [16, 241], strides = [1, 1]} : vector<16x256xbf16> to vector<16x241xbf16>
    %802 = tpu.concatenate %800, %801 in 1 : vector<16x15xbf16>, vector<16x241xbf16> -> vector<16x256xbf16>
    %cst_307 = arith.constant 0.000000e+00 : bf16
    %803 = vector.broadcast %cst_307 : bf16 to vector<16x256xbf16>
    %804 = vector.shape_cast %20 : vector<1x256xi1> to vector<1x256xi1>
    %805 = vector.broadcast %804 : vector<1x256xi1> to vector<16x256xi1>
    %806 = arith.select %805, %802, %803 : vector<16x256xi1>, vector<16x256xbf16>
    %cst_308 = arith.constant 0.000000e+00 : bf16
    %807 = vector.broadcast %cst_308 : bf16 to vector<16x1xbf16>
    %808 = vector.extract_strided_slice %789 {offsets = [0, 0], sizes = [16, 255], strides = [1, 1]} : vector<16x256xbf16> to vector<16x255xbf16>
    %809 = tpu.concatenate %807, %808 in 1 : vector<16x1xbf16>, vector<16x255xbf16> -> vector<16x256xbf16>
    %cst_309 = arith.constant 0.000000e+00 : bf16
    %810 = vector.broadcast %cst_309 : bf16 to vector<16x256xbf16>
    %811 = vector.shape_cast %18 : vector<1x256xi1> to vector<1x256xi1>
    %812 = vector.broadcast %811 : vector<1x256xi1> to vector<16x256xi1>
    %813 = arith.select %812, %809, %810 : vector<16x256xi1>, vector<16x256xbf16>
    %814 = vector.extract_strided_slice %789 {offsets = [0, 1], sizes = [16, 255], strides = [1, 1]} : vector<16x256xbf16> to vector<16x255xbf16>
    %cst_310 = arith.constant 0.000000e+00 : bf16
    %815 = vector.broadcast %cst_310 : bf16 to vector<16x1xbf16>
    %816 = tpu.concatenate %814, %815 in 1 : vector<16x255xbf16>, vector<16x1xbf16> -> vector<16x256xbf16>
    %cst_311 = arith.constant 0.000000e+00 : bf16
    %817 = vector.broadcast %cst_311 : bf16 to vector<16x256xbf16>
    %818 = vector.shape_cast %20 : vector<1x256xi1> to vector<1x256xi1>
    %819 = vector.broadcast %818 : vector<1x256xi1> to vector<16x256xi1>
    %820 = arith.select %819, %816, %817 : vector<16x256xi1>, vector<16x256xbf16>
    %821 = vector.extract_strided_slice %789 {offsets = [0, 15], sizes = [16, 241], strides = [1, 1]} : vector<16x256xbf16> to vector<16x241xbf16>
    %cst_312 = arith.constant 0.000000e+00 : bf16
    %822 = vector.broadcast %cst_312 : bf16 to vector<16x15xbf16>
    %823 = tpu.concatenate %821, %822 in 1 : vector<16x241xbf16>, vector<16x15xbf16> -> vector<16x256xbf16>
    %cst_313 = arith.constant 0.000000e+00 : bf16
    %824 = vector.broadcast %cst_313 : bf16 to vector<16x256xbf16>
    %825 = vector.shape_cast %18 : vector<1x256xi1> to vector<1x256xi1>
    %826 = vector.broadcast %825 : vector<1x256xi1> to vector<16x256xi1>
    %827 = arith.select %826, %823, %824 : vector<16x256xi1>, vector<16x256xbf16>
    %828 = vector.extract_strided_slice %789 {offsets = [0, 16], sizes = [16, 240], strides = [1, 1]} : vector<16x256xbf16> to vector<16x240xbf16>
    %cst_314 = arith.constant 0.000000e+00 : bf16
    %829 = vector.broadcast %cst_314 : bf16 to vector<16x16xbf16>
    %830 = tpu.concatenate %828, %829 in 1 : vector<16x240xbf16>, vector<16x16xbf16> -> vector<16x256xbf16>
    %831 = vector.extract_strided_slice %789 {offsets = [0, 17], sizes = [16, 239], strides = [1, 1]} : vector<16x256xbf16> to vector<16x239xbf16>
    %cst_315 = arith.constant 0.000000e+00 : bf16
    %832 = vector.broadcast %cst_315 : bf16 to vector<16x17xbf16>
    %833 = tpu.concatenate %831, %832 in 1 : vector<16x239xbf16>, vector<16x17xbf16> -> vector<16x256xbf16>
    %cst_316 = arith.constant 0.000000e+00 : bf16
    %834 = vector.broadcast %cst_316 : bf16 to vector<16x256xbf16>
    %835 = vector.shape_cast %20 : vector<1x256xi1> to vector<1x256xi1>
    %836 = vector.broadcast %835 : vector<1x256xi1> to vector<16x256xi1>
    %837 = arith.select %836, %833, %834 : vector<16x256xi1>, vector<16x256xbf16>
    %838 = tpu.concatenate %796, %799, %806, %813, %789, %820, %827, %830, %837 in 0 : vector<16x256xbf16>, vector<16x256xbf16>, vector<16x256xbf16>, vector<16x256xbf16>, vector<16x256xbf16>, vector<16x256xbf16>, vector<16x256xbf16>, vector<16x256xbf16>, vector<16x256xbf16> -> vector<144x256xbf16>
    %cst_317 = arith.constant dense<0.000000e+00> : vector<16x256xf32>
    %839 = tpu.matmul %63, %838, %cst_317 {dimension_numbers = #tpu.dot_dimension_numbers<[1], [0], [0], [1], [0, 0, 1, 1], [], []>} : vector<16x144xbf16>, vector<144x256xbf16>, vector<16x256xf32> -> vector<16x256xf32>
    %840 = vector.broadcast %89 : vector<16x1xf32> to vector<16x256xf32>
    %841 = arith.addf %839, %840 : vector<16x256xf32>
    %cst_318 = arith.constant 0.000000e+00 : f32
    %842 = vector.broadcast %cst_318 : f32 to vector<16x256xf32>
    %843 = arith.maximumf %841, %842 : vector<16x256xf32>
    %844 = arith.addf %205, %843 : vector<16x256xf32>
    %845 = arith.truncf %844 : vector<16x256xf32> to vector<16x256xbf16>
    %cst_319 = arith.constant 0.000000e+00 : bf16
    %846 = vector.broadcast %cst_319 : bf16 to vector<16x17xbf16>
    %847 = vector.extract_strided_slice %845 {offsets = [0, 0], sizes = [16, 239], strides = [1, 1]} : vector<16x256xbf16> to vector<16x239xbf16>
    %848 = tpu.concatenate %846, %847 in 1 : vector<16x17xbf16>, vector<16x239xbf16> -> vector<16x256xbf16>
    %cst_320 = arith.constant 0.000000e+00 : bf16
    %849 = vector.broadcast %cst_320 : bf16 to vector<16x256xbf16>
    %850 = vector.shape_cast %18 : vector<1x256xi1> to vector<1x256xi1>
    %851 = vector.broadcast %850 : vector<1x256xi1> to vector<16x256xi1>
    %852 = arith.select %851, %848, %849 : vector<16x256xi1>, vector<16x256xbf16>
    %cst_321 = arith.constant 0.000000e+00 : bf16
    %853 = vector.broadcast %cst_321 : bf16 to vector<16x16xbf16>
    %854 = vector.extract_strided_slice %845 {offsets = [0, 0], sizes = [16, 240], strides = [1, 1]} : vector<16x256xbf16> to vector<16x240xbf16>
    %855 = tpu.concatenate %853, %854 in 1 : vector<16x16xbf16>, vector<16x240xbf16> -> vector<16x256xbf16>
    %cst_322 = arith.constant 0.000000e+00 : bf16
    %856 = vector.broadcast %cst_322 : bf16 to vector<16x15xbf16>
    %857 = vector.extract_strided_slice %845 {offsets = [0, 0], sizes = [16, 241], strides = [1, 1]} : vector<16x256xbf16> to vector<16x241xbf16>
    %858 = tpu.concatenate %856, %857 in 1 : vector<16x15xbf16>, vector<16x241xbf16> -> vector<16x256xbf16>
    %cst_323 = arith.constant 0.000000e+00 : bf16
    %859 = vector.broadcast %cst_323 : bf16 to vector<16x256xbf16>
    %860 = vector.shape_cast %20 : vector<1x256xi1> to vector<1x256xi1>
    %861 = vector.broadcast %860 : vector<1x256xi1> to vector<16x256xi1>
    %862 = arith.select %861, %858, %859 : vector<16x256xi1>, vector<16x256xbf16>
    %cst_324 = arith.constant 0.000000e+00 : bf16
    %863 = vector.broadcast %cst_324 : bf16 to vector<16x1xbf16>
    %864 = vector.extract_strided_slice %845 {offsets = [0, 0], sizes = [16, 255], strides = [1, 1]} : vector<16x256xbf16> to vector<16x255xbf16>
    %865 = tpu.concatenate %863, %864 in 1 : vector<16x1xbf16>, vector<16x255xbf16> -> vector<16x256xbf16>
    %cst_325 = arith.constant 0.000000e+00 : bf16
    %866 = vector.broadcast %cst_325 : bf16 to vector<16x256xbf16>
    %867 = vector.shape_cast %18 : vector<1x256xi1> to vector<1x256xi1>
    %868 = vector.broadcast %867 : vector<1x256xi1> to vector<16x256xi1>
    %869 = arith.select %868, %865, %866 : vector<16x256xi1>, vector<16x256xbf16>
    %870 = vector.extract_strided_slice %845 {offsets = [0, 1], sizes = [16, 255], strides = [1, 1]} : vector<16x256xbf16> to vector<16x255xbf16>
    %cst_326 = arith.constant 0.000000e+00 : bf16
    %871 = vector.broadcast %cst_326 : bf16 to vector<16x1xbf16>
    %872 = tpu.concatenate %870, %871 in 1 : vector<16x255xbf16>, vector<16x1xbf16> -> vector<16x256xbf16>
    %cst_327 = arith.constant 0.000000e+00 : bf16
    %873 = vector.broadcast %cst_327 : bf16 to vector<16x256xbf16>
    %874 = vector.shape_cast %20 : vector<1x256xi1> to vector<1x256xi1>
    %875 = vector.broadcast %874 : vector<1x256xi1> to vector<16x256xi1>
    %876 = arith.select %875, %872, %873 : vector<16x256xi1>, vector<16x256xbf16>
    %877 = vector.extract_strided_slice %845 {offsets = [0, 15], sizes = [16, 241], strides = [1, 1]} : vector<16x256xbf16> to vector<16x241xbf16>
    %cst_328 = arith.constant 0.000000e+00 : bf16
    %878 = vector.broadcast %cst_328 : bf16 to vector<16x15xbf16>
    %879 = tpu.concatenate %877, %878 in 1 : vector<16x241xbf16>, vector<16x15xbf16> -> vector<16x256xbf16>
    %cst_329 = arith.constant 0.000000e+00 : bf16
    %880 = vector.broadcast %cst_329 : bf16 to vector<16x256xbf16>
    %881 = vector.shape_cast %18 : vector<1x256xi1> to vector<1x256xi1>
    %882 = vector.broadcast %881 : vector<1x256xi1> to vector<16x256xi1>
    %883 = arith.select %882, %879, %880 : vector<16x256xi1>, vector<16x256xbf16>
    %884 = vector.extract_strided_slice %845 {offsets = [0, 16], sizes = [16, 240], strides = [1, 1]} : vector<16x256xbf16> to vector<16x240xbf16>
    %cst_330 = arith.constant 0.000000e+00 : bf16
    %885 = vector.broadcast %cst_330 : bf16 to vector<16x16xbf16>
    %886 = tpu.concatenate %884, %885 in 1 : vector<16x240xbf16>, vector<16x16xbf16> -> vector<16x256xbf16>
    %887 = vector.extract_strided_slice %845 {offsets = [0, 17], sizes = [16, 239], strides = [1, 1]} : vector<16x256xbf16> to vector<16x239xbf16>
    %cst_331 = arith.constant 0.000000e+00 : bf16
    %888 = vector.broadcast %cst_331 : bf16 to vector<16x17xbf16>
    %889 = tpu.concatenate %887, %888 in 1 : vector<16x239xbf16>, vector<16x17xbf16> -> vector<16x256xbf16>
    %cst_332 = arith.constant 0.000000e+00 : bf16
    %890 = vector.broadcast %cst_332 : bf16 to vector<16x256xbf16>
    %891 = vector.shape_cast %20 : vector<1x256xi1> to vector<1x256xi1>
    %892 = vector.broadcast %891 : vector<1x256xi1> to vector<16x256xi1>
    %893 = arith.select %892, %889, %890 : vector<16x256xi1>, vector<16x256xbf16>
    %894 = tpu.concatenate %852, %855, %862, %869, %845, %876, %883, %886, %893 in 0 : vector<16x256xbf16>, vector<16x256xbf16>, vector<16x256xbf16>, vector<16x256xbf16>, vector<16x256xbf16>, vector<16x256xbf16>, vector<16x256xbf16>, vector<16x256xbf16>, vector<16x256xbf16> -> vector<144x256xbf16>
    %cst_333 = arith.constant dense<0.000000e+00> : vector<16x256xf32>
    %895 = tpu.matmul %65, %894, %cst_333 {dimension_numbers = #tpu.dot_dimension_numbers<[1], [0], [0], [1], [0, 0, 1, 1], [], []>} : vector<16x144xbf16>, vector<144x256xbf16>, vector<16x256xf32> -> vector<16x256xf32>
    %896 = vector.broadcast %91 : vector<16x1xf32> to vector<16x256xf32>
    %897 = arith.addf %895, %896 : vector<16x256xf32>
    %cst_334 = arith.constant 0.000000e+00 : f32
    %898 = vector.broadcast %cst_334 : f32 to vector<16x256xf32>
    %899 = arith.maximumf %897, %898 : vector<16x256xf32>
    %900 = arith.truncf %899 : vector<16x256xf32> to vector<16x256xbf16>
    %cst_335 = arith.constant 0.000000e+00 : bf16
    %901 = vector.broadcast %cst_335 : bf16 to vector<16x17xbf16>
    %902 = vector.extract_strided_slice %900 {offsets = [0, 0], sizes = [16, 239], strides = [1, 1]} : vector<16x256xbf16> to vector<16x239xbf16>
    %903 = tpu.concatenate %901, %902 in 1 : vector<16x17xbf16>, vector<16x239xbf16> -> vector<16x256xbf16>
    %cst_336 = arith.constant 0.000000e+00 : bf16
    %904 = vector.broadcast %cst_336 : bf16 to vector<16x256xbf16>
    %905 = vector.shape_cast %18 : vector<1x256xi1> to vector<1x256xi1>
    %906 = vector.broadcast %905 : vector<1x256xi1> to vector<16x256xi1>
    %907 = arith.select %906, %903, %904 : vector<16x256xi1>, vector<16x256xbf16>
    %cst_337 = arith.constant 0.000000e+00 : bf16
    %908 = vector.broadcast %cst_337 : bf16 to vector<16x16xbf16>
    %909 = vector.extract_strided_slice %900 {offsets = [0, 0], sizes = [16, 240], strides = [1, 1]} : vector<16x256xbf16> to vector<16x240xbf16>
    %910 = tpu.concatenate %908, %909 in 1 : vector<16x16xbf16>, vector<16x240xbf16> -> vector<16x256xbf16>
    %cst_338 = arith.constant 0.000000e+00 : bf16
    %911 = vector.broadcast %cst_338 : bf16 to vector<16x15xbf16>
    %912 = vector.extract_strided_slice %900 {offsets = [0, 0], sizes = [16, 241], strides = [1, 1]} : vector<16x256xbf16> to vector<16x241xbf16>
    %913 = tpu.concatenate %911, %912 in 1 : vector<16x15xbf16>, vector<16x241xbf16> -> vector<16x256xbf16>
    %cst_339 = arith.constant 0.000000e+00 : bf16
    %914 = vector.broadcast %cst_339 : bf16 to vector<16x256xbf16>
    %915 = vector.shape_cast %20 : vector<1x256xi1> to vector<1x256xi1>
    %916 = vector.broadcast %915 : vector<1x256xi1> to vector<16x256xi1>
    %917 = arith.select %916, %913, %914 : vector<16x256xi1>, vector<16x256xbf16>
    %cst_340 = arith.constant 0.000000e+00 : bf16
    %918 = vector.broadcast %cst_340 : bf16 to vector<16x1xbf16>
    %919 = vector.extract_strided_slice %900 {offsets = [0, 0], sizes = [16, 255], strides = [1, 1]} : vector<16x256xbf16> to vector<16x255xbf16>
    %920 = tpu.concatenate %918, %919 in 1 : vector<16x1xbf16>, vector<16x255xbf16> -> vector<16x256xbf16>
    %cst_341 = arith.constant 0.000000e+00 : bf16
    %921 = vector.broadcast %cst_341 : bf16 to vector<16x256xbf16>
    %922 = vector.shape_cast %18 : vector<1x256xi1> to vector<1x256xi1>
    %923 = vector.broadcast %922 : vector<1x256xi1> to vector<16x256xi1>
    %924 = arith.select %923, %920, %921 : vector<16x256xi1>, vector<16x256xbf16>
    %925 = vector.extract_strided_slice %900 {offsets = [0, 1], sizes = [16, 255], strides = [1, 1]} : vector<16x256xbf16> to vector<16x255xbf16>
    %cst_342 = arith.constant 0.000000e+00 : bf16
    %926 = vector.broadcast %cst_342 : bf16 to vector<16x1xbf16>
    %927 = tpu.concatenate %925, %926 in 1 : vector<16x255xbf16>, vector<16x1xbf16> -> vector<16x256xbf16>
    %cst_343 = arith.constant 0.000000e+00 : bf16
    %928 = vector.broadcast %cst_343 : bf16 to vector<16x256xbf16>
    %929 = vector.shape_cast %20 : vector<1x256xi1> to vector<1x256xi1>
    %930 = vector.broadcast %929 : vector<1x256xi1> to vector<16x256xi1>
    %931 = arith.select %930, %927, %928 : vector<16x256xi1>, vector<16x256xbf16>
    %932 = vector.extract_strided_slice %900 {offsets = [0, 15], sizes = [16, 241], strides = [1, 1]} : vector<16x256xbf16> to vector<16x241xbf16>
    %cst_344 = arith.constant 0.000000e+00 : bf16
    %933 = vector.broadcast %cst_344 : bf16 to vector<16x15xbf16>
    %934 = tpu.concatenate %932, %933 in 1 : vector<16x241xbf16>, vector<16x15xbf16> -> vector<16x256xbf16>
    %cst_345 = arith.constant 0.000000e+00 : bf16
    %935 = vector.broadcast %cst_345 : bf16 to vector<16x256xbf16>
    %936 = vector.shape_cast %18 : vector<1x256xi1> to vector<1x256xi1>
    %937 = vector.broadcast %936 : vector<1x256xi1> to vector<16x256xi1>
    %938 = arith.select %937, %934, %935 : vector<16x256xi1>, vector<16x256xbf16>
    %939 = vector.extract_strided_slice %900 {offsets = [0, 16], sizes = [16, 240], strides = [1, 1]} : vector<16x256xbf16> to vector<16x240xbf16>
    %cst_346 = arith.constant 0.000000e+00 : bf16
    %940 = vector.broadcast %cst_346 : bf16 to vector<16x16xbf16>
    %941 = tpu.concatenate %939, %940 in 1 : vector<16x240xbf16>, vector<16x16xbf16> -> vector<16x256xbf16>
    %942 = vector.extract_strided_slice %900 {offsets = [0, 17], sizes = [16, 239], strides = [1, 1]} : vector<16x256xbf16> to vector<16x239xbf16>
    %cst_347 = arith.constant 0.000000e+00 : bf16
    %943 = vector.broadcast %cst_347 : bf16 to vector<16x17xbf16>
    %944 = tpu.concatenate %942, %943 in 1 : vector<16x239xbf16>, vector<16x17xbf16> -> vector<16x256xbf16>
    %cst_348 = arith.constant 0.000000e+00 : bf16
    %945 = vector.broadcast %cst_348 : bf16 to vector<16x256xbf16>
    %946 = vector.shape_cast %20 : vector<1x256xi1> to vector<1x256xi1>
    %947 = vector.broadcast %946 : vector<1x256xi1> to vector<16x256xi1>
    %948 = arith.select %947, %944, %945 : vector<16x256xi1>, vector<16x256xbf16>
    %949 = tpu.concatenate %907, %910, %917, %924, %900, %931, %938, %941, %948 in 0 : vector<16x256xbf16>, vector<16x256xbf16>, vector<16x256xbf16>, vector<16x256xbf16>, vector<16x256xbf16>, vector<16x256xbf16>, vector<16x256xbf16>, vector<16x256xbf16>, vector<16x256xbf16> -> vector<144x256xbf16>
    %cst_349 = arith.constant dense<0.000000e+00> : vector<16x256xf32>
    %950 = tpu.matmul %67, %949, %cst_349 {dimension_numbers = #tpu.dot_dimension_numbers<[1], [0], [0], [1], [0, 0, 1, 1], [], []>} : vector<16x144xbf16>, vector<144x256xbf16>, vector<16x256xf32> -> vector<16x256xf32>
    %951 = vector.broadcast %93 : vector<16x1xf32> to vector<16x256xf32>
    %952 = arith.addf %950, %951 : vector<16x256xf32>
    %cst_350 = arith.constant 0.000000e+00 : f32
    %953 = vector.broadcast %cst_350 : f32 to vector<16x256xf32>
    %954 = arith.maximumf %952, %953 : vector<16x256xf32>
    %955 = arith.addf %95, %954 : vector<16x256xf32>
    %c0_351 = arith.constant 0 : index
    %c0_352 = arith.constant 0 : index
    %c0_353 = arith.constant 0 : index
    %956 = vector.load %arg16[%c0_351, %c0_352, %c0_353] : memref<1x16x256xf32, #tpu.memory_space<vmem>>, vector<1x16x256xf32>
    %957 = vector.shape_cast %956 : vector<1x16x256xf32> to vector<16x256xf32>
    %958 = vector.shape_cast %955 : vector<16x256xf32> to vector<1x16x256xf32>
    tpu.vector_store %arg16[%c0_351, %c0_352, %c0_353], %958 {strides = array<i32>} : memref<1x16x256xf32, #tpu.memory_space<vmem>>, vector<1x16x256xf32>,
    return
  }
  func.func @transform_0(%arg0: i32) -> (i32, i32, i32) {
    %c0_i32 = arith.constant 0 : i32
    %c0_i32_0 = arith.constant 0 : i32
    %c0_i32_1 = arith.constant 0 : i32
    return %arg0, %c0_i32, %c0_i32_0 : i32, i32, i32
  }
  func.func @transform_1(%arg0: i32) -> (i32, i32, i32) {
    %c0_i32 = arith.constant 0 : i32
    %c0_i32_0 = arith.constant 0 : i32
    %c0_i32_1 = arith.constant 0 : i32
    %c0_i32_2 = arith.constant 0 : i32
    return %c0_i32, %c0_i32_0, %c0_i32_1 : i32, i32, i32
  }
  func.func @transform_2(%arg0: i32) -> (i32, i32, i32) {
    %c0_i32 = arith.constant 0 : i32
    %c0_i32_0 = arith.constant 0 : i32
    %c0_i32_1 = arith.constant 0 : i32
    %c0_i32_2 = arith.constant 0 : i32
    return %c0_i32, %c0_i32_0, %c0_i32_1 : i32, i32, i32
  }
  func.func @transform_3(%arg0: i32) -> (i32, i32, i32) {
    %c0_i32 = arith.constant 0 : i32
    %c0_i32_0 = arith.constant 0 : i32
    %c0_i32_1 = arith.constant 0 : i32
    %c0_i32_2 = arith.constant 0 : i32
    return %c0_i32, %c0_i32_0, %c0_i32_1 : i32, i32, i32
  }
  func.func @transform_4(%arg0: i32) -> (i32, i32, i32) {
    %c0_i32 = arith.constant 0 : i32
    %c0_i32_0 = arith.constant 0 : i32
    %c0_i32_1 = arith.constant 0 : i32
    %c0_i32_2 = arith.constant 0 : i32
    return %c0_i32, %c0_i32_0, %c0_i32_1 : i32, i32, i32
  }
  func.func @transform_5(%arg0: i32) -> (i32, i32, i32) {
    %c0_i32 = arith.constant 0 : i32
    %c0_i32_0 = arith.constant 0 : i32
    %c0_i32_1 = arith.constant 0 : i32
    %c0_i32_2 = arith.constant 0 : i32
    return %c0_i32, %c0_i32_0, %c0_i32_1 : i32, i32, i32
  }
  func.func @transform_6(%arg0: i32) -> (i32, i32, i32) {
    %c0_i32 = arith.constant 0 : i32
    %c0_i32_0 = arith.constant 0 : i32
    %c0_i32_1 = arith.constant 0 : i32
    %c0_i32_2 = arith.constant 0 : i32
    return %c0_i32, %c0_i32_0, %c0_i32_1 : i32, i32, i32
  }
  func.func @transform_7(%arg0: i32) -> (i32, i32, i32) {
    %c0_i32 = arith.constant 0 : i32
    %c0_i32_0 = arith.constant 0 : i32
    %c0_i32_1 = arith.constant 0 : i32
    %c0_i32_2 = arith.constant 0 : i32
    return %c0_i32, %c0_i32_0, %c0_i32_1 : i32, i32, i32
  }
  func.func @transform_8(%arg0: i32) -> (i32, i32) {
    %c0_i32 = arith.constant 0 : i32
    %c0_i32_0 = arith.constant 0 : i32
    %c0_i32_1 = arith.constant 0 : i32
    return %c0_i32, %c0_i32_0 : i32, i32
  }
  func.func @transform_9(%arg0: i32) -> (i32, i32) {
    %c0_i32 = arith.constant 0 : i32
    %c0_i32_0 = arith.constant 0 : i32
    %c0_i32_1 = arith.constant 0 : i32
    return %c0_i32, %c0_i32_0 : i32, i32
  }
  func.func @transform_10(%arg0: i32) -> (i32, i32) {
    %c0_i32 = arith.constant 0 : i32
    %c0_i32_0 = arith.constant 0 : i32
    %c0_i32_1 = arith.constant 0 : i32
    return %c0_i32, %c0_i32_0 : i32, i32
  }
  func.func @transform_11(%arg0: i32) -> (i32, i32) {
    %c0_i32 = arith.constant 0 : i32
    %c0_i32_0 = arith.constant 0 : i32
    %c0_i32_1 = arith.constant 0 : i32
    return %c0_i32, %c0_i32_0 : i32, i32
  }
  func.func @transform_12(%arg0: i32) -> (i32, i32) {
    %c0_i32 = arith.constant 0 : i32
    %c0_i32_0 = arith.constant 0 : i32
    %c0_i32_1 = arith.constant 0 : i32
    return %c0_i32, %c0_i32_0 : i32, i32
  }
  func.func @transform_13(%arg0: i32) -> (i32, i32) {
    %c0_i32 = arith.constant 0 : i32
    %c0_i32_0 = arith.constant 0 : i32
    %c0_i32_1 = arith.constant 0 : i32
    return %c0_i32, %c0_i32_0 : i32, i32
  }
  func.func @transform_14(%arg0: i32) -> (i32, i32) {
    %c0_i32 = arith.constant 0 : i32
    %c0_i32_0 = arith.constant 0 : i32
    %c0_i32_1 = arith.constant 0 : i32
    return %c0_i32, %c0_i32_0 : i32, i32
  }
  func.func @transform_15(%arg0: i32) -> (i32, i32, i32) {
    %c0_i32 = arith.constant 0 : i32
    %c0_i32_0 = arith.constant 0 : i32
    %c0_i32_1 = arith.constant 0 : i32
    return %arg0, %c0_i32, %c0_i32_0 : i32, i32, i32
  }
}

</mosaic_0001>

<llo_original>
// kernel: basic_module.1
$region0: #{basic_module.1}
  #allocation0 [shape = 'u32[]', space=smem, size = 0x4, offset = 0x4, fixed_abs, tag = 'smem constant byte address 0x4 - core index']
  #allocation1 [shape = 'u32[144,128]{1,0:T(1,128)}', space=vmem, size = 0x12000, scoped, tag = 'internal scratch']
  %s0 = inlined_call_operand.vmem [shape: f32[2,16,256], index: 0, kind: input, shape index: {}]
  %s1 = inlined_call_operand.vmem [shape: bf16[13,16,144], index: 1, kind: input, shape index: {}]
  %s2 = inlined_call_operand.vmem [shape: f32[13,16,1], index: 2, kind: input, shape index: {}]
  %s3 = inlined_call_operand.vmem [shape: bf16[2,32,16], index: 3, kind: input, shape index: {}]
  %s4 = inlined_call_operand.vmem [shape: f32[2,32,1], index: 4, kind: input, shape index: {}]
  %s5 = inlined_call_operand.vmem [shape: f32[2,16,1], index: 5, kind: input, shape index: {}]
  %s6 = inlined_call_operand.vmem [shape: bf16[2,16,16], index: 6, kind: input, shape index: {}]
  %s7 = inlined_call_operand.vmem [shape: f32[2,16,1], index: 7, kind: input, shape index: {}]
  %s8 = inlined_call_operand.vmem [shape: bf16[8,16], index: 8, kind: input, shape index: {}]
  %s9 = inlined_call_operand.vmem [shape: f32[8,1], index: 9, kind: input, shape index: {}]
  %s10 = inlined_call_operand.vmem [shape: bf16[24,16], index: 10, kind: input, shape index: {}]
  %s11 = inlined_call_operand.vmem [shape: f32[24,1], index: 11, kind: input, shape index: {}]
  %s12 = inlined_call_operand.vmem [shape: f32[16,1], index: 12, kind: input, shape index: {}]
  %s13 = inlined_call_operand.vmem [shape: bf16[256,64], index: 13, kind: input, shape index: {}]
  %s14 = inlined_call_operand.vmem [shape: bf16[64,256], index: 14, kind: input, shape index: {}]
  %s15 = inlined_call_operand.vmem [shape: f32[2,16,256], index: 15, kind: output, shape index: {}]
  %s16 = sld [smem:[#allocation0]]
  $region93: #{basic_module.1} parent=0
    _
  %s18 = ssub.s32 1, %s16
  %s19 = scalar_select 0, %s18, %s16
  loop: start=0, step=1, limit=4
  $region2: #{basic_module.1} parent=0 // loop_pre_header
    _
  $region3: #{basic_module.1} parent=0 // loop_header
    %s21 = sphi 0, %s25
    %p22 = scmp.ge.s32.totalorder %s21, 4
    %s31 = sphi 0, %s33
    %s34 = sphi 0, %s31
    %s35 = sphi 0, %s34
    %s51 = sphi 0, %s35
    %s55 = sphi 0, %s55
    %s57 = sphi 0, %s55
    %s58 = sphi 0, %s57
    %s72 = sphi 0, %s58
    %s76 = sphi 0, %s76
    %s78 = sphi 0, %s76
    %s79 = sphi 0, %s78
    %s93 = sphi 0, %s79
    %s97 = sphi 0, %s97
    %s99 = sphi 0, %s97
    %s100 = sphi 0, %s99
    %s114 = sphi 0, %s100
    %s118 = sphi 0, %s118
    %s120 = sphi 0, %s118
    %s121 = sphi 0, %s120
    %s135 = sphi 0, %s121
    %s139 = sphi 0, %s139
    %s141 = sphi 0, %s139
    %s142 = sphi 0, %s141
    %s156 = sphi 0, %s142
    %s160 = sphi 0, %s160
    %s162 = sphi 0, %s160
    %s163 = sphi 0, %s162
    %s177 = sphi 0, %s163
    %s181 = sphi 0, %s181
    %s183 = sphi 0, %s181
    %s184 = sphi 0, %s183
    %s198 = sphi 0, %s184
    %s202 = sphi 0, %s202
    %s204 = sphi 0, %s202
    %s205 = sphi 0, %s204
    %s219 = sphi 0, %s205
    %s223 = sphi 0, %s223
    %s225 = sphi 0, %s223
    %s226 = sphi 0, %s225
    %s240 = sphi 0, %s226
    %s244 = sphi 0, %s244
    %s246 = sphi 0, %s244
    %s247 = sphi 0, %s246
    %s261 = sphi 0, %s247
    %s265 = sphi 0, %s265
    %s267 = sphi 0, %s265
    %s268 = sphi 0, %s267
    %s282 = sphi 0, %s268
    %s286 = sphi 0, %s286
    %s288 = sphi 0, %s286
    %s289 = sphi 0, %s288
    %s303 = sphi 0, %s289
    %s307 = sphi 0, %s307
    %s309 = sphi 0, %s307
    %s310 = sphi 0, %s309
    %s324 = sphi 0, %s310
    %s328 = sphi 0, %s328
    %s330 = sphi 0, %s328
    %s331 = sphi 0, %s330
    %s345 = sphi 0, %s331
    %s351 = sphi 0, %s353
    %s354 = sphi 0, %s351
    %s355 = sphi 0, %s354
    %s371 = sphi 0, %s355
  $region4: #{basic_module.1} parent=0 // loop_header_branch
    %24 = sbr.rel (%p22) target = $region8
  $region5: #{basic_module.1} parent=0 // loop_body
    %s26 = ssub.s32 %s21, 1
    %s27 = ssub.s32 %s21, 2
    %s28 = sadd.s32 %s21, 1
    %s29 = ssub.s32 %s21, %s28
    %p30 = scmp.eq.s32.totalorder %s29, 0
    %s32 = sadd.s32 %s31, 1
    %s33 = scalar_select %p30, %s31, %s32
    %p36 = pneg %p30
    %p37 = scmp.eq.s32.totalorder %s21, 1
    %p38 = por %p36, %p37
    %p39 = scmp.ne.s32.totalorder %s31, %s34
    %p40 = scmp.eq.s32.totalorder %s21, 0
    %p41 = por %p39, %p40
    %p42 = scmp.ne.s32.totalorder %s31, %s34
    %p43 = scmp.eq.s32.totalorder %s26, 1
    %p44 = por %p42, %p43
    %p45 = scmp.ne.s32.totalorder %s34, %s35
    %p46 = scmp.eq.s32.totalorder %s26, 0
    %p47 = por %p45, %p46
    %p48 = scmp.ne.s32.totalorder %s34, %s35
    %p49 = scmp.eq.s32.totalorder %s27, 1
    %p50 = por %p48, %p49
    %p52 = scmp.ne.s32.totalorder %s35, %s51
    %p53 = scmp.eq.s32.totalorder %s27, 0
    %p54 = por %p52, %p53
    %s56 = sadd.s32 %s55, 1
    %p59 = scmp.eq.s32.totalorder %s21, 1
    %p60 = scmp.ne.s32.totalorder %s55, %s57
    %p61 = scmp.eq.s32.totalorder %s21, 0
    %p62 = por %p60, %p61
    %p63 = scmp.ne.s32.totalorder %s55, %s57
    %p64 = scmp.eq.s32.totalorder %s26, 1
    %p65 = por %p63, %p64
    %p66 = scmp.ne.s32.totalorder %s57, %s58
    %p67 = scmp.eq.s32.totalorder %s26, 0
    %p68 = por %p66, %p67
    %p69 = scmp.ne.s32.totalorder %s57, %s58
    %p70 = scmp.eq.s32.totalorder %s27, 1
    %p71 = por %p69, %p70
    %p73 = scmp.ne.s32.totalorder %s58, %s72
    %p74 = scmp.eq.s32.totalorder %s27, 0
    %p75 = por %p73, %p74
    %s77 = sadd.s32 %s76, 1
    %p80 = scmp.eq.s32.totalorder %s21, 1
    %p81 = scmp.ne.s32.totalorder %s76, %s78
    %p82 = scmp.eq.s32.totalorder %s21, 0
    %p83 = por %p81, %p82
    %p84 = scmp.ne.s32.totalorder %s76, %s78
    %p85 = scmp.eq.s32.totalorder %s26, 1
    %p86 = por %p84, %p85
    %p87 = scmp.ne.s32.totalorder %s78, %s79
    %p88 = scmp.eq.s32.totalorder %s26, 0
    %p89 = por %p87, %p88
    %p90 = scmp.ne.s32.totalorder %s78, %s79
    %p91 = scmp.eq.s32.totalorder %s27, 1
    %p92 = por %p90, %p91
    %p94 = scmp.ne.s32.totalorder %s79, %s93
    %p95 = scmp.eq.s32.totalorder %s27, 0
    %p96 = por %p94, %p95
    %s98 = sadd.s32 %s97, 1
    %p101 = scmp.eq.s32.totalorder %s21, 1
    %p102 = scmp.ne.s32.totalorder %s97, %s99
    %p103 = scmp.eq.s32.totalorder %s21, 0
    %p104 = por %p102, %p103
    %p105 = scmp.ne.s32.totalorder %s97, %s99
    %p106 = scmp.eq.s32.totalorder %s26, 1
    %p107 = por %p105, %p106
    %p108 = scmp.ne.s32.totalorder %s99, %s100
    %p109 = scmp.eq.s32.totalorder %s26, 0
    %p110 = por %p108, %p109
    %p111 = scmp.ne.s32.totalorder %s99, %s100
    %p112 = scmp.eq.s32.totalorder %s27, 1
    %p113 = por %p111, %p112
    %p115 = scmp.ne.s32.totalorder %s100, %s114
    %p116 = scmp.eq.s32.totalorder %s27, 0
    %p117 = por %p115, %p116
    %s119 = sadd.s32 %s118, 1
    %p122 = scmp.eq.s32.totalorder %s21, 1
    %p123 = scmp.ne.s32.totalorder %s118, %s120
    %p124 = scmp.eq.s32.totalorder %s21, 0
    %p125 = por %p123, %p124
    %p126 = scmp.ne.s32.totalorder %s118, %s120
    %p127 = scmp.eq.s32.totalorder %s26, 1
    %p128 = por %p126, %p127
    %p129 = scmp.ne.s32.totalorder %s120, %s121
    %p130 = scmp.eq.s32.totalorder %s26, 0
    %p131 = por %p129, %p130
    %p132 = scmp.ne.s32.totalorder %s120, %s121
    %p133 = scmp.eq.s32.totalorder %s27, 1
    %p134 = por %p132, %p133
    %p136 = scmp.ne.s32.totalorder %s121, %s135
    %p137 = scmp.eq.s32.totalorder %s27, 0
    %p138 = por %p136, %p137
    %s140 = sadd.s32 %s139, 1
    %p143 = scmp.eq.s32.totalorder %s21, 1
    %p144 = scmp.ne.s32.totalorder %s139, %s141
    %p145 = scmp.eq.s32.totalorder %s21, 0
    %p146 = por %p144, %p145
    %p147 = scmp.ne.s32.totalorder %s139, %s141
    %p148 = scmp.eq.s32.totalorder %s26, 1
    %p149 = por %p147, %p148
    %p150 = scmp.ne.s32.totalorder %s141, %s142
    %p151 = scmp.eq.s32.totalorder %s26, 0
    %p152 = por %p150, %p151
    %p153 = scmp.ne.s32.totalorder %s141, %s142
    %p154 = scmp.eq.s32.totalorder %s27, 1
    %p155 = por %p153, %p154
    %p157 = scmp.ne.s32.totalorder %s142, %s156
    %p158 = scmp.eq.s32.totalorder %s27, 0
    %p159 = por %p157, %p158
    %s161 = sadd.s32 %s160, 1
    %p164 = scmp.eq.s32.totalorder %s21, 1
    %p165 = scmp.ne.s32.totalorder %s160, %s162
    %p166 = scmp.eq.s32.totalorder %s21, 0
    %p167 = por %p165, %p166
    %p168 = scmp.ne.s32.totalorder %s160, %s162
    %p169 = scmp.eq.s32.totalorder %s26, 1
    %p170 = por %p168, %p169
    %p171 = scmp.ne.s32.totalorder %s162, %s163
    %p172 = scmp.eq.s32.totalorder %s26, 0
    %p173 = por %p171, %p172
    %p174 = scmp.ne.s32.totalorder %s162, %s163
    %p175 = scmp.eq.s32.totalorder %s27, 1
    %p176 = por %p174, %p175
    %p178 = scmp.ne.s32.totalorder %s163, %s177
    %p179 = scmp.eq.s32.totalorder %s27, 0
    %p180 = por %p178, %p179
    %s182 = sadd.s32 %s181, 1
    %p185 = scmp.eq.s32.totalorder %s21, 1
    %p186 = scmp.ne.s32.totalorder %s181, %s183
    %p187 = scmp.eq.s32.totalorder %s21, 0
    %p188 = por %p186, %p187
    %p189 = scmp.ne.s32.totalorder %s181, %s183
    %p190 = scmp.eq.s32.totalorder %s26, 1
    %p191 = por %p189, %p190
    %p192 = scmp.ne.s32.totalorder %s183, %s184
    %p193 = scmp.eq.s32.totalorder %s26, 0
    %p194 = por %p192, %p193
    %p195 = scmp.ne.s32.totalorder %s183, %s184
    %p196 = scmp.eq.s32.totalorder %s27, 1
    %p197 = por %p195, %p196
    %p199 = scmp.ne.s32.totalorder %s184, %s198
    %p200 = scmp.eq.s32.totalorder %s27, 0
    %p201 = por %p199, %p200
    %s203 = sadd.s32 %s202, 1
    %p206 = scmp.eq.s32.totalorder %s21, 1
    %p207 = scmp.ne.s32.totalorder %s202, %s204
    %p208 = scmp.eq.s32.totalorder %s21, 0
    %p209 = por %p207, %p208
    %p210 = scmp.ne.s32.totalorder %s202, %s204
    %p211 = scmp.eq.s32.totalorder %s26, 1
    %p212 = por %p210, %p211
    %p213 = scmp.ne.s32.totalorder %s204, %s205
    %p214 = scmp.eq.s32.totalorder %s26, 0
    %p215 = por %p213, %p214
    %p216 = scmp.ne.s32.totalorder %s204, %s205
    %p217 = scmp.eq.s32.totalorder %s27, 1
    %p218 = por %p216, %p217
    %p220 = scmp.ne.s32.totalorder %s205, %s219
    %p221 = scmp.eq.s32.totalorder %s27, 0
    %p222 = por %p220, %p221
    %s224 = sadd.s32 %s223, 1
    %p227 = scmp.eq.s32.totalorder %s21, 1
    %p228 = scmp.ne.s32.totalorder %s223, %s225
    %p229 = scmp.eq.s32.totalorder %s21, 0
    %p230 = por %p228, %p229
    %p231 = scmp.ne.s32.totalorder %s223, %s225
    %p232 = scmp.eq.s32.totalorder %s26, 1
    %p233 = por %p231, %p232
    %p234 = scmp.ne.s32.totalorder %s225, %s226
    %p235 = scmp.eq.s32.totalorder %s26, 0
    %p236 = por %p234, %p235
    %p237 = scmp.ne.s32.totalorder %s225, %s226
    %p238 = scmp.eq.s32.totalorder %s27, 1
    %p239 = por %p237, %p238
    %p241 = scmp.ne.s32.totalorder %s226, %s240
    %p242 = scmp.eq.s32.totalorder %s27, 0
    %p243 = por %p241, %p242
    %s245 = sadd.s32 %s244, 1
    %p248 = scmp.eq.s32.totalorder %s21, 1
    %p249 = scmp.ne.s32.totalorder %s244, %s246
    %p250 = scmp.eq.s32.totalorder %s21, 0
    %p251 = por %p249, %p250
    %p252 = scmp.ne.s32.totalorder %s244, %s246
    %p253 = scmp.eq.s32.totalorder %s26, 1
    %p254 = por %p252, %p253
    %p255 = scmp.ne.s32.totalorder %s246, %s247
    %p256 = scmp.eq.s32.totalorder %s26, 0
    %p257 = por %p255, %p256
    %p258 = scmp.ne.s32.totalorder %s246, %s247
    %p259 = scmp.eq.s32.totalorder %s27, 1
    %p260 = por %p258, %p259
    %p262 = scmp.ne.s32.totalorder %s247, %s261
    %p263 = scmp.eq.s32.totalorder %s27, 0
    %p264 = por %p262, %p263
    %s266 = sadd.s32 %s265, 1
    %p269 = scmp.eq.s32.totalorder %s21, 1
    %p270 = scmp.ne.s32.totalorder %s265, %s267
    %p271 = scmp.eq.s32.totalorder %s21, 0
    %p272 = por %p270, %p271
    %p273 = scmp.ne.s32.totalorder %s265, %s267
    %p274 = scmp.eq.s32.totalorder %s26, 1
    %p275 = por %p273, %p274
    %p276 = scmp.ne.s32.totalorder %s267, %s268
    %p277 = scmp.eq.s32.totalorder %s26, 0
    %p278 = por %p276, %p277
    %p279 = scmp.ne.s32.totalorder %s267, %s268
    %p280 = scmp.eq.s32.totalorder %s27, 1
    %p281 = por %p279, %p280
    %p283 = scmp.ne.s32.totalorder %s268, %s282
    %p284 = scmp.eq.s32.totalorder %s27, 0
    %p285 = por %p283, %p284
    %s287 = sadd.s32 %s286, 1
    %p290 = scmp.eq.s32.totalorder %s21, 1
    %p291 = scmp.ne.s32.totalorder %s286, %s288
    %p292 = scmp.eq.s32.totalorder %s21, 0
    %p293 = por %p291, %p292
    %p294 = scmp.ne.s32.totalorder %s286, %s288
    %p295 = scmp.eq.s32.totalorder %s26, 1
    %p296 = por %p294, %p295
    %p297 = scmp.ne.s32.totalorder %s288, %s289
    %p298 = scmp.eq.s32.totalorder %s26, 0
    %p299 = por %p297, %p298
    %p300 = scmp.ne.s32.totalorder %s288, %s289
    %p301 = scmp.eq.s32.totalorder %s27, 1
    %p302 = por %p300, %p301
    %p304 = scmp.ne.s32.totalorder %s289, %s303
    %p305 = scmp.eq.s32.totalorder %s27, 0
    %p306 = por %p304, %p305
    %s308 = sadd.s32 %s307, 1
    %p311 = scmp.eq.s32.totalorder %s21, 1
    %p312 = scmp.ne.s32.totalorder %s307, %s309
    %p313 = scmp.eq.s32.totalorder %s21, 0
    %p314 = por %p312, %p313
    %p315 = scmp.ne.s32.totalorder %s307, %s309
    %p316 = scmp.eq.s32.totalorder %s26, 1
    %p317 = por %p315, %p316
    %p318 = scmp.ne.s32.totalorder %s309, %s310
    %p319 = scmp.eq.s32.totalorder %s26, 0
    %p320 = por %p318, %p319
    %p321 = scmp.ne.s32.totalorder %s309, %s310
    %p322 = scmp.eq.s32.totalorder %s27, 1
    %p323 = por %p321, %p322
    %p325 = scmp.ne.s32.totalorder %s310, %s324
    %p326 = scmp.eq.s32.totalorder %s27, 0
    %p327 = por %p325, %p326
    %s329 = sadd.s32 %s328, 1
    %p332 = scmp.eq.s32.totalorder %s21, 1
    %p333 = scmp.ne.s32.totalorder %s328, %s330
    %p334 = scmp.eq.s32.totalorder %s21, 0
    %p335 = por %p333, %p334
    %p336 = scmp.ne.s32.totalorder %s328, %s330
    %p337 = scmp.eq.s32.totalorder %s26, 1
    %p338 = por %p336, %p337
    %p339 = scmp.ne.s32.totalorder %s330, %s331
    %p340 = scmp.eq.s32.totalorder %s26, 0
    %p341 = por %p339, %p340
    %p342 = scmp.ne.s32.totalorder %s330, %s331
    %p343 = scmp.eq.s32.totalorder %s27, 1
    %p344 = por %p342, %p343
    %p346 = scmp.ne.s32.totalorder %s331, %s345
    %p347 = scmp.eq.s32.totalorder %s27, 0
    %p348 = por %p346, %p347
    %s349 = ssub.s32 %s21, %s28
    %p350 = scmp.eq.s32.totalorder %s349, 0
    %s352 = sadd.s32 %s351, 1
    %s353 = scalar_select %p350, %s351, %s352
    %p356 = pneg %p350
    %p357 = scmp.eq.s32.totalorder %s21, 1
    %p358 = por %p356, %p357
    %p359 = scmp.ne.s32.totalorder %s351, %s354
    %p360 = scmp.eq.s32.totalorder %s21, 0
    %p361 = por %p359, %p360
    %p362 = scmp.ne.s32.totalorder %s351, %s354
    %p363 = scmp.eq.s32.totalorder %s26, 1
    %p364 = por %p362, %p363
    %p365 = scmp.ne.s32.totalorder %s354, %s355
    %p366 = scmp.eq.s32.totalorder %s26, 0
    %p367 = por %p365, %p366
    %p368 = scmp.ne.s32.totalorder %s354, %s355
    %p369 = scmp.eq.s32.totalorder %s27, 1
    %p370 = por %p368, %p369
    %p372 = scmp.ne.s32.totalorder %s355, %s371
    %p373 = scmp.eq.s32.totalorder %s27, 0
    %p374 = por %p372, %p373
    %p375 = scmp.le.s32.totalorder 1, %s21
    %p376 = scmp.lt.s32.totalorder %s21, 3
    %p377 = pnand %p375, %p376
    %p378 = pneg %p377
    // Predicated region
    $region9: #{basic_module.1} parent=5 // pred_check
      _
    $region10: #{basic_module.1} parent=5 // pred_check_branch
      %380 = sbr.rel (%p377) target = $region12
    $region11: #{basic_module.1} parent=5 // pred_region
      %s381 = ssub.s32 %s21, 1
      // Predicated region
      $region13: #{basic_module.1} parent=11 // pred_check
        %p382 = pneg %p68
      $region14: #{basic_module.1} parent=11 // pred_check_branch
        %384 = sbr.rel (%p382) target = $region16
      $region15: #{basic_module.1} parent=11 // pred_region
        _
      $region16: #{basic_module.1} parent=11 // pred_fallthru
        _
      // Predicated region
      $region17: #{basic_module.1} parent=11 // pred_check
        %p385 = pneg %p89
      $region18: #{basic_module.1} parent=11 // pred_check_branch
        %387 = sbr.rel (%p385) target = $region20
      $region19: #{basic_module.1} parent=11 // pred_region
        _
      $region20: #{basic_module.1} parent=11 // pred_fallthru
        _
      // Predicated region
      $region21: #{basic_module.1} parent=11 // pred_check
        %p388 = pneg %p110
      $region22: #{basic_module.1} parent=11 // pred_check_branch
        %390 = sbr.rel (%p388) target = $region24
      $region23: #{basic_module.1} parent=11 // pred_region
        _
      $region24: #{basic_module.1} parent=11 // pred_fallthru
        _
      // Predicated region
      $region25: #{basic_module.1} parent=11 // pred_check
        %p391 = pneg %p131
      $region26: #{basic_module.1} parent=11 // pred_check_branch
        %393 = sbr.rel (%p391) target = $region28
      $region27: #{basic_module.1} parent=11 // pred_region
        _
      $region28: #{basic_module.1} parent=11 // pred_fallthru
        _
      // Predicated region
      $region29: #{basic_module.1} parent=11 // pred_check
        %p394 = pneg %p152
      $region30: #{basic_module.1} parent=11 // pred_check_branch
        %396 = sbr.rel (%p394) target = $region32
      $region31: #{basic_module.1} parent=11 // pred_region
        _
      $region32: #{basic_module.1} parent=11 // pred_fallthru
        _
      // Predicated region
      $region33: #{basic_module.1} parent=11 // pred_check
        %p397 = pneg %p173
      $region34: #{basic_module.1} parent=11 // pred_check_branch
        %399 = sbr.rel (%p397) target = $region36
      $region35: #{basic_module.1} parent=11 // pred_region
        _
      $region36: #{basic_module.1} parent=11 // pred_fallthru
        _
      // Predicated region
      $region37: #{basic_module.1} parent=11 // pred_check
        %p400 = pneg %p194
      $region38: #{basic_module.1} parent=11 // pred_check_branch
        %402 = sbr.rel (%p400) target = $region40
      $region39: #{basic_module.1} parent=11 // pred_region
        _
      $region40: #{basic_module.1} parent=11 // pred_fallthru
        _
      // Predicated region
      $region41: #{basic_module.1} parent=11 // pred_check
        %p403 = pneg %p215
      $region42: #{basic_module.1} parent=11 // pred_check_branch
        %405 = sbr.rel (%p403) target = $region44
      $region43: #{basic_module.1} parent=11 // pred_region
        _
      $region44: #{basic_module.1} parent=11 // pred_fallthru
        _
      // Predicated region
      $region45: #{basic_module.1} parent=11 // pred_check
        %p406 = pneg %p236
      $region46: #{basic_module.1} parent=11 // pred_check_branch
        %408 = sbr.rel (%p406) target = $region48
      $region47: #{basic_module.1} parent=11 // pred_region
        _
      $region48: #{basic_module.1} parent=11 // pred_fallthru
        _
      // Predicated region
      $region49: #{basic_module.1} parent=11 // pred_check
        %p409 = pneg %p257
      $region50: #{basic_module.1} parent=11 // pred_check_branch
        %411 = sbr.rel (%p409) target = $region52
      $region51: #{basic_module.1} parent=11 // pred_region
        _
      $region52: #{basic_module.1} parent=11 // pred_fallthru
        _
      // Predicated region
      $region53: #{basic_module.1} parent=11 // pred_check
        %p412 = pneg %p278
      $region54: #{basic_module.1} parent=11 // pred_check_branch
        %414 = sbr.rel (%p412) target = $region56
      $region55: #{basic_module.1} parent=11 // pred_region
        _
      $region56: #{basic_module.1} parent=11 // pred_fallthru
        _
      // Predicated region
      $region57: #{basic_module.1} parent=11 // pred_check
        %p415 = pneg %p299
      $region58: #{basic_module.1} parent=11 // pred_check_branch
        %417 = sbr.rel (%p415) target = $region60
      $region59: #{basic_module.1} parent=11 // pred_region
        _
      $region60: #{basic_module.1} parent=11 // pred_fallthru
        _
      // Predicated region
      $region61: #{basic_module.1} parent=11 // pred_check
        %p418 = pneg %p320
      $region62: #{basic_module.1} parent=11 // pred_check_branch
        %420 = sbr.rel (%p418) target = $region64
      $region63: #{basic_module.1} parent=11 // pred_region
        _
      $region64: #{basic_module.1} parent=11 // pred_fallthru
        _
      // Predicated region
      $region65: #{basic_module.1} parent=11 // pred_check
        %p421 = pneg %p341
      $region66: #{basic_module.1} parent=11 // pred_check_branch
        %423 = sbr.rel (%p421) target = $region68
      $region67: #{basic_module.1} parent=11 // pred_region
        _
      $region68: #{basic_module.1} parent=11 // pred_fallthru
        _
    $region12: #{basic_module.1} parent=5 // pred_fallthru
      _
    %p424 = scmp.lt.s32.totalorder %s21, 2
    // Predicated region
    $region69: #{basic_module.1} parent=5 // pred_check
      %p425 = pneg %p424
    $region70: #{basic_module.1} parent=5 // pred_check_branch
      %427 = sbr.rel (%p425) target = $region72
    $region71: #{basic_module.1} parent=5 // pred_region
      // Predicated region
      $region73: #{basic_module.1} parent=71 // pred_check
        %p428 = pneg %p41
      $region74: #{basic_module.1} parent=71 // pred_check_branch
        %430 = sbr.rel (%p428) target = $region76
      $region75: #{basic_module.1} parent=71 // pred_region
        %p431 = scmp.lt.s32.totalorder %s21, 1
        %s432 = scalar_select %p431, %s21, 1
        %s433 = smul.addr %s432, 4
        %s434 = smul.addr %s433, 8
        %s435 = scalar_lea.vmem %s0, %s434
      $region76: #{basic_module.1} parent=71 // pred_fallthru
        _
    $region72: #{basic_module.1} parent=5 // pred_fallthru
      _
    %p436 = scmp.le.s32.totalorder 1, %s21
    %p437 = scmp.lt.s32.totalorder %s21, 3
    %p438 = pnand %p436, %p437
    %p439 = pneg %p438
    // Predicated region
    $region77: #{basic_module.1} parent=5 // pred_check
      _
    $region78: #{basic_module.1} parent=5 // pred_check_branch
      %441 = sbr.rel (%p438) target = $region80
    $region79: #{basic_module.1} parent=5 // pred_region
      %s442 = ssub.s32 %s21, 1
      %p443 = scmp.lt.s32.totalorder %s26, 1
      %s444 = scalar_select %p443, %s26, 1
      %s445 = smul.addr %s444, 4
      %s446 = smul.addr %s445, 8
      %s447 = scalar_lea.vmem %s0, %s446
      %p448 = pneg %p47
      %p449 = pneg %p44
      %p450 = pneg %p68
      %p451 = pneg %p65
      %p452 = pneg %p89
      %p453 = pneg %p86
      %p454 = pneg %p110
      %p455 = pneg %p107
      %p456 = pneg %p131
      %p457 = pneg %p128
      %p458 = pneg %p152
      %p459 = pneg %p149
      %p460 = pneg %p173
      %p461 = pneg %p170
      %p462 = pneg %p194
      %p463 = pneg %p191
      %p464 = pneg %p215
      %p465 = pneg %p212
      %p466 = pneg %p236
      %p467 = pneg %p233
      %p468 = pneg %p257
      %p469 = pneg %p254
      %p470 = pneg %p278
      %p471 = pneg %p275
      %p472 = pneg %p299
      %p473 = pneg %p296
      %p474 = pneg %p320
      %p475 = pneg %p317
      %p476 = pneg %p341
      %p477 = pneg %p338
      %p478 = pneg %p367
      %p479 = pneg %p364
      %p480 = scmp.lt.s32.totalorder %s26, 1
      %s481 = scalar_select %p480, %s26, 1
      %s482 = smul.addr %s481, 4
      %s483 = smul.addr %s482, 8
      %s484 = scalar_lea.vmem %s15, %s483
      %p485 = scmp.lt.s32.totalorder %s26, 1
      %s486 = scalar_select %p485, %s26, 1
      %s487 = smul.addr %s486, 4
      %s488 = smul.addr %s487, 8
      %s489 = scalar_lea.vmem %s0, %s488
      %p490 = scmp.lt.s32.totalorder %s26, 1
      %s491 = scalar_select %p490, %s26, 1
      %s492 = smul.addr %s491, 4
      %s493 = smul.addr %s492, 8
      %s494 = scalar_lea.vmem %s15, %s493
      %v499 = vlaneseq
      %v500 = vand.u32 %v499, 127
      %v501 = vadd.s32 %v500, 128
      %vm502 = vcmp.lt.s32.totalorder %v500, 0
      %v503 = vsub.s32 0, %v500
      %v504 = vsel %vm502, %v503, %v500
      %v505 = vshrl.u32 %v504, 4
      %v506 = vand.u32 %v504, 15
      %v507 = vsub.s32 0, %v506
      %v508 = vsel %vm502, %v507, %v506
      %vm509 = vcmp.lt.s32.totalorder %v501, 0
      %v510 = vsub.s32 0, %v501
      %v511 = vsel %vm509, %v510, %v501
      %v512 = vshrl.u32 %v511, 4
      %v513 = vand.u32 %v511, 15
      %v514 = vsub.s32 0, %v513
      %v515 = vsel %vm509, %v514, %v513
      %vm516 = vcmp.ne.s32.totalorder %v508, 0
      %vm517 = vcmp.ne.s32.totalorder %v515, 0
      %vm518 = vcmp.lt.s32.totalorder %v508, 0
      %vm519 = vcmp.lt.s32.totalorder %v515, 0
      %vm520 = vmand %vm518, %vm516
      %vm521 = vmand %vm519, %vm517
      %v522 = vadd.s32 %v508, 16
      %v523 = vadd.s32 %v515, 16
      %v524 = vsel %vm520, %v522, %v508
      %v525 = vsel %vm521, %v523, %v515
      %vm526 = vcmp.ne.s32.totalorder %v524, 0
      %vm527 = vcmp.ne.s32.totalorder %v525, 0
      %vm528 = vcmp.ne.s32.totalorder %v524, 15
      %vm529 = vcmp.ne.s32.totalorder %v525, 15
      %vm530 = vcmp.lt.s32.totalorder %v500, 0
      %v531 = vsub.s32 0, %v500
      %v532 = vsel %vm530, %v531, %v500
      %v533 = vshrl.u32 %v532, 3
      %v534 = vand.u32 %v532, 7
      %v535 = vsub.s32 0, %v534
      %v536 = vsel %vm530, %v535, %v534
      %vm537 = vcmp.ne.s32.totalorder %v536, 0
      %vm538 = vcmp.lt.s32.totalorder %v536, 0
      %vm539 = vmand %vm538, %vm537
      %v540 = vadd.s32 %v536, 8
      %v541 = vsel %vm539, %v540, %v536
      %vm542 = vcmp.ne.s32.totalorder %v541, 0
      %vm543 = vcmp.ne.s32.totalorder %v541, 7
      %v544 = vld [vmem:[%s1] sm:$0xff]
      %v545 = vld [vmem:[%s1 + $0x8] sm:$0xff]
      %s546 = scalar_lea.vmem %s1, 16
      %v547 = vld [vmem:[%s546] sm:$0xff]
      %v548 = vld [vmem:[%s546 + $0x8] sm:$0xff]
      %s549 = scalar_lea.vmem %s1, 32
      %v550 = vld [vmem:[%s549] sm:$0xff]
      %v551 = vld [vmem:[%s549 + $0x8] sm:$0xff]
      %s552 = scalar_lea.vmem %s1, 48
      %v553 = vld [vmem:[%s552] sm:$0xff]
      %v554 = vld [vmem:[%s552 + $0x8] sm:$0xff]
      %s555 = scalar_lea.vmem %s1, 64
      %v556 = vld [vmem:[%s555] sm:$0xff]
      %v557 = vld [vmem:[%s555 + $0x8] sm:$0xff]
      %s558 = scalar_lea.vmem %s1, 80
      %v559 = vld [vmem:[%s558] sm:$0xff]
      %v560 = vld [vmem:[%s558 + $0x8] sm:$0xff]
      %s561 = scalar_lea.vmem %s1, 96
      %v562 = vld [vmem:[%s561] sm:$0xff]
      %v563 = vld [vmem:[%s561 + $0x8] sm:$0xff]
      %s564 = scalar_lea.vmem %s1, 112
      %v565 = vld [vmem:[%s564] sm:$0xff]
      %v566 = vld [vmem:[%s564 + $0x8] sm:$0xff]
      %s567 = scalar_lea.vmem %s1, 128
      %v568 = vld [vmem:[%s567] sm:$0xff]
      %v569 = vld [vmem:[%s567 + $0x8] sm:$0xff]
      %s570 = scalar_lea.vmem %s1, 144
      %v571 = vld [vmem:[%s570] sm:$0xff]
      %v572 = vld [vmem:[%s570 + $0x8] sm:$0xff]
      %s573 = scalar_lea.vmem %s1, 160
      %v574 = vld [vmem:[%s573] sm:$0xff]
      %v575 = vld [vmem:[%s573 + $0x8] sm:$0xff]
      %s576 = scalar_lea.vmem %s1, 176
      %v577 = vld [vmem:[%s576] sm:$0xff]
      %v578 = vld [vmem:[%s576 + $0x8] sm:$0xff]
      %s579 = scalar_lea.vmem %s1, 192
      %v580 = vld [vmem:[%s579] sm:$0xff]
      %v581 = vld [vmem:[%s579 + $0x8] sm:$0xff]
      %v582 = vld [vmem:[%s2] sm:$0xff]
      %v583 = vld [vmem:[%s2 + $0x8] sm:$0xff]
      %s584 = scalar_lea.vmem %s2, 16
      %v585 = vld [vmem:[%s584] sm:$0xff]
      %v586 = vld [vmem:[%s584 + $0x8] sm:$0xff]
      %s587 = scalar_lea.vmem %s2, 32
      %v588 = vld [vmem:[%s587] sm:$0xff]
      %v589 = vld [vmem:[%s587 + $0x8] sm:$0xff]
      %s590 = scalar_lea.vmem %s2, 48
      %v591 = vld [vmem:[%s590] sm:$0xff]
      %v592 = vld [vmem:[%s590 + $0x8] sm:$0xff]
      %s593 = scalar_lea.vmem %s2, 64
      %v594 = vld [vmem:[%s593] sm:$0xff]
      %v595 = vld [vmem:[%s593 + $0x8] sm:$0xff]
      %s596 = scalar_lea.vmem %s2, 80
      %v597 = vld [vmem:[%s596] sm:$0xff]
      %v598 = vld [vmem:[%s596 + $0x8] sm:$0xff]
      %s599 = scalar_lea.vmem %s2, 96
      %v600 = vld [vmem:[%s599] sm:$0xff]
      %v601 = vld [vmem:[%s599 + $0x8] sm:$0xff]
      %s602 = scalar_lea.vmem %s2, 112
      %v603 = vld [vmem:[%s602] sm:$0xff]
      %v604 = vld [vmem:[%s602 + $0x8] sm:$0xff]
      %s605 = scalar_lea.vmem %s2, 128
      %v606 = vld [vmem:[%s605] sm:$0xff]
      %v607 = vld [vmem:[%s605 + $0x8] sm:$0xff]
      %s608 = scalar_lea.vmem %s2, 144
      %v609 = vld [vmem:[%s608] sm:$0xff]
      %v610 = vld [vmem:[%s608 + $0x8] sm:$0xff]
      %s611 = scalar_lea.vmem %s2, 160
      %v612 = vld [vmem:[%s611] sm:$0xff]
      %v613 = vld [vmem:[%s611 + $0x8] sm:$0xff]
      %s614 = scalar_lea.vmem %s2, 176
      %v615 = vld [vmem:[%s614] sm:$0xff]
      %v616 = vld [vmem:[%s614 + $0x8] sm:$0xff]
      %s617 = scalar_lea.vmem %s2, 192
      %v618 = vld [vmem:[%s617] sm:$0xff]
      %v619 = vld [vmem:[%s617 + $0x8] sm:$0xff]
      %v620 = vld [vmem:[%s489] sm:$0xff]
      %v621 = vld [vmem:[%s489 + $0x8] sm:$0xff]
      %v622 = vld [vmem:[%s489 + $0x10] sm:$0xff]
      %v623 = vld [vmem:[%s489 + $0x18] sm:$0xff]
      %v624 = vpack.c.bf16 %v622, %v620
      %v625 = vpack.c.bf16 %v623, %v621
      %628 = vrot.lane.b32.xlu0 %v624, 17
      %v629 = vpop.permute.xlu0 %628
      %630 = vrot.lane.b32.xlu0 %v625, 17
      %v631 = vpop.permute.xlu0 %630
      %vm632 = vcmask 138240
      %v633 = vsel %vm632, %v629, %v631
      %vm635 = vcmask 138240
      %v638 = vsel %vm635, 0, %v629
      %v640 = vsel %vm526, 1, 0
      %v641 = vsel %vm527, 1, 0
      %vm642 = vcmp.eq.s32.totalorder %v640, 1
      %vm643 = vcmp.eq.s32.totalorder %v641, 1
      %vm644 = vmpackc.low %vm643, %vm642
      %v645 = vsel %vm644, 65537, 0
      %v646 = vlaneseq
      %v647 = vshrl.u32 %v646, 7
      %v648 = vsub.s32 0, %v647
      %v649 = vrot.slane %v645, %v648
      %v650 = vlaneseq
      %v651 = vshrl.u32 %v650, 7
      %v652 = vsub.s32 4, %v651
      %v653 = vrot.slane %v645, %v652
      %vm654 = vcmp.ne.s16.totalorder %v649, 0
      %vm655 = vcmp.ne.s16.totalorder %v653, 0
      %v656 = vsel %vm654, %v638, 0
      %v657 = vsel %vm655, %v633, 0
      %658 = vrot.lane.b32.xlu0 %v624, 16
      %v659 = vpop.permute.xlu0 %658
      %660 = vrot.lane.b32.xlu0 %v625, 16
      %v661 = vpop.permute.xlu0 %660
      %vm662 = vcmask 130048
      %v663 = vsel %vm662, %v659, %v661
      %vm665 = vcmask 130048
      %v667 = vsel %vm665, 0, %v659
      %669 = vrot.lane.b32.xlu0 %v624, 15
      %v670 = vpop.permute.xlu0 %669
      %671 = vrot.lane.b32.xlu0 %v625, 15
      %v672 = vpop.permute.xlu0 %671
      %vm673 = vcmask 121856
      %v674 = vsel %vm673, %v670, %v672
      %vm676 = vcmask 121856
      %v678 = vsel %vm676, 0, %v670
      %v680 = vsel %vm528, 1, 0
      %v681 = vsel %vm529, 1, 0
      %vm682 = vcmp.eq.s32.totalorder %v680, 1
      %vm683 = vcmp.eq.s32.totalorder %v681, 1
      %vm684 = vmpackc.low %vm683, %vm682
      %v685 = vsel %vm684, 65537, 0
      %v686 = vlaneseq
      %v687 = vshrl.u32 %v686, 7
      %v688 = vsub.s32 0, %v687
      %v689 = vrot.slane %v685, %v688
      %v690 = vlaneseq
      %v691 = vshrl.u32 %v690, 7
      %v692 = vsub.s32 4, %v691
      %v693 = vrot.slane %v685, %v692
      %vm694 = vcmp.ne.s16.totalorder %v689, 0
      %vm695 = vcmp.ne.s16.totalorder %v693, 0
      %v696 = vsel %vm694, %v678, 0
      %v697 = vsel %vm695, %v674, 0
      %698 = vrot.lane.b32.xlu0 %v624, 1
      %v699 = vpop.permute.xlu0 %698
      %700 = vrot.lane.b32.xlu0 %v625, 1
      %v701 = vpop.permute.xlu0 %700
      %vm702 = vcmask 7168
      %v703 = vsel %vm702, %v699, %v701
      %vm705 = vcmask 7168
      %v707 = vsel %vm705, 0, %v699
      %v709 = vsel %vm654, %v707, 0
      %v710 = vsel %vm655, %v703, 0
      %711 = vrot.lane.b32.xlu0 %v624, 127
      %v712 = vpop.permute.xlu0 %711
      %713 = vrot.lane.b32.xlu0 %v625, 127
      %v714 = vpop.permute.xlu0 %713
      %vm715 = vcmask 1039360
      %v716 = vsel %vm715, %v712, %v714
      %vm718 = vcmask 1039360
      %v720 = vsel %vm718, %v714, 0
      %v722 = vsel %vm694, %v716, 0
      %v723 = vsel %vm695, %v720, 0
      %724 = vrot.lane.b32.xlu0 %v624, 113
      %v725 = vpop.permute.xlu0 %724
      %726 = vrot.lane.b32.xlu0 %v625, 113
      %v727 = vpop.permute.xlu0 %726
      %vm728 = vcmask 924672
      %v729 = vsel %vm728, %v725, %v727
      %vm731 = vcmask 924672
      %v733 = vsel %vm731, %v727, 0
      %v735 = vsel %vm654, %v729, 0
      %v736 = vsel %vm655, %v733, 0
      %737 = vrot.lane.b32.xlu0 %v624, 112
      %v738 = vpop.permute.xlu0 %737
      %739 = vrot.lane.b32.xlu0 %v625, 112
      %v740 = vpop.permute.xlu0 %739
      %vm741 = vcmask 916480
      %v742 = vsel %vm741, %v738, %v740
      %vm744 = vcmask 916480
      %v746 = vsel %vm744, %v740, 0
      %748 = vrot.lane.b32.xlu0 %v624, 111
      %v749 = vpop.permute.xlu0 %748
      %750 = vrot.lane.b32.xlu0 %v625, 111
      %v751 = vpop.permute.xlu0 %750
      %vm752 = vcmask 908288
      %v753 = vsel %vm752, %v749, %v751
      %vm755 = vcmask 908288
      %v757 = vsel %vm755, %v751, 0
      %v759 = vsel %vm694, %v753, 0
      %v760 = vsel %vm695, %v757, 0
      %762 = vset.pattern.permute.xlu0 0
      %763 = vperm.xlu0 %762, %v582
      %v764 = vpop.permute.xlu0 %763
      %767 = vset.pattern.permute.xlu0 0
      %768 = vperm.xlu0 %767, %v583
      %v769 = vpop.permute.xlu0 %768
      %v773 = vunpack.c.l.b16 %v544
      %v774 = vunpack.c.h.b16 %v544
      %v775 = vunpack.c.l.b16 %v545
      %v776 = vunpack.c.h.b16 %v545
      %v777 = vpack.c.b16 %v775, %v773
      %v778 = vpack.c.b16 %v776, %v774
      %v781 = vsel %vm665, %v778, 0
      %783 = vmatprep.subr.bf16.mxu0 %v657
      %784 = vmatpush1.bf16.msra.mxu0 %v656
      %785 = vmatprep.subr.bf16.mxu0 %v663
      %786 = vmatpush1.bf16.msra.mxu0 %v667
      %787 = vmatprep.subr.bf16.mxu0 %v697
      %788 = vmatpush1.bf16.msra.mxu0 %v696
      %789 = vmatprep.subr.bf16.mxu0 %v710
      %790 = vmatpush1.bf16.msra.mxu0 %v709
      %791 = vmatprep.subr.bf16.mxu0 %v625
      %792 = vmatpush1.bf16.msra.mxu0 %v624
      %793 = vmatprep.subr.bf16.mxu0 %v723
      %794 = vmatpush1.bf16.msra.mxu0 %v722
      %795 = vmatprep.subr.bf16.mxu0 %v736
      %796 = vmatpush1.bf16.msra.mxu0 %v735
      %797 = vmatprep.subr.bf16.mxu0 %v746
      %798 = vmatpush1.bf16.msra.mxu0 %v742
      %799 = vmatprep.subr.bf16.mxu0 %v760
      %800 = vmatpush1.bf16.msra.mxu0 %v759
      %801 = vmatprep.subr.bf16.mxu0 0
      %802 = vmatpush1.bf16.msra.mxu0 0
      %803 = vmatprep.subr.bf16.mxu0 0
      %804 = vmatpush1.bf16.msra.mxu0 0
      %805 = vmatprep.subr.bf16.mxu0 0
      %806 = vmatpush1.bf16.msra.mxu0 0
      %807 = vmatprep.subr.bf16.mxu0 0
      %808 = vmatpush1.bf16.msra.mxu0 0
      %809 = vmatprep.subr.bf16.mxu0 0
      %810 = vmatpush1.bf16.msra.mxu0 0
      %811 = vmatprep.subr.bf16.mxu0 0
      %812 = vmatpush1.bf16.msra.mxu0 0
      %813 = vmatprep.subr.bf16.mxu0 0
      %814 = vmatpush1.bf16.msra.mxu0 0
      %815 = vmatprep.mubr.bf16.mxu0 %v781
      %816 = vmatmul.mubr.bf16.gmra.mrb[0].mxu0 %v777
      %v817 = vpop.f32.mrb[0].mxu0
      %v818 = vadd.f32 %v764, %v817
      %v819 = vpop.f32.mrb[0].mxu0
      %v820 = vadd.f32 %v764, %v819
      %v821 = vpop.f32.mrb[0].mxu0
      %v822 = vadd.f32 %v769, %v821
      %v823 = vpop.f32.mrb[0].mxu0
      %v824 = vadd.f32 %v769, %v823
      %825 = vdwg.mxu0
      %v826 = vmax.f32 %v818, 0.0
      %v827 = vmax.f32 %v820, 0.0
      %v828 = vmax.f32 %v822, 0.0
      %v829 = vmax.f32 %v824, 0.0
      %v830 = vpack.c.bf16 %v828, %v826
      %v831 = vpack.c.bf16 %v829, %v827
      %834 = vrot.lane.b32.xlu0 %v830, 17
      %v835 = vpop.permute.xlu0 %834
      %836 = vrot.lane.b32.xlu0 %v831, 17
      %v837 = vpop.permute.xlu0 %836
      %v838 = vsel %vm632, %v835, %v837
      %v841 = vsel %vm635, 0, %v835
      %v843 = vsel %vm654, %v841, 0
      %v844 = vsel %vm655, %v838, 0
      %845 = vrot.lane.b32.xlu0 %v830, 16
      %v846 = vpop.permute.xlu0 %845
      %847 = vrot.lane.b32.xlu0 %v831, 16
      %v848 = vpop.permute.xlu0 %847
      %v849 = vsel %vm662, %v846, %v848
      %v852 = vsel %vm665, 0, %v846
      %854 = vrot.lane.b32.xlu0 %v830, 15
      %v855 = vpop.permute.xlu0 %854
      %856 = vrot.lane.b32.xlu0 %v831, 15
      %v857 = vpop.permute.xlu0 %856
      %v858 = vsel %vm673, %v855, %v857
      %v861 = vsel %vm676, 0, %v855
      %v863 = vsel %vm694, %v861, 0
      %v864 = vsel %vm695, %v858, 0
      %865 = vrot.lane.b32.xlu0 %v830, 1
      %v866 = vpop.permute.xlu0 %865
      %867 = vrot.lane.b32.xlu0 %v831, 1
      %v868 = vpop.permute.xlu0 %867
      %v869 = vsel %vm702, %v866, %v868
      %v872 = vsel %vm705, 0, %v866
      %v874 = vsel %vm654, %v872, 0
      %v875 = vsel %vm655, %v869, 0
      %876 = vrot.lane.b32.xlu0 %v830, 127
      %v877 = vpop.permute.xlu0 %876
      %878 = vrot.lane.b32.xlu0 %v831, 127
      %v879 = vpop.permute.xlu0 %878
      %v880 = vsel %vm715, %v877, %v879
      %v883 = vsel %vm718, %v879, 0
      %v885 = vsel %vm694, %v880, 0
      %v886 = vsel %vm695, %v883, 0
      %887 = vrot.lane.b32.xlu0 %v830, 113
      %v888 = vpop.permute.xlu0 %887
      %889 = vrot.lane.b32.xlu0 %v831, 113
      %v890 = vpop.permute.xlu0 %889
      %v891 = vsel %vm728, %v888, %v890
      %v894 = vsel %vm731, %v890, 0
      %v896 = vsel %vm654, %v891, 0
      %v897 = vsel %vm655, %v894, 0
      %898 = vrot.lane.b32.xlu0 %v830, 112
      %v899 = vpop.permute.xlu0 %898
      %900 = vrot.lane.b32.xlu0 %v831, 112
      %v901 = vpop.permute.xlu0 %900
      %v902 = vsel %vm741, %v899, %v901
      %v905 = vsel %vm744, %v901, 0
      %907 = vrot.lane.b32.xlu0 %v830, 111
      %v908 = vpop.permute.xlu0 %907
      %909 = vrot.lane.b32.xlu0 %v831, 111
      %v910 = vpop.permute.xlu0 %909
      %v911 = vsel %vm752, %v908, %v910
      %v914 = vsel %vm755, %v910, 0
      %v916 = vsel %vm694, %v911, 0
      %v917 = vsel %vm695, %v914, 0
      %919 = vset.pattern.permute.xlu0 0
      %920 = vperm.xlu0 %919, %v585
      %v921 = vpop.permute.xlu0 %920
      %924 = vset.pattern.permute.xlu0 0
      %925 = vperm.xlu0 %924, %v586
      %v926 = vpop.permute.xlu0 %925
      %v930 = vunpack.c.l.b16 %v547
      %v931 = vunpack.c.h.b16 %v547
      %v932 = vunpack.c.l.b16 %v548
      %v933 = vunpack.c.h.b16 %v548
      %v934 = vpack.c.b16 %v932, %v930
      %v935 = vpack.c.b16 %v933, %v931
      %v938 = vsel %vm665, %v935, 0
      %940 = vmatprep.subr.bf16.mxu0 %v844
      %941 = vmatpush1.bf16.msra.mxu0 %v843
      %942 = vmatprep.subr.bf16.mxu0 %v849
      %943 = vmatpush1.bf16.msra.mxu0 %v852
      %944 = vmatprep.subr.bf16.mxu0 %v864
      %945 = vmatpush1.bf16.msra.mxu0 %v863
      %946 = vmatprep.subr.bf16.mxu0 %v875
      %947 = vmatpush1.bf16.msra.mxu0 %v874
      %948 = vmatprep.subr.bf16.mxu0 %v831
      %949 = vmatpush1.bf16.msra.mxu0 %v830
      %950 = vmatprep.subr.bf16.mxu0 %v886
      %951 = vmatpush1.bf16.msra.mxu0 %v885
      %952 = vmatprep.subr.bf16.mxu0 %v897
      %953 = vmatpush1.bf16.msra.mxu0 %v896
      %954 = vmatprep.subr.bf16.mxu0 %v905
      %955 = vmatpush1.bf16.msra.mxu0 %v902
      %956 = vmatprep.subr.bf16.mxu0 %v917
      %957 = vmatpush1.bf16.msra.mxu0 %v916
      %958 = vmatprep.subr.bf16.mxu0 0
      %959 = vmatpush1.bf16.msra.mxu0 0
      %960 = vmatprep.subr.bf16.mxu0 0
      %961 = vmatpush1.bf16.msra.mxu0 0
      %962 = vmatprep.subr.bf16.mxu0 0
      %963 = vmatpush1.bf16.msra.mxu0 0
      %964 = vmatprep.subr.bf16.mxu0 0
      %965 = vmatpush1.bf16.msra.mxu0 0
      %966 = vmatprep.subr.bf16.mxu0 0
      %967 = vmatpush1.bf16.msra.mxu0 0
      %968 = vmatprep.subr.bf16.mxu0 0
      %969 = vmatpush1.bf16.msra.mxu0 0
      %970 = vmatprep.subr.bf16.mxu0 0
      %971 = vmatpush1.bf16.msra.mxu0 0
      %972 = vmatprep.mubr.bf16.mxu0 %v938
      %973 = vmatmul.mubr.bf16.gmra.mrb[0].mxu0 %v934
      %v974 = vpop.f32.mrb[0].mxu0
      %v975 = vadd.f32 %v921, %v974
      %v976 = vpop.f32.mrb[0].mxu0
      %v977 = vadd.f32 %v921, %v976
      %v978 = vpop.f32.mrb[0].mxu0
      %v979 = vadd.f32 %v926, %v978
      %v980 = vpop.f32.mrb[0].mxu0
      %v981 = vadd.f32 %v926, %v980
      %982 = vdwg.mxu0
      %v983 = vmax.f32 %v975, 0.0
      %v984 = vmax.f32 %v977, 0.0
      %v985 = vmax.f32 %v979, 0.0
      %v986 = vmax.f32 %v981, 0.0
      %v987 = vld [vmem:[%s3] sm:$0xf]
      %v988 = vld [vmem:[%s3 + $0x4] sm:$0xf]
      %v989 = vld [vmem:[%s3 + $0x8] sm:$0xf]
      %v990 = vld [vmem:[%s3 + $0xc] sm:$0xf]
      %v991 = vld [vmem:[%s4] sm:$0xff]
      %v992 = vld [vmem:[%s4 + $0x8] sm:$0xff]
      %v993 = vld [vmem:[%s4 + $0x10] sm:$0xff]
      %v994 = vld [vmem:[%s4 + $0x18] sm:$0xff]
      %v995 = vld [vmem:[%s5] sm:$0xff]
      %v996 = vld [vmem:[%s5 + $0x8] sm:$0xff]
      %v997 = vld [vmem:[%s6] sm:$0xf]
      %v998 = vld [vmem:[%s6 + $0x4] sm:$0xf]
      %v999 = vld [vmem:[%s7] sm:$0xff]
      %v1000 = vld [vmem:[%s7 + $0x8] sm:$0xff]
      %v1001 = vpack.c.bf16 %v985, %v983
      %v1002 = vpack.c.bf16 %v986, %v984
      %1005 = vrot.lane.b32.xlu0 %v1001, 17
      %v1006 = vpop.permute.xlu0 %1005
      %1007 = vrot.lane.b32.xlu0 %v1002, 17
      %v1008 = vpop.permute.xlu0 %1007
      %v1009 = vsel %vm632, %v1006, %v1008
      %v1012 = vsel %vm635, 0, %v1006
      %v1014 = vsel %vm654, %v1012, 0
      %v1015 = vsel %vm655, %v1009, 0
      %1016 = vrot.lane.b32.xlu0 %v1001, 16
      %v1017 = vpop.permute.xlu0 %1016
      %1018 = vrot.lane.b32.xlu0 %v1002, 16
      %v1019 = vpop.permute.xlu0 %1018
      %v1020 = vsel %vm662, %v1017, %v1019
      %v1023 = vsel %vm665, 0, %v1017
      %1025 = vrot.lane.b32.xlu0 %v1001, 15
      %v1026 = vpop.permute.xlu0 %1025
      %1027 = vrot.lane.b32.xlu0 %v1002, 15
      %v1028 = vpop.permute.xlu0 %1027
      %v1029 = vsel %vm673, %v1026, %v1028
      %v1032 = vsel %vm676, 0, %v1026
      %v1034 = vsel %vm694, %v1032, 0
      %v1035 = vsel %vm695, %v1029, 0
      %1036 = vrot.lane.b32.xlu0 %v1001, 1
      %v1037 = vpop.permute.xlu0 %1036
      %1038 = vrot.lane.b32.xlu0 %v1002, 1
      %v1039 = vpop.permute.xlu0 %1038
      %v1040 = vsel %vm702, %v1037, %v1039
      %v1043 = vsel %vm705, 0, %v1037
      %v1045 = vsel %vm654, %v1043, 0
      %v1046 = vsel %vm655, %v1040, 0
      %1047 = vrot.lane.b32.xlu0 %v1001, 127
      %v1048 = vpop.permute.xlu0 %1047
      %1049 = vrot.lane.b32.xlu0 %v1002, 127
      %v1050 = vpop.permute.xlu0 %1049
      %v1051 = vsel %vm715, %v1048, %v1050
      %v1054 = vsel %vm718, %v1050, 0
      %v1056 = vsel %vm694, %v1051, 0
      %v1057 = vsel %vm695, %v1054, 0
      %1058 = vrot.lane.b32.xlu0 %v1001, 113
      %v1059 = vpop.permute.xlu0 %1058
      %1060 = vrot.lane.b32.xlu0 %v1002, 113
      %v1061 = vpop.permute.xlu0 %1060
      %v1062 = vsel %vm728, %v1059, %v1061
      %v1065 = vsel %vm731, %v1061, 0
      %v1067 = vsel %vm654, %v1062, 0
      %v1068 = vsel %vm655, %v1065, 0
      %1069 = vrot.lane.b32.xlu0 %v1001, 112
      %v1070 = vpop.permute.xlu0 %1069
      %1071 = vrot.lane.b32.xlu0 %v1002, 112
      %v1072 = vpop.permute.xlu0 %1071
      %v1073 = vsel %vm741, %v1070, %v1072
      %v1076 = vsel %vm744, %v1072, 0
      %1078 = vrot.lane.b32.xlu0 %v1001, 111
      %v1079 = vpop.permute.xlu0 %1078
      %1080 = vrot.lane.b32.xlu0 %v1002, 111
      %v1081 = vpop.permute.xlu0 %1080
      %v1082 = vsel %vm752, %v1079, %v1081
      %v1085 = vsel %vm755, %v1081, 0
      %v1087 = vsel %vm694, %v1082, 0
      %v1088 = vsel %vm695, %v1085, 0
      %1090 = vset.pattern.permute.xlu0 0
      %1091 = vperm.xlu0 %1090, %v588
      %v1092 = vpop.permute.xlu0 %1091
      %1095 = vset.pattern.permute.xlu0 0
      %1096 = vperm.xlu0 %1095, %v589
      %v1097 = vpop.permute.xlu0 %1096
      %v1101 = vunpack.c.l.b16 %v550
      %v1102 = vunpack.c.h.b16 %v550
      %v1103 = vunpack.c.l.b16 %v551
      %v1104 = vunpack.c.h.b16 %v551
      %v1105 = vpack.c.b16 %v1103, %v1101
      %v1106 = vpack.c.b16 %v1104, %v1102
      %v1109 = vsel %vm665, %v1106, 0
      %1111 = vmatprep.subr.bf16.mxu0 %v1015
      %1112 = vmatpush1.bf16.msra.mxu0 %v1014
      %1113 = vmatprep.subr.bf16.mxu0 %v1020
      %1114 = vmatpush1.bf16.msra.mxu0 %v1023
      %1115 = vmatprep.subr.bf16.mxu0 %v1035
      %1116 = vmatpush1.bf16.msra.mxu0 %v1034
      %1117 = vmatprep.subr.bf16.mxu0 %v1046
      %1118 = vmatpush1.bf16.msra.mxu0 %v1045
      %1119 = vmatprep.subr.bf16.mxu0 %v1002
      %1120 = vmatpush1.bf16.msra.mxu0 %v1001
      %1121 = vmatprep.subr.bf16.mxu0 %v1057
      %1122 = vmatpush1.bf16.msra.mxu0 %v1056
      %1123 = vmatprep.subr.bf16.mxu0 %v1068
      %1124 = vmatpush1.bf16.msra.mxu0 %v1067
      %1125 = vmatprep.subr.bf16.mxu0 %v1076
      %1126 = vmatpush1.bf16.msra.mxu0 %v1073
      %1127 = vmatprep.subr.bf16.mxu0 %v1088
      %1128 = vmatpush1.bf16.msra.mxu0 %v1087
      %1129 = vmatprep.subr.bf16.mxu0 0
      %1130 = vmatpush1.bf16.msra.mxu0 0
      %1131 = vmatprep.subr.bf16.mxu0 0
      %1132 = vmatpush1.bf16.msra.mxu0 0
      %1133 = vmatprep.subr.bf16.mxu0 0
      %1134 = vmatpush1.bf16.msra.mxu0 0
      %1135 = vmatprep.subr.bf16.mxu0 0
      %1136 = vmatpush1.bf16.msra.mxu0 0
      %1137 = vmatprep.subr.bf16.mxu0 0
      %1138 = vmatpush1.bf16.msra.mxu0 0
      %1139 = vmatprep.subr.bf16.mxu0 0
      %1140 = vmatpush1.bf16.msra.mxu0 0
      %1141 = vmatprep.subr.bf16.mxu0 0
      %1142 = vmatpush1.bf16.msra.mxu0 0
      %1143 = vmatprep.mubr.bf16.mxu0 %v1109
      %1144 = vmatmul.mubr.bf16.gmra.mrb[0].mxu0 %v1105
      %v1145 = vpop.f32.mrb[0].mxu0
      %v1146 = vadd.f32 %v1092, %v1145
      %v1147 = vpop.f32.mrb[0].mxu0
      %v1148 = vadd.f32 %v1092, %v1147
      %v1149 = vpop.f32.mrb[0].mxu0
      %v1150 = vadd.f32 %v1097, %v1149
      %v1151 = vpop.f32.mrb[0].mxu0
      %v1152 = vadd.f32 %v1097, %v1151
      %1153 = vdwg.mxu0
      %v1154 = vmax.f32 %v1146, 0.0
      %v1155 = vmax.f32 %v1148, 0.0
      %v1156 = vmax.f32 %v1150, 0.0
      %v1157 = vmax.f32 %v1152, 0.0
      %v1158 = vpack.c.bf16 %v1156, %v1154
      %v1159 = vpack.c.bf16 %v1157, %v1155
      %1162 = vrot.lane.b32.xlu0 %v1158, 17
      %v1163 = vpop.permute.xlu0 %1162
      %1164 = vrot.lane.b32.xlu0 %v1159, 17
      %v1165 = vpop.permute.xlu0 %1164
      %v1166 = vsel %vm632, %v1163, %v1165
      %v1169 = vsel %vm635, 0, %v1163
      %v1171 = vsel %vm654, %v1169, 0
      %v1172 = vsel %vm655, %v1166, 0
      %1173 = vrot.lane.b32.xlu0 %v1158, 16
      %v1174 = vpop.permute.xlu0 %1173
      %1175 = vrot.lane.b32.xlu0 %v1159, 16
      %v1176 = vpop.permute.xlu0 %1175
      %v1177 = vsel %vm662, %v1174, %v1176
      %v1180 = vsel %vm665, 0, %v1174
      %1182 = vrot.lane.b32.xlu0 %v1158, 15
      %v1183 = vpop.permute.xlu0 %1182
      %1184 = vrot.lane.b32.xlu0 %v1159, 15
      %v1185 = vpop.permute.xlu0 %1184
      %v1186 = vsel %vm673, %v1183, %v1185
      %v1189 = vsel %vm676, 0, %v1183
      %v1191 = vsel %vm694, %v1189, 0
      %v1192 = vsel %vm695, %v1186, 0
      %1193 = vrot.lane.b32.xlu0 %v1158, 1
      %v1194 = vpop.permute.xlu0 %1193
      %1195 = vrot.lane.b32.xlu0 %v1159, 1
      %v1196 = vpop.permute.xlu0 %1195
      %v1197 = vsel %vm702, %v1194, %v1196
      %v1200 = vsel %vm705, 0, %v1194
      %v1202 = vsel %vm654, %v1200, 0
      %v1203 = vsel %vm655, %v1197, 0
      %1204 = vrot.lane.b32.xlu0 %v1158, 127
      %v1205 = vpop.permute.xlu0 %1204
      %1206 = vrot.lane.b32.xlu0 %v1159, 127
      %v1207 = vpop.permute.xlu0 %1206
      %v1208 = vsel %vm715, %v1205, %v1207
      %v1211 = vsel %vm718, %v1207, 0
      %v1213 = vsel %vm694, %v1208, 0
      %v1214 = vsel %vm695, %v1211, 0
      %1215 = vrot.lane.b32.xlu0 %v1158, 113
      %v1216 = vpop.permute.xlu0 %1215
      %1217 = vrot.lane.b32.xlu0 %v1159, 113
      %v1218 = vpop.permute.xlu0 %1217
      %v1219 = vsel %vm728, %v1216, %v1218
      %v1222 = vsel %vm731, %v1218, 0
      %v1224 = vsel %vm654, %v1219, 0
      %v1225 = vsel %vm655, %v1222, 0
      %1226 = vrot.lane.b32.xlu0 %v1158, 112
      %v1227 = vpop.permute.xlu0 %1226
      %1228 = vrot.lane.b32.xlu0 %v1159, 112
      %v1229 = vpop.permute.xlu0 %1228
      %v1230 = vsel %vm741, %v1227, %v1229
      %v1233 = vsel %vm744, %v1229, 0
      %1235 = vrot.lane.b32.xlu0 %v1158, 111
      %v1236 = vpop.permute.xlu0 %1235
      %1237 = vrot.lane.b32.xlu0 %v1159, 111
      %v1238 = vpop.permute.xlu0 %1237
      %v1239 = vsel %vm752, %v1236, %v1238
      %v1242 = vsel %vm755, %v1238, 0
      %v1244 = vsel %vm694, %v1239, 0
      %v1245 = vsel %vm695, %v1242, 0
      %1247 = vset.pattern.permute.xlu0 0
      %1248 = vperm.xlu0 %1247, %v591
      %v1249 = vpop.permute.xlu0 %1248
      %1252 = vset.pattern.permute.xlu0 0
      %1253 = vperm.xlu0 %1252, %v592
      %v1254 = vpop.permute.xlu0 %1253
      %v1258 = vunpack.c.l.b16 %v553
      %v1259 = vunpack.c.h.b16 %v553
      %v1260 = vunpack.c.l.b16 %v554
      %v1261 = vunpack.c.h.b16 %v554
      %v1262 = vpack.c.b16 %v1260, %v1258
      %v1263 = vpack.c.b16 %v1261, %v1259
      %v1266 = vsel %vm665, %v1263, 0
      %1268 = vmatprep.subr.bf16.mxu0 %v1172
      %1269 = vmatpush1.bf16.msra.mxu0 %v1171
      %1270 = vmatprep.subr.bf16.mxu0 %v1177
      %1271 = vmatpush1.bf16.msra.mxu0 %v1180
      %1272 = vmatprep.subr.bf16.mxu0 %v1192
      %1273 = vmatpush1.bf16.msra.mxu0 %v1191
      %1274 = vmatprep.subr.bf16.mxu0 %v1203
      %1275 = vmatpush1.bf16.msra.mxu0 %v1202
      %1276 = vmatprep.subr.bf16.mxu0 %v1159
      %1277 = vmatpush1.bf16.msra.mxu0 %v1158
      %1278 = vmatprep.subr.bf16.mxu0 %v1214
      %1279 = vmatpush1.bf16.msra.mxu0 %v1213
      %1280 = vmatprep.subr.bf16.mxu0 %v1225
      %1281 = vmatpush1.bf16.msra.mxu0 %v1224
      %1282 = vmatprep.subr.bf16.mxu0 %v1233
      %1283 = vmatpush1.bf16.msra.mxu0 %v1230
      %1284 = vmatprep.subr.bf16.mxu0 %v1245
      %1285 = vmatpush1.bf16.msra.mxu0 %v1244
      %1286 = vmatprep.subr.bf16.mxu0 0
      %1287 = vmatpush1.bf16.msra.mxu0 0
      %1288 = vmatprep.subr.bf16.mxu0 0
      %1289 = vmatpush1.bf16.msra.mxu0 0
      %1290 = vmatprep.subr.bf16.mxu0 0
      %1291 = vmatpush1.bf16.msra.mxu0 0
      %1292 = vmatprep.subr.bf16.mxu0 0
      %1293 = vmatpush1.bf16.msra.mxu0 0
      %1294 = vmatprep.subr.bf16.mxu0 0
      %1295 = vmatpush1.bf16.msra.mxu0 0
      %1296 = vmatprep.subr.bf16.mxu0 0
      %1297 = vmatpush1.bf16.msra.mxu0 0
      %1298 = vmatprep.subr.bf16.mxu0 0
      %1299 = vmatpush1.bf16.msra.mxu0 0
      %1300 = vmatprep.mubr.bf16.mxu0 %v1266
      %1301 = vmatmul.mubr.bf16.gmra.mrb[0].mxu0 %v1262
      %v1302 = vpop.f32.mrb[0].mxu0
      %v1303 = vadd.f32 %v1249, %v1302
      %v1304 = vpop.f32.mrb[0].mxu0
      %v1305 = vadd.f32 %v1249, %v1304
      %v1306 = vpop.f32.mrb[0].mxu0
      %v1307 = vadd.f32 %v1254, %v1306
      %v1308 = vpop.f32.mrb[0].mxu0
      %v1309 = vadd.f32 %v1254, %v1308
      %1310 = vdwg.mxu0
      %v1311 = vmax.f32 %v1303, 0.0
      %v1312 = vmax.f32 %v1305, 0.0
      %v1313 = vmax.f32 %v1307, 0.0
      %v1314 = vmax.f32 %v1309, 0.0
      %v1315 = vpack.c.bf16 %v1313, %v1311
      %v1316 = vpack.c.bf16 %v1314, %v1312
      %1319 = vrot.lane.b32.xlu0 %v1315, 17
      %v1320 = vpop.permute.xlu0 %1319
      %1321 = vrot.lane.b32.xlu0 %v1316, 17
      %v1322 = vpop.permute.xlu0 %1321
      %v1323 = vsel %vm632, %v1320, %v1322
      %v1326 = vsel %vm635, 0, %v1320
      %v1328 = vsel %vm654, %v1326, 0
      %v1329 = vsel %vm655, %v1323, 0
      %1330 = vrot.lane.b32.xlu0 %v1315, 16
      %v1331 = vpop.permute.xlu0 %1330
      %1332 = vrot.lane.b32.xlu0 %v1316, 16
      %v1333 = vpop.permute.xlu0 %1332
      %v1334 = vsel %vm662, %v1331, %v1333
      %v1337 = vsel %vm665, 0, %v1331
      %1339 = vrot.lane.b32.xlu0 %v1315, 15
      %v1340 = vpop.permute.xlu0 %1339
      %1341 = vrot.lane.b32.xlu0 %v1316, 15
      %v1342 = vpop.permute.xlu0 %1341
      %v1343 = vsel %vm673, %v1340, %v1342
      %v1346 = vsel %vm676, 0, %v1340
      %v1348 = vsel %vm694, %v1346, 0
      %v1349 = vsel %vm695, %v1343, 0
      %1350 = vrot.lane.b32.xlu0 %v1315, 1
      %v1351 = vpop.permute.xlu0 %1350
      %1352 = vrot.lane.b32.xlu0 %v1316, 1
      %v1353 = vpop.permute.xlu0 %1352
      %v1354 = vsel %vm702, %v1351, %v1353
      %v1357 = vsel %vm705, 0, %v1351
      %v1359 = vsel %vm654, %v1357, 0
      %v1360 = vsel %vm655, %v1354, 0
      %1361 = vrot.lane.b32.xlu0 %v1315, 127
      %v1362 = vpop.permute.xlu0 %1361
      %1363 = vrot.lane.b32.xlu0 %v1316, 127
      %v1364 = vpop.permute.xlu0 %1363
      %v1365 = vsel %vm715, %v1362, %v1364
      %v1368 = vsel %vm718, %v1364, 0
      %v1370 = vsel %vm694, %v1365, 0
      %v1371 = vsel %vm695, %v1368, 0
      %1372 = vrot.lane.b32.xlu0 %v1315, 113
      %v1373 = vpop.permute.xlu0 %1372
      %1374 = vrot.lane.b32.xlu0 %v1316, 113
      %v1375 = vpop.permute.xlu0 %1374
      %v1376 = vsel %vm728, %v1373, %v1375
      %v1379 = vsel %vm731, %v1375, 0
      %v1381 = vsel %vm654, %v1376, 0
      %v1382 = vsel %vm655, %v1379, 0
      %1383 = vrot.lane.b32.xlu0 %v1315, 112
      %v1384 = vpop.permute.xlu0 %1383
      %1385 = vrot.lane.b32.xlu0 %v1316, 112
      %v1386 = vpop.permute.xlu0 %1385
      %v1387 = vsel %vm741, %v1384, %v1386
      %v1390 = vsel %vm744, %v1386, 0
      %1392 = vrot.lane.b32.xlu0 %v1315, 111
      %v1393 = vpop.permute.xlu0 %1392
      %1394 = vrot.lane.b32.xlu0 %v1316, 111
      %v1395 = vpop.permute.xlu0 %1394
      %v1396 = vsel %vm752, %v1393, %v1395
      %v1399 = vsel %vm755, %v1395, 0
      %v1401 = vsel %vm694, %v1396, 0
      %v1402 = vsel %vm695, %v1399, 0
      %1404 = vset.pattern.permute.xlu0 0
      %1405 = vperm.xlu0 %1404, %v594
      %v1406 = vpop.permute.xlu0 %1405
      %1409 = vset.pattern.permute.xlu0 0
      %1410 = vperm.xlu0 %1409, %v595
      %v1411 = vpop.permute.xlu0 %1410
      %v1415 = vunpack.c.l.b16 %v556
      %v1416 = vunpack.c.h.b16 %v556
      %v1417 = vunpack.c.l.b16 %v557
      %v1418 = vunpack.c.h.b16 %v557
      %v1419 = vpack.c.b16 %v1417, %v1415
      %v1420 = vpack.c.b16 %v1418, %v1416
      %v1423 = vsel %vm665, %v1420, 0
      %1425 = vmatprep.subr.bf16.mxu0 %v1329
      %1426 = vmatpush1.bf16.msra.mxu0 %v1328
      %1427 = vmatprep.subr.bf16.mxu0 %v1334
      %1428 = vmatpush1.bf16.msra.mxu0 %v1337
      %1429 = vmatprep.subr.bf16.mxu0 %v1349
      %1430 = vmatpush1.bf16.msra.mxu0 %v1348
      %1431 = vmatprep.subr.bf16.mxu0 %v1360
      %1432 = vmatpush1.bf16.msra.mxu0 %v1359
      %1433 = vmatprep.subr.bf16.mxu0 %v1316
      %1434 = vmatpush1.bf16.msra.mxu0 %v1315
      %1435 = vmatprep.subr.bf16.mxu0 %v1371
      %1436 = vmatpush1.bf16.msra.mxu0 %v1370
      %1437 = vmatprep.subr.bf16.mxu0 %v1382
      %1438 = vmatpush1.bf16.msra.mxu0 %v1381
      %1439 = vmatprep.subr.bf16.mxu0 %v1390
      %1440 = vmatpush1.bf16.msra.mxu0 %v1387
      %1441 = vmatprep.subr.bf16.mxu0 %v1402
      %1442 = vmatpush1.bf16.msra.mxu0 %v1401
      %1443 = vmatprep.subr.bf16.mxu0 0
      %1444 = vmatpush1.bf16.msra.mxu0 0
      %1445 = vmatprep.subr.bf16.mxu0 0
      %1446 = vmatpush1.bf16.msra.mxu0 0
      %1447 = vmatprep.subr.bf16.mxu0 0
      %1448 = vmatpush1.bf16.msra.mxu0 0
      %1449 = vmatprep.subr.bf16.mxu0 0
      %1450 = vmatpush1.bf16.msra.mxu0 0
      %1451 = vmatprep.subr.bf16.mxu0 0
      %1452 = vmatpush1.bf16.msra.mxu0 0
      %1453 = vmatprep.subr.bf16.mxu0 0
      %1454 = vmatpush1.bf16.msra.mxu0 0
      %1455 = vmatprep.subr.bf16.mxu0 0
      %1456 = vmatpush1.bf16.msra.mxu0 0
      %1457 = vmatprep.mubr.bf16.mxu0 %v1423
      %1458 = vmatmul.mubr.bf16.gmra.mrb[0].mxu0 %v1419
      %v1459 = vpop.f32.mrb[0].mxu0
      %v1460 = vadd.f32 %v1406, %v1459
      %v1461 = vpop.f32.mrb[0].mxu0
      %v1462 = vadd.f32 %v1406, %v1461
      %v1463 = vpop.f32.mrb[0].mxu0
      %v1464 = vadd.f32 %v1411, %v1463
      %v1465 = vpop.f32.mrb[0].mxu0
      %v1466 = vadd.f32 %v1411, %v1465
      %1467 = vdwg.mxu0
      %v1468 = vmax.f32 %v1460, 0.0
      %v1469 = vmax.f32 %v1462, 0.0
      %v1470 = vmax.f32 %v1464, 0.0
      %v1471 = vmax.f32 %v1466, 0.0
      %1473 = vset.pattern.permute.xlu0 0
      %1474 = vperm.xlu0 %1473, %v991
      %v1475 = vpop.permute.xlu0 %1474
      %1478 = vset.pattern.permute.xlu0 0
      %1479 = vperm.xlu0 %1478, %v992
      %v1480 = vpop.permute.xlu0 %1479
      %1483 = vset.pattern.permute.xlu0 0
      %1484 = vperm.xlu0 %1483, %v993
      %v1485 = vpop.permute.xlu0 %1484
      %1488 = vset.pattern.permute.xlu0 0
      %1489 = vperm.xlu0 %1488, %v994
      %v1490 = vpop.permute.xlu0 %1489
      %v1496 = vunpack.c.l.b16 %v987
      %v1497 = vunpack.c.l.b16 %v988
      %v1498 = vunpack.c.l.b16 %v989
      %v1499 = vunpack.c.l.b16 %v990
      %v1500 = vpack.c.b16 %v1497, %v1496
      %v1501 = vpack.c.b16 %v1499, %v1498
      %v1503 = vsel %vm665, %v1500, 0
      %v1506 = vsel %vm665, %v1501, 0
      %1508 = vmatprep.subr.bf16.mxu0 %v1159
      %1509 = vmatpush1.bf16.msra.mxu0 %v1158
      %1510 = vmatprep.subr.bf16.mxu0 0
      %1511 = vmatpush1.bf16.msra.mxu0 0
      %1512 = vmatprep.subr.bf16.mxu0 0
      %1513 = vmatpush1.bf16.msra.mxu0 0
      %1514 = vmatprep.subr.bf16.mxu0 0
      %1515 = vmatpush1.bf16.msra.mxu0 0
      %1516 = vmatprep.subr.bf16.mxu0 0
      %1517 = vmatpush1.bf16.msra.mxu0 0
      %1518 = vmatprep.subr.bf16.mxu0 0
      %1519 = vmatpush1.bf16.msra.mxu0 0
      %1520 = vmatprep.subr.bf16.mxu0 0
      %1521 = vmatpush1.bf16.msra.mxu0 0
      %1522 = vmatprep.subr.bf16.mxu0 0
      %1523 = vmatpush1.bf16.msra.mxu0 0
      %1524 = vmatprep.subr.bf16.mxu0 0
      %1525 = vmatpush1.bf16.msra.mxu0 0
      %1526 = vmatprep.subr.bf16.mxu0 0
      %1527 = vmatpush1.bf16.msra.mxu0 0
      %1528 = vmatprep.subr.bf16.mxu0 0
      %1529 = vmatpush1.bf16.msra.mxu0 0
      %1530 = vmatprep.subr.bf16.mxu0 0
      %1531 = vmatpush1.bf16.msra.mxu0 0
      %1532 = vmatprep.subr.bf16.mxu0 0
      %1533 = vmatpush1.bf16.msra.mxu0 0
      %1534 = vmatprep.subr.bf16.mxu0 0
      %1535 = vmatpush1.bf16.msra.mxu0 0
      %1536 = vmatprep.subr.bf16.mxu0 0
      %1537 = vmatpush1.bf16.msra.mxu0 0
      %1538 = vmatprep.subr.bf16.mxu0 0
      %1539 = vmatpush1.bf16.msra.mxu0 0
      %1540 = vmatprep.mubr.bf16.mxu0 0
      %1541 = vmatmul.mubr.bf16.gmra.mrb[0].mxu0 %v1503
      %v1542 = vpop.f32.mrb[0].mxu0
      %v1543 = vadd.f32 %v1475, %v1542
      %v1544 = vpop.f32.mrb[0].mxu0
      %v1545 = vadd.f32 %v1475, %v1544
      %v1546 = vpop.f32.mrb[0].mxu0
      %v1547 = vadd.f32 %v1480, %v1546
      %v1548 = vpop.f32.mrb[0].mxu0
      %v1549 = vadd.f32 %v1480, %v1548
      %1550 = vmatprep.mubr.bf16.mxu0 0
      %1551 = vmatmul.mubr.bf16.gmra.mrb[0].mxu0 %v1506
      %v1552 = vpop.f32.mrb[0].mxu0
      %v1553 = vadd.f32 %v1485, %v1552
      %v1554 = vpop.f32.mrb[0].mxu0
      %v1555 = vadd.f32 %v1485, %v1554
      %v1556 = vpop.f32.mrb[0].mxu0
      %v1557 = vadd.f32 %v1490, %v1556
      %v1558 = vpop.f32.mrb[0].mxu0
      %v1559 = vadd.f32 %v1490, %v1558
      %1560 = vdwg.mxu0
      %1561 = vxpose.xlu0.b32.start [1/16] %v1543, 128
      %1562 = vxpose.xlu0.b32.cont [2/16] 0.0, 128
      %1563 = vxpose.xlu0.b32.cont [3/16] 0.0, 128
      %1564 = vxpose.xlu0.b32.cont [4/16] 0.0, 128
      %1565 = vxpose.xlu0.b32.cont [5/16] 0.0, 128
      %1566 = vxpose.xlu0.b32.cont [6/16] 0.0, 128
      %1567 = vxpose.xlu0.b32.cont [7/16] 0.0, 128
      %1568 = vxpose.xlu0.b32.cont [8/16] 0.0, 128
      %1569 = vxpose.xlu0.b32.cont [9/16] 0.0, 128
      %1570 = vxpose.xlu0.b32.cont [10/16] 0.0, 128
      %1571 = vxpose.xlu0.b32.cont [11/16] 0.0, 128
      %1572 = vxpose.xlu0.b32.cont [12/16] 0.0, 128
      %1573 = vxpose.xlu0.b32.cont [13/16] 0.0, 128
      %1574 = vxpose.xlu0.b32.cont [14/16] 0.0, 128
      %1575 = vxpose.xlu0.b32.cont [15/16] 0.0, 128
      %1576 = vxpose.xlu0.b32.end [16/16] 0.0, 128
      %v1577 = vpop.trf.xlu0
      %v1578 = vpop.trf.xlu0
      %v1579 = vpop.trf.xlu0
      %v1580 = vpop.trf.xlu0
      %v1581 = vpop.trf.xlu0
      %v1582 = vpop.trf.xlu0
      %v1583 = vpop.trf.xlu0
      %v1584 = vpop.trf.xlu0
      %v1585 = vpop.trf.xlu0
      %v1586 = vpop.trf.xlu0
      %v1587 = vpop.trf.xlu0
      %v1588 = vpop.trf.xlu0
      %v1589 = vpop.trf.xlu0
      %v1590 = vpop.trf.xlu0
      %v1591 = vpop.trf.xlu0
      %v1592 = vpop.trf.xlu0
      %1593 = vxpose.xlu0.b32.start [1/16] %v1545, 128
      %1594 = vxpose.xlu0.b32.cont [2/16] 0.0, 128
      %1595 = vxpose.xlu0.b32.cont [3/16] 0.0, 128
      %1596 = vxpose.xlu0.b32.cont [4/16] 0.0, 128
      %1597 = vxpose.xlu0.b32.cont [5/16] 0.0, 128
      %1598 = vxpose.xlu0.b32.cont [6/16] 0.0, 128
      %1599 = vxpose.xlu0.b32.cont [7/16] 0.0, 128
      %1600 = vxpose.xlu0.b32.cont [8/16] 0.0, 128
      %1601 = vxpose.xlu0.b32.cont [9/16] 0.0, 128
      %1602 = vxpose.xlu0.b32.cont [10/16] 0.0, 128
      %1603 = vxpose.xlu0.b32.cont [11/16] 0.0, 128
      %1604 = vxpose.xlu0.b32.cont [12/16] 0.0, 128
      %1605 = vxpose.xlu0.b32.cont [13/16] 0.0, 128
      %1606 = vxpose.xlu0.b32.cont [14/16] 0.0, 128
      %1607 = vxpose.xlu0.b32.cont [15/16] 0.0, 128
      %1608 = vxpose.xlu0.b32.end [16/16] 0.0, 128
      %v1609 = vpop.trf.xlu0
      %v1610 = vpop.trf.xlu0
      %v1611 = vpop.trf.xlu0
      %v1612 = vpop.trf.xlu0
      %v1613 = vpop.trf.xlu0
      %v1614 = vpop.trf.xlu0
      %v1615 = vpop.trf.xlu0
      %v1616 = vpop.trf.xlu0
      %v1617 = vpop.trf.xlu0
      %v1618 = vpop.trf.xlu0
      %v1619 = vpop.trf.xlu0
      %v1620 = vpop.trf.xlu0
      %v1621 = vpop.trf.xlu0
      %v1622 = vpop.trf.xlu0
      %v1623 = vpop.trf.xlu0
      %v1624 = vpop.trf.xlu0
      %v1625 = vpack.c.bf16 %v1578, %v1577
      %v1626 = vpack.c.bf16 %v1580, %v1579
      %v1627 = vpack.c.bf16 %v1582, %v1581
      %v1628 = vpack.c.bf16 %v1584, %v1583
      %v1629 = vpack.c.bf16 %v1586, %v1585
      %v1630 = vpack.c.bf16 %v1588, %v1587
      %v1631 = vpack.c.bf16 %v1590, %v1589
      %v1632 = vpack.c.bf16 %v1592, %v1591
      %v1633 = vpack.c.bf16 %v1610, %v1609
      %v1634 = vpack.c.bf16 %v1612, %v1611
      %v1635 = vpack.c.bf16 %v1614, %v1613
      %v1636 = vpack.c.bf16 %v1616, %v1615
      %v1637 = vpack.c.bf16 %v1618, %v1617
      %v1638 = vpack.c.bf16 %v1620, %v1619
      %v1639 = vpack.c.bf16 %v1622, %v1621
      %v1640 = vpack.c.bf16 %v1624, %v1623
      %v1641 = vpack.c.bf16 %v1547, %v1547
      %v1642 = vpack.c.bf16 %v1549, %v1549
      %vm1643 = vcmask 64512
      %v1645 = vsel %vm1643, %v1625, 0
      %v1648 = vsel %vm1643, %v1626, 0
      %v1651 = vsel %vm1643, %v1627, 0
      %v1654 = vsel %vm1643, %v1628, 0
      %v1657 = vsel %vm1643, %v1629, 0
      %v1660 = vsel %vm1643, %v1630, 0
      %v1663 = vsel %vm1643, %v1631, 0
      %v1666 = vsel %vm1643, %v1632, 0
      %v1669 = vsel %vm1643, %v1633, 0
      %v1672 = vsel %vm1643, %v1634, 0
      %v1675 = vsel %vm1643, %v1635, 0
      %v1678 = vsel %vm1643, %v1636, 0
      %v1681 = vsel %vm1643, %v1637, 0
      %v1684 = vsel %vm1643, %v1638, 0
      %v1687 = vsel %vm1643, %v1639, 0
      %v1690 = vsel %vm1643, %v1640, 0
      %vm1692 = vcmask 1043456
      %v1694 = vsel %vm1692, %v1641, 0
      %v1697 = vsel %vm1692, %v1642, 0
      %1699 = vmatprep.subr.bf16.mxu0 %v1697
      %1700 = vmatpush1.bf16.msra.mxu0 %v1694
      %1701 = vmatprep.subr.bf16.mxu0 0
      %1702 = vmatpush1.bf16.msra.mxu0 0
      %1703 = vmatprep.subr.bf16.mxu0 0
      %1704 = vmatpush1.bf16.msra.mxu0 0
      %1705 = vmatprep.subr.bf16.mxu0 0
      %1706 = vmatpush1.bf16.msra.mxu0 0
      %1707 = vmatprep.subr.bf16.mxu0 0
      %1708 = vmatpush1.bf16.msra.mxu0 0
      %1709 = vmatprep.subr.bf16.mxu0 0
      %1710 = vmatpush1.bf16.msra.mxu0 0
      %1711 = vmatprep.subr.bf16.mxu0 0
      %1712 = vmatpush1.bf16.msra.mxu0 0
      %1713 = vmatprep.subr.bf16.mxu0 0
      %1714 = vmatpush1.bf16.msra.mxu0 0
      %1715 = vmatprep.subr.bf16.mxu0 0
      %1716 = vmatpush1.bf16.msra.mxu0 0
      %1717 = vmatprep.subr.bf16.mxu0 0
      %1718 = vmatpush1.bf16.msra.mxu0 0
      %1719 = vmatprep.subr.bf16.mxu0 0
      %1720 = vmatpush1.bf16.msra.mxu0 0
      %1721 = vmatprep.subr.bf16.mxu0 0
      %1722 = vmatpush1.bf16.msra.mxu0 0
      %1723 = vmatprep.subr.bf16.mxu0 0
      %1724 = vmatpush1.bf16.msra.mxu0 0
      %1725 = vmatprep.subr.bf16.mxu0 0
      %1726 = vmatpush1.bf16.msra.mxu0 0
      %1727 = vmatprep.subr.bf16.mxu0 0
      %1728 = vmatpush1.bf16.msra.mxu0 0
      %1729 = vmatprep.subr.bf16.mxu0 0
      %1730 = vmatpush1.bf16.msra.mxu0 0
      %1731 = vmatprep.mubr.bf16.mxu0 0
      %1732 = vmatmul.mubr.bf16.gmra.mrb[0].mxu0 %v1645
      %v1733 = vpop.f32.mrb[0].mxu0
      %v1734 = vadd.f32 0.0, %v1733
      %v1735 = vpop.f32.mrb[0].mxu0
      %v1736 = vadd.f32 0.0, %v1735
      %v1737 = vpop.f32.mrb[0].mxu0
      %v1738 = vadd.f32 0.0, %v1737
      %v1739 = vpop.f32.mrb[0].mxu0
      %v1740 = vadd.f32 0.0, %v1739
      %1741 = vmatprep.mubr.bf16.mxu0 0
      %1742 = vmatmul.mubr.bf16.gmra.mrb[0].mxu0 %v1648
      %v1743 = vpop.f32.mrb[0].mxu0
      %v1744 = vadd.f32 0.0, %v1743
      %v1745 = vpop.f32.mrb[0].mxu0
      %v1746 = vadd.f32 0.0, %v1745
      %v1747 = vpop.f32.mrb[0].mxu0
      %v1748 = vadd.f32 0.0, %v1747
      %v1749 = vpop.f32.mrb[0].mxu0
      %v1750 = vadd.f32 0.0, %v1749
      %1751 = vmatprep.mubr.bf16.mxu0 0
      %1752 = vmatmul.mubr.bf16.gmra.mrb[0].mxu0 %v1651
      %v1753 = vpop.f32.mrb[0].mxu0
      %v1754 = vadd.f32 0.0, %v1753
      %v1755 = vpop.f32.mrb[0].mxu0
      %v1756 = vadd.f32 0.0, %v1755
      %v1757 = vpop.f32.mrb[0].mxu0
      %v1758 = vadd.f32 0.0, %v1757
      %v1759 = vpop.f32.mrb[0].mxu0
      %v1760 = vadd.f32 0.0, %v1759
      %1761 = vmatprep.mubr.bf16.mxu0 0
      %1762 = vmatmul.mubr.bf16.gmra.mrb[0].mxu0 %v1654
      %v1763 = vpop.f32.mrb[0].mxu0
      %v1764 = vadd.f32 0.0, %v1763
      %v1765 = vpop.f32.mrb[0].mxu0
      %v1766 = vadd.f32 0.0, %v1765
      %v1767 = vpop.f32.mrb[0].mxu0
      %v1768 = vadd.f32 0.0, %v1767
      %v1769 = vpop.f32.mrb[0].mxu0
      %v1770 = vadd.f32 0.0, %v1769
      %1771 = vmatprep.mubr.bf16.mxu0 0
      %1772 = vmatmul.mubr.bf16.gmra.mrb[0].mxu0 %v1657
      %v1773 = vpop.f32.mrb[0].mxu0
      %v1774 = vadd.f32 0.0, %v1773
      %v1775 = vpop.f32.mrb[0].mxu0
      %v1776 = vadd.f32 0.0, %v1775
      %v1777 = vpop.f32.mrb[0].mxu0
      %v1778 = vadd.f32 0.0, %v1777
      %v1779 = vpop.f32.mrb[0].mxu0
      %v1780 = vadd.f32 0.0, %v1779
      %1781 = vmatprep.mubr.bf16.mxu0 0
      %1782 = vmatmul.mubr.bf16.gmra.mrb[0].mxu0 %v1660
      %v1783 = vpop.f32.mrb[0].mxu0
      %v1784 = vadd.f32 0.0, %v1783
      %v1785 = vpop.f32.mrb[0].mxu0
      %v1786 = vadd.f32 0.0, %v1785
      %v1787 = vpop.f32.mrb[0].mxu0
      %v1788 = vadd.f32 0.0, %v1787
      %v1789 = vpop.f32.mrb[0].mxu0
      %v1790 = vadd.f32 0.0, %v1789
      %1791 = vmatprep.mubr.bf16.mxu0 0
      %1792 = vmatmul.mubr.bf16.gmra.mrb[0].mxu0 %v1663
      %v1793 = vpop.f32.mrb[0].mxu0
      %v1794 = vadd.f32 0.0, %v1793
      %v1795 = vpop.f32.mrb[0].mxu0
      %v1796 = vadd.f32 0.0, %v1795
      %v1797 = vpop.f32.mrb[0].mxu0
      %v1798 = vadd.f32 0.0, %v1797
      %v1799 = vpop.f32.mrb[0].mxu0
      %v1800 = vadd.f32 0.0, %v1799
      %1801 = vmatprep.mubr.bf16.mxu0 0
      %1802 = vmatmul.mubr.bf16.gmra.mrb[0].mxu0 %v1666
      %v1803 = vpop.f32.mrb[0].mxu0
      %v1804 = vadd.f32 0.0, %v1803
      %v1805 = vpop.f32.mrb[0].mxu0
      %v1806 = vadd.f32 0.0, %v1805
      %v1807 = vpop.f32.mrb[0].mxu0
      %v1808 = vadd.f32 0.0, %v1807
      %v1809 = vpop.f32.mrb[0].mxu0
      %v1810 = vadd.f32 0.0, %v1809
      %1811 = vmatprep.mubr.bf16.mxu0 0
      %1812 = vmatmul.mubr.bf16.gmra.mrb[0].mxu0 %v1669
      %v1813 = vpop.f32.mrb[0].mxu0
      %v1814 = vadd.f32 0.0, %v1813
      %v1815 = vpop.f32.mrb[0].mxu0
      %v1816 = vadd.f32 0.0, %v1815
      %v1817 = vpop.f32.mrb[0].mxu0
      %v1818 = vadd.f32 0.0, %v1817
      %v1819 = vpop.f32.mrb[0].mxu0
      %v1820 = vadd.f32 0.0, %v1819
      %1821 = vmatprep.mubr.bf16.mxu0 0
      %1822 = vmatmul.mubr.bf16.gmra.mrb[0].mxu0 %v1672
      %v1823 = vpop.f32.mrb[0].mxu0
      %v1824 = vadd.f32 0.0, %v1823
      %v1825 = vpop.f32.mrb[0].mxu0
      %v1826 = vadd.f32 0.0, %v1825
      %v1827 = vpop.f32.mrb[0].mxu0
      %v1828 = vadd.f32 0.0, %v1827
      %v1829 = vpop.f32.mrb[0].mxu0
      %v1830 = vadd.f32 0.0, %v1829
      %1831 = vmatprep.mubr.bf16.mxu0 0
      %1832 = vmatmul.mubr.bf16.gmra.mrb[0].mxu0 %v1675
      %v1833 = vpop.f32.mrb[0].mxu0
      %v1834 = vadd.f32 0.0, %v1833
      %v1835 = vpop.f32.mrb[0].mxu0
      %v1836 = vadd.f32 0.0, %v1835
      %v1837 = vpop.f32.mrb[0].mxu0
      %v1838 = vadd.f32 0.0, %v1837
      %v1839 = vpop.f32.mrb[0].mxu0
      %v1840 = vadd.f32 0.0, %v1839
      %1841 = vmatprep.mubr.bf16.mxu0 0
      %1842 = vmatmul.mubr.bf16.gmra.mrb[0].mxu0 %v1678
      %v1843 = vpop.f32.mrb[0].mxu0
      %v1844 = vadd.f32 0.0, %v1843
      %v1845 = vpop.f32.mrb[0].mxu0
      %v1846 = vadd.f32 0.0, %v1845
      %v1847 = vpop.f32.mrb[0].mxu0
      %v1848 = vadd.f32 0.0, %v1847
      %v1849 = vpop.f32.mrb[0].mxu0
      %v1850 = vadd.f32 0.0, %v1849
      %1851 = vmatprep.mubr.bf16.mxu0 0
      %1852 = vmatmul.mubr.bf16.gmra.mrb[0].mxu0 %v1681
      %v1853 = vpop.f32.mrb[0].mxu0
      %v1854 = vadd.f32 0.0, %v1853
      %v1855 = vpop.f32.mrb[0].mxu0
      %v1856 = vadd.f32 0.0, %v1855
      %v1857 = vpop.f32.mrb[0].mxu0
      %v1858 = vadd.f32 0.0, %v1857
      %v1859 = vpop.f32.mrb[0].mxu0
      %v1860 = vadd.f32 0.0, %v1859
      %1861 = vmatprep.mubr.bf16.mxu0 0
      %1862 = vmatmul.mubr.bf16.gmra.mrb[0].mxu0 %v1684
      %v1863 = vpop.f32.mrb[0].mxu0
      %v1864 = vadd.f32 0.0, %v1863
      %v1865 = vpop.f32.mrb[0].mxu0
      %v1866 = vadd.f32 0.0, %v1865
      %v1867 = vpop.f32.mrb[0].mxu0
      %v1868 = vadd.f32 0.0, %v1867
      %v1869 = vpop.f32.mrb[0].mxu0
      %v1870 = vadd.f32 0.0, %v1869
      %1871 = vmatprep.mubr.bf16.mxu0 0
      %1872 = vmatmul.mubr.bf16.gmra.mrb[0].mxu0 %v1687
      %v1873 = vpop.f32.mrb[0].mxu0
      %v1874 = vadd.f32 0.0, %v1873
      %v1875 = vpop.f32.mrb[0].mxu0
      %v1876 = vadd.f32 0.0, %v1875
      %v1877 = vpop.f32.mrb[0].mxu0
      %v1878 = vadd.f32 0.0, %v1877
      %v1879 = vpop.f32.mrb[0].mxu0
      %v1880 = vadd.f32 0.0, %v1879
      %1881 = vmatprep.mubr.bf16.mxu0 0
      %1882 = vmatmul.mubr.bf16.gmra.mrb[0].mxu0 %v1690
      %v1883 = vpop.f32.mrb[0].mxu0
      %v1884 = vadd.f32 0.0, %v1883
      %v1885 = vpop.f32.mrb[0].mxu0
      %v1886 = vadd.f32 0.0, %v1885
      %v1887 = vpop.f32.mrb[0].mxu0
      %v1888 = vadd.f32 0.0, %v1887
      %v1889 = vpop.f32.mrb[0].mxu0
      %v1890 = vadd.f32 0.0, %v1889
      %1891 = vdwg.mxu0
      %v1892 = vmax.f32 %v1734, %v1736
      %1893 = vmax.xlane.f32.xlu0 %v1892
      %v1894 = vpop.xlane.xlu0 %1893
      %v1895 = vmax.f32 %v1738, %v1740
      %1896 = vmax.xlane.f32.xlu0 %v1895
      %v1897 = vpop.xlane.xlu0 %1896
      %v1898 = vmax.f32 %v1744, %v1746
      %1899 = vmax.xlane.f32.xlu0 %v1898
      %v1900 = vpop.xlane.xlu0 %1899
      %v1901 = vmax.f32 %v1748, %v1750
      %1902 = vmax.xlane.f32.xlu0 %v1901
      %v1903 = vpop.xlane.xlu0 %1902
      %v1904 = vmax.f32 %v1754, %v1756
      %1905 = vmax.xlane.f32.xlu0 %v1904
      %v1906 = vpop.xlane.xlu0 %1905
      %v1907 = vmax.f32 %v1758, %v1760
      %1908 = vmax.xlane.f32.xlu0 %v1907
      %v1909 = vpop.xlane.xlu0 %1908
      %v1910 = vmax.f32 %v1764, %v1766
      %1911 = vmax.xlane.f32.xlu0 %v1910
      %v1912 = vpop.xlane.xlu0 %1911
      %v1913 = vmax.f32 %v1768, %v1770
      %1914 = vmax.xlane.f32.xlu0 %v1913
      %v1915 = vpop.xlane.xlu0 %1914
      %v1916 = vmax.f32 %v1774, %v1776
      %1917 = vmax.xlane.f32.xlu0 %v1916
      %v1918 = vpop.xlane.xlu0 %1917
      %v1919 = vmax.f32 %v1778, %v1780
      %1920 = vmax.xlane.f32.xlu0 %v1919
      %v1921 = vpop.xlane.xlu0 %1920
      %v1922 = vmax.f32 %v1784, %v1786
      %1923 = vmax.xlane.f32.xlu0 %v1922
      %v1924 = vpop.xlane.xlu0 %1923
      %v1925 = vmax.f32 %v1788, %v1790
      %1926 = vmax.xlane.f32.xlu0 %v1925
      %v1927 = vpop.xlane.xlu0 %1926
      %v1928 = vmax.f32 %v1794, %v1796
      %1929 = vmax.xlane.f32.xlu0 %v1928
      %v1930 = vpop.xlane.xlu0 %1929
      %v1931 = vmax.f32 %v1798, %v1800
      %1932 = vmax.xlane.f32.xlu0 %v1931
      %v1933 = vpop.xlane.xlu0 %1932
      %v1934 = vmax.f32 %v1804, %v1806
      %1935 = vmax.xlane.f32.xlu0 %v1934
      %v1936 = vpop.xlane.xlu0 %1935
      %v1937 = vmax.f32 %v1808, %v1810
      %1938 = vmax.xlane.f32.xlu0 %v1937
      %v1939 = vpop.xlane.xlu0 %1938
      %v1940 = vmax.f32 %v1814, %v1816
      %1941 = vmax.xlane.f32.xlu0 %v1940
      %v1942 = vpop.xlane.xlu0 %1941
      %v1943 = vmax.f32 %v1818, %v1820
      %1944 = vmax.xlane.f32.xlu0 %v1943
      %v1945 = vpop.xlane.xlu0 %1944
      %v1946 = vmax.f32 %v1824, %v1826
      %1947 = vmax.xlane.f32.xlu0 %v1946
      %v1948 = vpop.xlane.xlu0 %1947
      %v1949 = vmax.f32 %v1828, %v1830
      %1950 = vmax.xlane.f32.xlu0 %v1949
      %v1951 = vpop.xlane.xlu0 %1950
      %v1952 = vmax.f32 %v1834, %v1836
      %1953 = vmax.xlane.f32.xlu0 %v1952
      %v1954 = vpop.xlane.xlu0 %1953
      %v1955 = vmax.f32 %v1838, %v1840
      %1956 = vmax.xlane.f32.xlu0 %v1955
      %v1957 = vpop.xlane.xlu0 %1956
      %v1958 = vmax.f32 %v1844, %v1846
      %1959 = vmax.xlane.f32.xlu0 %v1958
      %v1960 = vpop.xlane.xlu0 %1959
      %v1961 = vmax.f32 %v1848, %v1850
      %1962 = vmax.xlane.f32.xlu0 %v1961
      %v1963 = vpop.xlane.xlu0 %1962
      %v1964 = vmax.f32 %v1854, %v1856
      %1965 = vmax.xlane.f32.xlu0 %v1964
      %v1966 = vpop.xlane.xlu0 %1965
      %v1967 = vmax.f32 %v1858, %v1860
      %1968 = vmax.xlane.f32.xlu0 %v1967
      %v1969 = vpop.xlane.xlu0 %1968
      %v1970 = vmax.f32 %v1864, %v1866
      %1971 = vmax.xlane.f32.xlu0 %v1970
      %v1972 = vpop.xlane.xlu0 %1971
      %v1973 = vmax.f32 %v1868, %v1870
      %1974 = vmax.xlane.f32.xlu0 %v1973
      %v1975 = vpop.xlane.xlu0 %1974
      %v1976 = vmax.f32 %v1874, %v1876
      %1977 = vmax.xlane.f32.xlu0 %v1976
      %v1978 = vpop.xlane.xlu0 %1977
      %v1979 = vmax.f32 %v1878, %v1880
      %1980 = vmax.xlane.f32.xlu0 %v1979
      %v1981 = vpop.xlane.xlu0 %1980
      %v1982 = vmax.f32 %v1884, %v1886
      %1983 = vmax.xlane.f32.xlu0 %v1982
      %v1984 = vpop.xlane.xlu0 %1983
      %v1985 = vmax.f32 %v1888, %v1890
      %1986 = vmax.xlane.f32.xlu0 %v1985
      %v1987 = vpop.xlane.xlu0 %1986
      %v1988 = vsub.f32 %v1734, %v1894
      %v1989 = vsub.f32 %v1736, %v1894
      %v1990 = vsub.f32 %v1738, %v1897
      %v1991 = vsub.f32 %v1740, %v1897
      %v1992 = vsub.f32 %v1744, %v1900
      %v1993 = vsub.f32 %v1746, %v1900
      %v1994 = vsub.f32 %v1748, %v1903
      %v1995 = vsub.f32 %v1750, %v1903
      %v1996 = vsub.f32 %v1754, %v1906
      %v1997 = vsub.f32 %v1756, %v1906
      %v1998 = vsub.f32 %v1758, %v1909
      %v1999 = vsub.f32 %v1760, %v1909
      %v2000 = vsub.f32 %v1764, %v1912
      %v2001 = vsub.f32 %v1766, %v1912
      %v2002 = vsub.f32 %v1768, %v1915
      %v2003 = vsub.f32 %v1770, %v1915
      %v2004 = vsub.f32 %v1774, %v1918
      %v2005 = vsub.f32 %v1776, %v1918
      %v2006 = vsub.f32 %v1778, %v1921
      %v2007 = vsub.f32 %v1780, %v1921
      %v2008 = vsub.f32 %v1784, %v1924
      %v2009 = vsub.f32 %v1786, %v1924
      %v2010 = vsub.f32 %v1788, %v1927
      %v2011 = vsub.f32 %v1790, %v1927
      %v2012 = vsub.f32 %v1794, %v1930
      %v2013 = vsub.f32 %v1796, %v1930
      %v2014 = vsub.f32 %v1798, %v1933
      %v2015 = vsub.f32 %v1800, %v1933
      %v2016 = vsub.f32 %v1804, %v1936
      %v2017 = vsub.f32 %v1806, %v1936
      %v2018 = vsub.f32 %v1808, %v1939
      %v2019 = vsub.f32 %v1810, %v1939
      %v2020 = vsub.f32 %v1814, %v1942
      %v2021 = vsub.f32 %v1816, %v1942
      %v2022 = vsub.f32 %v1818, %v1945
      %v2023 = vsub.f32 %v1820, %v1945
      %v2024 = vsub.f32 %v1824, %v1948
      %v2025 = vsub.f32 %v1826, %v1948
      %v2026 = vsub.f32 %v1828, %v1951
      %v2027 = vsub.f32 %v1830, %v1951
      %v2028 = vsub.f32 %v1834, %v1954
      %v2029 = vsub.f32 %v1836, %v1954
      %v2030 = vsub.f32 %v1838, %v1957
      %v2031 = vsub.f32 %v1840, %v1957
      %v2032 = vsub.f32 %v1844, %v1960
      %v2033 = vsub.f32 %v1846, %v1960
      %v2034 = vsub.f32 %v1848, %v1963
      %v2035 = vsub.f32 %v1850, %v1963
      %v2036 = vsub.f32 %v1854, %v1966
      %v2037 = vsub.f32 %v1856, %v1966
      %v2038 = vsub.f32 %v1858, %v1969
      %v2039 = vsub.f32 %v1860, %v1969
      %v2040 = vsub.f32 %v1864, %v1972
      %v2041 = vsub.f32 %v1866, %v1972
      %v2042 = vsub.f32 %v1868, %v1975
      %v2043 = vsub.f32 %v1870, %v1975
      %v2044 = vsub.f32 %v1874, %v1978
      %v2045 = vsub.f32 %v1876, %v1978
      %v2046 = vsub.f32 %v1878, %v1981
      %v2047 = vsub.f32 %v1880, %v1981
      %v2048 = vsub.f32 %v1884, %v1984
      %v2049 = vsub.f32 %v1886, %v1984
      %v2050 = vsub.f32 %v1888, %v1987
      %v2051 = vsub.f32 %v1890, %v1987
      %v2052 = vmul.f32 %v1988, 1.442695
      %v2053 = vpow.pop %v2052
      %v2054 = vmul.f32 %v1989, 1.442695
      %v2055 = vpow.pop %v2054
      %v2056 = vmul.f32 %v1990, 1.442695
      %v2057 = vpow.pop %v2056
      %v2058 = vmul.f32 %v1991, 1.442695
      %v2059 = vpow.pop %v2058
      %v2060 = vmul.f32 %v1992, 1.442695
      %v2061 = vpow.pop %v2060
      %v2062 = vmul.f32 %v1993, 1.442695
      %v2063 = vpow.pop %v2062
      %v2064 = vmul.f32 %v1994, 1.442695
      %v2065 = vpow.pop %v2064
      %v2066 = vmul.f32 %v1995, 1.442695
      %v2067 = vpow.pop %v2066
      %v2068 = vmul.f32 %v1996, 1.442695
      %v2069 = vpow.pop %v2068
      %v2070 = vmul.f32 %v1997, 1.442695
      %v2071 = vpow.pop %v2070
      %v2072 = vmul.f32 %v1998, 1.442695
      %v2073 = vpow.pop %v2072
      %v2074 = vmul.f32 %v1999, 1.442695
      %v2075 = vpow.pop %v2074
      %v2076 = vmul.f32 %v2000, 1.442695
      %v2077 = vpow.pop %v2076
      %v2078 = vmul.f32 %v2001, 1.442695
      %v2079 = vpow.pop %v2078
      %v2080 = vmul.f32 %v2002, 1.442695
      %v2081 = vpow.pop %v2080
      %v2082 = vmul.f32 %v2003, 1.442695
      %v2083 = vpow.pop %v2082
      %v2084 = vmul.f32 %v2004, 1.442695
      %v2085 = vpow.pop %v2084
      %v2086 = vmul.f32 %v2005, 1.442695
      %v2087 = vpow.pop %v2086
      %v2088 = vmul.f32 %v2006, 1.442695
      %v2089 = vpow.pop %v2088
      %v2090 = vmul.f32 %v2007, 1.442695
      %v2091 = vpow.pop %v2090
      %v2092 = vmul.f32 %v2008, 1.442695
      %v2093 = vpow.pop %v2092
      %v2094 = vmul.f32 %v2009, 1.442695
      %v2095 = vpow.pop %v2094
      %v2096 = vmul.f32 %v2010, 1.442695
      %v2097 = vpow.pop %v2096
      %v2098 = vmul.f32 %v2011, 1.442695
      %v2099 = vpow.pop %v2098
      %v2100 = vmul.f32 %v2012, 1.442695
      %v2101 = vpow.pop %v2100
      %v2102 = vmul.f32 %v2013, 1.442695
      %v2103 = vpow.pop %v2102
      %v2104 = vmul.f32 %v2014, 1.442695
      %v2105 = vpow.pop %v2104
      %v2106 = vmul.f32 %v2015, 1.442695
      %v2107 = vpow.pop %v2106
      %v2108 = vmul.f32 %v2016, 1.442695
      %v2109 = vpow.pop %v2108
      %v2110 = vmul.f32 %v2017, 1.442695
      %v2111 = vpow.pop %v2110
      %v2112 = vmul.f32 %v2018, 1.442695
      %v2113 = vpow.pop %v2112
      %v2114 = vmul.f32 %v2019, 1.442695
      %v2115 = vpow.pop %v2114
      %v2116 = vmul.f32 %v2020, 1.442695
      %v2117 = vpow.pop %v2116
      %v2118 = vmul.f32 %v2021, 1.442695
      %v2119 = vpow.pop %v2118
      %v2120 = vmul.f32 %v2022, 1.442695
      %v2121 = vpow.pop %v2120
      %v2122 = vmul.f32 %v2023, 1.442695
      %v2123 = vpow.pop %v2122
      %v2124 = vmul.f32 %v2024, 1.442695
      %v2125 = vpow.pop %v2124
      %v2126 = vmul.f32 %v2025, 1.442695
      %v2127 = vpow.pop %v2126
      %v2128 = vmul.f32 %v2026, 1.442695
      %v2129 = vpow.pop %v2128
      %v2130 = vmul.f32 %v2027, 1.442695
      %v2131 = vpow.pop %v2130
      %v2132 = vmul.f32 %v2028, 1.442695
      %v2133 = vpow.pop %v2132
      %v2134 = vmul.f32 %v2029, 1.442695
      %v2135 = vpow.pop %v2134
      %v2136 = vmul.f32 %v2030, 1.442695
      %v2137 = vpow.pop %v2136
      %v2138 = vmul.f32 %v2031, 1.442695
      %v2139 = vpow.pop %v2138
      %v2140 = vmul.f32 %v2032, 1.442695
      %v2141 = vpow.pop %v2140
      %v2142 = vmul.f32 %v2033, 1.442695
      %v2143 = vpow.pop %v2142
      %v2144 = vmul.f32 %v2034, 1.442695
      %v2145 = vpow.pop %v2144
      %v2146 = vmul.f32 %v2035, 1.442695
      %v2147 = vpow.pop %v2146
      %v2148 = vmul.f32 %v2036, 1.442695
      %v2149 = vpow.pop %v2148
      %v2150 = vmul.f32 %v2037, 1.442695
      %v2151 = vpow.pop %v2150
      %v2152 = vmul.f32 %v2038, 1.442695
      %v2153 = vpow.pop %v2152
      %v2154 = vmul.f32 %v2039, 1.442695
      %v2155 = vpow.pop %v2154
      %v2156 = vmul.f32 %v2040, 1.442695
      %v2157 = vpow.pop %v2156
      %v2158 = vmul.f32 %v2041, 1.442695
      %v2159 = vpow.pop %v2158
      %v2160 = vmul.f32 %v2042, 1.442695
      %v2161 = vpow.pop %v2160
      %v2162 = vmul.f32 %v2043, 1.442695
      %v2163 = vpow.pop %v2162
      %v2164 = vmul.f32 %v2044, 1.442695
      %v2165 = vpow.pop %v2164
      %v2166 = vmul.f32 %v2045, 1.442695
      %v2167 = vpow.pop %v2166
      %v2168 = vmul.f32 %v2046, 1.442695
      %v2169 = vpow.pop %v2168
      %v2170 = vmul.f32 %v2047, 1.442695
      %v2171 = vpow.pop %v2170
      %v2172 = vmul.f32 %v2048, 1.442695
      %v2173 = vpow.pop %v2172
      %v2174 = vmul.f32 %v2049, 1.442695
      %v2175 = vpow.pop %v2174
      %v2176 = vmul.f32 %v2050, 1.442695
      %v2177 = vpow.pop %v2176
      %v2178 = vmul.f32 %v2051, 1.442695
      %v2179 = vpow.pop %v2178
      %v2180 = vpack.c.bf16 %v1557, %v1553
      %v2181 = vpack.c.bf16 %v1559, %v1555
      %v2182 = vpack.c.bf16 %v2057, %v2053
      %v2183 = vpack.c.bf16 %v2059, %v2055
      %v2184 = vpack.c.bf16 %v2065, %v2061
      %v2185 = vpack.c.bf16 %v2067, %v2063
      %v2186 = vpack.c.bf16 %v2073, %v2069
      %v2187 = vpack.c.bf16 %v2075, %v2071
      %v2188 = vpack.c.bf16 %v2081, %v2077
      %v2189 = vpack.c.bf16 %v2083, %v2079
      %v2190 = vpack.c.bf16 %v2089, %v2085
      %v2191 = vpack.c.bf16 %v2091, %v2087
      %v2192 = vpack.c.bf16 %v2097, %v2093
      %v2193 = vpack.c.bf16 %v2099, %v2095
      %v2194 = vpack.c.bf16 %v2105, %v2101
      %v2195 = vpack.c.bf16 %v2107, %v2103
      %v2196 = vpack.c.bf16 %v2113, %v2109
      %v2197 = vpack.c.bf16 %v2115, %v2111
      %v2198 = vpack.c.bf16 %v2121, %v2117
      %v2199 = vpack.c.bf16 %v2123, %v2119
      %v2200 = vpack.c.bf16 %v2129, %v2125
      %v2201 = vpack.c.bf16 %v2131, %v2127
      %v2202 = vpack.c.bf16 %v2137, %v2133
      %v2203 = vpack.c.bf16 %v2139, %v2135
      %v2204 = vpack.c.bf16 %v2145, %v2141
      %v2205 = vpack.c.bf16 %v2147, %v2143
      %v2206 = vpack.c.bf16 %v2153, %v2149
      %v2207 = vpack.c.bf16 %v2155, %v2151
      %v2208 = vpack.c.bf16 %v2161, %v2157
      %v2209 = vpack.c.bf16 %v2163, %v2159
      %v2210 = vpack.c.bf16 %v2169, %v2165
      %v2211 = vpack.c.bf16 %v2171, %v2167
      %v2212 = vpack.c.bf16 %v2177, %v2173
      %v2213 = vpack.c.bf16 %v2179, %v2175
      %2214 = vmatprep.subr.bf16.mxu0 %v2183
      %2215 = vmatpush1.bf16.xpose.msra.mxu0 %v2182
      %2216 = vmatprep.subr.bf16.mxu0 %v2185
      %2217 = vmatpush1.bf16.xpose.msra.mxu0 %v2184
      %2218 = vmatprep.subr.bf16.mxu0 %v2187
      %2219 = vmatpush1.bf16.xpose.msra.mxu0 %v2186
      %2220 = vmatprep.subr.bf16.mxu0 %v2189
      %2221 = vmatpush1.bf16.xpose.msra.mxu0 %v2188
      %2222 = vmatprep.subr.bf16.mxu0 %v2191
      %2223 = vmatpush1.bf16.xpose.msra.mxu0 %v2190
      %2224 = vmatprep.subr.bf16.mxu0 %v2193
      %2225 = vmatpush1.bf16.xpose.msra.mxu0 %v2192
      %2226 = vmatprep.subr.bf16.mxu0 %v2195
      %2227 = vmatpush1.bf16.xpose.msra.mxu0 %v2194
      %2228 = vmatprep.subr.bf16.mxu0 %v2197
      %2229 = vmatpush1.bf16.xpose.msra.mxu0 %v2196
      %2230 = vmatprep.subr.bf16.mxu0 %v2199
      %2231 = vmatpush1.bf16.xpose.msra.mxu0 %v2198
      %2232 = vmatprep.subr.bf16.mxu0 %v2201
      %2233 = vmatpush1.bf16.xpose.msra.mxu0 %v2200
      %2234 = vmatprep.subr.bf16.mxu0 %v2203
      %2235 = vmatpush1.bf16.xpose.msra.mxu0 %v2202
      %2236 = vmatprep.subr.bf16.mxu0 %v2205
      %2237 = vmatpush1.bf16.xpose.msra.mxu0 %v2204
      %2238 = vmatprep.subr.bf16.mxu0 %v2207
      %2239 = vmatpush1.bf16.xpose.msra.mxu0 %v2206
      %2240 = vmatprep.subr.bf16.mxu0 %v2209
      %2241 = vmatpush1.bf16.xpose.msra.mxu0 %v2208
      %2242 = vmatprep.subr.bf16.mxu0 %v2211
      %2243 = vmatpush1.bf16.xpose.msra.mxu0 %v2210
      %2244 = vmatprep.subr.bf16.mxu0 %v2213
      %2245 = vmatpush1.bf16.xpose.msra.mxu0 %v2212
      %2246 = vmatprep.mubr.bf16.mxu0 %v2181
      %2247 = vmatmul.mubr.bf16.gmra.mrb[0].mxu0 %v2180
      %v2248 = vpop.f32.mrb[0].mxu0
      %v2249 = vadd.f32 0.0, %v2248
      %v2250 = vpop.f32.mrb[0].mxu0
      %v2251 = vadd.f32 0.0, %v2250
      %v2252 = vpop.f32.mrb[0].mxu0
      %v2253 = vadd.f32 0.0, %v2252
      %v2254 = vpop.f32.mrb[0].mxu0
      %v2255 = vadd.f32 0.0, %v2254
      %2256 = vmatprep.mubr.bf16.mxu0 1065369472
      %2257 = vmatmul.mubr.bf16.gmra.mrb[0].mxu0 1065369472
      %v2258 = vpop.f32.mrb[0].mxu0
      %v2259 = vadd.f32 0.0, %v2258
      %v2260 = vpop.f32.mrb[0].mxu0
      %v2261 = vadd.f32 0.0, %v2260
      %v2262 = vpop.f32.mrb[0].mxu0
      %v2263 = vpop.f32.mrb[0].mxu0
      %2264 = vdwg.mxu0
      %v2265 = vrcp.pop %v2259
      %v2266 = vrcp.pop %v2261
      %v2267 = vlaneseq
      %v2268 = vshrl.u32 %v2267, 7
      %v2269 = vsub.s32 0, %v2268
      %v2270 = vrot.slane %v2265, %v2269
      %v2271 = vlaneseq
      %v2272 = vshrl.u32 %v2271, 7
      %v2273 = vsub.s32 0, %v2272
      %v2274 = vrot.slane %v2266, %v2273
      %v2275 = vmul.f32 %v2249, %v2270
      %v2276 = vmul.f32 %v2251, %v2274
      %v2277 = vmul.f32 %v2253, %v2270
      %v2278 = vmul.f32 %v2255, %v2274
      %2280 = vset.pattern.permute.xlu0 0
      %2281 = vperm.xlu0 %2280, %v995
      %v2282 = vpop.permute.xlu0 %2281
      %2285 = vset.pattern.permute.xlu0 0
      %2286 = vperm.xlu0 %2285, %v996
      %v2287 = vpop.permute.xlu0 %2286
      %v2289 = vadd.f32 %v2275, %v2282
      %v2290 = vadd.f32 %v2276, %v2282
      %v2291 = vadd.f32 %v2277, %v2287
      %v2292 = vadd.f32 %v2278, %v2287
      %v2293 = vadd.f32 %v2289, %v1154
      %v2294 = vadd.f32 %v2290, %v1155
      %v2295 = vadd.f32 %v2291, %v1156
      %v2296 = vadd.f32 %v2292, %v1157
      %v2297 = vpack.c.bf16 %v2295, %v2293
      %v2298 = vpack.c.bf16 %v2296, %v2294
      %2300 = vset.pattern.permute.xlu0 0
      %2301 = vperm.xlu0 %2300, %v999
      %v2302 = vpop.permute.xlu0 %2301
      %2305 = vset.pattern.permute.xlu0 0
      %2306 = vperm.xlu0 %2305, %v1000
      %v2307 = vpop.permute.xlu0 %2306
      %v2311 = vunpack.c.l.b16 %v997
      %v2312 = vunpack.c.l.b16 %v998
      %v2313 = vpack.c.b16 %v2312, %v2311
      %v2315 = vsel %vm665, %v2313, 0
      %2317 = vmatprep.subr.bf16.mxu0 %v2298
      %2318 = vmatpush1.bf16.msra.mxu0 %v2297
      %2319 = vmatprep.subr.bf16.mxu0 0
      %2320 = vmatpush1.bf16.msra.mxu0 0
      %2321 = vmatprep.subr.bf16.mxu0 0
      %2322 = vmatpush1.bf16.msra.mxu0 0
      %2323 = vmatprep.subr.bf16.mxu0 0
      %2324 = vmatpush1.bf16.msra.mxu0 0
      %2325 = vmatprep.subr.bf16.mxu0 0
      %2326 = vmatpush1.bf16.msra.mxu0 0
      %2327 = vmatprep.subr.bf16.mxu0 0
      %2328 = vmatpush1.bf16.msra.mxu0 0
      %2329 = vmatprep.subr.bf16.mxu0 0
      %2330 = vmatpush1.bf16.msra.mxu0 0
      %2331 = vmatprep.subr.bf16.mxu0 0
      %2332 = vmatpush1.bf16.msra.mxu0 0
      %2333 = vmatprep.subr.bf16.mxu0 0
      %2334 = vmatpush1.bf16.msra.mxu0 0
      %2335 = vmatprep.subr.bf16.mxu0 0
      %2336 = vmatpush1.bf16.msra.mxu0 0
      %2337 = vmatprep.subr.bf16.mxu0 0
      %2338 = vmatpush1.bf16.msra.mxu0 0
      %2339 = vmatprep.subr.bf16.mxu0 0
      %2340 = vmatpush1.bf16.msra.mxu0 0
      %2341 = vmatprep.subr.bf16.mxu0 0
      %2342 = vmatpush1.bf16.msra.mxu0 0
      %2343 = vmatprep.subr.bf16.mxu0 0
      %2344 = vmatpush1.bf16.msra.mxu0 0
      %2345 = vmatprep.subr.bf16.mxu0 0
      %2346 = vmatpush1.bf16.msra.mxu0 0
      %2347 = vmatprep.subr.bf16.mxu0 0
      %2348 = vmatpush1.bf16.msra.mxu0 0
      %2349 = vmatprep.mubr.bf16.mxu0 0
      %2350 = vmatmul.mubr.bf16.gmra.mrb[0].mxu0 %v2315
      %v2351 = vpop.f32.mrb[0].mxu0
      %v2352 = vadd.f32 %v2302, %v2351
      %v2353 = vpop.f32.mrb[0].mxu0
      %v2354 = vadd.f32 %v2302, %v2353
      %v2355 = vpop.f32.mrb[0].mxu0
      %v2356 = vadd.f32 %v2307, %v2355
      %v2357 = vpop.f32.mrb[0].mxu0
      %v2358 = vadd.f32 %v2307, %v2357
      %2359 = vdwg.mxu0
      %v2360 = vxor.u32 %v2352, 2147483648
      %v2361 = vxor.u32 %v2354, 2147483648
      %v2362 = vxor.u32 %v2356, 2147483648
      %v2363 = vxor.u32 %v2358, 2147483648
      %v2364 = vmul.f32 %v2360, 1.442695
      %v2365 = vpow.pop %v2364
      %v2366 = vmul.f32 %v2361, 1.442695
      %v2367 = vpow.pop %v2366
      %v2368 = vmul.f32 %v2362, 1.442695
      %v2369 = vpow.pop %v2368
      %v2370 = vmul.f32 %v2363, 1.442695
      %v2371 = vpow.pop %v2370
      %v2372 = vadd.f32 %v2365, 1.0
      %v2373 = vadd.f32 %v2367, 1.0
      %v2374 = vadd.f32 %v2369, 1.0
      %v2375 = vadd.f32 %v2371, 1.0
      %v2376 = vrcp.pop %v2372
      %v2377 = vmul.f32 1.0, %v2376
      %v2378 = vrcp.pop %v2373
      %v2379 = vmul.f32 1.0, %v2378
      %v2380 = vrcp.pop %v2374
      %v2381 = vmul.f32 1.0, %v2380
      %v2382 = vrcp.pop %v2375
      %v2383 = vmul.f32 1.0, %v2382
      %v2384 = vmul.f32 %v1468, %v2377
      %v2385 = vmul.f32 %v1469, %v2379
      %v2386 = vmul.f32 %v1470, %v2381
      %v2387 = vmul.f32 %v1471, %v2383
      %v2388 = vpack.c.bf16 %v2386, %v2384
      %v2389 = vpack.c.bf16 %v2387, %v2385
      %2392 = vrot.lane.b32.xlu0 %v2388, 17
      %v2393 = vpop.permute.xlu0 %2392
      %2394 = vrot.lane.b32.xlu0 %v2389, 17
      %v2395 = vpop.permute.xlu0 %2394
      %v2396 = vsel %vm632, %v2393, %v2395
      %v2399 = vsel %vm635, 0, %v2393
      %v2401 = vsel %vm654, %v2399, 0
      %v2402 = vsel %vm655, %v2396, 0
      %2403 = vrot.lane.b32.xlu0 %v2388, 16
      %v2404 = vpop.permute.xlu0 %2403
      %2405 = vrot.lane.b32.xlu0 %v2389, 16
      %v2406 = vpop.permute.xlu0 %2405
      %v2407 = vsel %vm662, %v2404, %v2406
      %v2410 = vsel %vm665, 0, %v2404
      %2412 = vrot.lane.b32.xlu0 %v2388, 15
      %v2413 = vpop.permute.xlu0 %2412
      %2414 = vrot.lane.b32.xlu0 %v2389, 15
      %v2415 = vpop.permute.xlu0 %2414
      %v2416 = vsel %vm673, %v2413, %v2415
      %v2419 = vsel %vm676, 0, %v2413
      %v2421 = vsel %vm694, %v2419, 0
      %v2422 = vsel %vm695, %v2416, 0
      %2423 = vrot.lane.b32.xlu0 %v2388, 1
      %v2424 = vpop.permute.xlu0 %2423
      %2425 = vrot.lane.b32.xlu0 %v2389, 1
      %v2426 = vpop.permute.xlu0 %2425
      %v2427 = vsel %vm702, %v2424, %v2426
      %v2430 = vsel %vm705, 0, %v2424
      %v2432 = vsel %vm654, %v2430, 0
      %v2433 = vsel %vm655, %v2427, 0
      %2434 = vrot.lane.b32.xlu0 %v2388, 127
      %v2435 = vpop.permute.xlu0 %2434
      %2436 = vrot.lane.b32.xlu0 %v2389, 127
      %v2437 = vpop.permute.xlu0 %2436
      %v2438 = vsel %vm715, %v2435, %v2437
      %v2441 = vsel %vm718, %v2437, 0
      %v2443 = vsel %vm694, %v2438, 0
      %v2444 = vsel %vm695, %v2441, 0
      %2445 = vrot.lane.b32.xlu0 %v2388, 113
      %v2446 = vpop.permute.xlu0 %2445
      %2447 = vrot.lane.b32.xlu0 %v2389, 113
      %v2448 = vpop.permute.xlu0 %2447
      %v2449 = vsel %vm728, %v2446, %v2448
      %v2452 = vsel %vm731, %v2448, 0
      %v2454 = vsel %vm654, %v2449, 0
      %v2455 = vsel %vm655, %v2452, 0
      %2456 = vrot.lane.b32.xlu0 %v2388, 112
      %v2457 = vpop.permute.xlu0 %2456
      %2458 = vrot.lane.b32.xlu0 %v2389, 112
      %v2459 = vpop.permute.xlu0 %2458
      %v2460 = vsel %vm741, %v2457, %v2459
      %v2463 = vsel %vm744, %v2459, 0
      %2465 = vrot.lane.b32.xlu0 %v2388, 111
      %v2466 = vpop.permute.xlu0 %2465
      %2467 = vrot.lane.b32.xlu0 %v2389, 111
      %v2468 = vpop.permute.xlu0 %2467
      %v2469 = vsel %vm752, %v2466, %v2468
      %v2472 = vsel %vm755, %v2468, 0
      %v2474 = vsel %vm694, %v2469, 0
      %v2475 = vsel %vm695, %v2472, 0
      %2477 = vset.pattern.permute.xlu0 0
      %2478 = vperm.xlu0 %2477, %v597
      %v2479 = vpop.permute.xlu0 %2478
      %2482 = vset.pattern.permute.xlu0 0
      %2483 = vperm.xlu0 %2482, %v598
      %v2484 = vpop.permute.xlu0 %2483
      %v2488 = vunpack.c.l.b16 %v559
      %v2489 = vunpack.c.h.b16 %v559
      %v2490 = vunpack.c.l.b16 %v560
      %v2491 = vunpack.c.h.b16 %v560
      %v2492 = vpack.c.b16 %v2490, %v2488
      %v2493 = vpack.c.b16 %v2491, %v2489
      %v2496 = vsel %vm665, %v2493, 0
      %2498 = vmatprep.subr.bf16.mxu0 %v2402
      %2499 = vmatpush1.bf16.msra.mxu0 %v2401
      %2500 = vmatprep.subr.bf16.mxu0 %v2407
      %2501 = vmatpush1.bf16.msra.mxu0 %v2410
      %2502 = vmatprep.subr.bf16.mxu0 %v2422
      %2503 = vmatpush1.bf16.msra.mxu0 %v2421
      %2504 = vmatprep.subr.bf16.mxu0 %v2433
      %2505 = vmatpush1.bf16.msra.mxu0 %v2432
      %2506 = vmatprep.subr.bf16.mxu0 %v2389
      %2507 = vmatpush1.bf16.msra.mxu0 %v2388
      %2508 = vmatprep.subr.bf16.mxu0 %v2444
      %2509 = vmatpush1.bf16.msra.mxu0 %v2443
      %2510 = vmatprep.subr.bf16.mxu0 %v2455
      %2511 = vmatpush1.bf16.msra.mxu0 %v2454
      %2512 = vmatprep.subr.bf16.mxu0 %v2463
      %2513 = vmatpush1.bf16.msra.mxu0 %v2460
      %2514 = vmatprep.subr.bf16.mxu0 %v2475
      %2515 = vmatpush1.bf16.msra.mxu0 %v2474
      %2516 = vmatprep.subr.bf16.mxu0 0
      %2517 = vmatpush1.bf16.msra.mxu0 0
      %2518 = vmatprep.subr.bf16.mxu0 0
      %2519 = vmatpush1.bf16.msra.mxu0 0
      %2520 = vmatprep.subr.bf16.mxu0 0
      %2521 = vmatpush1.bf16.msra.mxu0 0
      %2522 = vmatprep.subr.bf16.mxu0 0
      %2523 = vmatpush1.bf16.msra.mxu0 0
      %2524 = vmatprep.subr.bf16.mxu0 0
      %2525 = vmatpush1.bf16.msra.mxu0 0
      %2526 = vmatprep.subr.bf16.mxu0 0
      %2527 = vmatpush1.bf16.msra.mxu0 0
      %2528 = vmatprep.subr.bf16.mxu0 0
      %2529 = vmatpush1.bf16.msra.mxu0 0
      %2530 = vmatprep.mubr.bf16.mxu0 %v2496
      %2531 = vmatmul.mubr.bf16.gmra.mrb[0].mxu0 %v2492
      %v2532 = vpop.f32.mrb[0].mxu0
      %v2533 = vadd.f32 %v2479, %v2532
      %v2534 = vpop.f32.mrb[0].mxu0
      %v2535 = vadd.f32 %v2479, %v2534
      %v2536 = vpop.f32.mrb[0].mxu0
      %v2537 = vadd.f32 %v2484, %v2536
      %v2538 = vpop.f32.mrb[0].mxu0
      %v2539 = vadd.f32 %v2484, %v2538
      %2540 = vdwg.mxu0
      %v2541 = vmax.f32 %v2533, 0.0
      %v2542 = vmax.f32 %v2535, 0.0
      %v2543 = vmax.f32 %v2537, 0.0
      %v2544 = vmax.f32 %v2539, 0.0
      %v2545 = vadd.f32 %v983, %v2541
      %v2546 = vadd.f32 %v984, %v2542
      %v2547 = vadd.f32 %v985, %v2543
      %v2548 = vadd.f32 %v986, %v2544
      %v2549 = vld [vmem:[%s13] sm:$0xf]
      %v2550 = vld [vmem:[%s13 + $0x4] sm:$0xf]
      %v2551 = vld [vmem:[%s13 + $0x8] sm:$0xf]
      %v2552 = vld [vmem:[%s13 + $0xc] sm:$0xf]
      %v2553 = vld [vmem:[%s13 + $0x10] sm:$0xf]
      %v2554 = vld [vmem:[%s13 + $0x14] sm:$0xf]
      %v2555 = vld [vmem:[%s13 + $0x18] sm:$0xf]
      %v2556 = vld [vmem:[%s13 + $0x1c] sm:$0xf]
      %v2557 = vld [vmem:[%s13 + $0x20] sm:$0xf]
      %v2558 = vld [vmem:[%s13 + $0x24] sm:$0xf]
      %v2559 = vld [vmem:[%s13 + $0x28] sm:$0xf]
      %v2560 = vld [vmem:[%s13 + $0x2c] sm:$0xf]
      %v2561 = vld [vmem:[%s13 + $0x30] sm:$0xf]
      %v2562 = vld [vmem:[%s13 + $0x34] sm:$0xf]
      %v2563 = vld [vmem:[%s13 + $0x38] sm:$0xf]
      %v2564 = vld [vmem:[%s13 + $0x3c] sm:$0xf]
      %v2565 = vld [vmem:[%s13 + $0x40] sm:$0xf]
      %v2566 = vld [vmem:[%s13 + $0x44] sm:$0xf]
      %v2567 = vld [vmem:[%s13 + $0x48] sm:$0xf]
      %v2568 = vld [vmem:[%s13 + $0x4c] sm:$0xf]
      %v2569 = vld [vmem:[%s13 + $0x50] sm:$0xf]
      %v2570 = vld [vmem:[%s13 + $0x54] sm:$0xf]
      %v2571 = vld [vmem:[%s13 + $0x58] sm:$0xf]
      %v2572 = vld [vmem:[%s13 + $0x5c] sm:$0xf]
      %v2573 = vld [vmem:[%s13 + $0x60] sm:$0xf]
      %v2574 = vld [vmem:[%s13 + $0x64] sm:$0xf]
      %v2575 = vld [vmem:[%s13 + $0x68] sm:$0xf]
      %v2576 = vld [vmem:[%s13 + $0x6c] sm:$0xf]
      %v2577 = vld [vmem:[%s13 + $0x70] sm:$0xf]
      %v2578 = vld [vmem:[%s13 + $0x74] sm:$0xf]
      %v2579 = vld [vmem:[%s13 + $0x78] sm:$0xf]
      %v2580 = vld [vmem:[%s13 + $0x7c] sm:$0xf]
      %v2613 = vunpack.c.l.b16 %v2549
      %v2614 = vunpack.c.l.b16 %v2550
      %v2615 = vunpack.c.l.b16 %v2551
      %v2616 = vunpack.c.l.b16 %v2552
      %v2617 = vunpack.c.l.b16 %v2553
      %v2618 = vunpack.c.l.b16 %v2554
      %v2619 = vunpack.c.l.b16 %v2555
      %v2620 = vunpack.c.l.b16 %v2556
      %v2621 = vunpack.c.l.b16 %v2557
      %v2622 = vunpack.c.l.b16 %v2558
      %v2623 = vunpack.c.l.b16 %v2559
      %v2624 = vunpack.c.l.b16 %v2560
      %v2625 = vunpack.c.l.b16 %v2561
      %v2626 = vunpack.c.l.b16 %v2562
      %v2627 = vunpack.c.l.b16 %v2563
      %v2628 = vunpack.c.l.b16 %v2564
      %v2629 = vunpack.c.l.b16 %v2565
      %v2630 = vunpack.c.l.b16 %v2566
      %v2631 = vunpack.c.l.b16 %v2567
      %v2632 = vunpack.c.l.b16 %v2568
      %v2633 = vunpack.c.l.b16 %v2569
      %v2634 = vunpack.c.l.b16 %v2570
      %v2635 = vunpack.c.l.b16 %v2571
      %v2636 = vunpack.c.l.b16 %v2572
      %v2637 = vunpack.c.l.b16 %v2573
      %v2638 = vunpack.c.l.b16 %v2574
      %v2639 = vunpack.c.l.b16 %v2575
      %v2640 = vunpack.c.l.b16 %v2576
      %v2641 = vunpack.c.l.b16 %v2577
      %v2642 = vunpack.c.l.b16 %v2578
      %v2643 = vunpack.c.l.b16 %v2579
      %v2644 = vunpack.c.l.b16 %v2580
      %v2645 = vpack.c.b16 %v2614, %v2613
      %v2646 = vpack.c.b16 %v2616, %v2615
      %v2647 = vpack.c.b16 %v2618, %v2617
      %v2648 = vpack.c.b16 %v2620, %v2619
      %v2649 = vpack.c.b16 %v2622, %v2621
      %v2650 = vpack.c.b16 %v2624, %v2623
      %v2651 = vpack.c.b16 %v2626, %v2625
      %v2652 = vpack.c.b16 %v2628, %v2627
      %v2653 = vpack.c.b16 %v2630, %v2629
      %v2654 = vpack.c.b16 %v2632, %v2631
      %v2655 = vpack.c.b16 %v2634, %v2633
      %v2656 = vpack.c.b16 %v2636, %v2635
      %v2657 = vpack.c.b16 %v2638, %v2637
      %v2658 = vpack.c.b16 %v2640, %v2639
      %v2659 = vpack.c.b16 %v2642, %v2641
      %v2660 = vpack.c.b16 %v2644, %v2643
      %2677 = vmatprep.subr.bf16.mxu0 0
      %2678 = vmatpush1.bf16.msra.mxu0 %v2645
      %2679 = vmatprep.subr.bf16.mxu0 0
      %2680 = vmatpush1.bf16.msra.mxu0 %v2646
      %2681 = vmatprep.subr.bf16.mxu0 0
      %2682 = vmatpush1.bf16.msra.mxu0 %v2647
      %2683 = vmatprep.subr.bf16.mxu0 0
      %2684 = vmatpush1.bf16.msra.mxu0 %v2648
      %2685 = vmatprep.subr.bf16.mxu0 0
      %2686 = vmatpush1.bf16.msra.mxu0 %v2649
      %2687 = vmatprep.subr.bf16.mxu0 0
      %2688 = vmatpush1.bf16.msra.mxu0 %v2650
      %2689 = vmatprep.subr.bf16.mxu0 0
      %2690 = vmatpush1.bf16.msra.mxu0 %v2651
      %2691 = vmatprep.subr.bf16.mxu0 0
      %2692 = vmatpush1.bf16.msra.mxu0 %v2652
      %2693 = vmatprep.subr.bf16.mxu0 0
      %2694 = vmatpush1.bf16.msra.mxu0 %v2653
      %2695 = vmatprep.subr.bf16.mxu0 0
      %2696 = vmatpush1.bf16.msra.mxu0 %v2654
      %2697 = vmatprep.subr.bf16.mxu0 0
      %2698 = vmatpush1.bf16.msra.mxu0 %v2655
      %2699 = vmatprep.subr.bf16.mxu0 0
      %2700 = vmatpush1.bf16.msra.mxu0 %v2656
      %2701 = vmatprep.subr.bf16.mxu0 0
      %2702 = vmatpush1.bf16.msra.mxu0 %v2657
      %2703 = vmatprep.subr.bf16.mxu0 0
      %2704 = vmatpush1.bf16.msra.mxu0 %v2658
      %2705 = vmatprep.subr.bf16.mxu0 0
      %2706 = vmatpush1.bf16.msra.mxu0 %v2659
      %2707 = vmatprep.subr.bf16.mxu0 0
      %2708 = vmatpush1.bf16.msra.mxu0 %v2660
      %2709 = vmatprep.mubr.bf16.mxu0 %v1002
      %2710 = vmatmul.mubr.bf16.gmra.mrb[0].mxu0 %v1001
      %v2711 = vpop.f32.mrb[0].mxu0
      %v2712 = vadd.f32 0.0, %v2711
      %v2713 = vpop.f32.mrb[0].mxu0
      %v2714 = vpop.f32.mrb[0].mxu0
      %v2715 = vadd.f32 0.0, %v2714
      %v2716 = vpop.f32.mrb[0].mxu0
      %2717 = vdwg.mxu0
      %s2718 = scalar_lea.vmem %s3, 16
      %v2719 = vld [vmem:[%s2718] sm:$0xf]
      %v2720 = vld [vmem:[%s2718 + $0x4] sm:$0xf]
      %v2721 = vld [vmem:[%s2718 + $0x8] sm:$0xf]
      %v2722 = vld [vmem:[%s2718 + $0xc] sm:$0xf]
      %s2723 = scalar_lea.vmem %s4, 32
      %v2724 = vld [vmem:[%s2723] sm:$0xff]
      %v2725 = vld [vmem:[%s2723 + $0x8] sm:$0xff]
      %v2726 = vld [vmem:[%s2723 + $0x10] sm:$0xff]
      %v2727 = vld [vmem:[%s2723 + $0x18] sm:$0xff]
      %s2728 = scalar_lea.vmem %s5, 16
      %v2729 = vld [vmem:[%s2728] sm:$0xff]
      %v2730 = vld [vmem:[%s2728 + $0x8] sm:$0xff]
      %s2731 = scalar_lea.vmem %s6, 8
      %v2732 = vld [vmem:[%s2731] sm:$0xf]
      %v2733 = vld [vmem:[%s2731 + $0x4] sm:$0xf]
      %s2734 = scalar_lea.vmem %s7, 16
      %v2735 = vld [vmem:[%s2734] sm:$0xff]
      %v2736 = vld [vmem:[%s2734 + $0x8] sm:$0xff]
      %v2737 = vpack.c.bf16 %v2715, %v2712
      %2739 = vrot.lane.b32.xlu0 %v2737, 9
      %v2740 = vpop.permute.xlu0 %2739
      %vm2741 = vcmask 72704
      %v2743 = vsel %vm2741, 0, %v2740
      %v2745 = vsel %vm542, 1, 0
      %vm2746 = vcmp.eq.s32.totalorder %v2745, 1
      %vm2747 = vmpackc.low %vm2746, %vm2746
      %v2748 = vsel %vm2747, 65537, 0
      %v2749 = vlaneseq
      %v2750 = vshrl.u32 %v2749, 7
      %v2751 = vsub.s32 0, %v2750
      %v2752 = vrot.slane %v2748, %v2751
      %vm2753 = vcmp.ne.s16.totalorder %v2752, 0
      %v2754 = vsel %vm2753, %v2743, 0
      %2755 = vrot.lane.b32.xlu0 %v2737, 8
      %v2756 = vpop.permute.xlu0 %2755
      %v2758 = vsel %vm1643, 0, %v2756
      %2760 = vrot.lane.b32.xlu0 %v2737, 7
      %v2761 = vpop.permute.xlu0 %2760
      %vm2762 = vcmask 56320
      %v2764 = vsel %vm2762, 0, %v2761
      %v2766 = vsel %vm543, 1, 0
      %vm2767 = vcmp.eq.s32.totalorder %v2766, 1
      %vm2768 = vmpackc.low %vm2767, %vm2767
      %v2769 = vsel %vm2768, 65537, 0
      %v2770 = vlaneseq
      %v2771 = vshrl.u32 %v2770, 7
      %v2772 = vsub.s32 0, %v2771
      %v2773 = vrot.slane %v2769, %v2772
      %vm2774 = vcmp.ne.s16.totalorder %v2773, 0
      %v2775 = vsel %vm2774, %v2764, 0
      %2776 = vrot.lane.b32.xlu0 %v2737, 1
      %v2777 = vpop.permute.xlu0 %2776
      %v2779 = vsel %vm705, 0, %v2777
      %v2781 = vsel %vm2753, %v2779, 0
      %2782 = vrot.lane.b32.xlu0 %v2737, 127
      %v2783 = vpop.permute.xlu0 %2782
      %vm2784 = vcmask 515072
      %v2786 = vsel %vm2784, %v2783, 0
      %v2788 = vsel %vm2774, %v2786, 0
      %2789 = vrot.lane.b32.xlu0 %v2737, 121
      %v2790 = vpop.permute.xlu0 %2789
      %vm2791 = vcmask 465920
      %v2793 = vsel %vm2791, %v2790, 0
      %v2795 = vsel %vm2753, %v2793, 0
      %2796 = vrot.lane.b32.xlu0 %v2737, 120
      %v2797 = vpop.permute.xlu0 %2796
      %vm2798 = vcmask 457728
      %v2800 = vsel %vm2798, %v2797, 0
      %2802 = vrot.lane.b32.xlu0 %v2737, 119
      %v2803 = vpop.permute.xlu0 %2802
      %vm2804 = vcmask 449536
      %v2806 = vsel %vm2804, %v2803, 0
      %v2808 = vsel %vm2774, %v2806, 0
      %2810 = vset.pattern.permute.xlu0 0
      %2811 = vperm.xlu0 %2810, %v600
      %v2812 = vpop.permute.xlu0 %2811
      %2815 = vset.pattern.permute.xlu0 0
      %2816 = vperm.xlu0 %2815, %v601
      %v2817 = vpop.permute.xlu0 %2816
      %v2821 = vunpack.c.l.b16 %v562
      %v2822 = vunpack.c.h.b16 %v562
      %v2823 = vunpack.c.l.b16 %v563
      %v2824 = vunpack.c.h.b16 %v563
      %v2825 = vpack.c.b16 %v2823, %v2821
      %v2826 = vpack.c.b16 %v2824, %v2822
      %v2829 = vsel %vm665, %v2826, 0
      %2831 = vmatprep.subr.bf16.mxu0 0
      %2832 = vmatpush1.bf16.msra.mxu0 %v2754
      %2833 = vmatprep.subr.bf16.mxu0 0
      %2834 = vmatpush1.bf16.msra.mxu0 %v2758
      %2835 = vmatprep.subr.bf16.mxu0 0
      %2836 = vmatpush1.bf16.msra.mxu0 %v2775
      %2837 = vmatprep.subr.bf16.mxu0 0
      %2838 = vmatpush1.bf16.msra.mxu0 %v2781
      %2839 = vmatprep.subr.bf16.mxu0 0
      %2840 = vmatpush1.bf16.msra.mxu0 %v2737
      %2841 = vmatprep.subr.bf16.mxu0 0
      %2842 = vmatpush1.bf16.msra.mxu0 %v2788
      %2843 = vmatprep.subr.bf16.mxu0 0
      %2844 = vmatpush1.bf16.msra.mxu0 %v2795
      %2845 = vmatprep.subr.bf16.mxu0 0
      %2846 = vmatpush1.bf16.msra.mxu0 %v2800
      %2847 = vmatprep.subr.bf16.mxu0 0
      %2848 = vmatpush1.bf16.msra.mxu0 %v2808
      %2849 = vmatprep.subr.bf16.mxu0 0
      %2850 = vmatpush1.bf16.msra.mxu0 0
      %2851 = vmatprep.subr.bf16.mxu0 0
      %2852 = vmatpush1.bf16.msra.mxu0 0
      %2853 = vmatprep.subr.bf16.mxu0 0
      %2854 = vmatpush1.bf16.msra.mxu0 0
      %2855 = vmatprep.subr.bf16.mxu0 0
      %2856 = vmatpush1.bf16.msra.mxu0 0
      %2857 = vmatprep.subr.bf16.mxu0 0
      %2858 = vmatpush1.bf16.msra.mxu0 0
      %2859 = vmatprep.subr.bf16.mxu0 0
      %2860 = vmatpush1.bf16.msra.mxu0 0
      %2861 = vmatprep.subr.bf16.mxu0 0
      %2862 = vmatpush1.bf16.msra.mxu0 0
      %2863 = vmatprep.mubr.bf16.mxu0 %v2829
      %2864 = vmatmul.mubr.bf16.gmra.mrb[0].mxu0 %v2825
      %v2865 = vpop.f32.mrb[0].mxu0
      %v2866 = vadd.f32 %v2812, %v2865
      %v2867 = vpop.f32.mrb[0].mxu0
      %v2868 = vpop.f32.mrb[0].mxu0
      %v2869 = vadd.f32 %v2817, %v2868
      %v2870 = vpop.f32.mrb[0].mxu0
      %2871 = vdwg.mxu0
      %v2872 = vmax.f32 %v2866, 0.0
      %v2873 = vmax.f32 %v2869, 0.0
      %v2874 = vpack.c.bf16 %v2873, %v2872
      %2876 = vrot.lane.b32.xlu0 %v2874, 9
      %v2877 = vpop.permute.xlu0 %2876
      %v2879 = vsel %vm2741, 0, %v2877
      %v2881 = vsel %vm2753, %v2879, 0
      %2882 = vrot.lane.b32.xlu0 %v2874, 8
      %v2883 = vpop.permute.xlu0 %2882
      %v2885 = vsel %vm1643, 0, %v2883
      %2887 = vrot.lane.b32.xlu0 %v2874, 7
      %v2888 = vpop.permute.xlu0 %2887
      %v2890 = vsel %vm2762, 0, %v2888
      %v2892 = vsel %vm2774, %v2890, 0
      %2893 = vrot.lane.b32.xlu0 %v2874, 1
      %v2894 = vpop.permute.xlu0 %2893
      %v2896 = vsel %vm705, 0, %v2894
      %v2898 = vsel %vm2753, %v2896, 0
      %2899 = vrot.lane.b32.xlu0 %v2874, 127
      %v2900 = vpop.permute.xlu0 %2899
      %v2902 = vsel %vm2784, %v2900, 0
      %v2904 = vsel %vm2774, %v2902, 0
      %2905 = vrot.lane.b32.xlu0 %v2874, 121
      %v2906 = vpop.permute.xlu0 %2905
      %v2908 = vsel %vm2791, %v2906, 0
      %v2910 = vsel %vm2753, %v2908, 0
      %2911 = vrot.lane.b32.xlu0 %v2874, 120
      %v2912 = vpop.permute.xlu0 %2911
      %v2914 = vsel %vm2798, %v2912, 0
      %2916 = vrot.lane.b32.xlu0 %v2874, 119
      %v2917 = vpop.permute.xlu0 %2916
      %v2919 = vsel %vm2804, %v2917, 0
      %v2921 = vsel %vm2774, %v2919, 0
      %2923 = vset.pattern.permute.xlu0 0
      %2924 = vperm.xlu0 %2923, %v603
      %v2925 = vpop.permute.xlu0 %2924
      %2928 = vset.pattern.permute.xlu0 0
      %2929 = vperm.xlu0 %2928, %v604
      %v2930 = vpop.permute.xlu0 %2929
      %v2934 = vunpack.c.l.b16 %v565
      %v2935 = vunpack.c.h.b16 %v565
      %v2936 = vunpack.c.l.b16 %v566
      %v2937 = vunpack.c.h.b16 %v566
      %v2938 = vpack.c.b16 %v2936, %v2934
      %v2939 = vpack.c.b16 %v2937, %v2935
      %v2942 = vsel %vm665, %v2939, 0
      %2944 = vmatprep.subr.bf16.mxu0 0
      %2945 = vmatpush1.bf16.msra.mxu0 %v2881
      %2946 = vmatprep.subr.bf16.mxu0 0
      %2947 = vmatpush1.bf16.msra.mxu0 %v2885
      %2948 = vmatprep.subr.bf16.mxu0 0
      %2949 = vmatpush1.bf16.msra.mxu0 %v2892
      %2950 = vmatprep.subr.bf16.mxu0 0
      %2951 = vmatpush1.bf16.msra.mxu0 %v2898
      %2952 = vmatprep.subr.bf16.mxu0 0
      %2953 = vmatpush1.bf16.msra.mxu0 %v2874
      %2954 = vmatprep.subr.bf16.mxu0 0
      %2955 = vmatpush1.bf16.msra.mxu0 %v2904
      %2956 = vmatprep.subr.bf16.mxu0 0
      %2957 = vmatpush1.bf16.msra.mxu0 %v2910
      %2958 = vmatprep.subr.bf16.mxu0 0
      %2959 = vmatpush1.bf16.msra.mxu0 %v2914
      %2960 = vmatprep.subr.bf16.mxu0 0
      %2961 = vmatpush1.bf16.msra.mxu0 %v2921
      %2962 = vmatprep.subr.bf16.mxu0 0
      %2963 = vmatpush1.bf16.msra.mxu0 0
      %2964 = vmatprep.subr.bf16.mxu0 0
      %2965 = vmatpush1.bf16.msra.mxu0 0
      %2966 = vmatprep.subr.bf16.mxu0 0
      %2967 = vmatpush1.bf16.msra.mxu0 0
      %2968 = vmatprep.subr.bf16.mxu0 0
      %2969 = vmatpush1.bf16.msra.mxu0 0
      %2970 = vmatprep.subr.bf16.mxu0 0
      %2971 = vmatpush1.bf16.msra.mxu0 0
      %2972 = vmatprep.subr.bf16.mxu0 0
      %2973 = vmatpush1.bf16.msra.mxu0 0
      %2974 = vmatprep.subr.bf16.mxu0 0
      %2975 = vmatpush1.bf16.msra.mxu0 0
      %2976 = vmatprep.mubr.bf16.mxu0 %v2942
      %2977 = vmatmul.mubr.bf16.gmra.mrb[0].mxu0 %v2938
      %v2978 = vpop.f32.mrb[0].mxu0
      %v2979 = vadd.f32 %v2925, %v2978
      %v2980 = vpop.f32.mrb[0].mxu0
      %v2981 = vpop.f32.mrb[0].mxu0
      %v2982 = vadd.f32 %v2930, %v2981
      %v2983 = vpop.f32.mrb[0].mxu0
      %2984 = vdwg.mxu0
      %v2985 = vmax.f32 %v2979, 0.0
      %v2986 = vmax.f32 %v2982, 0.0
      %v2987 = vpack.c.bf16 %v2986, %v2985
      %2989 = vrot.lane.b32.xlu0 %v2987, 9
      %v2990 = vpop.permute.xlu0 %2989
      %v2992 = vsel %vm2741, 0, %v2990
      %v2994 = vsel %vm2753, %v2992, 0
      %2995 = vrot.lane.b32.xlu0 %v2987, 8
      %v2996 = vpop.permute.xlu0 %2995
      %v2998 = vsel %vm1643, 0, %v2996
      %3000 = vrot.lane.b32.xlu0 %v2987, 7
      %v3001 = vpop.permute.xlu0 %3000
      %v3003 = vsel %vm2762, 0, %v3001
      %v3005 = vsel %vm2774, %v3003, 0
      %3006 = vrot.lane.b32.xlu0 %v2987, 1
      %v3007 = vpop.permute.xlu0 %3006
      %v3009 = vsel %vm705, 0, %v3007
      %v3011 = vsel %vm2753, %v3009, 0
      %3012 = vrot.lane.b32.xlu0 %v2987, 127
      %v3013 = vpop.permute.xlu0 %3012
      %v3015 = vsel %vm2784, %v3013, 0
      %v3017 = vsel %vm2774, %v3015, 0
      %3018 = vrot.lane.b32.xlu0 %v2987, 121
      %v3019 = vpop.permute.xlu0 %3018
      %v3021 = vsel %vm2791, %v3019, 0
      %v3023 = vsel %vm2753, %v3021, 0
      %3024 = vrot.lane.b32.xlu0 %v2987, 120
      %v3025 = vpop.permute.xlu0 %3024
      %v3027 = vsel %vm2798, %v3025, 0
      %3029 = vrot.lane.b32.xlu0 %v2987, 119
      %v3030 = vpop.permute.xlu0 %3029
      %v3032 = vsel %vm2804, %v3030, 0
      %v3034 = vsel %vm2774, %v3032, 0
      %3036 = vset.pattern.permute.xlu0 0
      %3037 = vperm.xlu0 %3036, %v606
      %v3038 = vpop.permute.xlu0 %3037
      %3041 = vset.pattern.permute.xlu0 0
      %3042 = vperm.xlu0 %3041, %v607
      %v3043 = vpop.permute.xlu0 %3042
      %v3047 = vunpack.c.l.b16 %v568
      %v3048 = vunpack.c.h.b16 %v568
      %v3049 = vunpack.c.l.b16 %v569
      %v3050 = vunpack.c.h.b16 %v569
      %v3051 = vpack.c.b16 %v3049, %v3047
      %v3052 = vpack.c.b16 %v3050, %v3048
      %v3055 = vsel %vm665, %v3052, 0
      %3057 = vmatprep.subr.bf16.mxu0 0
      %3058 = vmatpush1.bf16.msra.mxu0 %v2994
      %3059 = vmatprep.subr.bf16.mxu0 0
      %3060 = vmatpush1.bf16.msra.mxu0 %v2998
      %3061 = vmatprep.subr.bf16.mxu0 0
      %3062 = vmatpush1.bf16.msra.mxu0 %v3005
      %3063 = vmatprep.subr.bf16.mxu0 0
      %3064 = vmatpush1.bf16.msra.mxu0 %v3011
      %3065 = vmatprep.subr.bf16.mxu0 0
      %3066 = vmatpush1.bf16.msra.mxu0 %v2987
      %3067 = vmatprep.subr.bf16.mxu0 0
      %3068 = vmatpush1.bf16.msra.mxu0 %v3017
      %3069 = vmatprep.subr.bf16.mxu0 0
      %3070 = vmatpush1.bf16.msra.mxu0 %v3023
      %3071 = vmatprep.subr.bf16.mxu0 0
      %3072 = vmatpush1.bf16.msra.mxu0 %v3027
      %3073 = vmatprep.subr.bf16.mxu0 0
      %3074 = vmatpush1.bf16.msra.mxu0 %v3034
      %3075 = vmatprep.subr.bf16.mxu0 0
      %3076 = vmatpush1.bf16.msra.mxu0 0
      %3077 = vmatprep.subr.bf16.mxu0 0
      %3078 = vmatpush1.bf16.msra.mxu0 0
      %3079 = vmatprep.subr.bf16.mxu0 0
      %3080 = vmatpush1.bf16.msra.mxu0 0
      %3081 = vmatprep.subr.bf16.mxu0 0
      %3082 = vmatpush1.bf16.msra.mxu0 0
      %3083 = vmatprep.subr.bf16.mxu0 0
      %3084 = vmatpush1.bf16.msra.mxu0 0
      %3085 = vmatprep.subr.bf16.mxu0 0
      %3086 = vmatpush1.bf16.msra.mxu0 0
      %3087 = vmatprep.subr.bf16.mxu0 0
      %3088 = vmatpush1.bf16.msra.mxu0 0
      %3089 = vmatprep.mubr.bf16.mxu0 %v3055
      %3090 = vmatmul.mubr.bf16.gmra.mrb[0].mxu0 %v3051
      %v3091 = vpop.f32.mrb[0].mxu0
      %v3092 = vadd.f32 %v3038, %v3091
      %v3093 = vpop.f32.mrb[0].mxu0
      %v3094 = vpop.f32.mrb[0].mxu0
      %v3095 = vadd.f32 %v3043, %v3094
      %v3096 = vpop.f32.mrb[0].mxu0
      %3097 = vdwg.mxu0
      %v3098 = vmax.f32 %v3092, 0.0
      %v3099 = vmax.f32 %v3095, 0.0
      %3101 = vset.pattern.permute.xlu0 0
      %3102 = vperm.xlu0 %3101, %v2724
      %v3103 = vpop.permute.xlu0 %3102
      %3106 = vset.pattern.permute.xlu0 0
      %3107 = vperm.xlu0 %3106, %v2725
      %v3108 = vpop.permute.xlu0 %3107
      %3111 = vset.pattern.permute.xlu0 0
      %3112 = vperm.xlu0 %3111, %v2726
      %v3113 = vpop.permute.xlu0 %3112
      %3116 = vset.pattern.permute.xlu0 0
      %3117 = vperm.xlu0 %3116, %v2727
      %v3118 = vpop.permute.xlu0 %3117
      %v3124 = vunpack.c.l.b16 %v2719
      %v3125 = vunpack.c.l.b16 %v2720
      %v3126 = vunpack.c.l.b16 %v2721
      %v3127 = vunpack.c.l.b16 %v2722
      %v3128 = vpack.c.b16 %v3125, %v3124
      %v3129 = vpack.c.b16 %v3127, %v3126
      %v3131 = vsel %vm665, %v3128, 0
      %v3134 = vsel %vm665, %v3129, 0
      %3136 = vmatprep.subr.bf16.mxu0 0
      %3137 = vmatpush1.bf16.msra.mxu0 %v2874
      %3138 = vmatprep.subr.bf16.mxu0 0
      %3139 = vmatpush1.bf16.msra.mxu0 0
      %3140 = vmatprep.subr.bf16.mxu0 0
      %3141 = vmatpush1.bf16.msra.mxu0 0
      %3142 = vmatprep.subr.bf16.mxu0 0
      %3143 = vmatpush1.bf16.msra.mxu0 0
      %3144 = vmatprep.subr.bf16.mxu0 0
      %3145 = vmatpush1.bf16.msra.mxu0 0
      %3146 = vmatprep.subr.bf16.mxu0 0
      %3147 = vmatpush1.bf16.msra.mxu0 0
      %3148 = vmatprep.subr.bf16.mxu0 0
      %3149 = vmatpush1.bf16.msra.mxu0 0
      %3150 = vmatprep.subr.bf16.mxu0 0
      %3151 = vmatpush1.bf16.msra.mxu0 0
      %3152 = vmatprep.subr.bf16.mxu0 0
      %3153 = vmatpush1.bf16.msra.mxu0 0
      %3154 = vmatprep.subr.bf16.mxu0 0
      %3155 = vmatpush1.bf16.msra.mxu0 0
      %3156 = vmatprep.subr.bf16.mxu0 0
      %3157 = vmatpush1.bf16.msra.mxu0 0
      %3158 = vmatprep.subr.bf16.mxu0 0
      %3159 = vmatpush1.bf16.msra.mxu0 0
      %3160 = vmatprep.subr.bf16.mxu0 0
      %3161 = vmatpush1.bf16.msra.mxu0 0
      %3162 = vmatprep.subr.bf16.mxu0 0
      %3163 = vmatpush1.bf16.msra.mxu0 0
      %3164 = vmatprep.subr.bf16.mxu0 0
      %3165 = vmatpush1.bf16.msra.mxu0 0
      %3166 = vmatprep.subr.bf16.mxu0 0
      %3167 = vmatpush1.bf16.msra.mxu0 0
      %3168 = vmatprep.mubr.bf16.mxu0 0
      %3169 = vmatmul.mubr.bf16.gmra.mrb[0].mxu0 %v3131
      %v3170 = vpop.f32.mrb[0].mxu0
      %v3171 = vadd.f32 %v3103, %v3170
      %v3172 = vpop.f32.mrb[0].mxu0
      %v3173 = vpop.f32.mrb[0].mxu0
      %v3174 = vadd.f32 %v3108, %v3173
      %v3175 = vpop.f32.mrb[0].mxu0
      %3176 = vmatprep.mubr.bf16.mxu0 0
      %3177 = vmatmul.mubr.bf16.gmra.mrb[0].mxu0 %v3134
      %v3178 = vpop.f32.mrb[0].mxu0
      %v3179 = vadd.f32 %v3113, %v3178
      %v3180 = vpop.f32.mrb[0].mxu0
      %v3181 = vpop.f32.mrb[0].mxu0
      %v3182 = vadd.f32 %v3118, %v3181
      %v3183 = vpop.f32.mrb[0].mxu0
      %3184 = vdwg.mxu0
      %3185 = vxpose.xlu0.b32.start [1/16] %v3171, 128
      %3186 = vxpose.xlu0.b32.cont [2/16] 0.0, 128
      %3187 = vxpose.xlu0.b32.cont [3/16] 0.0, 128
      %3188 = vxpose.xlu0.b32.cont [4/16] 0.0, 128
      %3189 = vxpose.xlu0.b32.cont [5/16] 0.0, 128
      %3190 = vxpose.xlu0.b32.cont [6/16] 0.0, 128
      %3191 = vxpose.xlu0.b32.cont [7/16] 0.0, 128
      %3192 = vxpose.xlu0.b32.cont [8/16] 0.0, 128
      %3193 = vxpose.xlu0.b32.cont [9/16] 0.0, 128
      %3194 = vxpose.xlu0.b32.cont [10/16] 0.0, 128
      %3195 = vxpose.xlu0.b32.cont [11/16] 0.0, 128
      %3196 = vxpose.xlu0.b32.cont [12/16] 0.0, 128
      %3197 = vxpose.xlu0.b32.cont [13/16] 0.0, 128
      %3198 = vxpose.xlu0.b32.cont [14/16] 0.0, 128
      %3199 = vxpose.xlu0.b32.cont [15/16] 0.0, 128
      %3200 = vxpose.xlu0.b32.end [16/16] 0.0, 128
      %v3201 = vpop.trf.xlu0
      %v3202 = vpop.trf.xlu0
      %v3203 = vpop.trf.xlu0
      %v3204 = vpop.trf.xlu0
      %v3205 = vpop.trf.xlu0
      %v3206 = vpop.trf.xlu0
      %v3207 = vpop.trf.xlu0
      %v3208 = vpop.trf.xlu0
      %v3209 = vpop.trf.xlu0
      %v3210 = vpop.trf.xlu0
      %v3211 = vpop.trf.xlu0
      %v3212 = vpop.trf.xlu0
      %v3213 = vpop.trf.xlu0
      %v3214 = vpop.trf.xlu0
      %v3215 = vpop.trf.xlu0
      %v3216 = vpop.trf.xlu0
      %v3217 = vpack.c.bf16 %v3202, %v3201
      %v3218 = vpack.c.bf16 %v3204, %v3203
      %v3219 = vpack.c.bf16 %v3206, %v3205
      %v3220 = vpack.c.bf16 %v3208, %v3207
      %v3221 = vpack.c.bf16 %v3174, %v3174
      %v3223 = vsel %vm1643, %v3217, 0
      %v3226 = vsel %vm1643, %v3218, 0
      %v3229 = vsel %vm1643, %v3219, 0
      %v3232 = vsel %vm1643, %v3220, 0
      %v3235 = vsel %vm1692, %v3221, 0
      %3237 = vmatprep.subr.bf16.mxu0 0
      %3238 = vmatpush1.bf16.msra.mxu0 %v3235
      %3239 = vmatprep.subr.bf16.mxu0 0
      %3240 = vmatpush1.bf16.msra.mxu0 0
      %3241 = vmatprep.subr.bf16.mxu0 0
      %3242 = vmatpush1.bf16.msra.mxu0 0
      %3243 = vmatprep.subr.bf16.mxu0 0
      %3244 = vmatpush1.bf16.msra.mxu0 0
      %3245 = vmatprep.subr.bf16.mxu0 0
      %3246 = vmatpush1.bf16.msra.mxu0 0
      %3247 = vmatprep.subr.bf16.mxu0 0
      %3248 = vmatpush1.bf16.msra.mxu0 0
      %3249 = vmatprep.subr.bf16.mxu0 0
      %3250 = vmatpush1.bf16.msra.mxu0 0
      %3251 = vmatprep.subr.bf16.mxu0 0
      %3252 = vmatpush1.bf16.msra.mxu0 0
      %3253 = vmatprep.subr.bf16.mxu0 0
      %3254 = vmatpush1.bf16.msra.mxu0 0
      %3255 = vmatprep.subr.bf16.mxu0 0
      %3256 = vmatpush1.bf16.msra.mxu0 0
      %3257 = vmatprep.subr.bf16.mxu0 0
      %3258 = vmatpush1.bf16.msra.mxu0 0
      %3259 = vmatprep.subr.bf16.mxu0 0
      %3260 = vmatpush1.bf16.msra.mxu0 0
      %3261 = vmatprep.subr.bf16.mxu0 0
      %3262 = vmatpush1.bf16.msra.mxu0 0
      %3263 = vmatprep.subr.bf16.mxu0 0
      %3264 = vmatpush1.bf16.msra.mxu0 0
      %3265 = vmatprep.subr.bf16.mxu0 0
      %3266 = vmatpush1.bf16.msra.mxu0 0
      %3267 = vmatprep.subr.bf16.mxu0 0
      %3268 = vmatpush1.bf16.msra.mxu0 0
      %3269 = vmatprep.mubr.bf16.mxu0 0
      %3270 = vmatmul.mubr.bf16.gmra.mrb[0].mxu0 %v3223
      %v3271 = vpop.f32.mrb[0].mxu0
      %v3272 = vadd.f32 0.0, %v3271
      %v3273 = vpop.f32.mrb[0].mxu0
      %v3274 = vpop.f32.mrb[0].mxu0
      %v3275 = vadd.f32 0.0, %v3274
      %v3276 = vpop.f32.mrb[0].mxu0
      %3277 = vmatprep.mubr.bf16.mxu0 0
      %3278 = vmatmul.mubr.bf16.gmra.mrb[0].mxu0 %v3226
      %v3279 = vpop.f32.mrb[0].mxu0
      %v3280 = vadd.f32 0.0, %v3279
      %v3281 = vpop.f32.mrb[0].mxu0
      %v3282 = vpop.f32.mrb[0].mxu0
      %v3283 = vadd.f32 0.0, %v3282
      %v3284 = vpop.f32.mrb[0].mxu0
      %3285 = vmatprep.mubr.bf16.mxu0 0
      %3286 = vmatmul.mubr.bf16.gmra.mrb[0].mxu0 %v3229
      %v3287 = vpop.f32.mrb[0].mxu0
      %v3288 = vadd.f32 0.0, %v3287
      %v3289 = vpop.f32.mrb[0].mxu0
      %v3290 = vpop.f32.mrb[0].mxu0
      %v3291 = vadd.f32 0.0, %v3290
      %v3292 = vpop.f32.mrb[0].mxu0
      %3293 = vmatprep.mubr.bf16.mxu0 0
      %3294 = vmatmul.mubr.bf16.gmra.mrb[0].mxu0 %v3232
      %v3295 = vpop.f32.mrb[0].mxu0
      %v3296 = vadd.f32 0.0, %v3295
      %v3297 = vpop.f32.mrb[0].mxu0
      %v3298 = vpop.f32.mrb[0].mxu0
      %v3299 = vadd.f32 0.0, %v3298
      %v3300 = vpop.f32.mrb[0].mxu0
      %3301 = vdwg.mxu0
      %vm3302 = vcmask 523264
      %v3303 = vsel %vm3302, %v3272, -inf
      %3304 = vmax.xlane.f32.xlu0 %v3303
      %v3305 = vpop.xlane.xlu0 %3304
      %v3306 = vsel %vm3302, %v3275, -inf
      %3307 = vmax.xlane.f32.xlu0 %v3306
      %v3308 = vpop.xlane.xlu0 %3307
      %v3309 = vsel %vm3302, %v3280, -inf
      %3310 = vmax.xlane.f32.xlu0 %v3309
      %v3311 = vpop.xlane.xlu0 %3310
      %v3312 = vsel %vm3302, %v3283, -inf
      %3313 = vmax.xlane.f32.xlu0 %v3312
      %v3314 = vpop.xlane.xlu0 %3313
      %v3315 = vsel %vm3302, %v3288, -inf
      %3316 = vmax.xlane.f32.xlu0 %v3315
      %v3317 = vpop.xlane.xlu0 %3316
      %v3318 = vsel %vm3302, %v3291, -inf
      %3319 = vmax.xlane.f32.xlu0 %v3318
      %v3320 = vpop.xlane.xlu0 %3319
      %v3321 = vsel %vm3302, %v3296, -inf
      %3322 = vmax.xlane.f32.xlu0 %v3321
      %v3323 = vpop.xlane.xlu0 %3322
      %v3324 = vsel %vm3302, %v3299, -inf
      %3325 = vmax.xlane.f32.xlu0 %v3324
      %v3326 = vpop.xlane.xlu0 %3325
      %v3327 = vsub.f32 %v3272, %v3305
      %v3328 = vsub.f32 %v3275, %v3308
      %v3329 = vsub.f32 %v3280, %v3311
      %v3330 = vsub.f32 %v3283, %v3314
      %v3331 = vsub.f32 %v3288, %v3317
      %v3332 = vsub.f32 %v3291, %v3320
      %v3333 = vsub.f32 %v3296, %v3323
      %v3334 = vsub.f32 %v3299, %v3326
      %v3335 = vmul.f32 %v3327, 1.442695
      %v3336 = vpow.pop %v3335
      %v3337 = vmul.f32 %v3328, 1.442695
      %v3338 = vpow.pop %v3337
      %v3339 = vmul.f32 %v3329, 1.442695
      %v3340 = vpow.pop %v3339
      %v3341 = vmul.f32 %v3330, 1.442695
      %v3342 = vpow.pop %v3341
      %v3343 = vmul.f32 %v3331, 1.442695
      %v3344 = vpow.pop %v3343
      %v3345 = vmul.f32 %v3332, 1.442695
      %v3346 = vpow.pop %v3345
      %v3347 = vmul.f32 %v3333, 1.442695
      %v3348 = vpow.pop %v3347
      %v3349 = vmul.f32 %v3334, 1.442695
      %v3350 = vpow.pop %v3349
      %v3351 = vpack.c.bf16 %v3182, %v3179
      %v3352 = vpack.c.bf16 %v3338, %v3336
      %v3353 = vpack.c.bf16 %v3342, %v3340
      %v3354 = vpack.c.bf16 %v3346, %v3344
      %v3355 = vpack.c.bf16 %v3350, %v3348
      %v3357 = vsel %vm3302, %v3351, 0
      %v3360 = vsel %vm3302, 1065369472, 0
      %v3363 = vsel %vm3302, %v3352, 0
      %v3366 = vsel %vm3302, %v3353, 0
      %v3369 = vsel %vm3302, %v3354, 0
      %v3372 = vsel %vm3302, %v3355, 0
      %3374 = vmatprep.subr.bf16.mxu0 0
      %3375 = vmatpush1.bf16.xpose.msra.mxu0 %v3363
      %3376 = vmatprep.subr.bf16.mxu0 0
      %3377 = vmatpush1.bf16.xpose.msra.mxu0 %v3366
      %3378 = vmatprep.subr.bf16.mxu0 0
      %3379 = vmatpush1.bf16.xpose.msra.mxu0 %v3369
      %3380 = vmatprep.subr.bf16.mxu0 0
      %3381 = vmatpush1.bf16.xpose.msra.mxu0 %v3372
      %3382 = vmatprep.subr.bf16.mxu0 0
      %3383 = vmatpush1.bf16.xpose.msra.mxu0 0
      %3384 = vmatprep.subr.bf16.mxu0 0
      %3385 = vmatpush1.bf16.xpose.msra.mxu0 0
      %3386 = vmatprep.subr.bf16.mxu0 0
      %3387 = vmatpush1.bf16.xpose.msra.mxu0 0
      %3388 = vmatprep.subr.bf16.mxu0 0
      %3389 = vmatpush1.bf16.xpose.msra.mxu0 0
      %3390 = vmatprep.subr.bf16.mxu0 0
      %3391 = vmatpush1.bf16.xpose.msra.mxu0 0
      %3392 = vmatprep.subr.bf16.mxu0 0
      %3393 = vmatpush1.bf16.xpose.msra.mxu0 0
      %3394 = vmatprep.subr.bf16.mxu0 0
      %3395 = vmatpush1.bf16.xpose.msra.mxu0 0
      %3396 = vmatprep.subr.bf16.mxu0 0
      %3397 = vmatpush1.bf16.xpose.msra.mxu0 0
      %3398 = vmatprep.subr.bf16.mxu0 0
      %3399 = vmatpush1.bf16.xpose.msra.mxu0 0
      %3400 = vmatprep.subr.bf16.mxu0 0
      %3401 = vmatpush1.bf16.xpose.msra.mxu0 0
      %3402 = vmatprep.subr.bf16.mxu0 0
      %3403 = vmatpush1.bf16.xpose.msra.mxu0 0
      %3404 = vmatprep.subr.bf16.mxu0 0
      %3405 = vmatpush1.bf16.xpose.msra.mxu0 0
      %3406 = vmatprep.mubr.bf16.mxu0 0
      %3407 = vmatmul.mubr.bf16.gmra.mrb[0].mxu0 %v3357
      %v3408 = vpop.f32.mrb[0].mxu0
      %v3409 = vadd.f32 0.0, %v3408
      %v3410 = vpop.f32.mrb[0].mxu0
      %v3411 = vpop.f32.mrb[0].mxu0
      %v3412 = vadd.f32 0.0, %v3411
      %v3413 = vpop.f32.mrb[0].mxu0
      %3414 = vmatprep.mubr.bf16.mxu0 0
      %3415 = vmatmul.mubr.bf16.gmra.mrb[0].mxu0 %v3360
      %v3416 = vpop.f32.mrb[0].mxu0
      %v3417 = vadd.f32 0.0, %v3416
      %v3418 = vpop.f32.mrb[0].mxu0
      %v3419 = vpop.f32.mrb[0].mxu0
      %v3420 = vpop.f32.mrb[0].mxu0
      %3421 = vdwg.mxu0
      %v3422 = vrcp.pop %v3417
      %v3423 = vlaneseq
      %v3424 = vshrl.u32 %v3423, 7
      %v3425 = vsub.s32 0, %v3424
      %v3426 = vrot.slane %v3422, %v3425
      %v3427 = vmul.f32 %v3409, %v3426
      %v3428 = vmul.f32 %v3412, %v3426
      %3430 = vset.pattern.permute.xlu0 0
      %3431 = vperm.xlu0 %3430, %v2729
      %v3432 = vpop.permute.xlu0 %3431
      %3435 = vset.pattern.permute.xlu0 0
      %3436 = vperm.xlu0 %3435, %v2730
      %v3437 = vpop.permute.xlu0 %3436
      %v3439 = vadd.f32 %v3427, %v3432
      %v3440 = vadd.f32 %v3428, %v3437
      %v3441 = vadd.f32 %v3439, %v2872
      %v3442 = vadd.f32 %v3440, %v2873
      %v3443 = vpack.c.bf16 %v3442, %v3441
      %3445 = vset.pattern.permute.xlu0 0
      %3446 = vperm.xlu0 %3445, %v2735
      %v3447 = vpop.permute.xlu0 %3446
      %3450 = vset.pattern.permute.xlu0 0
      %3451 = vperm.xlu0 %3450, %v2736
      %v3452 = vpop.permute.xlu0 %3451
      %v3456 = vunpack.c.l.b16 %v2732
      %v3457 = vunpack.c.l.b16 %v2733
      %v3458 = vpack.c.b16 %v3457, %v3456
      %v3460 = vsel %vm665, %v3458, 0
      %3462 = vmatprep.subr.bf16.mxu0 0
      %3463 = vmatpush1.bf16.msra.mxu0 %v3443
      %3464 = vmatprep.subr.bf16.mxu0 0
      %3465 = vmatpush1.bf16.msra.mxu0 0
      %3466 = vmatprep.subr.bf16.mxu0 0
      %3467 = vmatpush1.bf16.msra.mxu0 0
      %3468 = vmatprep.subr.bf16.mxu0 0
      %3469 = vmatpush1.bf16.msra.mxu0 0
      %3470 = vmatprep.subr.bf16.mxu0 0
      %3471 = vmatpush1.bf16.msra.mxu0 0
      %3472 = vmatprep.subr.bf16.mxu0 0
      %3473 = vmatpush1.bf16.msra.mxu0 0
      %3474 = vmatprep.subr.bf16.mxu0 0
      %3475 = vmatpush1.bf16.msra.mxu0 0
      %3476 = vmatprep.subr.bf16.mxu0 0
      %3477 = vmatpush1.bf16.msra.mxu0 0
      %3478 = vmatprep.subr.bf16.mxu0 0
      %3479 = vmatpush1.bf16.msra.mxu0 0
      %3480 = vmatprep.subr.bf16.mxu0 0
      %3481 = vmatpush1.bf16.msra.mxu0 0
      %3482 = vmatprep.subr.bf16.mxu0 0
      %3483 = vmatpush1.bf16.msra.mxu0 0
      %3484 = vmatprep.subr.bf16.mxu0 0
      %3485 = vmatpush1.bf16.msra.mxu0 0
      %3486 = vmatprep.subr.bf16.mxu0 0
      %3487 = vmatpush1.bf16.msra.mxu0 0
      %3488 = vmatprep.subr.bf16.mxu0 0
      %3489 = vmatpush1.bf16.msra.mxu0 0
      %3490 = vmatprep.subr.bf16.mxu0 0
      %3491 = vmatpush1.bf16.msra.mxu0 0
      %3492 = vmatprep.subr.bf16.mxu0 0
      %3493 = vmatpush1.bf16.msra.mxu0 0
      %3494 = vmatprep.mubr.bf16.mxu0 0
      %3495 = vmatmul.mubr.bf16.gmra.mrb[0].mxu0 %v3460
      %v3496 = vpop.f32.mrb[0].mxu0
      %v3497 = vadd.f32 %v3447, %v3496
      %v3498 = vpop.f32.mrb[0].mxu0
      %v3499 = vpop.f32.mrb[0].mxu0
      %v3500 = vadd.f32 %v3452, %v3499
      %v3501 = vpop.f32.mrb[0].mxu0
      %3502 = vdwg.mxu0
      %v3503 = vxor.u32 %v3497, 2147483648
      %v3504 = vxor.u32 %v3500, 2147483648
      %v3505 = vmul.f32 %v3503, 1.442695
      %v3506 = vpow.pop %v3505
      %v3507 = vmul.f32 %v3504, 1.442695
      %v3508 = vpow.pop %v3507
      %v3509 = vadd.f32 %v3506, 1.0
      %v3510 = vadd.f32 %v3508, 1.0
      %v3511 = vrcp.pop %v3509
      %v3512 = vmul.f32 1.0, %v3511
      %v3513 = vrcp.pop %v3510
      %v3514 = vmul.f32 1.0, %v3513
      %v3515 = vmul.f32 %v3098, %v3512
      %v3516 = vmul.f32 %v3099, %v3514
      %v3517 = vpack.c.bf16 %v3516, %v3515
      %3519 = vrot.lane.b32.xlu0 %v3517, 9
      %v3520 = vpop.permute.xlu0 %3519
      %v3522 = vsel %vm2741, 0, %v3520
      %v3524 = vsel %vm2753, %v3522, 0
      %3525 = vrot.lane.b32.xlu0 %v3517, 8
      %v3526 = vpop.permute.xlu0 %3525
      %v3528 = vsel %vm1643, 0, %v3526
      %3530 = vrot.lane.b32.xlu0 %v3517, 7
      %v3531 = vpop.permute.xlu0 %3530
      %v3533 = vsel %vm2762, 0, %v3531
      %v3535 = vsel %vm2774, %v3533, 0
      %3536 = vrot.lane.b32.xlu0 %v3517, 1
      %v3537 = vpop.permute.xlu0 %3536
      %v3539 = vsel %vm705, 0, %v3537
      %v3541 = vsel %vm2753, %v3539, 0
      %3542 = vrot.lane.b32.xlu0 %v3517, 127
      %v3543 = vpop.permute.xlu0 %3542
      %v3545 = vsel %vm2784, %v3543, 0
      %v3547 = vsel %vm2774, %v3545, 0
      %3548 = vrot.lane.b32.xlu0 %v3517, 121
      %v3549 = vpop.permute.xlu0 %3548
      %v3551 = vsel %vm2791, %v3549, 0
      %v3553 = vsel %vm2753, %v3551, 0
      %3554 = vrot.lane.b32.xlu0 %v3517, 120
      %v3555 = vpop.permute.xlu0 %3554
      %v3557 = vsel %vm2798, %v3555, 0
      %3559 = vrot.lane.b32.xlu0 %v3517, 119
      %v3560 = vpop.permute.xlu0 %3559
      %v3562 = vsel %vm2804, %v3560, 0
      %v3564 = vsel %vm2774, %v3562, 0
      %3566 = vset.pattern.permute.xlu0 0
      %3567 = vperm.xlu0 %3566, %v609
      %v3568 = vpop.permute.xlu0 %3567
      %3571 = vset.pattern.permute.xlu0 0
      %3572 = vperm.xlu0 %3571, %v610
      %v3573 = vpop.permute.xlu0 %3572
      %v3577 = vunpack.c.l.b16 %v571
      %v3578 = vunpack.c.h.b16 %v571
      %v3579 = vunpack.c.l.b16 %v572
      %v3580 = vunpack.c.h.b16 %v572
      %v3581 = vpack.c.b16 %v3579, %v3577
      %v3582 = vpack.c.b16 %v3580, %v3578
      %v3585 = vsel %vm665, %v3582, 0
      %3587 = vmatprep.subr.bf16.mxu0 0
      %3588 = vmatpush1.bf16.msra.mxu0 %v3524
      %3589 = vmatprep.subr.bf16.mxu0 0
      %3590 = vmatpush1.bf16.msra.mxu0 %v3528
      %3591 = vmatprep.subr.bf16.mxu0 0
      %3592 = vmatpush1.bf16.msra.mxu0 %v3535
      %3593 = vmatprep.subr.bf16.mxu0 0
      %3594 = vmatpush1.bf16.msra.mxu0 %v3541
      %3595 = vmatprep.subr.bf16.mxu0 0
      %3596 = vmatpush1.bf16.msra.mxu0 %v3517
      %3597 = vmatprep.subr.bf16.mxu0 0
      %3598 = vmatpush1.bf16.msra.mxu0 %v3547
      %3599 = vmatprep.subr.bf16.mxu0 0
      %3600 = vmatpush1.bf16.msra.mxu0 %v3553
      %3601 = vmatprep.subr.bf16.mxu0 0
      %3602 = vmatpush1.bf16.msra.mxu0 %v3557
      %3603 = vmatprep.subr.bf16.mxu0 0
      %3604 = vmatpush1.bf16.msra.mxu0 %v3564
      %3605 = vmatprep.subr.bf16.mxu0 0
      %3606 = vmatpush1.bf16.msra.mxu0 0
      %3607 = vmatprep.subr.bf16.mxu0 0
      %3608 = vmatpush1.bf16.msra.mxu0 0
      %3609 = vmatprep.subr.bf16.mxu0 0
      %3610 = vmatpush1.bf16.msra.mxu0 0
      %3611 = vmatprep.subr.bf16.mxu0 0
      %3612 = vmatpush1.bf16.msra.mxu0 0
      %3613 = vmatprep.subr.bf16.mxu0 0
      %3614 = vmatpush1.bf16.msra.mxu0 0
      %3615 = vmatprep.subr.bf16.mxu0 0
      %3616 = vmatpush1.bf16.msra.mxu0 0
      %3617 = vmatprep.subr.bf16.mxu0 0
      %3618 = vmatpush1.bf16.msra.mxu0 0
      %3619 = vmatprep.mubr.bf16.mxu0 %v3585
      %3620 = vmatmul.mubr.bf16.gmra.mrb[0].mxu0 %v3581
      %v3621 = vpop.f32.mrb[0].mxu0
      %v3622 = vadd.f32 %v3568, %v3621
      %v3623 = vpop.f32.mrb[0].mxu0
      %v3624 = vpop.f32.mrb[0].mxu0
      %v3625 = vadd.f32 %v3573, %v3624
      %v3626 = vpop.f32.mrb[0].mxu0
      %3627 = vdwg.mxu0
      %v3628 = vmax.f32 %v3622, 0.0
      %v3629 = vmax.f32 %v3625, 0.0
      %v3630 = vadd.f32 %v2712, %v3628
      %v3631 = vadd.f32 %v2715, %v3629
      %v3632 = vpack.c.bf16 %v3631, %v3630
      %v3633 = vld [vmem:[%s14] sm:$0xff]
      %v3634 = vld [vmem:[%s14 + $0x8] sm:$0xff]
      %v3635 = vld [vmem:[%s14 + $0x10] sm:$0xff]
      %v3636 = vld [vmem:[%s14 + $0x18] sm:$0xff]
      %v3637 = vld [vmem:[%s14 + $0x20] sm:$0xff]
      %v3638 = vld [vmem:[%s14 + $0x28] sm:$0xff]
      %v3639 = vld [vmem:[%s14 + $0x30] sm:$0xff]
      %v3640 = vld [vmem:[%s14 + $0x38] sm:$0xff]
      %v3649 = vunpack.c.l.b16 %v3633
      %v3650 = vunpack.c.h.b16 %v3633
      %v3651 = vunpack.c.l.b16 %v3634
      %v3652 = vunpack.c.h.b16 %v3634
      %v3653 = vunpack.c.l.b16 %v3635
      %v3654 = vunpack.c.h.b16 %v3635
      %v3655 = vunpack.c.l.b16 %v3636
      %v3656 = vunpack.c.h.b16 %v3636
      %v3657 = vunpack.c.l.b16 %v3637
      %v3658 = vunpack.c.h.b16 %v3637
      %v3659 = vunpack.c.l.b16 %v3638
      %v3660 = vunpack.c.h.b16 %v3638
      %v3661 = vunpack.c.l.b16 %v3639
      %v3662 = vunpack.c.h.b16 %v3639
      %v3663 = vunpack.c.l.b16 %v3640
      %v3664 = vunpack.c.h.b16 %v3640
      %v3665 = vpack.c.b16 %v3651, %v3649
      %v3666 = vpack.c.b16 %v3652, %v3650
      %v3667 = vpack.c.b16 %v3655, %v3653
      %v3668 = vpack.c.b16 %v3656, %v3654
      %v3669 = vpack.c.b16 %v3659, %v3657
      %v3670 = vpack.c.b16 %v3660, %v3658
      %v3671 = vpack.c.b16 %v3663, %v3661
      %v3672 = vpack.c.b16 %v3664, %v3662
      %v3682 = vsel %vm3302, %v3632, 0
      %3684 = vmatprep.subr.bf16.mxu0 %v3666
      %3685 = vmatpush1.bf16.msra.mxu0 %v3665
      %3686 = vmatprep.subr.bf16.mxu0 %v3668
      %3687 = vmatpush1.bf16.msra.mxu0 %v3667
      %3688 = vmatprep.subr.bf16.mxu0 %v3670
      %3689 = vmatpush1.bf16.msra.mxu0 %v3669
      %3690 = vmatprep.subr.bf16.mxu0 %v3672
      %3691 = vmatpush1.bf16.msra.mxu0 %v3671
      %3692 = vmatprep.subr.bf16.mxu0 0
      %3693 = vmatpush1.bf16.msra.mxu0 0
      %3694 = vmatprep.subr.bf16.mxu0 0
      %3695 = vmatpush1.bf16.msra.mxu0 0
      %3696 = vmatprep.subr.bf16.mxu0 0
      %3697 = vmatpush1.bf16.msra.mxu0 0
      %3698 = vmatprep.subr.bf16.mxu0 0
      %3699 = vmatpush1.bf16.msra.mxu0 0
      %3700 = vmatprep.subr.bf16.mxu0 0
      %3701 = vmatpush1.bf16.msra.mxu0 0
      %3702 = vmatprep.subr.bf16.mxu0 0
      %3703 = vmatpush1.bf16.msra.mxu0 0
      %3704 = vmatprep.subr.bf16.mxu0 0
      %3705 = vmatpush1.bf16.msra.mxu0 0
      %3706 = vmatprep.subr.bf16.mxu0 0
      %3707 = vmatpush1.bf16.msra.mxu0 0
      %3708 = vmatprep.subr.bf16.mxu0 0
      %3709 = vmatpush1.bf16.msra.mxu0 0
      %3710 = vmatprep.subr.bf16.mxu0 0
      %3711 = vmatpush1.bf16.msra.mxu0 0
      %3712 = vmatprep.subr.bf16.mxu0 0
      %3713 = vmatpush1.bf16.msra.mxu0 0
      %3714 = vmatprep.subr.bf16.mxu0 0
      %3715 = vmatpush1.bf16.msra.mxu0 0
      %3716 = vmatprep.mubr.bf16.mxu0 0
      %3717 = vmatmul.mubr.bf16.gmra.mrb[0].mxu0 %v3682
      %v3718 = vpop.f32.mrb[0].mxu0
      %v3719 = vadd.f32 0.0, %v3718
      %v3720 = vpop.f32.mrb[0].mxu0
      %v3721 = vadd.f32 0.0, %v3720
      %v3722 = vpop.f32.mrb[0].mxu0
      %v3723 = vadd.f32 0.0, %v3722
      %v3724 = vpop.f32.mrb[0].mxu0
      %v3725 = vadd.f32 0.0, %v3724
      %3726 = vdwg.mxu0
      %v3727 = vld [vmem:[%s8] sm:$0xf]
      %v3728 = vld [vmem:[%s9] sm:$0xff]
      %v3729 = vpack.c.bf16 %v3723, %v3719
      %v3730 = vpack.c.bf16 %v3725, %v3721
      %3732 = vset.pattern.permute.xlu0 0
      %3733 = vperm.xlu0 %3732, %v3728
      %v3734 = vpop.permute.xlu0 %3733
      %v3737 = vsel %vm665, %v3727, 0
      %3739 = vmatprep.subr.bf16.mxu0 %v3730
      %3740 = vmatpush1.bf16.msra.mxu0 %v3729
      %3741 = vmatprep.subr.bf16.mxu0 0
      %3742 = vmatpush1.bf16.msra.mxu0 0
      %3743 = vmatprep.subr.bf16.mxu0 0
      %3744 = vmatpush1.bf16.msra.mxu0 0
      %3745 = vmatprep.subr.bf16.mxu0 0
      %3746 = vmatpush1.bf16.msra.mxu0 0
      %3747 = vmatprep.subr.bf16.mxu0 0
      %3748 = vmatpush1.bf16.msra.mxu0 0
      %3749 = vmatprep.subr.bf16.mxu0 0
      %3750 = vmatpush1.bf16.msra.mxu0 0
      %3751 = vmatprep.subr.bf16.mxu0 0
      %3752 = vmatpush1.bf16.msra.mxu0 0
      %3753 = vmatprep.subr.bf16.mxu0 0
      %3754 = vmatpush1.bf16.msra.mxu0 0
      %3755 = vmatprep.subr.bf16.mxu0 0
      %3756 = vmatpush1.bf16.msra.mxu0 0
      %3757 = vmatprep.subr.bf16.mxu0 0
      %3758 = vmatpush1.bf16.msra.mxu0 0
      %3759 = vmatprep.subr.bf16.mxu0 0
      %3760 = vmatpush1.bf16.msra.mxu0 0
      %3761 = vmatprep.subr.bf16.mxu0 0
      %3762 = vmatpush1.bf16.msra.mxu0 0
      %3763 = vmatprep.subr.bf16.mxu0 0
      %3764 = vmatpush1.bf16.msra.mxu0 0
      %3765 = vmatprep.subr.bf16.mxu0 0
      %3766 = vmatpush1.bf16.msra.mxu0 0
      %3767 = vmatprep.subr.bf16.mxu0 0
      %3768 = vmatpush1.bf16.msra.mxu0 0
      %3769 = vmatprep.subr.bf16.mxu0 0
      %3770 = vmatpush1.bf16.msra.mxu0 0
      %3771 = vmatprep.mubr.bf16.mxu0 0
      %3772 = vmatmul.mubr.bf16.gmra.mrb[0].mxu0 %v3737
      %v3773 = vpop.f32.mrb[0].mxu0
      %v3774 = vadd.f32 %v3734, %v3773
      %v3775 = vpop.f32.mrb[0].mxu0
      %v3776 = vadd.f32 %v3734, %v3775
      %v3777 = vpop.f32.mrb[0].mxu0
      %v3778 = vpop.f32.mrb[0].mxu0
      %3779 = vdwg.mxu0
      %v3780 = vld [vmem:[%s10] sm:$0xf]
      %v3781 = vld [vmem:[%s10 + $0x4] sm:$0xf]
      %v3782 = vld [vmem:[%s10 + $0x8] sm:$0xf]
      %v3783 = vld [vmem:[%s11] sm:$0xff]
      %v3784 = vld [vmem:[%s11 + $0x8] sm:$0xff]
      %v3785 = vld [vmem:[%s11 + $0x10] sm:$0xff]
      %v3786 = vpack.c.bf16 %v2547, %v2545
      %v3787 = vpack.c.bf16 %v2548, %v2546
      %3789 = vset.pattern.permute.xlu0 0
      %3790 = vperm.xlu0 %3789, %v3783
      %v3791 = vpop.permute.xlu0 %3790
      %3794 = vset.pattern.permute.xlu0 0
      %3795 = vperm.xlu0 %3794, %v3784
      %v3796 = vpop.permute.xlu0 %3795
      %3799 = vset.pattern.permute.xlu0 0
      %3800 = vperm.xlu0 %3799, %v3785
      %v3801 = vpop.permute.xlu0 %3800
      %v3806 = vunpack.c.l.b16 %v3780
      %v3807 = vunpack.c.l.b16 %v3781
      %v3808 = vunpack.c.l.b16 %v3782
      %v3809 = vpack.c.b16 %v3807, %v3806
      %v3810 = vpack.c.b16 %v3808, %v3808
      %v3812 = vsel %vm665, %v3809, 0
      %v3815 = vsel %vm665, %v3810, 0
      %3817 = vmatprep.subr.bf16.mxu0 %v3787
      %3818 = vmatpush1.bf16.msra.mxu0 %v3786
      %3819 = vmatprep.subr.bf16.mxu0 0
      %3820 = vmatpush1.bf16.msra.mxu0 0
      %3821 = vmatprep.subr.bf16.mxu0 0
      %3822 = vmatpush1.bf16.msra.mxu0 0
      %3823 = vmatprep.subr.bf16.mxu0 0
      %3824 = vmatpush1.bf16.msra.mxu0 0
      %3825 = vmatprep.subr.bf16.mxu0 0
      %3826 = vmatpush1.bf16.msra.mxu0 0
      %3827 = vmatprep.subr.bf16.mxu0 0
      %3828 = vmatpush1.bf16.msra.mxu0 0
      %3829 = vmatprep.subr.bf16.mxu0 0
      %3830 = vmatpush1.bf16.msra.mxu0 0
      %3831 = vmatprep.subr.bf16.mxu0 0
      %3832 = vmatpush1.bf16.msra.mxu0 0
      %3833 = vmatprep.subr.bf16.mxu0 0
      %3834 = vmatpush1.bf16.msra.mxu0 0
      %3835 = vmatprep.subr.bf16.mxu0 0
      %3836 = vmatpush1.bf16.msra.mxu0 0
      %3837 = vmatprep.subr.bf16.mxu0 0
      %3838 = vmatpush1.bf16.msra.mxu0 0
      %3839 = vmatprep.subr.bf16.mxu0 0
      %3840 = vmatpush1.bf16.msra.mxu0 0
      %3841 = vmatprep.subr.bf16.mxu0 0
      %3842 = vmatpush1.bf16.msra.mxu0 0
      %3843 = vmatprep.subr.bf16.mxu0 0
      %3844 = vmatpush1.bf16.msra.mxu0 0
      %3845 = vmatprep.subr.bf16.mxu0 0
      %3846 = vmatpush1.bf16.msra.mxu0 0
      %3847 = vmatprep.subr.bf16.mxu0 0
      %3848 = vmatpush1.bf16.msra.mxu0 0
      %3849 = vmatprep.mubr.bf16.mxu0 0
      %3850 = vmatmul.mubr.bf16.gmra.mrb[0].mxu0 %v3812
      %v3851 = vpop.f32.mrb[0].mxu0
      %v3852 = vadd.f32 %v3791, %v3851
      %v3853 = vpop.f32.mrb[0].mxu0
      %v3854 = vadd.f32 %v3791, %v3853
      %v3855 = vpop.f32.mrb[0].mxu0
      %v3856 = vadd.f32 %v3796, %v3855
      %v3857 = vpop.f32.mrb[0].mxu0
      %v3858 = vadd.f32 %v3796, %v3857
      %3859 = vmatprep.mubr.bf16.mxu0 0
      %3860 = vmatmul.mubr.bf16.gmra.mrb[0].mxu0 %v3815
      %v3861 = vpop.f32.mrb[0].mxu0
      %v3862 = vadd.f32 %v3801, %v3861
      %v3863 = vpop.f32.mrb[0].mxu0
      %v3864 = vadd.f32 %v3801, %v3863
      %v3865 = vpop.f32.mrb[0].mxu0
      %v3866 = vpop.f32.mrb[0].mxu0
      %3867 = vdwg.mxu0
      %v3868 = vld [vmem:[%s12] sm:$0xff]
      %v3869 = vld [vmem:[%s12 + $0x8] sm:$0xff]
      %3870 = vxpose.xlu0.b32.start [1/16] %v3774, 128
      %3871 = vxpose.xlu0.b32.cont [2/16] 0.0, 128
      %3872 = vxpose.xlu0.b32.cont [3/16] 0.0, 128
      %3873 = vxpose.xlu0.b32.cont [4/16] 0.0, 128
      %3874 = vxpose.xlu0.b32.cont [5/16] 0.0, 128
      %3875 = vxpose.xlu0.b32.cont [6/16] 0.0, 128
      %3876 = vxpose.xlu0.b32.cont [7/16] 0.0, 128
      %3877 = vxpose.xlu0.b32.cont [8/16] 0.0, 128
      %3878 = vxpose.xlu0.b32.cont [9/16] 0.0, 128
      %3879 = vxpose.xlu0.b32.cont [10/16] 0.0, 128
      %3880 = vxpose.xlu0.b32.cont [11/16] 0.0, 128
      %3881 = vxpose.xlu0.b32.cont [12/16] 0.0, 128
      %3882 = vxpose.xlu0.b32.cont [13/16] 0.0, 128
      %3883 = vxpose.xlu0.b32.cont [14/16] 0.0, 128
      %3884 = vxpose.xlu0.b32.cont [15/16] 0.0, 128
      %3885 = vxpose.xlu0.b32.end [16/16] 0.0, 128
      %v3886 = vpop.trf.xlu0
      %v3887 = vpop.trf.xlu0
      %v3888 = vpop.trf.xlu0
      %v3889 = vpop.trf.xlu0
      %v3890 = vpop.trf.xlu0
      %v3891 = vpop.trf.xlu0
      %v3892 = vpop.trf.xlu0
      %v3893 = vpop.trf.xlu0
      %v3894 = vpop.trf.xlu0
      %v3895 = vpop.trf.xlu0
      %v3896 = vpop.trf.xlu0
      %v3897 = vpop.trf.xlu0
      %v3898 = vpop.trf.xlu0
      %v3899 = vpop.trf.xlu0
      %v3900 = vpop.trf.xlu0
      %v3901 = vpop.trf.xlu0
      %3902 = vxpose.xlu0.b32.start [1/16] %v3776, 128
      %3903 = vxpose.xlu0.b32.cont [2/16] 0.0, 128
      %3904 = vxpose.xlu0.b32.cont [3/16] 0.0, 128
      %3905 = vxpose.xlu0.b32.cont [4/16] 0.0, 128
      %3906 = vxpose.xlu0.b32.cont [5/16] 0.0, 128
      %3907 = vxpose.xlu0.b32.cont [6/16] 0.0, 128
      %3908 = vxpose.xlu0.b32.cont [7/16] 0.0, 128
      %3909 = vxpose.xlu0.b32.cont [8/16] 0.0, 128
      %3910 = vxpose.xlu0.b32.cont [9/16] 0.0, 128
      %3911 = vxpose.xlu0.b32.cont [10/16] 0.0, 128
      %3912 = vxpose.xlu0.b32.cont [11/16] 0.0, 128
      %3913 = vxpose.xlu0.b32.cont [12/16] 0.0, 128
      %3914 = vxpose.xlu0.b32.cont [13/16] 0.0, 128
      %3915 = vxpose.xlu0.b32.cont [14/16] 0.0, 128
      %3916 = vxpose.xlu0.b32.cont [15/16] 0.0, 128
      %3917 = vxpose.xlu0.b32.end [16/16] 0.0, 128
      %v3918 = vpop.trf.xlu0
      %v3919 = vpop.trf.xlu0
      %v3920 = vpop.trf.xlu0
      %v3921 = vpop.trf.xlu0
      %v3922 = vpop.trf.xlu0
      %v3923 = vpop.trf.xlu0
      %v3924 = vpop.trf.xlu0
      %v3925 = vpop.trf.xlu0
      %v3926 = vpop.trf.xlu0
      %v3927 = vpop.trf.xlu0
      %v3928 = vpop.trf.xlu0
      %v3929 = vpop.trf.xlu0
      %v3930 = vpop.trf.xlu0
      %v3931 = vpop.trf.xlu0
      %v3932 = vpop.trf.xlu0
      %v3933 = vpop.trf.xlu0
      %v3934 = vpack.c.bf16 %v3887, %v3886
      %v3935 = vpack.c.bf16 %v3889, %v3888
      %v3936 = vpack.c.bf16 %v3891, %v3890
      %v3937 = vpack.c.bf16 %v3893, %v3892
      %v3938 = vpack.c.bf16 %v3895, %v3894
      %v3939 = vpack.c.bf16 %v3897, %v3896
      %v3940 = vpack.c.bf16 %v3899, %v3898
      %v3941 = vpack.c.bf16 %v3901, %v3900
      %v3942 = vpack.c.bf16 %v3919, %v3918
      %v3943 = vpack.c.bf16 %v3921, %v3920
      %v3944 = vpack.c.bf16 %v3923, %v3922
      %v3945 = vpack.c.bf16 %v3925, %v3924
      %v3946 = vpack.c.bf16 %v3927, %v3926
      %v3947 = vpack.c.bf16 %v3929, %v3928
      %v3948 = vpack.c.bf16 %v3931, %v3930
      %v3949 = vpack.c.bf16 %v3933, %v3932
      %v3950 = vpack.c.bf16 %v3852, %v3852
      %v3951 = vpack.c.bf16 %v3854, %v3854
      %v3953 = vsel %vm1643, %v3934, 0
      %v3956 = vsel %vm1643, %v3935, 0
      %v3959 = vsel %vm1643, %v3936, 0
      %v3962 = vsel %vm1643, %v3937, 0
      %v3965 = vsel %vm1643, %v3938, 0
      %v3968 = vsel %vm1643, %v3939, 0
      %v3971 = vsel %vm1643, %v3940, 0
      %v3974 = vsel %vm1643, %v3941, 0
      %v3977 = vsel %vm1643, %v3942, 0
      %v3980 = vsel %vm1643, %v3943, 0
      %v3983 = vsel %vm1643, %v3944, 0
      %v3986 = vsel %vm1643, %v3945, 0
      %v3989 = vsel %vm1643, %v3946, 0
      %v3992 = vsel %vm1643, %v3947, 0
      %v3995 = vsel %vm1643, %v3948, 0
      %v3998 = vsel %vm1643, %v3949, 0
      %v4001 = vsel %vm1692, %v3950, 0
      %v4004 = vsel %vm1692, %v3951, 0
      %4006 = vmatprep.subr.bf16.mxu0 %v4004
      %4007 = vmatpush1.bf16.msra.mxu0 %v4001
      %4008 = vmatprep.subr.bf16.mxu0 0
      %4009 = vmatpush1.bf16.msra.mxu0 0
      %4010 = vmatprep.subr.bf16.mxu0 0
      %4011 = vmatpush1.bf16.msra.mxu0 0
      %4012 = vmatprep.subr.bf16.mxu0 0
      %4013 = vmatpush1.bf16.msra.mxu0 0
      %4014 = vmatprep.subr.bf16.mxu0 0
      %4015 = vmatpush1.bf16.msra.mxu0 0
      %4016 = vmatprep.subr.bf16.mxu0 0
      %4017 = vmatpush1.bf16.msra.mxu0 0
      %4018 = vmatprep.subr.bf16.mxu0 0
      %4019 = vmatpush1.bf16.msra.mxu0 0
      %4020 = vmatprep.subr.bf16.mxu0 0
      %4021 = vmatpush1.bf16.msra.mxu0 0
      %4022 = vmatprep.subr.bf16.mxu0 0
      %4023 = vmatpush1.bf16.msra.mxu0 0
      %4024 = vmatprep.subr.bf16.mxu0 0
      %4025 = vmatpush1.bf16.msra.mxu0 0
      %4026 = vmatprep.subr.bf16.mxu0 0
      %4027 = vmatpush1.bf16.msra.mxu0 0
      %4028 = vmatprep.subr.bf16.mxu0 0
      %4029 = vmatpush1.bf16.msra.mxu0 0
      %4030 = vmatprep.subr.bf16.mxu0 0
      %4031 = vmatpush1.bf16.msra.mxu0 0
      %4032 = vmatprep.subr.bf16.mxu0 0
      %4033 = vmatpush1.bf16.msra.mxu0 0
      %4034 = vmatprep.subr.bf16.mxu0 0
      %4035 = vmatpush1.bf16.msra.mxu0 0
      %4036 = vmatprep.subr.bf16.mxu0 0
      %4037 = vmatpush1.bf16.msra.mxu0 0
      %4038 = vmatprep.mubr.bf16.mxu0 0
      %4039 = vmatmul.mubr.bf16.gmra.mrb[0].mxu0 %v3953
      %v4040 = vpop.f32.mrb[0].mxu0
      %v4041 = vadd.f32 0.0, %v4040
      %v4042 = vpop.f32.mrb[0].mxu0
      %v4043 = vadd.f32 0.0, %v4042
      %v4044 = vpop.f32.mrb[0].mxu0
      %v4045 = vadd.f32 0.0, %v4044
      %v4046 = vpop.f32.mrb[0].mxu0
      %v4047 = vadd.f32 0.0, %v4046
      %4048 = vmatprep.mubr.bf16.mxu0 0
      %4049 = vmatmul.mubr.bf16.gmra.mrb[0].mxu0 %v3956
      %v4050 = vpop.f32.mrb[0].mxu0
      %v4051 = vadd.f32 0.0, %v4050
      %v4052 = vpop.f32.mrb[0].mxu0
      %v4053 = vadd.f32 0.0, %v4052
      %v4054 = vpop.f32.mrb[0].mxu0
      %v4055 = vadd.f32 0.0, %v4054
      %v4056 = vpop.f32.mrb[0].mxu0
      %v4057 = vadd.f32 0.0, %v4056
      %4058 = vmatprep.mubr.bf16.mxu0 0
      %4059 = vmatmul.mubr.bf16.gmra.mrb[0].mxu0 %v3959
      %v4060 = vpop.f32.mrb[0].mxu0
      %v4061 = vadd.f32 0.0, %v4060
      %v4062 = vpop.f32.mrb[0].mxu0
      %v4063 = vadd.f32 0.0, %v4062
      %v4064 = vpop.f32.mrb[0].mxu0
      %v4065 = vadd.f32 0.0, %v4064
      %v4066 = vpop.f32.mrb[0].mxu0
      %v4067 = vadd.f32 0.0, %v4066
      %4068 = vmatprep.mubr.bf16.mxu0 0
      %4069 = vmatmul.mubr.bf16.gmra.mrb[0].mxu0 %v3962
      %v4070 = vpop.f32.mrb[0].mxu0
      %v4071 = vadd.f32 0.0, %v4070
      %v4072 = vpop.f32.mrb[0].mxu0
      %v4073 = vadd.f32 0.0, %v4072
      %v4074 = vpop.f32.mrb[0].mxu0
      %v4075 = vadd.f32 0.0, %v4074
      %v4076 = vpop.f32.mrb[0].mxu0
      %v4077 = vadd.f32 0.0, %v4076
      %4078 = vmatprep.mubr.bf16.mxu0 0
      %4079 = vmatmul.mubr.bf16.gmra.mrb[0].mxu0 %v3965
      %v4080 = vpop.f32.mrb[0].mxu0
      %v4081 = vadd.f32 0.0, %v4080
      %v4082 = vpop.f32.mrb[0].mxu0
      %v4083 = vadd.f32 0.0, %v4082
      %v4084 = vpop.f32.mrb[0].mxu0
      %v4085 = vadd.f32 0.0, %v4084
      %v4086 = vpop.f32.mrb[0].mxu0
      %v4087 = vadd.f32 0.0, %v4086
      %4088 = vmatprep.mubr.bf16.mxu0 0
      %4089 = vmatmul.mubr.bf16.gmra.mrb[0].mxu0 %v3968
      %v4090 = vpop.f32.mrb[0].mxu0
      %v4091 = vadd.f32 0.0, %v4090
      %v4092 = vpop.f32.mrb[0].mxu0
      %v4093 = vadd.f32 0.0, %v4092
      %v4094 = vpop.f32.mrb[0].mxu0
      %v4095 = vadd.f32 0.0, %v4094
      %v4096 = vpop.f32.mrb[0].mxu0
      %v4097 = vadd.f32 0.0, %v4096
      %4098 = vmatprep.mubr.bf16.mxu0 0
      %4099 = vmatmul.mubr.bf16.gmra.mrb[0].mxu0 %v3971
      %v4100 = vpop.f32.mrb[0].mxu0
      %v4101 = vadd.f32 0.0, %v4100
      %v4102 = vpop.f32.mrb[0].mxu0
      %v4103 = vadd.f32 0.0, %v4102
      %v4104 = vpop.f32.mrb[0].mxu0
      %v4105 = vadd.f32 0.0, %v4104
      %v4106 = vpop.f32.mrb[0].mxu0
      %v4107 = vadd.f32 0.0, %v4106
      %4108 = vmatprep.mubr.bf16.mxu0 0
      %4109 = vmatmul.mubr.bf16.gmra.mrb[0].mxu0 %v3974
      %v4110 = vpop.f32.mrb[0].mxu0
      %v4111 = vadd.f32 0.0, %v4110
      %v4112 = vpop.f32.mrb[0].mxu0
      %v4113 = vadd.f32 0.0, %v4112
      %v4114 = vpop.f32.mrb[0].mxu0
      %v4115 = vadd.f32 0.0, %v4114
      %v4116 = vpop.f32.mrb[0].mxu0
      %v4117 = vadd.f32 0.0, %v4116
      %4118 = vmatprep.mubr.bf16.mxu0 0
      %4119 = vmatmul.mubr.bf16.gmra.mrb[0].mxu0 %v3977
      %v4120 = vpop.f32.mrb[0].mxu0
      %v4121 = vadd.f32 0.0, %v4120
      %v4122 = vpop.f32.mrb[0].mxu0
      %v4123 = vadd.f32 0.0, %v4122
      %v4124 = vpop.f32.mrb[0].mxu0
      %v4125 = vadd.f32 0.0, %v4124
      %v4126 = vpop.f32.mrb[0].mxu0
      %v4127 = vadd.f32 0.0, %v4126
      %4128 = vmatprep.mubr.bf16.mxu0 0
      %4129 = vmatmul.mubr.bf16.gmra.mrb[0].mxu0 %v3980
      %v4130 = vpop.f32.mrb[0].mxu0
      %v4131 = vadd.f32 0.0, %v4130
      %v4132 = vpop.f32.mrb[0].mxu0
      %v4133 = vadd.f32 0.0, %v4132
      %v4134 = vpop.f32.mrb[0].mxu0
      %v4135 = vadd.f32 0.0, %v4134
      %v4136 = vpop.f32.mrb[0].mxu0
      %v4137 = vadd.f32 0.0, %v4136
      %4138 = vmatprep.mubr.bf16.mxu0 0
      %4139 = vmatmul.mubr.bf16.gmra.mrb[0].mxu0 %v3983
      %v4140 = vpop.f32.mrb[0].mxu0
      %v4141 = vadd.f32 0.0, %v4140
      %v4142 = vpop.f32.mrb[0].mxu0
      %v4143 = vadd.f32 0.0, %v4142
      %v4144 = vpop.f32.mrb[0].mxu0
      %v4145 = vadd.f32 0.0, %v4144
      %v4146 = vpop.f32.mrb[0].mxu0
      %v4147 = vadd.f32 0.0, %v4146
      %4148 = vmatprep.mubr.bf16.mxu0 0
      %4149 = vmatmul.mubr.bf16.gmra.mrb[0].mxu0 %v3986
      %v4150 = vpop.f32.mrb[0].mxu0
      %v4151 = vadd.f32 0.0, %v4150
      %v4152 = vpop.f32.mrb[0].mxu0
      %v4153 = vadd.f32 0.0, %v4152
      %v4154 = vpop.f32.mrb[0].mxu0
      %v4155 = vadd.f32 0.0, %v4154
      %v4156 = vpop.f32.mrb[0].mxu0
      %v4157 = vadd.f32 0.0, %v4156
      %4158 = vmatprep.mubr.bf16.mxu0 0
      %4159 = vmatmul.mubr.bf16.gmra.mrb[0].mxu0 %v3989
      %v4160 = vpop.f32.mrb[0].mxu0
      %v4161 = vadd.f32 0.0, %v4160
      %v4162 = vpop.f32.mrb[0].mxu0
      %v4163 = vadd.f32 0.0, %v4162
      %v4164 = vpop.f32.mrb[0].mxu0
      %v4165 = vadd.f32 0.0, %v4164
      %v4166 = vpop.f32.mrb[0].mxu0
      %v4167 = vadd.f32 0.0, %v4166
      %4168 = vmatprep.mubr.bf16.mxu0 0
      %4169 = vmatmul.mubr.bf16.gmra.mrb[0].mxu0 %v3992
      %v4170 = vpop.f32.mrb[0].mxu0
      %v4171 = vadd.f32 0.0, %v4170
      %v4172 = vpop.f32.mrb[0].mxu0
      %v4173 = vadd.f32 0.0, %v4172
      %v4174 = vpop.f32.mrb[0].mxu0
      %v4175 = vadd.f32 0.0, %v4174
      %v4176 = vpop.f32.mrb[0].mxu0
      %v4177 = vadd.f32 0.0, %v4176
      %4178 = vmatprep.mubr.bf16.mxu0 0
      %4179 = vmatmul.mubr.bf16.gmra.mrb[0].mxu0 %v3995
      %v4180 = vpop.f32.mrb[0].mxu0
      %v4181 = vadd.f32 0.0, %v4180
      %v4182 = vpop.f32.mrb[0].mxu0
      %v4183 = vadd.f32 0.0, %v4182
      %v4184 = vpop.f32.mrb[0].mxu0
      %v4185 = vadd.f32 0.0, %v4184
      %v4186 = vpop.f32.mrb[0].mxu0
      %v4187 = vadd.f32 0.0, %v4186
      %4188 = vmatprep.mubr.bf16.mxu0 0
      %4189 = vmatmul.mubr.bf16.gmra.mrb[0].mxu0 %v3998
      %v4190 = vpop.f32.mrb[0].mxu0
      %v4191 = vadd.f32 0.0, %v4190
      %v4192 = vpop.f32.mrb[0].mxu0
      %v4193 = vadd.f32 0.0, %v4192
      %v4194 = vpop.f32.mrb[0].mxu0
      %v4195 = vadd.f32 0.0, %v4194
      %v4196 = vpop.f32.mrb[0].mxu0
      %v4197 = vadd.f32 0.0, %v4196
      %4198 = vdwg.mxu0
      %v4199 = vmax.f32 %v4041, %v4043
      %4200 = vmax.xlane.f32.xlu0 %v4199
      %v4201 = vpop.xlane.xlu0 %4200
      %v4202 = vmax.f32 %v4045, %v4047
      %4203 = vmax.xlane.f32.xlu0 %v4202
      %v4204 = vpop.xlane.xlu0 %4203
      %v4205 = vmax.f32 %v4051, %v4053
      %4206 = vmax.xlane.f32.xlu0 %v4205
      %v4207 = vpop.xlane.xlu0 %4206
      %v4208 = vmax.f32 %v4055, %v4057
      %4209 = vmax.xlane.f32.xlu0 %v4208
      %v4210 = vpop.xlane.xlu0 %4209
      %v4211 = vmax.f32 %v4061, %v4063
      %4212 = vmax.xlane.f32.xlu0 %v4211
      %v4213 = vpop.xlane.xlu0 %4212
      %v4214 = vmax.f32 %v4065, %v4067
      %4215 = vmax.xlane.f32.xlu0 %v4214
      %v4216 = vpop.xlane.xlu0 %4215
      %v4217 = vmax.f32 %v4071, %v4073
      %4218 = vmax.xlane.f32.xlu0 %v4217
      %v4219 = vpop.xlane.xlu0 %4218
      %v4220 = vmax.f32 %v4075, %v4077
      %4221 = vmax.xlane.f32.xlu0 %v4220
      %v4222 = vpop.xlane.xlu0 %4221
      %v4223 = vmax.f32 %v4081, %v4083
      %4224 = vmax.xlane.f32.xlu0 %v4223
      %v4225 = vpop.xlane.xlu0 %4224
      %v4226 = vmax.f32 %v4085, %v4087
      %4227 = vmax.xlane.f32.xlu0 %v4226
      %v4228 = vpop.xlane.xlu0 %4227
      %v4229 = vmax.f32 %v4091, %v4093
      %4230 = vmax.xlane.f32.xlu0 %v4229
      %v4231 = vpop.xlane.xlu0 %4230
      %v4232 = vmax.f32 %v4095, %v4097
      %4233 = vmax.xlane.f32.xlu0 %v4232
      %v4234 = vpop.xlane.xlu0 %4233
      %v4235 = vmax.f32 %v4101, %v4103
      %4236 = vmax.xlane.f32.xlu0 %v4235
      %v4237 = vpop.xlane.xlu0 %4236
      %v4238 = vmax.f32 %v4105, %v4107
      %4239 = vmax.xlane.f32.xlu0 %v4238
      %v4240 = vpop.xlane.xlu0 %4239
      %v4241 = vmax.f32 %v4111, %v4113
      %4242 = vmax.xlane.f32.xlu0 %v4241
      %v4243 = vpop.xlane.xlu0 %4242
      %v4244 = vmax.f32 %v4115, %v4117
      %4245 = vmax.xlane.f32.xlu0 %v4244
      %v4246 = vpop.xlane.xlu0 %4245
      %v4247 = vmax.f32 %v4121, %v4123
      %4248 = vmax.xlane.f32.xlu0 %v4247
      %v4249 = vpop.xlane.xlu0 %4248
      %v4250 = vmax.f32 %v4125, %v4127
      %4251 = vmax.xlane.f32.xlu0 %v4250
      %v4252 = vpop.xlane.xlu0 %4251
      %v4253 = vmax.f32 %v4131, %v4133
      %4254 = vmax.xlane.f32.xlu0 %v4253
      %v4255 = vpop.xlane.xlu0 %4254
      %v4256 = vmax.f32 %v4135, %v4137
      %4257 = vmax.xlane.f32.xlu0 %v4256
      %v4258 = vpop.xlane.xlu0 %4257
      %v4259 = vmax.f32 %v4141, %v4143
      %4260 = vmax.xlane.f32.xlu0 %v4259
      %v4261 = vpop.xlane.xlu0 %4260
      %v4262 = vmax.f32 %v4145, %v4147
      %4263 = vmax.xlane.f32.xlu0 %v4262
      %v4264 = vpop.xlane.xlu0 %4263
      %v4265 = vmax.f32 %v4151, %v4153
      %4266 = vmax.xlane.f32.xlu0 %v4265
      %v4267 = vpop.xlane.xlu0 %4266
      %v4268 = vmax.f32 %v4155, %v4157
      %4269 = vmax.xlane.f32.xlu0 %v4268
      %v4270 = vpop.xlane.xlu0 %4269
      %v4271 = vmax.f32 %v4161, %v4163
      %4272 = vmax.xlane.f32.xlu0 %v4271
      %v4273 = vpop.xlane.xlu0 %4272
      %v4274 = vmax.f32 %v4165, %v4167
      %4275 = vmax.xlane.f32.xlu0 %v4274
      %v4276 = vpop.xlane.xlu0 %4275
      %v4277 = vmax.f32 %v4171, %v4173
      %4278 = vmax.xlane.f32.xlu0 %v4277
      %v4279 = vpop.xlane.xlu0 %4278
      %v4280 = vmax.f32 %v4175, %v4177
      %4281 = vmax.xlane.f32.xlu0 %v4280
      %v4282 = vpop.xlane.xlu0 %4281
      %v4283 = vmax.f32 %v4181, %v4183
      %4284 = vmax.xlane.f32.xlu0 %v4283
      %v4285 = vpop.xlane.xlu0 %4284
      %v4286 = vmax.f32 %v4185, %v4187
      %4287 = vmax.xlane.f32.xlu0 %v4286
      %v4288 = vpop.xlane.xlu0 %4287
      %v4289 = vmax.f32 %v4191, %v4193
      %4290 = vmax.xlane.f32.xlu0 %v4289
      %v4291 = vpop.xlane.xlu0 %4290
      %v4292 = vmax.f32 %v4195, %v4197
      %4293 = vmax.xlane.f32.xlu0 %v4292
      %v4294 = vpop.xlane.xlu0 %4293
      %v4295 = vsub.f32 %v4041, %v4201
      %v4296 = vsub.f32 %v4043, %v4201
      %v4297 = vsub.f32 %v4045, %v4204
      %v4298 = vsub.f32 %v4047, %v4204
      %v4299 = vsub.f32 %v4051, %v4207
      %v4300 = vsub.f32 %v4053, %v4207
      %v4301 = vsub.f32 %v4055, %v4210
      %v4302 = vsub.f32 %v4057, %v4210
      %v4303 = vsub.f32 %v4061, %v4213
      %v4304 = vsub.f32 %v4063, %v4213
      %v4305 = vsub.f32 %v4065, %v4216
      %v4306 = vsub.f32 %v4067, %v4216
      %v4307 = vsub.f32 %v4071, %v4219
      %v4308 = vsub.f32 %v4073, %v4219
      %v4309 = vsub.f32 %v4075, %v4222
      %v4310 = vsub.f32 %v4077, %v4222
      %v4311 = vsub.f32 %v4081, %v4225
      %v4312 = vsub.f32 %v4083, %v4225
      %v4313 = vsub.f32 %v4085, %v4228
      %v4314 = vsub.f32 %v4087, %v4228
      %v4315 = vsub.f32 %v4091, %v4231
      %v4316 = vsub.f32 %v4093, %v4231
      %v4317 = vsub.f32 %v4095, %v4234
      %v4318 = vsub.f32 %v4097, %v4234
      %v4319 = vsub.f32 %v4101, %v4237
      %v4320 = vsub.f32 %v4103, %v4237
      %v4321 = vsub.f32 %v4105, %v4240
      %v4322 = vsub.f32 %v4107, %v4240
      %v4323 = vsub.f32 %v4111, %v4243
      %v4324 = vsub.f32 %v4113, %v4243
      %v4325 = vsub.f32 %v4115, %v4246
      %v4326 = vsub.f32 %v4117, %v4246
      %v4327 = vsub.f32 %v4121, %v4249
      %v4328 = vsub.f32 %v4123, %v4249
      %v4329 = vsub.f32 %v4125, %v4252
      %v4330 = vsub.f32 %v4127, %v4252
      %v4331 = vsub.f32 %v4131, %v4255
      %v4332 = vsub.f32 %v4133, %v4255
      %v4333 = vsub.f32 %v4135, %v4258
      %v4334 = vsub.f32 %v4137, %v4258
      %v4335 = vsub.f32 %v4141, %v4261
      %v4336 = vsub.f32 %v4143, %v4261
      %v4337 = vsub.f32 %v4145, %v4264
      %v4338 = vsub.f32 %v4147, %v4264
      %v4339 = vsub.f32 %v4151, %v4267
      %v4340 = vsub.f32 %v4153, %v4267
      %v4341 = vsub.f32 %v4155, %v4270
      %v4342 = vsub.f32 %v4157, %v4270
      %v4343 = vsub.f32 %v4161, %v4273
      %v4344 = vsub.f32 %v4163, %v4273
      %v4345 = vsub.f32 %v4165, %v4276
      %v4346 = vsub.f32 %v4167, %v4276
      %v4347 = vsub.f32 %v4171, %v4279
      %v4348 = vsub.f32 %v4173, %v4279
      %v4349 = vsub.f32 %v4175, %v4282
      %v4350 = vsub.f32 %v4177, %v4282
      %v4351 = vsub.f32 %v4181, %v4285
      %v4352 = vsub.f32 %v4183, %v4285
      %v4353 = vsub.f32 %v4185, %v4288
      %v4354 = vsub.f32 %v4187, %v4288
      %v4355 = vsub.f32 %v4191, %v4291
      %v4356 = vsub.f32 %v4193, %v4291
      %v4357 = vsub.f32 %v4195, %v4294
      %v4358 = vsub.f32 %v4197, %v4294
      %v4359 = vmul.f32 %v4295, 1.442695
      %v4360 = vpow.pop %v4359
      %v4361 = vmul.f32 %v4296, 1.442695
      %v4362 = vpow.pop %v4361
      %v4363 = vmul.f32 %v4297, 1.442695
      %v4364 = vpow.pop %v4363
      %v4365 = vmul.f32 %v4298, 1.442695
      %v4366 = vpow.pop %v4365
      %v4367 = vmul.f32 %v4299, 1.442695
      %v4368 = vpow.pop %v4367
      %v4369 = vmul.f32 %v4300, 1.442695
      %v4370 = vpow.pop %v4369
      %v4371 = vmul.f32 %v4301, 1.442695
      %v4372 = vpow.pop %v4371
      %v4373 = vmul.f32 %v4302, 1.442695
      %v4374 = vpow.pop %v4373
      %v4375 = vmul.f32 %v4303, 1.442695
      %v4376 = vpow.pop %v4375
      %v4377 = vmul.f32 %v4304, 1.442695
      %v4378 = vpow.pop %v4377
      %v4379 = vmul.f32 %v4305, 1.442695
      %v4380 = vpow.pop %v4379
      %v4381 = vmul.f32 %v4306, 1.442695
      %v4382 = vpow.pop %v4381
      %v4383 = vmul.f32 %v4307, 1.442695
      %v4384 = vpow.pop %v4383
      %v4385 = vmul.f32 %v4308, 1.442695
      %v4386 = vpow.pop %v4385
      %v4387 = vmul.f32 %v4309, 1.442695
      %v4388 = vpow.pop %v4387
      %v4389 = vmul.f32 %v4310, 1.442695
      %v4390 = vpow.pop %v4389
      %v4391 = vmul.f32 %v4311, 1.442695
      %v4392 = vpow.pop %v4391
      %v4393 = vmul.f32 %v4312, 1.442695
      %v4394 = vpow.pop %v4393
      %v4395 = vmul.f32 %v4313, 1.442695
      %v4396 = vpow.pop %v4395
      %v4397 = vmul.f32 %v4314, 1.442695
      %v4398 = vpow.pop %v4397
      %v4399 = vmul.f32 %v4315, 1.442695
      %v4400 = vpow.pop %v4399
      %v4401 = vmul.f32 %v4316, 1.442695
      %v4402 = vpow.pop %v4401
      %v4403 = vmul.f32 %v4317, 1.442695
      %v4404 = vpow.pop %v4403
      %v4405 = vmul.f32 %v4318, 1.442695
      %v4406 = vpow.pop %v4405
      %v4407 = vmul.f32 %v4319, 1.442695
      %v4408 = vpow.pop %v4407
      %v4409 = vmul.f32 %v4320, 1.442695
      %v4410 = vpow.pop %v4409
      %v4411 = vmul.f32 %v4321, 1.442695
      %v4412 = vpow.pop %v4411
      %v4413 = vmul.f32 %v4322, 1.442695
      %v4414 = vpow.pop %v4413
      %v4415 = vmul.f32 %v4323, 1.442695
      %v4416 = vpow.pop %v4415
      %v4417 = vmul.f32 %v4324, 1.442695
      %v4418 = vpow.pop %v4417
      %v4419 = vmul.f32 %v4325, 1.442695
      %v4420 = vpow.pop %v4419
      %v4421 = vmul.f32 %v4326, 1.442695
      %v4422 = vpow.pop %v4421
      %v4423 = vmul.f32 %v4327, 1.442695
      %v4424 = vpow.pop %v4423
      %v4425 = vmul.f32 %v4328, 1.442695
      %v4426 = vpow.pop %v4425
      %v4427 = vmul.f32 %v4329, 1.442695
      %v4428 = vpow.pop %v4427
      %v4429 = vmul.f32 %v4330, 1.442695
      %v4430 = vpow.pop %v4429
      %v4431 = vmul.f32 %v4331, 1.442695
      %v4432 = vpow.pop %v4431
      %v4433 = vmul.f32 %v4332, 1.442695
      %v4434 = vpow.pop %v4433
      %v4435 = vmul.f32 %v4333, 1.442695
      %v4436 = vpow.pop %v4435
      %v4437 = vmul.f32 %v4334, 1.442695
      %v4438 = vpow.pop %v4437
      %v4439 = vmul.f32 %v4335, 1.442695
      %v4440 = vpow.pop %v4439
      %v4441 = vmul.f32 %v4336, 1.442695
      %v4442 = vpow.pop %v4441
      %v4443 = vmul.f32 %v4337, 1.442695
      %v4444 = vpow.pop %v4443
      %v4445 = vmul.f32 %v4338, 1.442695
      %v4446 = vpow.pop %v4445
      %v4447 = vmul.f32 %v4339, 1.442695
      %v4448 = vpow.pop %v4447
      %v4449 = vmul.f32 %v4340, 1.442695
      %v4450 = vpow.pop %v4449
      %v4451 = vmul.f32 %v4341, 1.442695
      %v4452 = vpow.pop %v4451
      %v4453 = vmul.f32 %v4342, 1.442695
      %v4454 = vpow.pop %v4453
      %v4455 = vmul.f32 %v4343, 1.442695
      %v4456 = vpow.pop %v4455
      %v4457 = vmul.f32 %v4344, 1.442695
      %v4458 = vpow.pop %v4457
      %v4459 = vmul.f32 %v4345, 1.442695
      %v4460 = vpow.pop %v4459
      %v4461 = vmul.f32 %v4346, 1.442695
      %v4462 = vpow.pop %v4461
      %v4463 = vmul.f32 %v4347, 1.442695
      %v4464 = vpow.pop %v4463
      %v4465 = vmul.f32 %v4348, 1.442695
      %v4466 = vpow.pop %v4465
      %v4467 = vmul.f32 %v4349, 1.442695
      %v4468 = vpow.pop %v4467
      %v4469 = vmul.f32 %v4350, 1.442695
      %v4470 = vpow.pop %v4469
      %v4471 = vmul.f32 %v4351, 1.442695
      %v4472 = vpow.pop %v4471
      %v4473 = vmul.f32 %v4352, 1.442695
      %v4474 = vpow.pop %v4473
      %v4475 = vmul.f32 %v4353, 1.442695
      %v4476 = vpow.pop %v4475
      %v4477 = vmul.f32 %v4354, 1.442695
      %v4478 = vpow.pop %v4477
      %v4479 = vmul.f32 %v4355, 1.442695
      %v4480 = vpow.pop %v4479
      %v4481 = vmul.f32 %v4356, 1.442695
      %v4482 = vpow.pop %v4481
      %v4483 = vmul.f32 %v4357, 1.442695
      %v4484 = vpow.pop %v4483
      %v4485 = vmul.f32 %v4358, 1.442695
      %v4486 = vpow.pop %v4485
      %v4487 = vpack.c.bf16 %v3862, %v3856
      %v4488 = vpack.c.bf16 %v3864, %v3858
      %v4489 = vpack.c.bf16 %v4364, %v4360
      %v4490 = vpack.c.bf16 %v4366, %v4362
      %v4491 = vpack.c.bf16 %v4372, %v4368
      %v4492 = vpack.c.bf16 %v4374, %v4370
      %v4493 = vpack.c.bf16 %v4380, %v4376
      %v4494 = vpack.c.bf16 %v4382, %v4378
      %v4495 = vpack.c.bf16 %v4388, %v4384
      %v4496 = vpack.c.bf16 %v4390, %v4386
      %v4497 = vpack.c.bf16 %v4396, %v4392
      %v4498 = vpack.c.bf16 %v4398, %v4394
      %v4499 = vpack.c.bf16 %v4404, %v4400
      %v4500 = vpack.c.bf16 %v4406, %v4402
      %v4501 = vpack.c.bf16 %v4412, %v4408
      %v4502 = vpack.c.bf16 %v4414, %v4410
      %v4503 = vpack.c.bf16 %v4420, %v4416
      %v4504 = vpack.c.bf16 %v4422, %v4418
      %v4505 = vpack.c.bf16 %v4428, %v4424
      %v4506 = vpack.c.bf16 %v4430, %v4426
      %v4507 = vpack.c.bf16 %v4436, %v4432
      %v4508 = vpack.c.bf16 %v4438, %v4434
      %v4509 = vpack.c.bf16 %v4444, %v4440
      %v4510 = vpack.c.bf16 %v4446, %v4442
      %v4511 = vpack.c.bf16 %v4452, %v4448
      %v4512 = vpack.c.bf16 %v4454, %v4450
      %v4513 = vpack.c.bf16 %v4460, %v4456
      %v4514 = vpack.c.bf16 %v4462, %v4458
      %v4515 = vpack.c.bf16 %v4468, %v4464
      %v4516 = vpack.c.bf16 %v4470, %v4466
      %v4517 = vpack.c.bf16 %v4476, %v4472
      %v4518 = vpack.c.bf16 %v4478, %v4474
      %v4519 = vpack.c.bf16 %v4484, %v4480
      %v4520 = vpack.c.bf16 %v4486, %v4482
      %4521 = vmatprep.subr.bf16.mxu0 %v4490
      %4522 = vmatpush1.bf16.xpose.msra.mxu0 %v4489
      %4523 = vmatprep.subr.bf16.mxu0 %v4492
      %4524 = vmatpush1.bf16.xpose.msra.mxu0 %v4491
      %4525 = vmatprep.subr.bf16.mxu0 %v4494
      %4526 = vmatpush1.bf16.xpose.msra.mxu0 %v4493
      %4527 = vmatprep.subr.bf16.mxu0 %v4496
      %4528 = vmatpush1.bf16.xpose.msra.mxu0 %v4495
      %4529 = vmatprep.subr.bf16.mxu0 %v4498
      %4530 = vmatpush1.bf16.xpose.msra.mxu0 %v4497
      %4531 = vmatprep.subr.bf16.mxu0 %v4500
      %4532 = vmatpush1.bf16.xpose.msra.mxu0 %v4499
      %4533 = vmatprep.subr.bf16.mxu0 %v4502
      %4534 = vmatpush1.bf16.xpose.msra.mxu0 %v4501
      %4535 = vmatprep.subr.bf16.mxu0 %v4504
      %4536 = vmatpush1.bf16.xpose.msra.mxu0 %v4503
      %4537 = vmatprep.subr.bf16.mxu0 %v4506
      %4538 = vmatpush1.bf16.xpose.msra.mxu0 %v4505
      %4539 = vmatprep.subr.bf16.mxu0 %v4508
      %4540 = vmatpush1.bf16.xpose.msra.mxu0 %v4507
      %4541 = vmatprep.subr.bf16.mxu0 %v4510
      %4542 = vmatpush1.bf16.xpose.msra.mxu0 %v4509
      %4543 = vmatprep.subr.bf16.mxu0 %v4512
      %4544 = vmatpush1.bf16.xpose.msra.mxu0 %v4511
      %4545 = vmatprep.subr.bf16.mxu0 %v4514
      %4546 = vmatpush1.bf16.xpose.msra.mxu0 %v4513
      %4547 = vmatprep.subr.bf16.mxu0 %v4516
      %4548 = vmatpush1.bf16.xpose.msra.mxu0 %v4515
      %4549 = vmatprep.subr.bf16.mxu0 %v4518
      %4550 = vmatpush1.bf16.xpose.msra.mxu0 %v4517
      %4551 = vmatprep.subr.bf16.mxu0 %v4520
      %4552 = vmatpush1.bf16.xpose.msra.mxu0 %v4519
      %4553 = vmatprep.mubr.bf16.mxu0 %v4488
      %4554 = vmatmul.mubr.bf16.gmra.mrb[0].mxu0 %v4487
      %v4555 = vpop.f32.mrb[0].mxu0
      %v4556 = vadd.f32 0.0, %v4555
      %v4557 = vpop.f32.mrb[0].mxu0
      %v4558 = vadd.f32 0.0, %v4557
      %v4559 = vpop.f32.mrb[0].mxu0
      %v4560 = vadd.f32 0.0, %v4559
      %v4561 = vpop.f32.mrb[0].mxu0
      %v4562 = vadd.f32 0.0, %v4561
      %4563 = vmatprep.mubr.bf16.mxu0 1065369472
      %4564 = vmatmul.mubr.bf16.gmra.mrb[0].mxu0 1065369472
      %v4565 = vpop.f32.mrb[0].mxu0
      %v4566 = vadd.f32 0.0, %v4565
      %v4567 = vpop.f32.mrb[0].mxu0
      %v4568 = vadd.f32 0.0, %v4567
      %v4569 = vpop.f32.mrb[0].mxu0
      %v4570 = vpop.f32.mrb[0].mxu0
      %4571 = vdwg.mxu0
      %v4572 = vrcp.pop %v4566
      %v4573 = vrcp.pop %v4568
      %v4574 = vlaneseq
      %v4575 = vshrl.u32 %v4574, 7
      %v4576 = vsub.s32 0, %v4575
      %v4577 = vrot.slane %v4572, %v4576
      %v4578 = vlaneseq
      %v4579 = vshrl.u32 %v4578, 7
      %v4580 = vsub.s32 0, %v4579
      %v4581 = vrot.slane %v4573, %v4580
      %v4582 = vmul.f32 %v4556, %v4577
      %v4583 = vmul.f32 %v4558, %v4581
      %v4584 = vmul.f32 %v4560, %v4577
      %v4585 = vmul.f32 %v4562, %v4581
      %4587 = vset.pattern.permute.xlu0 0
      %4588 = vperm.xlu0 %4587, %v3868
      %v4589 = vpop.permute.xlu0 %4588
      %4592 = vset.pattern.permute.xlu0 0
      %4593 = vperm.xlu0 %4592, %v3869
      %v4594 = vpop.permute.xlu0 %4593
      %v4596 = vadd.f32 %v4582, %v4589
      %v4597 = vadd.f32 %v4583, %v4589
      %v4598 = vadd.f32 %v4584, %v4594
      %v4599 = vadd.f32 %v4585, %v4594
      %v4600 = vadd.f32 %v4596, %v2545
      %v4601 = vadd.f32 %v4597, %v2546
      %v4602 = vadd.f32 %v4598, %v2547
      %v4603 = vadd.f32 %v4599, %v2548
      %v4604 = vpack.c.bf16 %v4602, %v4600
      %v4605 = vpack.c.bf16 %v4603, %v4601
      %4608 = vrot.lane.b32.xlu0 %v4604, 17
      %v4609 = vpop.permute.xlu0 %4608
      %4610 = vrot.lane.b32.xlu0 %v4605, 17
      %v4611 = vpop.permute.xlu0 %4610
      %v4612 = vsel %vm632, %v4609, %v4611
      %v4615 = vsel %vm635, 0, %v4609
      %v4617 = vsel %vm654, %v4615, 0
      %v4618 = vsel %vm655, %v4612, 0
      %4619 = vrot.lane.b32.xlu0 %v4604, 16
      %v4620 = vpop.permute.xlu0 %4619
      %4621 = vrot.lane.b32.xlu0 %v4605, 16
      %v4622 = vpop.permute.xlu0 %4621
      %v4623 = vsel %vm662, %v4620, %v4622
      %v4626 = vsel %vm665, 0, %v4620
      %4628 = vrot.lane.b32.xlu0 %v4604, 15
      %v4629 = vpop.permute.xlu0 %4628
      %4630 = vrot.lane.b32.xlu0 %v4605, 15
      %v4631 = vpop.permute.xlu0 %4630
      %v4632 = vsel %vm673, %v4629, %v4631
      %v4635 = vsel %vm676, 0, %v4629
      %v4637 = vsel %vm694, %v4635, 0
      %v4638 = vsel %vm695, %v4632, 0
      %4639 = vrot.lane.b32.xlu0 %v4604, 1
      %v4640 = vpop.permute.xlu0 %4639
      %4641 = vrot.lane.b32.xlu0 %v4605, 1
      %v4642 = vpop.permute.xlu0 %4641
      %v4643 = vsel %vm702, %v4640, %v4642
      %v4646 = vsel %vm705, 0, %v4640
      %v4648 = vsel %vm654, %v4646, 0
      %v4649 = vsel %vm655, %v4643, 0
      %4650 = vrot.lane.b32.xlu0 %v4604, 127
      %v4651 = vpop.permute.xlu0 %4650
      %4652 = vrot.lane.b32.xlu0 %v4605, 127
      %v4653 = vpop.permute.xlu0 %4652
      %v4654 = vsel %vm715, %v4651, %v4653
      %v4657 = vsel %vm718, %v4653, 0
      %v4659 = vsel %vm694, %v4654, 0
      %v4660 = vsel %vm695, %v4657, 0
      %4661 = vrot.lane.b32.xlu0 %v4604, 113
      %v4662 = vpop.permute.xlu0 %4661
      %4663 = vrot.lane.b32.xlu0 %v4605, 113
      %v4664 = vpop.permute.xlu0 %4663
      %v4665 = vsel %vm728, %v4662, %v4664
      %v4668 = vsel %vm731, %v4664, 0
      %v4670 = vsel %vm654, %v4665, 0
      %v4671 = vsel %vm655, %v4668, 0
      %4672 = vrot.lane.b32.xlu0 %v4604, 112
      %v4673 = vpop.permute.xlu0 %4672
      %4674 = vrot.lane.b32.xlu0 %v4605, 112
      %v4675 = vpop.permute.xlu0 %4674
      %v4676 = vsel %vm741, %v4673, %v4675
      %v4679 = vsel %vm744, %v4675, 0
      %4681 = vrot.lane.b32.xlu0 %v4604, 111
      %v4682 = vpop.permute.xlu0 %4681
      %4683 = vrot.lane.b32.xlu0 %v4605, 111
      %v4684 = vpop.permute.xlu0 %4683
      %v4685 = vsel %vm752, %v4682, %v4684
      %v4688 = vsel %vm755, %v4684, 0
      %v4690 = vsel %vm694, %v4685, 0
      %v4691 = vsel %vm695, %v4688, 0
      %4693 = vset.pattern.permute.xlu0 0
      %4694 = vperm.xlu0 %4693, %v612
      %v4695 = vpop.permute.xlu0 %4694
      %4698 = vset.pattern.permute.xlu0 0
      %4699 = vperm.xlu0 %4698, %v613
      %v4700 = vpop.permute.xlu0 %4699
      %v4704 = vunpack.c.l.b16 %v574
      %v4705 = vunpack.c.h.b16 %v574
      %v4706 = vunpack.c.l.b16 %v575
      %v4707 = vunpack.c.h.b16 %v575
      %v4708 = vpack.c.b16 %v4706, %v4704
      %v4709 = vpack.c.b16 %v4707, %v4705
      %v4712 = vsel %vm665, %v4709, 0
      %4714 = vmatprep.subr.bf16.mxu0 %v4618
      %4715 = vmatpush1.bf16.msra.mxu0 %v4617
      %4716 = vmatprep.subr.bf16.mxu0 %v4623
      %4717 = vmatpush1.bf16.msra.mxu0 %v4626
      %4718 = vmatprep.subr.bf16.mxu0 %v4638
      %4719 = vmatpush1.bf16.msra.mxu0 %v4637
      %4720 = vmatprep.subr.bf16.mxu0 %v4649
      %4721 = vmatpush1.bf16.msra.mxu0 %v4648
      %4722 = vmatprep.subr.bf16.mxu0 %v4605
      %4723 = vmatpush1.bf16.msra.mxu0 %v4604
      %4724 = vmatprep.subr.bf16.mxu0 %v4660
      %4725 = vmatpush1.bf16.msra.mxu0 %v4659
      %4726 = vmatprep.subr.bf16.mxu0 %v4671
      %4727 = vmatpush1.bf16.msra.mxu0 %v4670
      %4728 = vmatprep.subr.bf16.mxu0 %v4679
      %4729 = vmatpush1.bf16.msra.mxu0 %v4676
      %4730 = vmatprep.subr.bf16.mxu0 %v4691
      %4731 = vmatpush1.bf16.msra.mxu0 %v4690
      %4732 = vmatprep.subr.bf16.mxu0 0
      %4733 = vmatpush1.bf16.msra.mxu0 0
      %4734 = vmatprep.subr.bf16.mxu0 0
      %4735 = vmatpush1.bf16.msra.mxu0 0
      %4736 = vmatprep.subr.bf16.mxu0 0
      %4737 = vmatpush1.bf16.msra.mxu0 0
      %4738 = vmatprep.subr.bf16.mxu0 0
      %4739 = vmatpush1.bf16.msra.mxu0 0
      %4740 = vmatprep.subr.bf16.mxu0 0
      %4741 = vmatpush1.bf16.msra.mxu0 0
      %4742 = vmatprep.subr.bf16.mxu0 0
      %4743 = vmatpush1.bf16.msra.mxu0 0
      %4744 = vmatprep.subr.bf16.mxu0 0
      %4745 = vmatpush1.bf16.msra.mxu0 0
      %4746 = vmatprep.mubr.bf16.mxu0 %v4712
      %4747 = vmatmul.mubr.bf16.gmra.mrb[0].mxu0 %v4708
      %v4748 = vpop.f32.mrb[0].mxu0
      %v4749 = vadd.f32 %v4695, %v4748
      %v4750 = vpop.f32.mrb[0].mxu0
      %v4751 = vadd.f32 %v4695, %v4750
      %v4752 = vpop.f32.mrb[0].mxu0
      %v4753 = vadd.f32 %v4700, %v4752
      %v4754 = vpop.f32.mrb[0].mxu0
      %v4755 = vadd.f32 %v4700, %v4754
      %4756 = vdwg.mxu0
      %v4757 = vmax.f32 %v4749, 0.0
      %v4758 = vmax.f32 %v4751, 0.0
      %v4759 = vmax.f32 %v4753, 0.0
      %v4760 = vmax.f32 %v4755, 0.0
      %v4761 = vadd.f32 %v983, %v4757
      %v4762 = vadd.f32 %v984, %v4758
      %v4763 = vadd.f32 %v985, %v4759
      %v4764 = vadd.f32 %v986, %v4760
      %v4765 = vpack.c.bf16 %v4763, %v4761
      %v4766 = vpack.c.bf16 %v4764, %v4762
      %4769 = vrot.lane.b32.xlu0 %v4765, 17
      %v4770 = vpop.permute.xlu0 %4769
      %4771 = vrot.lane.b32.xlu0 %v4766, 17
      %v4772 = vpop.permute.xlu0 %4771
      %v4773 = vsel %vm632, %v4770, %v4772
      %v4776 = vsel %vm635, 0, %v4770
      %v4778 = vsel %vm654, %v4776, 0
      %v4779 = vsel %vm655, %v4773, 0
      %4780 = vrot.lane.b32.xlu0 %v4765, 16
      %v4781 = vpop.permute.xlu0 %4780
      %4782 = vrot.lane.b32.xlu0 %v4766, 16
      %v4783 = vpop.permute.xlu0 %4782
      %v4784 = vsel %vm662, %v4781, %v4783
      %v4787 = vsel %vm665, 0, %v4781
      %4789 = vrot.lane.b32.xlu0 %v4765, 15
      %v4790 = vpop.permute.xlu0 %4789
      %4791 = vrot.lane.b32.xlu0 %v4766, 15
      %v4792 = vpop.permute.xlu0 %4791
      %v4793 = vsel %vm673, %v4790, %v4792
      %v4796 = vsel %vm676, 0, %v4790
      %v4798 = vsel %vm694, %v4796, 0
      %v4799 = vsel %vm695, %v4793, 0
      %4800 = vrot.lane.b32.xlu0 %v4765, 1
      %v4801 = vpop.permute.xlu0 %4800
      %4802 = vrot.lane.b32.xlu0 %v4766, 1
      %v4803 = vpop.permute.xlu0 %4802
      %v4804 = vsel %vm702, %v4801, %v4803
      %v4807 = vsel %vm705, 0, %v4801
      %v4809 = vsel %vm654, %v4807, 0
      %v4810 = vsel %vm655, %v4804, 0
      %4811 = vrot.lane.b32.xlu0 %v4765, 127
      %v4812 = vpop.permute.xlu0 %4811
      %4813 = vrot.lane.b32.xlu0 %v4766, 127
      %v4814 = vpop.permute.xlu0 %4813
      %v4815 = vsel %vm715, %v4812, %v4814
      %v4818 = vsel %vm718, %v4814, 0
      %v4820 = vsel %vm694, %v4815, 0
      %v4821 = vsel %vm695, %v4818, 0
      %4822 = vrot.lane.b32.xlu0 %v4765, 113
      %v4823 = vpop.permute.xlu0 %4822
      %4824 = vrot.lane.b32.xlu0 %v4766, 113
      %v4825 = vpop.permute.xlu0 %4824
      %v4826 = vsel %vm728, %v4823, %v4825
      %v4829 = vsel %vm731, %v4825, 0
      %v4831 = vsel %vm654, %v4826, 0
      %v4832 = vsel %vm655, %v4829, 0
      %4833 = vrot.lane.b32.xlu0 %v4765, 112
      %v4834 = vpop.permute.xlu0 %4833
      %4835 = vrot.lane.b32.xlu0 %v4766, 112
      %v4836 = vpop.permute.xlu0 %4835
      %v4837 = vsel %vm741, %v4834, %v4836
      %v4840 = vsel %vm744, %v4836, 0
      %4842 = vrot.lane.b32.xlu0 %v4765, 111
      %v4843 = vpop.permute.xlu0 %4842
      %4844 = vrot.lane.b32.xlu0 %v4766, 111
      %v4845 = vpop.permute.xlu0 %4844
      %v4846 = vsel %vm752, %v4843, %v4845
      %v4849 = vsel %vm755, %v4845, 0
      %v4851 = vsel %vm694, %v4846, 0
      %v4852 = vsel %vm695, %v4849, 0
      %4854 = vset.pattern.permute.xlu0 0
      %4855 = vperm.xlu0 %4854, %v615
      %v4856 = vpop.permute.xlu0 %4855
      %4859 = vset.pattern.permute.xlu0 0
      %4860 = vperm.xlu0 %4859, %v616
      %v4861 = vpop.permute.xlu0 %4860
      %v4865 = vunpack.c.l.b16 %v577
      %v4866 = vunpack.c.h.b16 %v577
      %v4867 = vunpack.c.l.b16 %v578
      %v4868 = vunpack.c.h.b16 %v578
      %v4869 = vpack.c.b16 %v4867, %v4865
      %v4870 = vpack.c.b16 %v4868, %v4866
      %v4873 = vsel %vm665, %v4870, 0
      %4875 = vmatprep.subr.bf16.mxu0 %v4779
      %4876 = vmatpush1.bf16.msra.mxu0 %v4778
      %4877 = vmatprep.subr.bf16.mxu0 %v4784
      %4878 = vmatpush1.bf16.msra.mxu0 %v4787
      %4879 = vmatprep.subr.bf16.mxu0 %v4799
      %4880 = vmatpush1.bf16.msra.mxu0 %v4798
      %4881 = vmatprep.subr.bf16.mxu0 %v4810
      %4882 = vmatpush1.bf16.msra.mxu0 %v4809
      %4883 = vmatprep.subr.bf16.mxu0 %v4766
      %4884 = vmatpush1.bf16.msra.mxu0 %v4765
      %4885 = vmatprep.subr.bf16.mxu0 %v4821
      %4886 = vmatpush1.bf16.msra.mxu0 %v4820
      %4887 = vmatprep.subr.bf16.mxu0 %v4832
      %4888 = vmatpush1.bf16.msra.mxu0 %v4831
      %4889 = vmatprep.subr.bf16.mxu0 %v4840
      %4890 = vmatpush1.bf16.msra.mxu0 %v4837
      %4891 = vmatprep.subr.bf16.mxu0 %v4852
      %4892 = vmatpush1.bf16.msra.mxu0 %v4851
      %4893 = vmatprep.subr.bf16.mxu0 0
      %4894 = vmatpush1.bf16.msra.mxu0 0
      %4895 = vmatprep.subr.bf16.mxu0 0
      %4896 = vmatpush1.bf16.msra.mxu0 0
      %4897 = vmatprep.subr.bf16.mxu0 0
      %4898 = vmatpush1.bf16.msra.mxu0 0
      %4899 = vmatprep.subr.bf16.mxu0 0
      %4900 = vmatpush1.bf16.msra.mxu0 0
      %4901 = vmatprep.subr.bf16.mxu0 0
      %4902 = vmatpush1.bf16.msra.mxu0 0
      %4903 = vmatprep.subr.bf16.mxu0 0
      %4904 = vmatpush1.bf16.msra.mxu0 0
      %4905 = vmatprep.subr.bf16.mxu0 0
      %4906 = vmatpush1.bf16.msra.mxu0 0
      %4907 = vmatprep.mubr.bf16.mxu0 %v4873
      %4908 = vmatmul.mubr.bf16.gmra.mrb[0].mxu0 %v4869
      %v4909 = vpop.f32.mrb[0].mxu0
      %v4910 = vadd.f32 %v4856, %v4909
      %v4911 = vpop.f32.mrb[0].mxu0
      %v4912 = vadd.f32 %v4856, %v4911
      %v4913 = vpop.f32.mrb[0].mxu0
      %v4914 = vadd.f32 %v4861, %v4913
      %v4915 = vpop.f32.mrb[0].mxu0
      %v4916 = vadd.f32 %v4861, %v4915
      %4917 = vdwg.mxu0
      %v4918 = vmax.f32 %v4910, 0.0
      %v4919 = vmax.f32 %v4912, 0.0
      %v4920 = vmax.f32 %v4914, 0.0
      %v4921 = vmax.f32 %v4916, 0.0
      %v4922 = vpack.c.bf16 %v4920, %v4918
      %v4923 = vpack.c.bf16 %v4921, %v4919
      %4926 = vrot.lane.b32.xlu0 %v4922, 17
      %v4927 = vpop.permute.xlu0 %4926
      %4928 = vrot.lane.b32.xlu0 %v4923, 17
      %v4929 = vpop.permute.xlu0 %4928
      %v4930 = vsel %vm632, %v4927, %v4929
      %v4933 = vsel %vm635, 0, %v4927
      %v4935 = vsel %vm654, %v4933, 0
      %v4936 = vsel %vm655, %v4930, 0
      %4937 = vrot.lane.b32.xlu0 %v4922, 16
      %v4938 = vpop.permute.xlu0 %4937
      %4939 = vrot.lane.b32.xlu0 %v4923, 16
      %v4940 = vpop.permute.xlu0 %4939
      %v4941 = vsel %vm662, %v4938, %v4940
      %v4944 = vsel %vm665, 0, %v4938
      %4946 = vrot.lane.b32.xlu0 %v4922, 15
      %v4947 = vpop.permute.xlu0 %4946
      %4948 = vrot.lane.b32.xlu0 %v4923, 15
      %v4949 = vpop.permute.xlu0 %4948
      %v4950 = vsel %vm673, %v4947, %v4949
      %v4953 = vsel %vm676, 0, %v4947
      %v4955 = vsel %vm694, %v4953, 0
      %v4956 = vsel %vm695, %v4950, 0
      %4957 = vrot.lane.b32.xlu0 %v4922, 1
      %v4958 = vpop.permute.xlu0 %4957
      %4959 = vrot.lane.b32.xlu0 %v4923, 1
      %v4960 = vpop.permute.xlu0 %4959
      %v4961 = vsel %vm702, %v4958, %v4960
      %v4964 = vsel %vm705, 0, %v4958
      %v4966 = vsel %vm654, %v4964, 0
      %v4967 = vsel %vm655, %v4961, 0
      %4968 = vrot.lane.b32.xlu0 %v4922, 127
      %v4969 = vpop.permute.xlu0 %4968
      %4970 = vrot.lane.b32.xlu0 %v4923, 127
      %v4971 = vpop.permute.xlu0 %4970
      %v4972 = vsel %vm715, %v4969, %v4971
      %v4975 = vsel %vm718, %v4971, 0
      %v4977 = vsel %vm694, %v4972, 0
      %v4978 = vsel %vm695, %v4975, 0
      %4979 = vrot.lane.b32.xlu0 %v4922, 113
      %v4980 = vpop.permute.xlu0 %4979
      %4981 = vrot.lane.b32.xlu0 %v4923, 113
      %v4982 = vpop.permute.xlu0 %4981
      %v4983 = vsel %vm728, %v4980, %v4982
      %v4986 = vsel %vm731, %v4982, 0
      %v4988 = vsel %vm654, %v4983, 0
      %v4989 = vsel %vm655, %v4986, 0
      %4990 = vrot.lane.b32.xlu0 %v4922, 112
      %v4991 = vpop.permute.xlu0 %4990
      %4992 = vrot.lane.b32.xlu0 %v4923, 112
      %v4993 = vpop.permute.xlu0 %4992
      %v4994 = vsel %vm741, %v4991, %v4993
      %v4997 = vsel %vm744, %v4993, 0
      %4999 = vrot.lane.b32.xlu0 %v4922, 111
      %v5000 = vpop.permute.xlu0 %4999
      %5001 = vrot.lane.b32.xlu0 %v4923, 111
      %v5002 = vpop.permute.xlu0 %5001
      %v5003 = vsel %vm752, %v5000, %v5002
      %v5006 = vsel %vm755, %v5002, 0
      %v5008 = vsel %vm694, %v5003, 0
      %v5009 = vsel %vm695, %v5006, 0
      %5011 = vset.pattern.permute.xlu0 0
      %5012 = vperm.xlu0 %5011, %v618
      %v5013 = vpop.permute.xlu0 %5012
      %5016 = vset.pattern.permute.xlu0 0
      %5017 = vperm.xlu0 %5016, %v619
      %v5018 = vpop.permute.xlu0 %5017
      %v5022 = vunpack.c.l.b16 %v580
      %v5023 = vunpack.c.h.b16 %v580
      %v5024 = vunpack.c.l.b16 %v581
      %v5025 = vunpack.c.h.b16 %v581
      %v5026 = vpack.c.b16 %v5024, %v5022
      %v5027 = vpack.c.b16 %v5025, %v5023
      %v5030 = vsel %vm665, %v5027, 0
      %5032 = vmatprep.subr.bf16.mxu0 %v4936
      %5033 = vmatpush1.bf16.msra.mxu0 %v4935
      %5034 = vmatprep.subr.bf16.mxu0 %v4941
      %5035 = vmatpush1.bf16.msra.mxu0 %v4944
      %5036 = vmatprep.subr.bf16.mxu0 %v4956
      %5037 = vmatpush1.bf16.msra.mxu0 %v4955
      %5038 = vmatprep.subr.bf16.mxu0 %v4967
      %5039 = vmatpush1.bf16.msra.mxu0 %v4966
      %5040 = vmatprep.subr.bf16.mxu0 %v4923
      %5041 = vmatpush1.bf16.msra.mxu0 %v4922
      %5042 = vmatprep.subr.bf16.mxu0 %v4978
      %5043 = vmatpush1.bf16.msra.mxu0 %v4977
      %5044 = vmatprep.subr.bf16.mxu0 %v4989
      %5045 = vmatpush1.bf16.msra.mxu0 %v4988
      %5046 = vmatprep.subr.bf16.mxu0 %v4997
      %5047 = vmatpush1.bf16.msra.mxu0 %v4994
      %5048 = vmatprep.subr.bf16.mxu0 %v5009
      %5049 = vmatpush1.bf16.msra.mxu0 %v5008
      %5050 = vmatprep.subr.bf16.mxu0 0
      %5051 = vmatpush1.bf16.msra.mxu0 0
      %5052 = vmatprep.subr.bf16.mxu0 0
      %5053 = vmatpush1.bf16.msra.mxu0 0
      %5054 = vmatprep.subr.bf16.mxu0 0
      %5055 = vmatpush1.bf16.msra.mxu0 0
      %5056 = vmatprep.subr.bf16.mxu0 0
      %5057 = vmatpush1.bf16.msra.mxu0 0
      %5058 = vmatprep.subr.bf16.mxu0 0
      %5059 = vmatpush1.bf16.msra.mxu0 0
      %5060 = vmatprep.subr.bf16.mxu0 0
      %5061 = vmatpush1.bf16.msra.mxu0 0
      %5062 = vmatprep.subr.bf16.mxu0 0
      %5063 = vmatpush1.bf16.msra.mxu0 0
      %5064 = vmatprep.mubr.bf16.mxu0 %v5030
      %5065 = vmatmul.mubr.bf16.gmra.mrb[0].mxu0 %v5026
      %v5066 = vpop.f32.mrb[0].mxu0
      %v5067 = vadd.f32 %v5013, %v5066
      %v5068 = vpop.f32.mrb[0].mxu0
      %v5069 = vadd.f32 %v5013, %v5068
      %v5070 = vpop.f32.mrb[0].mxu0
      %v5071 = vadd.f32 %v5018, %v5070
      %v5072 = vpop.f32.mrb[0].mxu0
      %v5073 = vadd.f32 %v5018, %v5072
      %5074 = vdwg.mxu0
      %v5075 = vmax.f32 %v5067, 0.0
      %v5076 = vmax.f32 %v5069, 0.0
      %v5077 = vmax.f32 %v5071, 0.0
      %v5078 = vmax.f32 %v5073, 0.0
      %v5079 = vadd.f32 %v620, %v5075
      %v5080 = vadd.f32 %v621, %v5076
      %v5081 = vadd.f32 %v622, %v5077
      %v5082 = vadd.f32 %v623, %v5078
      %5083 = vst [vmem:[%s494] sm:$0xff] %v5079
      %5084 = vst [vmem:[%s494 + $0x8] sm:$0xff] %v5080
      %5085 = vst [vmem:[%s494 + $0x10] sm:$0xff] %v5081
      %5086 = vst [vmem:[%s494 + $0x18] sm:$0xff] %v5082
      %p5087 = scmp.lt.s32.totalorder %s26, 1
      %s5088 = scalar_select %p5087, %s26, 1
      %s5089 = smul.addr %s5088, 4
      %s5090 = smul.addr %s5089, 8
      %s5091 = scalar_lea.vmem %s15, %s5090
      // Predicated region
      $region81: #{basic_module.1} parent=79 // pred_check
        %p5092 = pneg %p364
      $region82: #{basic_module.1} parent=79 // pred_check_branch
        %5094 = sbr.rel (%p5092) target = $region84
      $region83: #{basic_module.1} parent=79 // pred_region
        _
      $region84: #{basic_module.1} parent=79 // pred_fallthru
        _
    $region80: #{basic_module.1} parent=5 // pred_fallthru
      _
    %p5095 = scmp.le.s32.totalorder 2, %s21
    // Predicated region
    $region85: #{basic_module.1} parent=5 // pred_check
      %p5096 = pneg %p5095
    $region86: #{basic_module.1} parent=5 // pred_check_branch
      %5098 = sbr.rel (%p5096) target = $region88
    $region87: #{basic_module.1} parent=5 // pred_region
      %s5099 = ssub.s32 %s21, 2
      // Predicated region
      $region89: #{basic_module.1} parent=87 // pred_check
        %p5100 = pneg %p370
      $region90: #{basic_module.1} parent=87 // pred_check_branch
        %5102 = sbr.rel (%p5100) target = $region92
      $region91: #{basic_module.1} parent=87 // pred_region
        %p5103 = scmp.lt.s32.totalorder %s27, 1
        %s5104 = scalar_select %p5103, %s27, 1
        %s5105 = smul.addr %s5104, 4
        %s5106 = smul.addr %s5105, 8
        %s5107 = scalar_lea.vmem %s15, %s5106
      $region92: #{basic_module.1} parent=87 // pred_fallthru
        _
    $region88: #{basic_module.1} parent=5 // pred_fallthru
      _
  $region6: #{basic_module.1} parent=0 // loop_footer
    %s25 = sadd.s32 1, %s21
  $region7: #{basic_module.1} parent=0 // loop_footer_branch
    %20 = sbr.rel target = $region3
  $region8: #{basic_module.1} parent=0 // loop_exit
    _

</llo_original>
